<compile_context>
chip_gen: v7x
topology: tpu7x:2x2x1
jax: 0.10.0
libtpu: 0.0.40
codegen_flags: <defaults>
</compile_context>

<pallas_src>
import functools

import jax
import jax.numpy as jnp
from jax.experimental import pallas as pl
from jax.experimental.pallas import tpu as pltpu

LN_EPS = 1e-5  # torch nn.LayerNorm default


# ----------------------------- in-kernel math ------------------------------ #

def _erf(x):
    # Abramowitz & Stegun 7.1.26 rational approximation (max abs err ~1.5e-7).
    # Keeps torch's exact-erf nn.GELU semantics without relying on an erf
    # lowering inside Mosaic (exp + polynomial only).
    t = 1.0 / (1.0 + 0.3275911 * jnp.abs(x))
    poly = t * (0.254829592 + t * (-0.284496736 + t * (1.421413741 +
               t * (-1.453152027 + t * 1.061405429))))
    y = 1.0 - poly * jnp.exp(-(x * x))
    return jnp.where(x >= 0.0, y, -y)


def _gelu(x):
    return 0.5 * x * (1.0 + _erf(x * 0.7071067811865476))


# --------------------------- fused stage kernel ---------------------------- #

def _pvt5_stage_kernel(
        # inputs
        cols_ref,                               # (1, N, 9*Cin) f32  im2col slab
        pw_ref, pb_ref, pg_ref, pbe_ref,        # patch-embed GEMM + LN
        n1g_ref, n1b_ref, qkvw_ref, qkvb_ref,   # attn pre-LN + fused q/kv GEMM
        prw_ref, prb_ref,                       # attn output projection
        n2g_ref, n2b_ref, f1w_ref, f1b_ref,     # MLP pre-LN + fc1
        dww_ref, dwb_ref,                       # depthwise 3x3 conv
        f2w_ref, f2b_ref,                       # fc2
        ng_ref, nb_ref,                         # final stage LayerNorm
        # outputs
        o_ref,                                  # (1, N, C) f32
        # scratch
        dwpad_ref,                              # (Ho+2, Wo+2, Cm) f32
        *, depth, num_heads, Ho, Wo, eps):
    N = Ho * Wo
    C = pw_ref.shape[-1]
    d = C // num_heads
    scale = float(d) ** -0.5
    Cm = f1w_ref.shape[-1]

    def ln(x, g, b):
        mu = jnp.mean(x, axis=-1, keepdims=True)
        xc = x - mu
        var = jnp.mean(xc * xc, axis=-1, keepdims=True)
        return xc * jax.lax.rsqrt(var + eps) * g + b

    def mm(a, w_bf16):  # f32 activations -> bf16 MXU operands, f32 accumulation
        return jnp.dot(a.astype(jnp.bfloat16), w_bf16,
                       preferred_element_type=jnp.float32)

    # Zero the padded dwconv scratch once; its interior is rewritten per block,
    # so the border stays zero (= conv zero padding).
    dwpad_ref[...] = jnp.zeros_like(dwpad_ref)

    # ---- OverlapPatchEmbed: im2col GEMM + bias + LayerNorm ----------------- #
    x = mm(cols_ref[0], pw_ref[...]) + pb_ref[...]          # (N, C) f32
    x = ln(x, pg_ref[...], pbe_ref[...])

    for blk in range(depth):
        # ---- attention (sr_ratio == 1) ------------------------------------ #
        h = ln(x, n1g_ref[blk], n1b_ref[blk])
        qkv = mm(h, qkvw_ref[blk]) + qkvb_ref[blk]          # (N, 3C) f32
        heads = []
        for hh in range(num_heads):
            qh = qkv[:, hh * d:(hh + 1) * d].astype(jnp.bfloat16)
            kh = qkv[:, C + hh * d:C + (hh + 1) * d].astype(jnp.bfloat16)
            vh = qkv[:, 2 * C + hh * d:2 * C + (hh + 1) * d].astype(jnp.bfloat16)
            s = jax.lax.dot_general(qh, kh, (((1,), (1,)), ((), ())),
                                    preferred_element_type=jnp.float32) * scale
            s = s - jnp.max(s, axis=-1, keepdims=True)
            p = jnp.exp(s)
            p = p * pl.reciprocal(jnp.sum(p, axis=-1, keepdims=True), approx=True)
            heads.append(jnp.dot(p.astype(jnp.bfloat16), vh,
                                 preferred_element_type=jnp.float32))
        attn = jnp.concatenate(heads, axis=-1)              # (N, C) f32
        x = x + mm(attn, prw_ref[blk]) + prb_ref[blk]

        # ---- MLP: fc1 -> depthwise 3x3 conv -> GELU -> fc2 ----------------- #
        h2 = ln(x, n2g_ref[blk], n2b_ref[blk])
        m = mm(h2, f1w_ref[blk]) + f1b_ref[blk]             # (N, Cm) f32
        dwpad_ref[1:Ho + 1, 1:Wo + 1, :] = m.reshape(Ho, Wo, Cm)
        w3 = dww_ref[blk]                                   # (3, 3, Cm) f32
        acc = jnp.zeros((Ho, Wo, Cm), jnp.float32)
        for di in range(3):
            for dj in range(3):
                acc = acc + (dwpad_ref[di:di + Ho, dj:dj + Wo, :]
                             * w3[di, dj].reshape(1, 1, Cm))
        m = _gelu((acc + dwb_ref[blk]).reshape(N, Cm))
        x = x + mm(m, f2w_ref[blk]) + f2b_ref[blk]

    # ---- final stage LayerNorm --------------------------------------------- #
    o_ref[0] = ln(x, ng_ref[...], nb_ref[...]).astype(o_ref.dtype)


# ------------------------------- wrapper ----------------------------------- #

def pvt5_box_head_forward(x_nchw, params, y=None, *, num_heads=4):
    """Forward of PVT5BoxHead.stage for the single-branch (y=None) path."""
    if y is not None:
        # TODO(synk): SCT-Net cross-attention / branch-embedding path (y is not
        # None) not implemented: its source is not part of the provided module.
        raise NotImplementedError("cross-branch path not implemented")

    B, Cin, H, W = x_nchw.shape
    Ho, Wo = (H + 1) // 2, (W + 1) // 2
    N = Ho * Wo
    C = params['patch_w'].shape[-1]
    Cm = params['blocks'][0]['fc1_w'].shape[-1]
    D = len(params['blocks'])

    # --- glue: NCHW -> NHWC, pad, im2col for the 3x3 / stride-2 patch conv --- #
    # (tiny strided-slice concat in XLA; the GEMM + LN + all blocks are fused
    #  in the single Pallas kernel below)
    x = jnp.transpose(x_nchw, (0, 2, 3, 1))
    xp = jnp.pad(x, ((0, 0), (1, 1), (1, 1), (0, 0)))
    taps = [xp[:, ki:ki + 2 * Ho:2, kj:kj + 2 * Wo:2, :]
            for ki in range(3) for kj in range(3)]
    cols = jnp.concatenate(taps, axis=-1).reshape(B, N, 9 * Cin)

    # --- pack / cast parameters (constant-folded under jit) ----------------- #
    # NOTE: weights are stored (kH, kW, Cin, Cout)/(Cin, Cout); loading PyTorch
    # checkpoints (Cout, Cin, kH, kW) requires explicit transposes.
    bf = lambda a: a.astype(jnp.bfloat16)
    st = lambda k: jnp.stack([blk[k] for blk in params['blocks']])

    patch_w = bf(params['patch_w'].reshape(9 * Cin, C))
    patch_b = params['patch_b'].reshape(1, C)
    patch_g = params['patch_ln_g'].reshape(1, C)
    patch_be = params['patch_ln_b'].reshape(1, C)

    n1_g = st('n1_g').reshape(D, 1, C)
    n1_b = st('n1_b').reshape(D, 1, C)
    qkv_w = bf(jnp.concatenate([st('q_w'), st('kv_w')], axis=-1))   # (D, C, 3C)
    qkv_b = jnp.concatenate([st('q_b'), st('kv_b')], axis=-1).reshape(D, 1, 3 * C)
    proj_w = bf(st('proj_w'))
    proj_b = st('proj_b').reshape(D, 1, C)
    n2_g = st('n2_g').reshape(D, 1, C)
    n2_b = st('n2_b').reshape(D, 1, C)
    fc1_w = bf(st('fc1_w'))
    fc1_b = st('fc1_b').reshape(D, 1, Cm)
    dw_w = st('dw_w')                                               # (D, 3, 3, Cm) f32
    dw_b = st('dw_b').reshape(D, 1, 1, Cm)
    fc2_w = bf(st('fc2_w'))
    fc2_b = st('fc2_b').reshape(D, 1, C)
    norm_g = params['norm_g'].reshape(1, C)
    norm_b = params['norm_b'].reshape(1, C)

    weights = (patch_w, patch_b, patch_g, patch_be,
               n1_g, n1_b, qkv_w, qkv_b, proj_w, proj_b,
               n2_g, n2_b, fc1_w, fc1_b, dw_w, dw_b, fc2_w, fc2_b,
               norm_g, norm_b)

    def _resident(arr):  # full-array block, constant index map -> DMA'd once
        return pl.BlockSpec(arr.shape, lambda b, _n=arr.ndim: (0,) * _n)

    kernel = functools.partial(_pvt5_stage_kernel, depth=D, num_heads=num_heads,
                               Ho=Ho, Wo=Wo, eps=LN_EPS)

    out = pl.pallas_call(
        kernel,
        grid=(B,),
        in_specs=[pl.BlockSpec((1, N, 9 * Cin), lambda b: (b, 0, 0))]
                 + [_resident(a) for a in weights],
        out_specs=pl.BlockSpec((1, N, C), lambda b: (b, 0, 0)),
        out_shape=jax.ShapeDtypeStruct((B, N, C), jnp.float32),
        scratch_shapes=[pltpu.VMEM((Ho + 2, Wo + 2, Cm), jnp.float32)],
        compiler_params=pltpu.CompilerParams(
            dimension_semantics=("parallel",),
            vmem_limit_bytes=32 * 1024 * 1024),
    )(cols, *weights)

    return out.reshape(B, Ho, Wo, C).transpose(0, 3, 1, 2)   # NHWC -> NCHW


# ------------------------------ param init --------------------------------- #

def init_params(key, cin, c, depth, mlp_hidden):
    keys = iter(jax.random.split(key, 128))

    def w(shape, scale=0.02):
        return jax.random.normal(next(keys), shape, jnp.float32) * scale

    p = {
        'patch_w': w((3, 3, cin, c)), 'patch_b': w((c,)),
        'patch_ln_g': jnp.ones((c,), jnp.float32), 'patch_ln_b': jnp.zeros((c,), jnp.float32),
        'norm_g': jnp.ones((c,), jnp.float32), 'norm_b': jnp.zeros((c,), jnp.float32),
        'blocks': [],
    }
    for _ in range(depth):
        p['blocks'].append(dict(
            n1_g=jnp.ones((c,), jnp.float32), n1_b=jnp.zeros((c,), jnp.float32),
            q_w=w((c, c)), q_b=w((c,)),
            kv_w=w((c, 2 * c)), kv_b=w((2 * c,)),
            proj_w=w((c, c)), proj_b=w((c,)),
            n2_g=jnp.ones((c,), jnp.float32), n2_b=jnp.zeros((c,), jnp.float32),
            fc1_w=w((c, mlp_hidden)), fc1_b=w((mlp_hidden,)),
            dw_w=w((3, 3, mlp_hidden)), dw_b=w((mlp_hidden,)),
            fc2_w=w((mlp_hidden, c)), fc2_b=w((c,)),
        ))
    return p


# --------------------------------- main ------------------------------------ #

if __name__ == "__main__":
    key = jax.random.PRNGKey(0)

    # Small, module-consistent config: last PVT stage with downsample=True.
    B, Cin, H, W = 2, 16, 16, 16          # input ROI feature map (NCHW)
    C, num_heads, depth = 32, 4, 3        # embed_dim, heads, depth (last stage)
    mlp_hidden = int(C * 4.0)             # mlp_ratio = 4.0

    params = init_params(jax.random.fold_in(key, 1), Cin, C, depth, mlp_hidden)
    x = jax.random.normal(jax.random.fold_in(key, 99), (B, Cin, H, W), jnp.float32)

    fwd = jax.jit(lambda xx: pvt5_box_head_forward(xx, params, num_heads=num_heads))
    out = fwd(x)
    jax.block_until_ready(out)

    assert out.shape == (B, C, H // 2, W // 2), out.shape
    assert out.dtype == jnp.float32
    assert bool(jnp.all(jnp.isfinite(out)))
    print("KERNEL_OK")
</pallas_src>

<mosaic_0001>
module attributes {stable_mosaic.version = 11 : i64} {
  func.func @_pvt5_stage_kernel(%arg0: i32, %arg1: memref<1x64x144xf32, #tpu.memory_space<vmem>>, %arg2: memref<144x32xbf16, #tpu.memory_space<vmem>>, %arg3: memref<1x32xf32, #tpu.memory_space<vmem>>, %arg4: memref<1x32xf32, #tpu.memory_space<vmem>>, %arg5: memref<1x32xf32, #tpu.memory_space<vmem>>, %arg6: memref<3x1x32xf32, #tpu.memory_space<vmem>>, %arg7: memref<3x1x32xf32, #tpu.memory_space<vmem>>, %arg8: memref<3x32x96xbf16, #tpu.memory_space<vmem>>, %arg9: memref<3x1x96xf32, #tpu.memory_space<vmem>>, %arg10: memref<3x32x32xbf16, #tpu.memory_space<vmem>>, %arg11: memref<3x1x32xf32, #tpu.memory_space<vmem>>, %arg12: memref<3x1x32xf32, #tpu.memory_space<vmem>>, %arg13: memref<3x1x32xf32, #tpu.memory_space<vmem>>, %arg14: memref<3x32x128xbf16, #tpu.memory_space<vmem>>, %arg15: memref<3x1x128xf32, #tpu.memory_space<vmem>>, %arg16: memref<3x3x3x128xf32, #tpu.memory_space<vmem>>, %arg17: memref<3x1x1x128xf32, #tpu.memory_space<vmem>>, %arg18: memref<3x128x32xbf16, #tpu.memory_space<vmem>>, %arg19: memref<3x1x32xf32, #tpu.memory_space<vmem>>, %arg20: memref<1x32xf32, #tpu.memory_space<vmem>>, %arg21: memref<1x32xf32, #tpu.memory_space<vmem>>, %arg22: memref<1x64x32xf32, #tpu.memory_space<vmem>>, %arg23: memref<10x10x128xf32, #tpu.memory_space<vmem>>) attributes {dimension_semantics = [#tpu.dimension_semantics<parallel>], iteration_bounds = array<i64: 2>, scalar_prefetch = 0 : i64, scratch_operands = 1 : i64, tpu.core_type = #tpu.core_type<tc>, window_params = [{transform_indices = @transform_0, window_bounds = array<i64: 1, 64, 144>}, {pipeline_mode = #tpu.pipeline_mode<synchronous>, transform_indices = @transform_1, window_bounds = array<i64: 144, 32>}, {pipeline_mode = #tpu.pipeline_mode<synchronous>, transform_indices = @transform_2, window_bounds = array<i64: 1, 32>}, {pipeline_mode = #tpu.pipeline_mode<synchronous>, transform_indices = @transform_3, window_bounds = array<i64: 1, 32>}, {pipeline_mode = #tpu.pipeline_mode<synchronous>, transform_indices = @transform_4, window_bounds = array<i64: 1, 32>}, {pipeline_mode = #tpu.pipeline_mode<synchronous>, transform_indices = @transform_5, window_bounds = array<i64: 3, 1, 32>}, {pipeline_mode = #tpu.pipeline_mode<synchronous>, transform_indices = @transform_6, window_bounds = array<i64: 3, 1, 32>}, {pipeline_mode = #tpu.pipeline_mode<synchronous>, transform_indices = @transform_7, window_bounds = array<i64: 3, 32, 96>}, {pipeline_mode = #tpu.pipeline_mode<synchronous>, transform_indices = @transform_8, window_bounds = array<i64: 3, 1, 96>}, {pipeline_mode = #tpu.pipeline_mode<synchronous>, transform_indices = @transform_9, window_bounds = array<i64: 3, 32, 32>}, {pipeline_mode = #tpu.pipeline_mode<synchronous>, transform_indices = @transform_10, window_bounds = array<i64: 3, 1, 32>}, {pipeline_mode = #tpu.pipeline_mode<synchronous>, transform_indices = @transform_11, window_bounds = array<i64: 3, 1, 32>}, {pipeline_mode = #tpu.pipeline_mode<synchronous>, transform_indices = @transform_12, window_bounds = array<i64: 3, 1, 32>}, {pipeline_mode = #tpu.pipeline_mode<synchronous>, transform_indices = @transform_13, window_bounds = array<i64: 3, 32, 128>}, {pipeline_mode = #tpu.pipeline_mode<synchronous>, transform_indices = @transform_14, window_bounds = array<i64: 3, 1, 128>}, {pipeline_mode = #tpu.pipeline_mode<synchronous>, transform_indices = @transform_15, window_bounds = array<i64: 3, 3, 3, 128>}, {pipeline_mode = #tpu.pipeline_mode<synchronous>, transform_indices = @transform_16, window_bounds = array<i64: 3, 1, 1, 128>}, {pipeline_mode = #tpu.pipeline_mode<synchronous>, transform_indices = @transform_17, window_bounds = array<i64: 3, 128, 32>}, {pipeline_mode = #tpu.pipeline_mode<synchronous>, transform_indices = @transform_18, window_bounds = array<i64: 3, 1, 32>}, {pipeline_mode = #tpu.pipeline_mode<synchronous>, transform_indices = @transform_19, window_bounds = array<i64: 1, 32>}, {pipeline_mode = #tpu.pipeline_mode<synchronous>, transform_indices = @transform_20, window_bounds = array<i64: 1, 32>}, {transform_indices = @transform_21, window_bounds = array<i64: 1, 64, 32>}]} {
    %cst = arith.constant 0.000000e+00 : f32
    %0 = vector.broadcast %cst : f32 to vector<10x10x128xf32>
    %c0 = arith.constant 0 : index
    %c0_0 = arith.constant 0 : index
    %c0_1 = arith.constant 0 : index
    %1 = vector.load %arg23[%c0, %c0_0, %c0_1] : memref<10x10x128xf32, #tpu.memory_space<vmem>>, vector<10x10x128xf32>
    tpu.vector_store %arg23[%c0, %c0_0, %c0_1], %0 {strides = array<i32>} : memref<10x10x128xf32, #tpu.memory_space<vmem>>, vector<10x10x128xf32>,
    %c0_2 = arith.constant 0 : index
    %c0_3 = arith.constant 0 : index
    %c0_4 = arith.constant 0 : index
    %2 = vector.load %arg1[%c0_2, %c0_3, %c0_4] : memref<1x64x144xf32, #tpu.memory_space<vmem>>, vector<1x64x144xf32>
    %3 = vector.shape_cast %2 : vector<1x64x144xf32> to vector<64x144xf32>
    %c0_5 = arith.constant 0 : index
    %c0_6 = arith.constant 0 : index
    %4 = vector.load %arg2[%c0_5, %c0_6] : memref<144x32xbf16, #tpu.memory_space<vmem>>, vector<144x32xbf16>
    %5 = arith.truncf %3 : vector<64x144xf32> to vector<64x144xbf16>
    %cst_7 = arith.constant dense<0.000000e+00> : vector<64x32xf32>
    %6 = tpu.matmul %5, %4, %cst_7 {dimension_numbers = #tpu.dot_dimension_numbers<[1], [0], [0], [1], [0, 0, 1, 1], [], []>} : vector<64x144xbf16>, vector<144x32xbf16>, vector<64x32xf32> -> vector<64x32xf32>
    %c0_8 = arith.constant 0 : index
    %c0_9 = arith.constant 0 : index
    %7 = vector.load %arg3[%c0_8, %c0_9] : memref<1x32xf32, #tpu.memory_space<vmem>>, vector<1x32xf32>
    %8 = vector.broadcast %7 : vector<1x32xf32> to vector<64x32xf32>
    %9 = arith.addf %6, %8 : vector<64x32xf32>
    %c0_10 = arith.constant 0 : index
    %c0_11 = arith.constant 0 : index
    %10 = vector.load %arg4[%c0_10, %c0_11] : memref<1x32xf32, #tpu.memory_space<vmem>>, vector<1x32xf32>
    %c0_12 = arith.constant 0 : index
    %c0_13 = arith.constant 0 : index
    %11 = vector.load %arg5[%c0_12, %c0_13] : memref<1x32xf32, #tpu.memory_space<vmem>>, vector<1x32xf32>
    %cst_14 = arith.constant dense<0.000000e+00> : vector<64xf32>
    %12 = vector.multi_reduction <add>, %9, %cst_14 [1] : vector<64x32xf32> to vector<64xf32>
    %13 = vector.shape_cast %12 : vector<64xf32> to vector<64x1xf32>
    %cst_15 = arith.constant 3.200000e+01 : f32
    %14 = vector.broadcast %cst_15 : f32 to vector<64x1xf32>
    %15 = arith.divf %13, %14 : vector<64x1xf32>
    %16 = vector.broadcast %15 : vector<64x1xf32> to vector<64x32xf32>
    %17 = arith.subf %9, %16 : vector<64x32xf32>
    %18 = arith.mulf %17, %17 : vector<64x32xf32>
    %cst_16 = arith.constant dense<0.000000e+00> : vector<64xf32>
    %19 = vector.multi_reduction <add>, %18, %cst_16 [1] : vector<64x32xf32> to vector<64xf32>
    %20 = vector.shape_cast %19 : vector<64xf32> to vector<64x1xf32>
    %cst_17 = arith.constant 3.200000e+01 : f32
    %21 = vector.broadcast %cst_17 : f32 to vector<64x1xf32>
    %22 = arith.divf %20, %21 : vector<64x1xf32>
    %cst_18 = arith.constant 9.99999974E-6 : f32
    %23 = vector.broadcast %cst_18 : f32 to vector<64x1xf32>
    %24 = arith.addf %22, %23 : vector<64x1xf32>
    %25 = math.rsqrt %24 : vector<64x1xf32>
    %26 = vector.broadcast %25 : vector<64x1xf32> to vector<64x32xf32>
    %27 = arith.mulf %17, %26 : vector<64x32xf32>
    %28 = vector.broadcast %10 : vector<1x32xf32> to vector<64x32xf32>
    %29 = arith.mulf %27, %28 : vector<64x32xf32>
    %30 = vector.broadcast %11 : vector<1x32xf32> to vector<64x32xf32>
    %31 = arith.addf %29, %30 : vector<64x32xf32>
    %c0_19 = arith.constant 0 : index
    %c0_20 = arith.constant 0 : index
    %c0_21 = arith.constant 0 : index
    %32 = vector.load %arg6[%c0_19, %c0_20, %c0_21] : memref<3x1x32xf32, #tpu.memory_space<vmem>>, vector<1x1x32xf32>
    %33 = vector.shape_cast %32 : vector<1x1x32xf32> to vector<1x32xf32>
    %c0_22 = arith.constant 0 : index
    %c0_23 = arith.constant 0 : index
    %c0_24 = arith.constant 0 : index
    %34 = vector.load %arg7[%c0_22, %c0_23, %c0_24] : memref<3x1x32xf32, #tpu.memory_space<vmem>>, vector<1x1x32xf32>
    %35 = vector.shape_cast %34 : vector<1x1x32xf32> to vector<1x32xf32>
    %cst_25 = arith.constant dense<0.000000e+00> : vector<64xf32>
    %36 = vector.multi_reduction <add>, %31, %cst_25 [1] : vector<64x32xf32> to vector<64xf32>
    %37 = vector.shape_cast %36 : vector<64xf32> to vector<64x1xf32>
    %cst_26 = arith.constant 3.200000e+01 : f32
    %38 = vector.broadcast %cst_26 : f32 to vector<64x1xf32>
    %39 = arith.divf %37, %38 : vector<64x1xf32>
    %40 = vector.broadcast %39 : vector<64x1xf32> to vector<64x32xf32>
    %41 = arith.subf %31, %40 : vector<64x32xf32>
    %42 = arith.mulf %41, %41 : vector<64x32xf32>
    %cst_27 = arith.constant dense<0.000000e+00> : vector<64xf32>
    %43 = vector.multi_reduction <add>, %42, %cst_27 [1] : vector<64x32xf32> to vector<64xf32>
    %44 = vector.shape_cast %43 : vector<64xf32> to vector<64x1xf32>
    %cst_28 = arith.constant 3.200000e+01 : f32
    %45 = vector.broadcast %cst_28 : f32 to vector<64x1xf32>
    %46 = arith.divf %44, %45 : vector<64x1xf32>
    %cst_29 = arith.constant 9.99999974E-6 : f32
    %47 = vector.broadcast %cst_29 : f32 to vector<64x1xf32>
    %48 = arith.addf %46, %47 : vector<64x1xf32>
    %49 = math.rsqrt %48 : vector<64x1xf32>
    %50 = vector.broadcast %49 : vector<64x1xf32> to vector<64x32xf32>
    %51 = arith.mulf %41, %50 : vector<64x32xf32>
    %52 = vector.broadcast %33 : vector<1x32xf32> to vector<64x32xf32>
    %53 = arith.mulf %51, %52 : vector<64x32xf32>
    %54 = vector.broadcast %35 : vector<1x32xf32> to vector<64x32xf32>
    %55 = arith.addf %53, %54 : vector<64x32xf32>
    %c0_30 = arith.constant 0 : index
    %c0_31 = arith.constant 0 : index
    %c0_32 = arith.constant 0 : index
    %56 = vector.load %arg8[%c0_30, %c0_31, %c0_32] : memref<3x32x96xbf16, #tpu.memory_space<vmem>>, vector<1x32x96xbf16>
    %57 = vector.shape_cast %56 : vector<1x32x96xbf16> to vector<32x96xbf16>
    %58 = arith.truncf %55 : vector<64x32xf32> to vector<64x32xbf16>
    %cst_33 = arith.constant dense<0.000000e+00> : vector<64x96xf32>
    %59 = tpu.matmul %58, %57, %cst_33 {dimension_numbers = #tpu.dot_dimension_numbers<[1], [0], [0], [1], [0, 0, 1, 1], [], []>} : vector<64x32xbf16>, vector<32x96xbf16>, vector<64x96xf32> -> vector<64x96xf32>
    %c0_34 = arith.constant 0 : index
    %c0_35 = arith.constant 0 : index
    %c0_36 = arith.constant 0 : index
    %60 = vector.load %arg9[%c0_34, %c0_35, %c0_36] : memref<3x1x96xf32, #tpu.memory_space<vmem>>, vector<1x1x96xf32>
    %61 = vector.shape_cast %60 : vector<1x1x96xf32> to vector<1x96xf32>
    %62 = vector.broadcast %61 : vector<1x96xf32> to vector<64x96xf32>
    %63 = arith.addf %59, %62 : vector<64x96xf32>
    %64 = vector.extract_strided_slice %63 {offsets = [0, 0], sizes = [64, 8], strides = [1, 1]} : vector<64x96xf32> to vector<64x8xf32>
    %65 = arith.truncf %64 : vector<64x8xf32> to vector<64x8xbf16>
    %66 = vector.extract_strided_slice %63 {offsets = [0, 32], sizes = [64, 8], strides = [1, 1]} : vector<64x96xf32> to vector<64x8xf32>
    %67 = arith.truncf %66 : vector<64x8xf32> to vector<64x8xbf16>
    %68 = vector.extract_strided_slice %63 {offsets = [0, 64], sizes = [64, 8], strides = [1, 1]} : vector<64x96xf32> to vector<64x8xf32>
    %69 = arith.truncf %68 : vector<64x8xf32> to vector<64x8xbf16>
    %cst_37 = arith.constant dense<0.000000e+00> : vector<64x64xf32>
    %70 = tpu.matmul %65, %67, %cst_37 {dimension_numbers = #tpu.dot_dimension_numbers<[1], [1], [0], [0], [0, 0, 1, 0], [], []>} : vector<64x8xbf16>, vector<64x8xbf16>, vector<64x64xf32> -> vector<64x64xf32>
    %cst_38 = arith.constant 0.353553385 : f32
    %71 = vector.broadcast %cst_38 : f32 to vector<64x64xf32>
    %72 = arith.mulf %70, %71 : vector<64x64xf32>
    %cst_39 = arith.constant dense<0xFF800000> : vector<64xf32>
    %73 = vector.multi_reduction <maximumf>, %72, %cst_39 [1] : vector<64x64xf32> to vector<64xf32>
    %74 = vector.shape_cast %73 : vector<64xf32> to vector<64x1xf32>
    %75 = vector.broadcast %74 : vector<64x1xf32> to vector<64x64xf32>
    %76 = arith.subf %72, %75 : vector<64x64xf32>
    %77 = math.exp %76 : vector<64x64xf32>
    %cst_40 = arith.constant dense<0.000000e+00> : vector<64xf32>
    %78 = vector.multi_reduction <add>, %77, %cst_40 [1] : vector<64x64xf32> to vector<64xf32>
    %79 = vector.shape_cast %78 : vector<64xf32> to vector<64x1xf32>
    %80 = tpu.reciprocal %79 {approx = true} : vector<64x1xf32> -> vector<64x1xf32>
    %81 = vector.broadcast %80 : vector<64x1xf32> to vector<64x64xf32>
    %82 = arith.mulf %77, %81 : vector<64x64xf32>
    %83 = arith.truncf %82 : vector<64x64xf32> to vector<64x64xbf16>
    %cst_41 = arith.constant dense<0.000000e+00> : vector<64x8xf32>
    %84 = tpu.matmul %83, %69, %cst_41 {dimension_numbers = #tpu.dot_dimension_numbers<[1], [0], [0], [1], [0, 0, 1, 1], [], []>} : vector<64x64xbf16>, vector<64x8xbf16>, vector<64x8xf32> -> vector<64x8xf32>
    %85 = vector.extract_strided_slice %63 {offsets = [0, 8], sizes = [64, 8], strides = [1, 1]} : vector<64x96xf32> to vector<64x8xf32>
    %86 = arith.truncf %85 : vector<64x8xf32> to vector<64x8xbf16>
    %87 = vector.extract_strided_slice %63 {offsets = [0, 40], sizes = [64, 8], strides = [1, 1]} : vector<64x96xf32> to vector<64x8xf32>
    %88 = arith.truncf %87 : vector<64x8xf32> to vector<64x8xbf16>
    %89 = vector.extract_strided_slice %63 {offsets = [0, 72], sizes = [64, 8], strides = [1, 1]} : vector<64x96xf32> to vector<64x8xf32>
    %90 = arith.truncf %89 : vector<64x8xf32> to vector<64x8xbf16>
    %cst_42 = arith.constant dense<0.000000e+00> : vector<64x64xf32>
    %91 = tpu.matmul %86, %88, %cst_42 {dimension_numbers = #tpu.dot_dimension_numbers<[1], [1], [0], [0], [0, 0, 1, 0], [], []>} : vector<64x8xbf16>, vector<64x8xbf16>, vector<64x64xf32> -> vector<64x64xf32>
    %cst_43 = arith.constant 0.353553385 : f32
    %92 = vector.broadcast %cst_43 : f32 to vector<64x64xf32>
    %93 = arith.mulf %91, %92 : vector<64x64xf32>
    %cst_44 = arith.constant dense<0xFF800000> : vector<64xf32>
    %94 = vector.multi_reduction <maximumf>, %93, %cst_44 [1] : vector<64x64xf32> to vector<64xf32>
    %95 = vector.shape_cast %94 : vector<64xf32> to vector<64x1xf32>
    %96 = vector.broadcast %95 : vector<64x1xf32> to vector<64x64xf32>
    %97 = arith.subf %93, %96 : vector<64x64xf32>
    %98 = math.exp %97 : vector<64x64xf32>
    %cst_45 = arith.constant dense<0.000000e+00> : vector<64xf32>
    %99 = vector.multi_reduction <add>, %98, %cst_45 [1] : vector<64x64xf32> to vector<64xf32>
    %100 = vector.shape_cast %99 : vector<64xf32> to vector<64x1xf32>
    %101 = tpu.reciprocal %100 {approx = true} : vector<64x1xf32> -> vector<64x1xf32>
    %102 = vector.broadcast %101 : vector<64x1xf32> to vector<64x64xf32>
    %103 = arith.mulf %98, %102 : vector<64x64xf32>
    %104 = arith.truncf %103 : vector<64x64xf32> to vector<64x64xbf16>
    %cst_46 = arith.constant dense<0.000000e+00> : vector<64x8xf32>
    %105 = tpu.matmul %104, %90, %cst_46 {dimension_numbers = #tpu.dot_dimension_numbers<[1], [0], [0], [1], [0, 0, 1, 1], [], []>} : vector<64x64xbf16>, vector<64x8xbf16>, vector<64x8xf32> -> vector<64x8xf32>
    %106 = vector.extract_strided_slice %63 {offsets = [0, 16], sizes = [64, 8], strides = [1, 1]} : vector<64x96xf32> to vector<64x8xf32>
    %107 = arith.truncf %106 : vector<64x8xf32> to vector<64x8xbf16>
    %108 = vector.extract_strided_slice %63 {offsets = [0, 48], sizes = [64, 8], strides = [1, 1]} : vector<64x96xf32> to vector<64x8xf32>
    %109 = arith.truncf %108 : vector<64x8xf32> to vector<64x8xbf16>
    %110 = vector.extract_strided_slice %63 {offsets = [0, 80], sizes = [64, 8], strides = [1, 1]} : vector<64x96xf32> to vector<64x8xf32>
    %111 = arith.truncf %110 : vector<64x8xf32> to vector<64x8xbf16>
    %cst_47 = arith.constant dense<0.000000e+00> : vector<64x64xf32>
    %112 = tpu.matmul %107, %109, %cst_47 {dimension_numbers = #tpu.dot_dimension_numbers<[1], [1], [0], [0], [0, 0, 1, 0], [], []>} : vector<64x8xbf16>, vector<64x8xbf16>, vector<64x64xf32> -> vector<64x64xf32>
    %cst_48 = arith.constant 0.353553385 : f32
    %113 = vector.broadcast %cst_48 : f32 to vector<64x64xf32>
    %114 = arith.mulf %112, %113 : vector<64x64xf32>
    %cst_49 = arith.constant dense<0xFF800000> : vector<64xf32>
    %115 = vector.multi_reduction <maximumf>, %114, %cst_49 [1] : vector<64x64xf32> to vector<64xf32>
    %116 = vector.shape_cast %115 : vector<64xf32> to vector<64x1xf32>
    %117 = vector.broadcast %116 : vector<64x1xf32> to vector<64x64xf32>
    %118 = arith.subf %114, %117 : vector<64x64xf32>
    %119 = math.exp %118 : vector<64x64xf32>
    %cst_50 = arith.constant dense<0.000000e+00> : vector<64xf32>
    %120 = vector.multi_reduction <add>, %119, %cst_50 [1] : vector<64x64xf32> to vector<64xf32>
    %121 = vector.shape_cast %120 : vector<64xf32> to vector<64x1xf32>
    %122 = tpu.reciprocal %121 {approx = true} : vector<64x1xf32> -> vector<64x1xf32>
    %123 = vector.broadcast %122 : vector<64x1xf32> to vector<64x64xf32>
    %124 = arith.mulf %119, %123 : vector<64x64xf32>
    %125 = arith.truncf %124 : vector<64x64xf32> to vector<64x64xbf16>
    %cst_51 = arith.constant dense<0.000000e+00> : vector<64x8xf32>
    %126 = tpu.matmul %125, %111, %cst_51 {dimension_numbers = #tpu.dot_dimension_numbers<[1], [0], [0], [1], [0, 0, 1, 1], [], []>} : vector<64x64xbf16>, vector<64x8xbf16>, vector<64x8xf32> -> vector<64x8xf32>
    %127 = vector.extract_strided_slice %63 {offsets = [0, 24], sizes = [64, 8], strides = [1, 1]} : vector<64x96xf32> to vector<64x8xf32>
    %128 = arith.truncf %127 : vector<64x8xf32> to vector<64x8xbf16>
    %129 = vector.extract_strided_slice %63 {offsets = [0, 56], sizes = [64, 8], strides = [1, 1]} : vector<64x96xf32> to vector<64x8xf32>
    %130 = arith.truncf %129 : vector<64x8xf32> to vector<64x8xbf16>
    %131 = vector.extract_strided_slice %63 {offsets = [0, 88], sizes = [64, 8], strides = [1, 1]} : vector<64x96xf32> to vector<64x8xf32>
    %132 = arith.truncf %131 : vector<64x8xf32> to vector<64x8xbf16>
    %cst_52 = arith.constant dense<0.000000e+00> : vector<64x64xf32>
    %133 = tpu.matmul %128, %130, %cst_52 {dimension_numbers = #tpu.dot_dimension_numbers<[1], [1], [0], [0], [0, 0, 1, 0], [], []>} : vector<64x8xbf16>, vector<64x8xbf16>, vector<64x64xf32> -> vector<64x64xf32>
    %cst_53 = arith.constant 0.353553385 : f32
    %134 = vector.broadcast %cst_53 : f32 to vector<64x64xf32>
    %135 = arith.mulf %133, %134 : vector<64x64xf32>
    %cst_54 = arith.constant dense<0xFF800000> : vector<64xf32>
    %136 = vector.multi_reduction <maximumf>, %135, %cst_54 [1] : vector<64x64xf32> to vector<64xf32>
    %137 = vector.shape_cast %136 : vector<64xf32> to vector<64x1xf32>
    %138 = vector.broadcast %137 : vector<64x1xf32> to vector<64x64xf32>
    %139 = arith.subf %135, %138 : vector<64x64xf32>
    %140 = math.exp %139 : vector<64x64xf32>
    %cst_55 = arith.constant dense<0.000000e+00> : vector<64xf32>
    %141 = vector.multi_reduction <add>, %140, %cst_55 [1] : vector<64x64xf32> to vector<64xf32>
    %142 = vector.shape_cast %141 : vector<64xf32> to vector<64x1xf32>
    %143 = tpu.reciprocal %142 {approx = true} : vector<64x1xf32> -> vector<64x1xf32>
    %144 = vector.broadcast %143 : vector<64x1xf32> to vector<64x64xf32>
    %145 = arith.mulf %140, %144 : vector<64x64xf32>
    %146 = arith.truncf %145 : vector<64x64xf32> to vector<64x64xbf16>
    %cst_56 = arith.constant dense<0.000000e+00> : vector<64x8xf32>
    %147 = tpu.matmul %146, %132, %cst_56 {dimension_numbers = #tpu.dot_dimension_numbers<[1], [0], [0], [1], [0, 0, 1, 1], [], []>} : vector<64x64xbf16>, vector<64x8xbf16>, vector<64x8xf32> -> vector<64x8xf32>
    %148 = tpu.concatenate %84, %105, %126, %147 in 1 : vector<64x8xf32>, vector<64x8xf32>, vector<64x8xf32>, vector<64x8xf32> -> vector<64x32xf32>
    %c0_57 = arith.constant 0 : index
    %c0_58 = arith.constant 0 : index
    %c0_59 = arith.constant 0 : index
    %149 = vector.load %arg10[%c0_57, %c0_58, %c0_59] : memref<3x32x32xbf16, #tpu.memory_space<vmem>>, vector<1x32x32xbf16>
    %150 = vector.shape_cast %149 : vector<1x32x32xbf16> to vector<32x32xbf16>
    %151 = arith.truncf %148 : vector<64x32xf32> to vector<64x32xbf16>
    %cst_60 = arith.constant dense<0.000000e+00> : vector<64x32xf32>
    %152 = tpu.matmul %151, %150, %cst_60 {dimension_numbers = #tpu.dot_dimension_numbers<[1], [0], [0], [1], [0, 0, 1, 1], [], []>} : vector<64x32xbf16>, vector<32x32xbf16>, vector<64x32xf32> -> vector<64x32xf32>
    %153 = arith.addf %31, %152 : vector<64x32xf32>
    %c0_61 = arith.constant 0 : index
    %c0_62 = arith.constant 0 : index
    %c0_63 = arith.constant 0 : index
    %154 = vector.load %arg11[%c0_61, %c0_62, %c0_63] : memref<3x1x32xf32, #tpu.memory_space<vmem>>, vector<1x1x32xf32>
    %155 = vector.shape_cast %154 : vector<1x1x32xf32> to vector<1x32xf32>
    %156 = vector.broadcast %155 : vector<1x32xf32> to vector<64x32xf32>
    %157 = arith.addf %153, %156 : vector<64x32xf32>
    %c0_64 = arith.constant 0 : index
    %c0_65 = arith.constant 0 : index
    %c0_66 = arith.constant 0 : index
    %158 = vector.load %arg12[%c0_64, %c0_65, %c0_66] : memref<3x1x32xf32, #tpu.memory_space<vmem>>, vector<1x1x32xf32>
    %159 = vector.shape_cast %158 : vector<1x1x32xf32> to vector<1x32xf32>
    %c0_67 = arith.constant 0 : index
    %c0_68 = arith.constant 0 : index
    %c0_69 = arith.constant 0 : index
    %160 = vector.load %arg13[%c0_67, %c0_68, %c0_69] : memref<3x1x32xf32, #tpu.memory_space<vmem>>, vector<1x1x32xf32>
    %161 = vector.shape_cast %160 : vector<1x1x32xf32> to vector<1x32xf32>
    %cst_70 = arith.constant dense<0.000000e+00> : vector<64xf32>
    %162 = vector.multi_reduction <add>, %157, %cst_70 [1] : vector<64x32xf32> to vector<64xf32>
    %163 = vector.shape_cast %162 : vector<64xf32> to vector<64x1xf32>
    %cst_71 = arith.constant 3.200000e+01 : f32
    %164 = vector.broadcast %cst_71 : f32 to vector<64x1xf32>
    %165 = arith.divf %163, %164 : vector<64x1xf32>
    %166 = vector.broadcast %165 : vector<64x1xf32> to vector<64x32xf32>
    %167 = arith.subf %157, %166 : vector<64x32xf32>
    %168 = arith.mulf %167, %167 : vector<64x32xf32>
    %cst_72 = arith.constant dense<0.000000e+00> : vector<64xf32>
    %169 = vector.multi_reduction <add>, %168, %cst_72 [1] : vector<64x32xf32> to vector<64xf32>
    %170 = vector.shape_cast %169 : vector<64xf32> to vector<64x1xf32>
    %cst_73 = arith.constant 3.200000e+01 : f32
    %171 = vector.broadcast %cst_73 : f32 to vector<64x1xf32>
    %172 = arith.divf %170, %171 : vector<64x1xf32>
    %cst_74 = arith.constant 9.99999974E-6 : f32
    %173 = vector.broadcast %cst_74 : f32 to vector<64x1xf32>
    %174 = arith.addf %172, %173 : vector<64x1xf32>
    %175 = math.rsqrt %174 : vector<64x1xf32>
    %176 = vector.broadcast %175 : vector<64x1xf32> to vector<64x32xf32>
    %177 = arith.mulf %167, %176 : vector<64x32xf32>
    %178 = vector.broadcast %159 : vector<1x32xf32> to vector<64x32xf32>
    %179 = arith.mulf %177, %178 : vector<64x32xf32>
    %180 = vector.broadcast %161 : vector<1x32xf32> to vector<64x32xf32>
    %181 = arith.addf %179, %180 : vector<64x32xf32>
    %c0_75 = arith.constant 0 : index
    %c0_76 = arith.constant 0 : index
    %c0_77 = arith.constant 0 : index
    %182 = vector.load %arg14[%c0_75, %c0_76, %c0_77] : memref<3x32x128xbf16, #tpu.memory_space<vmem>>, vector<1x32x128xbf16>
    %183 = vector.shape_cast %182 : vector<1x32x128xbf16> to vector<32x128xbf16>
    %184 = arith.truncf %181 : vector<64x32xf32> to vector<64x32xbf16>
    %cst_78 = arith.constant dense<0.000000e+00> : vector<64x128xf32>
    %185 = tpu.matmul %184, %183, %cst_78 {dimension_numbers = #tpu.dot_dimension_numbers<[1], [0], [0], [1], [0, 0, 1, 1], [], []>} : vector<64x32xbf16>, vector<32x128xbf16>, vector<64x128xf32> -> vector<64x128xf32>
    %c0_79 = arith.constant 0 : index
    %c0_80 = arith.constant 0 : index
    %c0_81 = arith.constant 0 : index
    %186 = vector.load %arg15[%c0_79, %c0_80, %c0_81] : memref<3x1x128xf32, #tpu.memory_space<vmem>>, vector<1x1x128xf32>
    %187 = vector.shape_cast %186 : vector<1x1x128xf32> to vector<1x128xf32>
    %188 = vector.broadcast %187 : vector<1x128xf32> to vector<64x128xf32>
    %189 = arith.addf %185, %188 : vector<64x128xf32>
    %190 = vector.shape_cast %189 : vector<64x128xf32> to vector<8x8x128xf32>
    %c1 = arith.constant 1 : index
    %c1_82 = arith.constant 1 : index
    %c0_83 = arith.constant 0 : index
    %191 = vector.load %arg23[%c1, %c1_82, %c0_83] : memref<10x10x128xf32, #tpu.memory_space<vmem>>, vector<8x8x128xf32>
    tpu.vector_store %arg23[%c1, %c1_82, %c0_83], %190 {strides = array<i32>} : memref<10x10x128xf32, #tpu.memory_space<vmem>>, vector<8x8x128xf32>,
    %c0_84 = arith.constant 0 : index
    %c0_85 = arith.constant 0 : index
    %c0_86 = arith.constant 0 : index
    %c0_87 = arith.constant 0 : index
    %192 = vector.load %arg16[%c0_84, %c0_85, %c0_86, %c0_87] : memref<3x3x3x128xf32, #tpu.memory_space<vmem>>, vector<1x3x3x128xf32>
    %193 = vector.shape_cast %192 : vector<1x3x3x128xf32> to vector<3x3x128xf32>
    %cst_88 = arith.constant 0.000000e+00 : f32
    %194 = vector.broadcast %cst_88 : f32 to vector<8x8x128xf32>
    %c0_89 = arith.constant 0 : index
    %c0_90 = arith.constant 0 : index
    %c0_91 = arith.constant 0 : index
    %195 = vector.load %arg23[%c0_89, %c0_90, %c0_91] : memref<10x10x128xf32, #tpu.memory_space<vmem>>, vector<8x8x128xf32>
    %196 = vector.extract_strided_slice %193 {offsets = [0, 0, 0], sizes = [1, 1, 128], strides = [1, 1, 1]} : vector<3x3x128xf32> to vector<1x1x128xf32>
    %197 = vector.shape_cast %196 : vector<1x1x128xf32> to vector<128xf32>
    %198 = vector.shape_cast %197 : vector<128xf32> to vector<1x1x128xf32>
    %199 = vector.broadcast %198 : vector<1x1x128xf32> to vector<8x8x128xf32>
    %200 = arith.mulf %195, %199 : vector<8x8x128xf32>
    %201 = arith.addf %194, %200 : vector<8x8x128xf32>
    %c0_92 = arith.constant 0 : index
    %c1_93 = arith.constant 1 : index
    %c0_94 = arith.constant 0 : index
    %202 = vector.load %arg23[%c0_92, %c1_93, %c0_94] : memref<10x10x128xf32, #tpu.memory_space<vmem>>, vector<8x8x128xf32>
    %203 = vector.extract_strided_slice %193 {offsets = [0, 1, 0], sizes = [1, 1, 128], strides = [1, 1, 1]} : vector<3x3x128xf32> to vector<1x1x128xf32>
    %204 = vector.shape_cast %203 : vector<1x1x128xf32> to vector<128xf32>
    %205 = vector.shape_cast %204 : vector<128xf32> to vector<1x1x128xf32>
    %206 = vector.broadcast %205 : vector<1x1x128xf32> to vector<8x8x128xf32>
    %207 = arith.mulf %202, %206 : vector<8x8x128xf32>
    %208 = arith.addf %201, %207 : vector<8x8x128xf32>
    %c0_95 = arith.constant 0 : index
    %c2 = arith.constant 2 : index
    %c0_96 = arith.constant 0 : index
    %209 = vector.load %arg23[%c0_95, %c2, %c0_96] : memref<10x10x128xf32, #tpu.memory_space<vmem>>, vector<8x8x128xf32>
    %210 = vector.extract_strided_slice %193 {offsets = [0, 2, 0], sizes = [1, 1, 128], strides = [1, 1, 1]} : vector<3x3x128xf32> to vector<1x1x128xf32>
    %211 = vector.shape_cast %210 : vector<1x1x128xf32> to vector<128xf32>
    %212 = vector.shape_cast %211 : vector<128xf32> to vector<1x1x128xf32>
    %213 = vector.broadcast %212 : vector<1x1x128xf32> to vector<8x8x128xf32>
    %214 = arith.mulf %209, %213 : vector<8x8x128xf32>
    %215 = arith.addf %208, %214 : vector<8x8x128xf32>
    %c1_97 = arith.constant 1 : index
    %c0_98 = arith.constant 0 : index
    %c0_99 = arith.constant 0 : index
    %216 = vector.load %arg23[%c1_97, %c0_98, %c0_99] : memref<10x10x128xf32, #tpu.memory_space<vmem>>, vector<8x8x128xf32>
    %217 = vector.extract_strided_slice %193 {offsets = [1, 0, 0], sizes = [1, 1, 128], strides = [1, 1, 1]} : vector<3x3x128xf32> to vector<1x1x128xf32>
    %218 = vector.shape_cast %217 : vector<1x1x128xf32> to vector<128xf32>
    %219 = vector.shape_cast %218 : vector<128xf32> to vector<1x1x128xf32>
    %220 = vector.broadcast %219 : vector<1x1x128xf32> to vector<8x8x128xf32>
    %221 = arith.mulf %216, %220 : vector<8x8x128xf32>
    %222 = arith.addf %215, %221 : vector<8x8x128xf32>
    %c1_100 = arith.constant 1 : index
    %c1_101 = arith.constant 1 : index
    %c0_102 = arith.constant 0 : index
    %223 = vector.load %arg23[%c1_100, %c1_101, %c0_102] : memref<10x10x128xf32, #tpu.memory_space<vmem>>, vector<8x8x128xf32>
    %224 = vector.extract_strided_slice %193 {offsets = [1, 1, 0], sizes = [1, 1, 128], strides = [1, 1, 1]} : vector<3x3x128xf32> to vector<1x1x128xf32>
    %225 = vector.shape_cast %224 : vector<1x1x128xf32> to vector<128xf32>
    %226 = vector.shape_cast %225 : vector<128xf32> to vector<1x1x128xf32>
    %227 = vector.broadcast %226 : vector<1x1x128xf32> to vector<8x8x128xf32>
    %228 = arith.mulf %223, %227 : vector<8x8x128xf32>
    %229 = arith.addf %222, %228 : vector<8x8x128xf32>
    %c1_103 = arith.constant 1 : index
    %c2_104 = arith.constant 2 : index
    %c0_105 = arith.constant 0 : index
    %230 = vector.load %arg23[%c1_103, %c2_104, %c0_105] : memref<10x10x128xf32, #tpu.memory_space<vmem>>, vector<8x8x128xf32>
    %231 = vector.extract_strided_slice %193 {offsets = [1, 2, 0], sizes = [1, 1, 128], strides = [1, 1, 1]} : vector<3x3x128xf32> to vector<1x1x128xf32>
    %232 = vector.shape_cast %231 : vector<1x1x128xf32> to vector<128xf32>
    %233 = vector.shape_cast %232 : vector<128xf32> to vector<1x1x128xf32>
    %234 = vector.broadcast %233 : vector<1x1x128xf32> to vector<8x8x128xf32>
    %235 = arith.mulf %230, %234 : vector<8x8x128xf32>
    %236 = arith.addf %229, %235 : vector<8x8x128xf32>
    %c2_106 = arith.constant 2 : index
    %c0_107 = arith.constant 0 : index
    %c0_108 = arith.constant 0 : index
    %237 = vector.load %arg23[%c2_106, %c0_107, %c0_108] : memref<10x10x128xf32, #tpu.memory_space<vmem>>, vector<8x8x128xf32>
    %238 = vector.extract_strided_slice %193 {offsets = [2, 0, 0], sizes = [1, 1, 128], strides = [1, 1, 1]} : vector<3x3x128xf32> to vector<1x1x128xf32>
    %239 = vector.shape_cast %238 : vector<1x1x128xf32> to vector<128xf32>
    %240 = vector.shape_cast %239 : vector<128xf32> to vector<1x1x128xf32>
    %241 = vector.broadcast %240 : vector<1x1x128xf32> to vector<8x8x128xf32>
    %242 = arith.mulf %237, %241 : vector<8x8x128xf32>
    %243 = arith.addf %236, %242 : vector<8x8x128xf32>
    %c2_109 = arith.constant 2 : index
    %c1_110 = arith.constant 1 : index
    %c0_111 = arith.constant 0 : index
    %244 = vector.load %arg23[%c2_109, %c1_110, %c0_111] : memref<10x10x128xf32, #tpu.memory_space<vmem>>, vector<8x8x128xf32>
    %245 = vector.extract_strided_slice %193 {offsets = [2, 1, 0], sizes = [1, 1, 128], strides = [1, 1, 1]} : vector<3x3x128xf32> to vector<1x1x128xf32>
    %246 = vector.shape_cast %245 : vector<1x1x128xf32> to vector<128xf32>
    %247 = vector.shape_cast %246 : vector<128xf32> to vector<1x1x128xf32>
    %248 = vector.broadcast %247 : vector<1x1x128xf32> to vector<8x8x128xf32>
    %249 = arith.mulf %244, %248 : vector<8x8x128xf32>
    %250 = arith.addf %243, %249 : vector<8x8x128xf32>
    %c2_112 = arith.constant 2 : index
    %c2_113 = arith.constant 2 : index
    %c0_114 = arith.constant 0 : index
    %251 = vector.load %arg23[%c2_112, %c2_113, %c0_114] : memref<10x10x128xf32, #tpu.memory_space<vmem>>, vector<8x8x128xf32>
    %252 = vector.extract_strided_slice %193 {offsets = [2, 2, 0], sizes = [1, 1, 128], strides = [1, 1, 1]} : vector<3x3x128xf32> to vector<1x1x128xf32>
    %253 = vector.shape_cast %252 : vector<1x1x128xf32> to vector<128xf32>
    %254 = vector.shape_cast %253 : vector<128xf32> to vector<1x1x128xf32>
    %255 = vector.broadcast %254 : vector<1x1x128xf32> to vector<8x8x128xf32>
    %256 = arith.mulf %251, %255 : vector<8x8x128xf32>
    %257 = arith.addf %250, %256 : vector<8x8x128xf32>
    %c0_115 = arith.constant 0 : index
    %c0_116 = arith.constant 0 : index
    %c0_117 = arith.constant 0 : index
    %c0_118 = arith.constant 0 : index
    %258 = vector.load %arg17[%c0_115, %c0_116, %c0_117, %c0_118] : memref<3x1x1x128xf32, #tpu.memory_space<vmem>>, vector<1x1x1x128xf32>
    %259 = vector.shape_cast %258 : vector<1x1x1x128xf32> to vector<1x1x128xf32>
    %260 = vector.broadcast %259 : vector<1x1x128xf32> to vector<8x8x128xf32>
    %261 = arith.addf %257, %260 : vector<8x8x128xf32>
    %262 = vector.shape_cast %261 : vector<8x8x128xf32> to vector<64x128xf32>
    %cst_119 = arith.constant 5.000000e-01 : f32
    %263 = vector.broadcast %cst_119 : f32 to vector<64x128xf32>
    %264 = arith.mulf %263, %262 : vector<64x128xf32>
    %cst_120 = arith.constant 0.707106769 : f32
    %265 = vector.broadcast %cst_120 : f32 to vector<64x128xf32>
    %266 = arith.mulf %262, %265 : vector<64x128xf32>
    %267 = math.absf %266 : vector<64x128xf32>
    %cst_121 = arith.constant 0.327591091 : f32
    %268 = vector.broadcast %cst_121 : f32 to vector<64x128xf32>
    %269 = arith.mulf %268, %267 : vector<64x128xf32>
    %cst_122 = arith.constant 1.000000e+00 : f32
    %270 = vector.broadcast %cst_122 : f32 to vector<64x128xf32>
    %271 = arith.addf %270, %269 : vector<64x128xf32>
    %cst_123 = arith.constant 1.000000e+00 : f32
    %272 = vector.broadcast %cst_123 : f32 to vector<64x128xf32>
    %273 = arith.divf %272, %271 : vector<64x128xf32>
    %cst_124 = arith.constant 1.06140542 : f32
    %274 = vector.broadcast %cst_124 : f32 to vector<64x128xf32>
    %275 = arith.mulf %273, %274 : vector<64x128xf32>
    %cst_125 = arith.constant -1.45315206 : f32
    %276 = vector.broadcast %cst_125 : f32 to vector<64x128xf32>
    %277 = arith.addf %276, %275 : vector<64x128xf32>
    %278 = arith.mulf %273, %277 : vector<64x128xf32>
    %cst_126 = arith.constant 1.42141378 : f32
    %279 = vector.broadcast %cst_126 : f32 to vector<64x128xf32>
    %280 = arith.addf %279, %278 : vector<64x128xf32>
    %281 = arith.mulf %273, %280 : vector<64x128xf32>
    %cst_127 = arith.constant -0.284496725 : f32
    %282 = vector.broadcast %cst_127 : f32 to vector<64x128xf32>
    %283 = arith.addf %282, %281 : vector<64x128xf32>
    %284 = arith.mulf %273, %283 : vector<64x128xf32>
    %cst_128 = arith.constant 0.254829586 : f32
    %285 = vector.broadcast %cst_128 : f32 to vector<64x128xf32>
    %286 = arith.addf %285, %284 : vector<64x128xf32>
    %287 = arith.mulf %273, %286 : vector<64x128xf32>
    %288 = arith.mulf %266, %266 : vector<64x128xf32>
    %cst_129 = arith.constant 0.000000e+00 : f32
    %289 = vector.broadcast %cst_129 : f32 to vector<64x128xf32>
    %290 = arith.subf %289, %288 : vector<64x128xf32>
    %291 = math.exp %290 : vector<64x128xf32>
    %292 = arith.mulf %287, %291 : vector<64x128xf32>
    %cst_130 = arith.constant 1.000000e+00 : f32
    %293 = vector.broadcast %cst_130 : f32 to vector<64x128xf32>
    %294 = arith.subf %293, %292 : vector<64x128xf32>
    %cst_131 = arith.constant 0.000000e+00 : f32
    %295 = vector.broadcast %cst_131 : f32 to vector<64x128xf32>
    %296 = arith.cmpf oge, %266, %295 : vector<64x128xf32>
    %cst_132 = arith.constant 0.000000e+00 : f32
    %297 = vector.broadcast %cst_132 : f32 to vector<64x128xf32>
    %298 = arith.subf %297, %294 : vector<64x128xf32>
    %299 = arith.select %296, %294, %298 : vector<64x128xi1>, vector<64x128xf32>
    %cst_133 = arith.constant 1.000000e+00 : f32
    %300 = vector.broadcast %cst_133 : f32 to vector<64x128xf32>
    %301 = arith.addf %300, %299 : vector<64x128xf32>
    %302 = arith.mulf %264, %301 : vector<64x128xf32>
    %c0_134 = arith.constant 0 : index
    %c0_135 = arith.constant 0 : index
    %c0_136 = arith.constant 0 : index
    %303 = vector.load %arg18[%c0_134, %c0_135, %c0_136] : memref<3x128x32xbf16, #tpu.memory_space<vmem>>, vector<1x128x32xbf16>
    %304 = vector.shape_cast %303 : vector<1x128x32xbf16> to vector<128x32xbf16>
    %305 = arith.truncf %302 : vector<64x128xf32> to vector<64x128xbf16>
    %cst_137 = arith.constant dense<0.000000e+00> : vector<64x32xf32>
    %306 = tpu.matmul %305, %304, %cst_137 {dimension_numbers = #tpu.dot_dimension_numbers<[1], [0], [0], [1], [0, 0, 1, 1], [], []>} : vector<64x128xbf16>, vector<128x32xbf16>, vector<64x32xf32> -> vector<64x32xf32>
    %307 = arith.addf %157, %306 : vector<64x32xf32>
    %c0_138 = arith.constant 0 : index
    %c0_139 = arith.constant 0 : index
    %c0_140 = arith.constant 0 : index
    %308 = vector.load %arg19[%c0_138, %c0_139, %c0_140] : memref<3x1x32xf32, #tpu.memory_space<vmem>>, vector<1x1x32xf32>
    %309 = vector.shape_cast %308 : vector<1x1x32xf32> to vector<1x32xf32>
    %310 = vector.broadcast %309 : vector<1x32xf32> to vector<64x32xf32>
    %311 = arith.addf %307, %310 : vector<64x32xf32>
    %c1_141 = arith.constant 1 : index
    %c0_142 = arith.constant 0 : index
    %c0_143 = arith.constant 0 : index
    %312 = vector.load %arg6[%c1_141, %c0_142, %c0_143] : memref<3x1x32xf32, #tpu.memory_space<vmem>>, vector<1x1x32xf32>
    %313 = vector.shape_cast %312 : vector<1x1x32xf32> to vector<1x32xf32>
    %c1_144 = arith.constant 1 : index
    %c0_145 = arith.constant 0 : index
    %c0_146 = arith.constant 0 : index
    %314 = vector.load %arg7[%c1_144, %c0_145, %c0_146] : memref<3x1x32xf32, #tpu.memory_space<vmem>>, vector<1x1x32xf32>
    %315 = vector.shape_cast %314 : vector<1x1x32xf32> to vector<1x32xf32>
    %cst_147 = arith.constant dense<0.000000e+00> : vector<64xf32>
    %316 = vector.multi_reduction <add>, %311, %cst_147 [1] : vector<64x32xf32> to vector<64xf32>
    %317 = vector.shape_cast %316 : vector<64xf32> to vector<64x1xf32>
    %cst_148 = arith.constant 3.200000e+01 : f32
    %318 = vector.broadcast %cst_148 : f32 to vector<64x1xf32>
    %319 = arith.divf %317, %318 : vector<64x1xf32>
    %320 = vector.broadcast %319 : vector<64x1xf32> to vector<64x32xf32>
    %321 = arith.subf %311, %320 : vector<64x32xf32>
    %322 = arith.mulf %321, %321 : vector<64x32xf32>
    %cst_149 = arith.constant dense<0.000000e+00> : vector<64xf32>
    %323 = vector.multi_reduction <add>, %322, %cst_149 [1] : vector<64x32xf32> to vector<64xf32>
    %324 = vector.shape_cast %323 : vector<64xf32> to vector<64x1xf32>
    %cst_150 = arith.constant 3.200000e+01 : f32
    %325 = vector.broadcast %cst_150 : f32 to vector<64x1xf32>
    %326 = arith.divf %324, %325 : vector<64x1xf32>
    %cst_151 = arith.constant 9.99999974E-6 : f32
    %327 = vector.broadcast %cst_151 : f32 to vector<64x1xf32>
    %328 = arith.addf %326, %327 : vector<64x1xf32>
    %329 = math.rsqrt %328 : vector<64x1xf32>
    %330 = vector.broadcast %329 : vector<64x1xf32> to vector<64x32xf32>
    %331 = arith.mulf %321, %330 : vector<64x32xf32>
    %332 = vector.broadcast %313 : vector<1x32xf32> to vector<64x32xf32>
    %333 = arith.mulf %331, %332 : vector<64x32xf32>
    %334 = vector.broadcast %315 : vector<1x32xf32> to vector<64x32xf32>
    %335 = arith.addf %333, %334 : vector<64x32xf32>
    %c1_152 = arith.constant 1 : index
    %c0_153 = arith.constant 0 : index
    %c0_154 = arith.constant 0 : index
    %336 = vector.load %arg8[%c1_152, %c0_153, %c0_154] : memref<3x32x96xbf16, #tpu.memory_space<vmem>>, vector<1x32x96xbf16>
    %337 = vector.shape_cast %336 : vector<1x32x96xbf16> to vector<32x96xbf16>
    %338 = arith.truncf %335 : vector<64x32xf32> to vector<64x32xbf16>
    %cst_155 = arith.constant dense<0.000000e+00> : vector<64x96xf32>
    %339 = tpu.matmul %338, %337, %cst_155 {dimension_numbers = #tpu.dot_dimension_numbers<[1], [0], [0], [1], [0, 0, 1, 1], [], []>} : vector<64x32xbf16>, vector<32x96xbf16>, vector<64x96xf32> -> vector<64x96xf32>
    %c1_156 = arith.constant 1 : index
    %c0_157 = arith.constant 0 : index
    %c0_158 = arith.constant 0 : index
    %340 = vector.load %arg9[%c1_156, %c0_157, %c0_158] : memref<3x1x96xf32, #tpu.memory_space<vmem>>, vector<1x1x96xf32>
    %341 = vector.shape_cast %340 : vector<1x1x96xf32> to vector<1x96xf32>
    %342 = vector.broadcast %341 : vector<1x96xf32> to vector<64x96xf32>
    %343 = arith.addf %339, %342 : vector<64x96xf32>
    %344 = vector.extract_strided_slice %343 {offsets = [0, 0], sizes = [64, 8], strides = [1, 1]} : vector<64x96xf32> to vector<64x8xf32>
    %345 = arith.truncf %344 : vector<64x8xf32> to vector<64x8xbf16>
    %346 = vector.extract_strided_slice %343 {offsets = [0, 32], sizes = [64, 8], strides = [1, 1]} : vector<64x96xf32> to vector<64x8xf32>
    %347 = arith.truncf %346 : vector<64x8xf32> to vector<64x8xbf16>
    %348 = vector.extract_strided_slice %343 {offsets = [0, 64], sizes = [64, 8], strides = [1, 1]} : vector<64x96xf32> to vector<64x8xf32>
    %349 = arith.truncf %348 : vector<64x8xf32> to vector<64x8xbf16>
    %cst_159 = arith.constant dense<0.000000e+00> : vector<64x64xf32>
    %350 = tpu.matmul %345, %347, %cst_159 {dimension_numbers = #tpu.dot_dimension_numbers<[1], [1], [0], [0], [0, 0, 1, 0], [], []>} : vector<64x8xbf16>, vector<64x8xbf16>, vector<64x64xf32> -> vector<64x64xf32>
    %cst_160 = arith.constant 0.353553385 : f32
    %351 = vector.broadcast %cst_160 : f32 to vector<64x64xf32>
    %352 = arith.mulf %350, %351 : vector<64x64xf32>
    %cst_161 = arith.constant dense<0xFF800000> : vector<64xf32>
    %353 = vector.multi_reduction <maximumf>, %352, %cst_161 [1] : vector<64x64xf32> to vector<64xf32>
    %354 = vector.shape_cast %353 : vector<64xf32> to vector<64x1xf32>
    %355 = vector.broadcast %354 : vector<64x1xf32> to vector<64x64xf32>
    %356 = arith.subf %352, %355 : vector<64x64xf32>
    %357 = math.exp %356 : vector<64x64xf32>
    %cst_162 = arith.constant dense<0.000000e+00> : vector<64xf32>
    %358 = vector.multi_reduction <add>, %357, %cst_162 [1] : vector<64x64xf32> to vector<64xf32>
    %359 = vector.shape_cast %358 : vector<64xf32> to vector<64x1xf32>
    %360 = tpu.reciprocal %359 {approx = true} : vector<64x1xf32> -> vector<64x1xf32>
    %361 = vector.broadcast %360 : vector<64x1xf32> to vector<64x64xf32>
    %362 = arith.mulf %357, %361 : vector<64x64xf32>
    %363 = arith.truncf %362 : vector<64x64xf32> to vector<64x64xbf16>
    %cst_163 = arith.constant dense<0.000000e+00> : vector<64x8xf32>
    %364 = tpu.matmul %363, %349, %cst_163 {dimension_numbers = #tpu.dot_dimension_numbers<[1], [0], [0], [1], [0, 0, 1, 1], [], []>} : vector<64x64xbf16>, vector<64x8xbf16>, vector<64x8xf32> -> vector<64x8xf32>
    %365 = vector.extract_strided_slice %343 {offsets = [0, 8], sizes = [64, 8], strides = [1, 1]} : vector<64x96xf32> to vector<64x8xf32>
    %366 = arith.truncf %365 : vector<64x8xf32> to vector<64x8xbf16>
    %367 = vector.extract_strided_slice %343 {offsets = [0, 40], sizes = [64, 8], strides = [1, 1]} : vector<64x96xf32> to vector<64x8xf32>
    %368 = arith.truncf %367 : vector<64x8xf32> to vector<64x8xbf16>
    %369 = vector.extract_strided_slice %343 {offsets = [0, 72], sizes = [64, 8], strides = [1, 1]} : vector<64x96xf32> to vector<64x8xf32>
    %370 = arith.truncf %369 : vector<64x8xf32> to vector<64x8xbf16>
    %cst_164 = arith.constant dense<0.000000e+00> : vector<64x64xf32>
    %371 = tpu.matmul %366, %368, %cst_164 {dimension_numbers = #tpu.dot_dimension_numbers<[1], [1], [0], [0], [0, 0, 1, 0], [], []>} : vector<64x8xbf16>, vector<64x8xbf16>, vector<64x64xf32> -> vector<64x64xf32>
    %cst_165 = arith.constant 0.353553385 : f32
    %372 = vector.broadcast %cst_165 : f32 to vector<64x64xf32>
    %373 = arith.mulf %371, %372 : vector<64x64xf32>
    %cst_166 = arith.constant dense<0xFF800000> : vector<64xf32>
    %374 = vector.multi_reduction <maximumf>, %373, %cst_166 [1] : vector<64x64xf32> to vector<64xf32>
    %375 = vector.shape_cast %374 : vector<64xf32> to vector<64x1xf32>
    %376 = vector.broadcast %375 : vector<64x1xf32> to vector<64x64xf32>
    %377 = arith.subf %373, %376 : vector<64x64xf32>
    %378 = math.exp %377 : vector<64x64xf32>
    %cst_167 = arith.constant dense<0.000000e+00> : vector<64xf32>
    %379 = vector.multi_reduction <add>, %378, %cst_167 [1] : vector<64x64xf32> to vector<64xf32>
    %380 = vector.shape_cast %379 : vector<64xf32> to vector<64x1xf32>
    %381 = tpu.reciprocal %380 {approx = true} : vector<64x1xf32> -> vector<64x1xf32>
    %382 = vector.broadcast %381 : vector<64x1xf32> to vector<64x64xf32>
    %383 = arith.mulf %378, %382 : vector<64x64xf32>
    %384 = arith.truncf %383 : vector<64x64xf32> to vector<64x64xbf16>
    %cst_168 = arith.constant dense<0.000000e+00> : vector<64x8xf32>
    %385 = tpu.matmul %384, %370, %cst_168 {dimension_numbers = #tpu.dot_dimension_numbers<[1], [0], [0], [1], [0, 0, 1, 1], [], []>} : vector<64x64xbf16>, vector<64x8xbf16>, vector<64x8xf32> -> vector<64x8xf32>
    %386 = vector.extract_strided_slice %343 {offsets = [0, 16], sizes = [64, 8], strides = [1, 1]} : vector<64x96xf32> to vector<64x8xf32>
    %387 = arith.truncf %386 : vector<64x8xf32> to vector<64x8xbf16>
    %388 = vector.extract_strided_slice %343 {offsets = [0, 48], sizes = [64, 8], strides = [1, 1]} : vector<64x96xf32> to vector<64x8xf32>
    %389 = arith.truncf %388 : vector<64x8xf32> to vector<64x8xbf16>
    %390 = vector.extract_strided_slice %343 {offsets = [0, 80], sizes = [64, 8], strides = [1, 1]} : vector<64x96xf32> to vector<64x8xf32>
    %391 = arith.truncf %390 : vector<64x8xf32> to vector<64x8xbf16>
    %cst_169 = arith.constant dense<0.000000e+00> : vector<64x64xf32>
    %392 = tpu.matmul %387, %389, %cst_169 {dimension_numbers = #tpu.dot_dimension_numbers<[1], [1], [0], [0], [0, 0, 1, 0], [], []>} : vector<64x8xbf16>, vector<64x8xbf16>, vector<64x64xf32> -> vector<64x64xf32>
    %cst_170 = arith.constant 0.353553385 : f32
    %393 = vector.broadcast %cst_170 : f32 to vector<64x64xf32>
    %394 = arith.mulf %392, %393 : vector<64x64xf32>
    %cst_171 = arith.constant dense<0xFF800000> : vector<64xf32>
    %395 = vector.multi_reduction <maximumf>, %394, %cst_171 [1] : vector<64x64xf32> to vector<64xf32>
    %396 = vector.shape_cast %395 : vector<64xf32> to vector<64x1xf32>
    %397 = vector.broadcast %396 : vector<64x1xf32> to vector<64x64xf32>
    %398 = arith.subf %394, %397 : vector<64x64xf32>
    %399 = math.exp %398 : vector<64x64xf32>
    %cst_172 = arith.constant dense<0.000000e+00> : vector<64xf32>
    %400 = vector.multi_reduction <add>, %399, %cst_172 [1] : vector<64x64xf32> to vector<64xf32>
    %401 = vector.shape_cast %400 : vector<64xf32> to vector<64x1xf32>
    %402 = tpu.reciprocal %401 {approx = true} : vector<64x1xf32> -> vector<64x1xf32>
    %403 = vector.broadcast %402 : vector<64x1xf32> to vector<64x64xf32>
    %404 = arith.mulf %399, %403 : vector<64x64xf32>
    %405 = arith.truncf %404 : vector<64x64xf32> to vector<64x64xbf16>
    %cst_173 = arith.constant dense<0.000000e+00> : vector<64x8xf32>
    %406 = tpu.matmul %405, %391, %cst_173 {dimension_numbers = #tpu.dot_dimension_numbers<[1], [0], [0], [1], [0, 0, 1, 1], [], []>} : vector<64x64xbf16>, vector<64x8xbf16>, vector<64x8xf32> -> vector<64x8xf32>
    %407 = vector.extract_strided_slice %343 {offsets = [0, 24], sizes = [64, 8], strides = [1, 1]} : vector<64x96xf32> to vector<64x8xf32>
    %408 = arith.truncf %407 : vector<64x8xf32> to vector<64x8xbf16>
    %409 = vector.extract_strided_slice %343 {offsets = [0, 56], sizes = [64, 8], strides = [1, 1]} : vector<64x96xf32> to vector<64x8xf32>
    %410 = arith.truncf %409 : vector<64x8xf32> to vector<64x8xbf16>
    %411 = vector.extract_strided_slice %343 {offsets = [0, 88], sizes = [64, 8], strides = [1, 1]} : vector<64x96xf32> to vector<64x8xf32>
    %412 = arith.truncf %411 : vector<64x8xf32> to vector<64x8xbf16>
    %cst_174 = arith.constant dense<0.000000e+00> : vector<64x64xf32>
    %413 = tpu.matmul %408, %410, %cst_174 {dimension_numbers = #tpu.dot_dimension_numbers<[1], [1], [0], [0], [0, 0, 1, 0], [], []>} : vector<64x8xbf16>, vector<64x8xbf16>, vector<64x64xf32> -> vector<64x64xf32>
    %cst_175 = arith.constant 0.353553385 : f32
    %414 = vector.broadcast %cst_175 : f32 to vector<64x64xf32>
    %415 = arith.mulf %413, %414 : vector<64x64xf32>
    %cst_176 = arith.constant dense<0xFF800000> : vector<64xf32>
    %416 = vector.multi_reduction <maximumf>, %415, %cst_176 [1] : vector<64x64xf32> to vector<64xf32>
    %417 = vector.shape_cast %416 : vector<64xf32> to vector<64x1xf32>
    %418 = vector.broadcast %417 : vector<64x1xf32> to vector<64x64xf32>
    %419 = arith.subf %415, %418 : vector<64x64xf32>
    %420 = math.exp %419 : vector<64x64xf32>
    %cst_177 = arith.constant dense<0.000000e+00> : vector<64xf32>
    %421 = vector.multi_reduction <add>, %420, %cst_177 [1] : vector<64x64xf32> to vector<64xf32>
    %422 = vector.shape_cast %421 : vector<64xf32> to vector<64x1xf32>
    %423 = tpu.reciprocal %422 {approx = true} : vector<64x1xf32> -> vector<64x1xf32>
    %424 = vector.broadcast %423 : vector<64x1xf32> to vector<64x64xf32>
    %425 = arith.mulf %420, %424 : vector<64x64xf32>
    %426 = arith.truncf %425 : vector<64x64xf32> to vector<64x64xbf16>
    %cst_178 = arith.constant dense<0.000000e+00> : vector<64x8xf32>
    %427 = tpu.matmul %426, %412, %cst_178 {dimension_numbers = #tpu.dot_dimension_numbers<[1], [0], [0], [1], [0, 0, 1, 1], [], []>} : vector<64x64xbf16>, vector<64x8xbf16>, vector<64x8xf32> -> vector<64x8xf32>
    %428 = tpu.concatenate %364, %385, %406, %427 in 1 : vector<64x8xf32>, vector<64x8xf32>, vector<64x8xf32>, vector<64x8xf32> -> vector<64x32xf32>
    %c1_179 = arith.constant 1 : index
    %c0_180 = arith.constant 0 : index
    %c0_181 = arith.constant 0 : index
    %429 = vector.load %arg10[%c1_179, %c0_180, %c0_181] : memref<3x32x32xbf16, #tpu.memory_space<vmem>>, vector<1x32x32xbf16>
    %430 = vector.shape_cast %429 : vector<1x32x32xbf16> to vector<32x32xbf16>
    %431 = arith.truncf %428 : vector<64x32xf32> to vector<64x32xbf16>
    %cst_182 = arith.constant dense<0.000000e+00> : vector<64x32xf32>
    %432 = tpu.matmul %431, %430, %cst_182 {dimension_numbers = #tpu.dot_dimension_numbers<[1], [0], [0], [1], [0, 0, 1, 1], [], []>} : vector<64x32xbf16>, vector<32x32xbf16>, vector<64x32xf32> -> vector<64x32xf32>
    %433 = arith.addf %311, %432 : vector<64x32xf32>
    %c1_183 = arith.constant 1 : index
    %c0_184 = arith.constant 0 : index
    %c0_185 = arith.constant 0 : index
    %434 = vector.load %arg11[%c1_183, %c0_184, %c0_185] : memref<3x1x32xf32, #tpu.memory_space<vmem>>, vector<1x1x32xf32>
    %435 = vector.shape_cast %434 : vector<1x1x32xf32> to vector<1x32xf32>
    %436 = vector.broadcast %435 : vector<1x32xf32> to vector<64x32xf32>
    %437 = arith.addf %433, %436 : vector<64x32xf32>
    %c1_186 = arith.constant 1 : index
    %c0_187 = arith.constant 0 : index
    %c0_188 = arith.constant 0 : index
    %438 = vector.load %arg12[%c1_186, %c0_187, %c0_188] : memref<3x1x32xf32, #tpu.memory_space<vmem>>, vector<1x1x32xf32>
    %439 = vector.shape_cast %438 : vector<1x1x32xf32> to vector<1x32xf32>
    %c1_189 = arith.constant 1 : index
    %c0_190 = arith.constant 0 : index
    %c0_191 = arith.constant 0 : index
    %440 = vector.load %arg13[%c1_189, %c0_190, %c0_191] : memref<3x1x32xf32, #tpu.memory_space<vmem>>, vector<1x1x32xf32>
    %441 = vector.shape_cast %440 : vector<1x1x32xf32> to vector<1x32xf32>
    %cst_192 = arith.constant dense<0.000000e+00> : vector<64xf32>
    %442 = vector.multi_reduction <add>, %437, %cst_192 [1] : vector<64x32xf32> to vector<64xf32>
    %443 = vector.shape_cast %442 : vector<64xf32> to vector<64x1xf32>
    %cst_193 = arith.constant 3.200000e+01 : f32
    %444 = vector.broadcast %cst_193 : f32 to vector<64x1xf32>
    %445 = arith.divf %443, %444 : vector<64x1xf32>
    %446 = vector.broadcast %445 : vector<64x1xf32> to vector<64x32xf32>
    %447 = arith.subf %437, %446 : vector<64x32xf32>
    %448 = arith.mulf %447, %447 : vector<64x32xf32>
    %cst_194 = arith.constant dense<0.000000e+00> : vector<64xf32>
    %449 = vector.multi_reduction <add>, %448, %cst_194 [1] : vector<64x32xf32> to vector<64xf32>
    %450 = vector.shape_cast %449 : vector<64xf32> to vector<64x1xf32>
    %cst_195 = arith.constant 3.200000e+01 : f32
    %451 = vector.broadcast %cst_195 : f32 to vector<64x1xf32>
    %452 = arith.divf %450, %451 : vector<64x1xf32>
    %cst_196 = arith.constant 9.99999974E-6 : f32
    %453 = vector.broadcast %cst_196 : f32 to vector<64x1xf32>
    %454 = arith.addf %452, %453 : vector<64x1xf32>
    %455 = math.rsqrt %454 : vector<64x1xf32>
    %456 = vector.broadcast %455 : vector<64x1xf32> to vector<64x32xf32>
    %457 = arith.mulf %447, %456 : vector<64x32xf32>
    %458 = vector.broadcast %439 : vector<1x32xf32> to vector<64x32xf32>
    %459 = arith.mulf %457, %458 : vector<64x32xf32>
    %460 = vector.broadcast %441 : vector<1x32xf32> to vector<64x32xf32>
    %461 = arith.addf %459, %460 : vector<64x32xf32>
    %c1_197 = arith.constant 1 : index
    %c0_198 = arith.constant 0 : index
    %c0_199 = arith.constant 0 : index
    %462 = vector.load %arg14[%c1_197, %c0_198, %c0_199] : memref<3x32x128xbf16, #tpu.memory_space<vmem>>, vector<1x32x128xbf16>
    %463 = vector.shape_cast %462 : vector<1x32x128xbf16> to vector<32x128xbf16>
    %464 = arith.truncf %461 : vector<64x32xf32> to vector<64x32xbf16>
    %cst_200 = arith.constant dense<0.000000e+00> : vector<64x128xf32>
    %465 = tpu.matmul %464, %463, %cst_200 {dimension_numbers = #tpu.dot_dimension_numbers<[1], [0], [0], [1], [0, 0, 1, 1], [], []>} : vector<64x32xbf16>, vector<32x128xbf16>, vector<64x128xf32> -> vector<64x128xf32>
    %c1_201 = arith.constant 1 : index
    %c0_202 = arith.constant 0 : index
    %c0_203 = arith.constant 0 : index
    %466 = vector.load %arg15[%c1_201, %c0_202, %c0_203] : memref<3x1x128xf32, #tpu.memory_space<vmem>>, vector<1x1x128xf32>
    %467 = vector.shape_cast %466 : vector<1x1x128xf32> to vector<1x128xf32>
    %468 = vector.broadcast %467 : vector<1x128xf32> to vector<64x128xf32>
    %469 = arith.addf %465, %468 : vector<64x128xf32>
    %470 = vector.shape_cast %469 : vector<64x128xf32> to vector<8x8x128xf32>
    %c1_204 = arith.constant 1 : index
    %c1_205 = arith.constant 1 : index
    %c0_206 = arith.constant 0 : index
    %471 = vector.load %arg23[%c1_204, %c1_205, %c0_206] : memref<10x10x128xf32, #tpu.memory_space<vmem>>, vector<8x8x128xf32>
    tpu.vector_store %arg23[%c1_204, %c1_205, %c0_206], %470 {strides = array<i32>} : memref<10x10x128xf32, #tpu.memory_space<vmem>>, vector<8x8x128xf32>,
    %c1_207 = arith.constant 1 : index
    %c0_208 = arith.constant 0 : index
    %c0_209 = arith.constant 0 : index
    %c0_210 = arith.constant 0 : index
    %472 = vector.load %arg16[%c1_207, %c0_208, %c0_209, %c0_210] : memref<3x3x3x128xf32, #tpu.memory_space<vmem>>, vector<1x3x3x128xf32>
    %473 = vector.shape_cast %472 : vector<1x3x3x128xf32> to vector<3x3x128xf32>
    %cst_211 = arith.constant 0.000000e+00 : f32
    %474 = vector.broadcast %cst_211 : f32 to vector<8x8x128xf32>
    %c0_212 = arith.constant 0 : index
    %c0_213 = arith.constant 0 : index
    %c0_214 = arith.constant 0 : index
    %475 = vector.load %arg23[%c0_212, %c0_213, %c0_214] : memref<10x10x128xf32, #tpu.memory_space<vmem>>, vector<8x8x128xf32>
    %476 = vector.extract_strided_slice %473 {offsets = [0, 0, 0], sizes = [1, 1, 128], strides = [1, 1, 1]} : vector<3x3x128xf32> to vector<1x1x128xf32>
    %477 = vector.shape_cast %476 : vector<1x1x128xf32> to vector<128xf32>
    %478 = vector.shape_cast %477 : vector<128xf32> to vector<1x1x128xf32>
    %479 = vector.broadcast %478 : vector<1x1x128xf32> to vector<8x8x128xf32>
    %480 = arith.mulf %475, %479 : vector<8x8x128xf32>
    %481 = arith.addf %474, %480 : vector<8x8x128xf32>
    %c0_215 = arith.constant 0 : index
    %c1_216 = arith.constant 1 : index
    %c0_217 = arith.constant 0 : index
    %482 = vector.load %arg23[%c0_215, %c1_216, %c0_217] : memref<10x10x128xf32, #tpu.memory_space<vmem>>, vector<8x8x128xf32>
    %483 = vector.extract_strided_slice %473 {offsets = [0, 1, 0], sizes = [1, 1, 128], strides = [1, 1, 1]} : vector<3x3x128xf32> to vector<1x1x128xf32>
    %484 = vector.shape_cast %483 : vector<1x1x128xf32> to vector<128xf32>
    %485 = vector.shape_cast %484 : vector<128xf32> to vector<1x1x128xf32>
    %486 = vector.broadcast %485 : vector<1x1x128xf32> to vector<8x8x128xf32>
    %487 = arith.mulf %482, %486 : vector<8x8x128xf32>
    %488 = arith.addf %481, %487 : vector<8x8x128xf32>
    %c0_218 = arith.constant 0 : index
    %c2_219 = arith.constant 2 : index
    %c0_220 = arith.constant 0 : index
    %489 = vector.load %arg23[%c0_218, %c2_219, %c0_220] : memref<10x10x128xf32, #tpu.memory_space<vmem>>, vector<8x8x128xf32>
    %490 = vector.extract_strided_slice %473 {offsets = [0, 2, 0], sizes = [1, 1, 128], strides = [1, 1, 1]} : vector<3x3x128xf32> to vector<1x1x128xf32>
    %491 = vector.shape_cast %490 : vector<1x1x128xf32> to vector<128xf32>
    %492 = vector.shape_cast %491 : vector<128xf32> to vector<1x1x128xf32>
    %493 = vector.broadcast %492 : vector<1x1x128xf32> to vector<8x8x128xf32>
    %494 = arith.mulf %489, %493 : vector<8x8x128xf32>
    %495 = arith.addf %488, %494 : vector<8x8x128xf32>
    %c1_221 = arith.constant 1 : index
    %c0_222 = arith.constant 0 : index
    %c0_223 = arith.constant 0 : index
    %496 = vector.load %arg23[%c1_221, %c0_222, %c0_223] : memref<10x10x128xf32, #tpu.memory_space<vmem>>, vector<8x8x128xf32>
    %497 = vector.extract_strided_slice %473 {offsets = [1, 0, 0], sizes = [1, 1, 128], strides = [1, 1, 1]} : vector<3x3x128xf32> to vector<1x1x128xf32>
    %498 = vector.shape_cast %497 : vector<1x1x128xf32> to vector<128xf32>
    %499 = vector.shape_cast %498 : vector<128xf32> to vector<1x1x128xf32>
    %500 = vector.broadcast %499 : vector<1x1x128xf32> to vector<8x8x128xf32>
    %501 = arith.mulf %496, %500 : vector<8x8x128xf32>
    %502 = arith.addf %495, %501 : vector<8x8x128xf32>
    %c1_224 = arith.constant 1 : index
    %c1_225 = arith.constant 1 : index
    %c0_226 = arith.constant 0 : index
    %503 = vector.load %arg23[%c1_224, %c1_225, %c0_226] : memref<10x10x128xf32, #tpu.memory_space<vmem>>, vector<8x8x128xf32>
    %504 = vector.extract_strided_slice %473 {offsets = [1, 1, 0], sizes = [1, 1, 128], strides = [1, 1, 1]} : vector<3x3x128xf32> to vector<1x1x128xf32>
    %505 = vector.shape_cast %504 : vector<1x1x128xf32> to vector<128xf32>
    %506 = vector.shape_cast %505 : vector<128xf32> to vector<1x1x128xf32>
    %507 = vector.broadcast %506 : vector<1x1x128xf32> to vector<8x8x128xf32>
    %508 = arith.mulf %503, %507 : vector<8x8x128xf32>
    %509 = arith.addf %502, %508 : vector<8x8x128xf32>
    %c1_227 = arith.constant 1 : index
    %c2_228 = arith.constant 2 : index
    %c0_229 = arith.constant 0 : index
    %510 = vector.load %arg23[%c1_227, %c2_228, %c0_229] : memref<10x10x128xf32, #tpu.memory_space<vmem>>, vector<8x8x128xf32>
    %511 = vector.extract_strided_slice %473 {offsets = [1, 2, 0], sizes = [1, 1, 128], strides = [1, 1, 1]} : vector<3x3x128xf32> to vector<1x1x128xf32>
    %512 = vector.shape_cast %511 : vector<1x1x128xf32> to vector<128xf32>
    %513 = vector.shape_cast %512 : vector<128xf32> to vector<1x1x128xf32>
    %514 = vector.broadcast %513 : vector<1x1x128xf32> to vector<8x8x128xf32>
    %515 = arith.mulf %510, %514 : vector<8x8x128xf32>
    %516 = arith.addf %509, %515 : vector<8x8x128xf32>
    %c2_230 = arith.constant 2 : index
    %c0_231 = arith.constant 0 : index
    %c0_232 = arith.constant 0 : index
    %517 = vector.load %arg23[%c2_230, %c0_231, %c0_232] : memref<10x10x128xf32, #tpu.memory_space<vmem>>, vector<8x8x128xf32>
    %518 = vector.extract_strided_slice %473 {offsets = [2, 0, 0], sizes = [1, 1, 128], strides = [1, 1, 1]} : vector<3x3x128xf32> to vector<1x1x128xf32>
    %519 = vector.shape_cast %518 : vector<1x1x128xf32> to vector<128xf32>
    %520 = vector.shape_cast %519 : vector<128xf32> to vector<1x1x128xf32>
    %521 = vector.broadcast %520 : vector<1x1x128xf32> to vector<8x8x128xf32>
    %522 = arith.mulf %517, %521 : vector<8x8x128xf32>
    %523 = arith.addf %516, %522 : vector<8x8x128xf32>
    %c2_233 = arith.constant 2 : index
    %c1_234 = arith.constant 1 : index
    %c0_235 = arith.constant 0 : index
    %524 = vector.load %arg23[%c2_233, %c1_234, %c0_235] : memref<10x10x128xf32, #tpu.memory_space<vmem>>, vector<8x8x128xf32>
    %525 = vector.extract_strided_slice %473 {offsets = [2, 1, 0], sizes = [1, 1, 128], strides = [1, 1, 1]} : vector<3x3x128xf32> to vector<1x1x128xf32>
    %526 = vector.shape_cast %525 : vector<1x1x128xf32> to vector<128xf32>
    %527 = vector.shape_cast %526 : vector<128xf32> to vector<1x1x128xf32>
    %528 = vector.broadcast %527 : vector<1x1x128xf32> to vector<8x8x128xf32>
    %529 = arith.mulf %524, %528 : vector<8x8x128xf32>
    %530 = arith.addf %523, %529 : vector<8x8x128xf32>
    %c2_236 = arith.constant 2 : index
    %c2_237 = arith.constant 2 : index
    %c0_238 = arith.constant 0 : index
    %531 = vector.load %arg23[%c2_236, %c2_237, %c0_238] : memref<10x10x128xf32, #tpu.memory_space<vmem>>, vector<8x8x128xf32>
    %532 = vector.extract_strided_slice %473 {offsets = [2, 2, 0], sizes = [1, 1, 128], strides = [1, 1, 1]} : vector<3x3x128xf32> to vector<1x1x128xf32>
    %533 = vector.shape_cast %532 : vector<1x1x128xf32> to vector<128xf32>
    %534 = vector.shape_cast %533 : vector<128xf32> to vector<1x1x128xf32>
    %535 = vector.broadcast %534 : vector<1x1x128xf32> to vector<8x8x128xf32>
    %536 = arith.mulf %531, %535 : vector<8x8x128xf32>
    %537 = arith.addf %530, %536 : vector<8x8x128xf32>
    %c1_239 = arith.constant 1 : index
    %c0_240 = arith.constant 0 : index
    %c0_241 = arith.constant 0 : index
    %c0_242 = arith.constant 0 : index
    %538 = vector.load %arg17[%c1_239, %c0_240, %c0_241, %c0_242] : memref<3x1x1x128xf32, #tpu.memory_space<vmem>>, vector<1x1x1x128xf32>
    %539 = vector.shape_cast %538 : vector<1x1x1x128xf32> to vector<1x1x128xf32>
    %540 = vector.broadcast %539 : vector<1x1x128xf32> to vector<8x8x128xf32>
    %541 = arith.addf %537, %540 : vector<8x8x128xf32>
    %542 = vector.shape_cast %541 : vector<8x8x128xf32> to vector<64x128xf32>
    %cst_243 = arith.constant 5.000000e-01 : f32
    %543 = vector.broadcast %cst_243 : f32 to vector<64x128xf32>
    %544 = arith.mulf %543, %542 : vector<64x128xf32>
    %cst_244 = arith.constant 0.707106769 : f32
    %545 = vector.broadcast %cst_244 : f32 to vector<64x128xf32>
    %546 = arith.mulf %542, %545 : vector<64x128xf32>
    %547 = math.absf %546 : vector<64x128xf32>
    %cst_245 = arith.constant 0.327591091 : f32
    %548 = vector.broadcast %cst_245 : f32 to vector<64x128xf32>
    %549 = arith.mulf %548, %547 : vector<64x128xf32>
    %cst_246 = arith.constant 1.000000e+00 : f32
    %550 = vector.broadcast %cst_246 : f32 to vector<64x128xf32>
    %551 = arith.addf %550, %549 : vector<64x128xf32>
    %cst_247 = arith.constant 1.000000e+00 : f32
    %552 = vector.broadcast %cst_247 : f32 to vector<64x128xf32>
    %553 = arith.divf %552, %551 : vector<64x128xf32>
    %cst_248 = arith.constant 1.06140542 : f32
    %554 = vector.broadcast %cst_248 : f32 to vector<64x128xf32>
    %555 = arith.mulf %553, %554 : vector<64x128xf32>
    %cst_249 = arith.constant -1.45315206 : f32
    %556 = vector.broadcast %cst_249 : f32 to vector<64x128xf32>
    %557 = arith.addf %556, %555 : vector<64x128xf32>
    %558 = arith.mulf %553, %557 : vector<64x128xf32>
    %cst_250 = arith.constant 1.42141378 : f32
    %559 = vector.broadcast %cst_250 : f32 to vector<64x128xf32>
    %560 = arith.addf %559, %558 : vector<64x128xf32>
    %561 = arith.mulf %553, %560 : vector<64x128xf32>
    %cst_251 = arith.constant -0.284496725 : f32
    %562 = vector.broadcast %cst_251 : f32 to vector<64x128xf32>
    %563 = arith.addf %562, %561 : vector<64x128xf32>
    %564 = arith.mulf %553, %563 : vector<64x128xf32>
    %cst_252 = arith.constant 0.254829586 : f32
    %565 = vector.broadcast %cst_252 : f32 to vector<64x128xf32>
    %566 = arith.addf %565, %564 : vector<64x128xf32>
    %567 = arith.mulf %553, %566 : vector<64x128xf32>
    %568 = arith.mulf %546, %546 : vector<64x128xf32>
    %cst_253 = arith.constant 0.000000e+00 : f32
    %569 = vector.broadcast %cst_253 : f32 to vector<64x128xf32>
    %570 = arith.subf %569, %568 : vector<64x128xf32>
    %571 = math.exp %570 : vector<64x128xf32>
    %572 = arith.mulf %567, %571 : vector<64x128xf32>
    %cst_254 = arith.constant 1.000000e+00 : f32
    %573 = vector.broadcast %cst_254 : f32 to vector<64x128xf32>
    %574 = arith.subf %573, %572 : vector<64x128xf32>
    %cst_255 = arith.constant 0.000000e+00 : f32
    %575 = vector.broadcast %cst_255 : f32 to vector<64x128xf32>
    %576 = arith.cmpf oge, %546, %575 : vector<64x128xf32>
    %cst_256 = arith.constant 0.000000e+00 : f32
    %577 = vector.broadcast %cst_256 : f32 to vector<64x128xf32>
    %578 = arith.subf %577, %574 : vector<64x128xf32>
    %579 = arith.select %576, %574, %578 : vector<64x128xi1>, vector<64x128xf32>
    %cst_257 = arith.constant 1.000000e+00 : f32
    %580 = vector.broadcast %cst_257 : f32 to vector<64x128xf32>
    %581 = arith.addf %580, %579 : vector<64x128xf32>
    %582 = arith.mulf %544, %581 : vector<64x128xf32>
    %c1_258 = arith.constant 1 : index
    %c0_259 = arith.constant 0 : index
    %c0_260 = arith.constant 0 : index
    %583 = vector.load %arg18[%c1_258, %c0_259, %c0_260] : memref<3x128x32xbf16, #tpu.memory_space<vmem>>, vector<1x128x32xbf16>
    %584 = vector.shape_cast %583 : vector<1x128x32xbf16> to vector<128x32xbf16>
    %585 = arith.truncf %582 : vector<64x128xf32> to vector<64x128xbf16>
    %cst_261 = arith.constant dense<0.000000e+00> : vector<64x32xf32>
    %586 = tpu.matmul %585, %584, %cst_261 {dimension_numbers = #tpu.dot_dimension_numbers<[1], [0], [0], [1], [0, 0, 1, 1], [], []>} : vector<64x128xbf16>, vector<128x32xbf16>, vector<64x32xf32> -> vector<64x32xf32>
    %587 = arith.addf %437, %586 : vector<64x32xf32>
    %c1_262 = arith.constant 1 : index
    %c0_263 = arith.constant 0 : index
    %c0_264 = arith.constant 0 : index
    %588 = vector.load %arg19[%c1_262, %c0_263, %c0_264] : memref<3x1x32xf32, #tpu.memory_space<vmem>>, vector<1x1x32xf32>
    %589 = vector.shape_cast %588 : vector<1x1x32xf32> to vector<1x32xf32>
    %590 = vector.broadcast %589 : vector<1x32xf32> to vector<64x32xf32>
    %591 = arith.addf %587, %590 : vector<64x32xf32>
    %c2_265 = arith.constant 2 : index
    %c0_266 = arith.constant 0 : index
    %c0_267 = arith.constant 0 : index
    %592 = vector.load %arg6[%c2_265, %c0_266, %c0_267] : memref<3x1x32xf32, #tpu.memory_space<vmem>>, vector<1x1x32xf32>
    %593 = vector.shape_cast %592 : vector<1x1x32xf32> to vector<1x32xf32>
    %c2_268 = arith.constant 2 : index
    %c0_269 = arith.constant 0 : index
    %c0_270 = arith.constant 0 : index
    %594 = vector.load %arg7[%c2_268, %c0_269, %c0_270] : memref<3x1x32xf32, #tpu.memory_space<vmem>>, vector<1x1x32xf32>
    %595 = vector.shape_cast %594 : vector<1x1x32xf32> to vector<1x32xf32>
    %cst_271 = arith.constant dense<0.000000e+00> : vector<64xf32>
    %596 = vector.multi_reduction <add>, %591, %cst_271 [1] : vector<64x32xf32> to vector<64xf32>
    %597 = vector.shape_cast %596 : vector<64xf32> to vector<64x1xf32>
    %cst_272 = arith.constant 3.200000e+01 : f32
    %598 = vector.broadcast %cst_272 : f32 to vector<64x1xf32>
    %599 = arith.divf %597, %598 : vector<64x1xf32>
    %600 = vector.broadcast %599 : vector<64x1xf32> to vector<64x32xf32>
    %601 = arith.subf %591, %600 : vector<64x32xf32>
    %602 = arith.mulf %601, %601 : vector<64x32xf32>
    %cst_273 = arith.constant dense<0.000000e+00> : vector<64xf32>
    %603 = vector.multi_reduction <add>, %602, %cst_273 [1] : vector<64x32xf32> to vector<64xf32>
    %604 = vector.shape_cast %603 : vector<64xf32> to vector<64x1xf32>
    %cst_274 = arith.constant 3.200000e+01 : f32
    %605 = vector.broadcast %cst_274 : f32 to vector<64x1xf32>
    %606 = arith.divf %604, %605 : vector<64x1xf32>
    %cst_275 = arith.constant 9.99999974E-6 : f32
    %607 = vector.broadcast %cst_275 : f32 to vector<64x1xf32>
    %608 = arith.addf %606, %607 : vector<64x1xf32>
    %609 = math.rsqrt %608 : vector<64x1xf32>
    %610 = vector.broadcast %609 : vector<64x1xf32> to vector<64x32xf32>
    %611 = arith.mulf %601, %610 : vector<64x32xf32>
    %612 = vector.broadcast %593 : vector<1x32xf32> to vector<64x32xf32>
    %613 = arith.mulf %611, %612 : vector<64x32xf32>
    %614 = vector.broadcast %595 : vector<1x32xf32> to vector<64x32xf32>
    %615 = arith.addf %613, %614 : vector<64x32xf32>
    %c2_276 = arith.constant 2 : index
    %c0_277 = arith.constant 0 : index
    %c0_278 = arith.constant 0 : index
    %616 = vector.load %arg8[%c2_276, %c0_277, %c0_278] : memref<3x32x96xbf16, #tpu.memory_space<vmem>>, vector<1x32x96xbf16>
    %617 = vector.shape_cast %616 : vector<1x32x96xbf16> to vector<32x96xbf16>
    %618 = arith.truncf %615 : vector<64x32xf32> to vector<64x32xbf16>
    %cst_279 = arith.constant dense<0.000000e+00> : vector<64x96xf32>
    %619 = tpu.matmul %618, %617, %cst_279 {dimension_numbers = #tpu.dot_dimension_numbers<[1], [0], [0], [1], [0, 0, 1, 1], [], []>} : vector<64x32xbf16>, vector<32x96xbf16>, vector<64x96xf32> -> vector<64x96xf32>
    %c2_280 = arith.constant 2 : index
    %c0_281 = arith.constant 0 : index
    %c0_282 = arith.constant 0 : index
    %620 = vector.load %arg9[%c2_280, %c0_281, %c0_282] : memref<3x1x96xf32, #tpu.memory_space<vmem>>, vector<1x1x96xf32>
    %621 = vector.shape_cast %620 : vector<1x1x96xf32> to vector<1x96xf32>
    %622 = vector.broadcast %621 : vector<1x96xf32> to vector<64x96xf32>
    %623 = arith.addf %619, %622 : vector<64x96xf32>
    %624 = vector.extract_strided_slice %623 {offsets = [0, 0], sizes = [64, 8], strides = [1, 1]} : vector<64x96xf32> to vector<64x8xf32>
    %625 = arith.truncf %624 : vector<64x8xf32> to vector<64x8xbf16>
    %626 = vector.extract_strided_slice %623 {offsets = [0, 32], sizes = [64, 8], strides = [1, 1]} : vector<64x96xf32> to vector<64x8xf32>
    %627 = arith.truncf %626 : vector<64x8xf32> to vector<64x8xbf16>
    %628 = vector.extract_strided_slice %623 {offsets = [0, 64], sizes = [64, 8], strides = [1, 1]} : vector<64x96xf32> to vector<64x8xf32>
    %629 = arith.truncf %628 : vector<64x8xf32> to vector<64x8xbf16>
    %cst_283 = arith.constant dense<0.000000e+00> : vector<64x64xf32>
    %630 = tpu.matmul %625, %627, %cst_283 {dimension_numbers = #tpu.dot_dimension_numbers<[1], [1], [0], [0], [0, 0, 1, 0], [], []>} : vector<64x8xbf16>, vector<64x8xbf16>, vector<64x64xf32> -> vector<64x64xf32>
    %cst_284 = arith.constant 0.353553385 : f32
    %631 = vector.broadcast %cst_284 : f32 to vector<64x64xf32>
    %632 = arith.mulf %630, %631 : vector<64x64xf32>
    %cst_285 = arith.constant dense<0xFF800000> : vector<64xf32>
    %633 = vector.multi_reduction <maximumf>, %632, %cst_285 [1] : vector<64x64xf32> to vector<64xf32>
    %634 = vector.shape_cast %633 : vector<64xf32> to vector<64x1xf32>
    %635 = vector.broadcast %634 : vector<64x1xf32> to vector<64x64xf32>
    %636 = arith.subf %632, %635 : vector<64x64xf32>
    %637 = math.exp %636 : vector<64x64xf32>
    %cst_286 = arith.constant dense<0.000000e+00> : vector<64xf32>
    %638 = vector.multi_reduction <add>, %637, %cst_286 [1] : vector<64x64xf32> to vector<64xf32>
    %639 = vector.shape_cast %638 : vector<64xf32> to vector<64x1xf32>
    %640 = tpu.reciprocal %639 {approx = true} : vector<64x1xf32> -> vector<64x1xf32>
    %641 = vector.broadcast %640 : vector<64x1xf32> to vector<64x64xf32>
    %642 = arith.mulf %637, %641 : vector<64x64xf32>
    %643 = arith.truncf %642 : vector<64x64xf32> to vector<64x64xbf16>
    %cst_287 = arith.constant dense<0.000000e+00> : vector<64x8xf32>
    %644 = tpu.matmul %643, %629, %cst_287 {dimension_numbers = #tpu.dot_dimension_numbers<[1], [0], [0], [1], [0, 0, 1, 1], [], []>} : vector<64x64xbf16>, vector<64x8xbf16>, vector<64x8xf32> -> vector<64x8xf32>
    %645 = vector.extract_strided_slice %623 {offsets = [0, 8], sizes = [64, 8], strides = [1, 1]} : vector<64x96xf32> to vector<64x8xf32>
    %646 = arith.truncf %645 : vector<64x8xf32> to vector<64x8xbf16>
    %647 = vector.extract_strided_slice %623 {offsets = [0, 40], sizes = [64, 8], strides = [1, 1]} : vector<64x96xf32> to vector<64x8xf32>
    %648 = arith.truncf %647 : vector<64x8xf32> to vector<64x8xbf16>
    %649 = vector.extract_strided_slice %623 {offsets = [0, 72], sizes = [64, 8], strides = [1, 1]} : vector<64x96xf32> to vector<64x8xf32>
    %650 = arith.truncf %649 : vector<64x8xf32> to vector<64x8xbf16>
    %cst_288 = arith.constant dense<0.000000e+00> : vector<64x64xf32>
    %651 = tpu.matmul %646, %648, %cst_288 {dimension_numbers = #tpu.dot_dimension_numbers<[1], [1], [0], [0], [0, 0, 1, 0], [], []>} : vector<64x8xbf16>, vector<64x8xbf16>, vector<64x64xf32> -> vector<64x64xf32>
    %cst_289 = arith.constant 0.353553385 : f32
    %652 = vector.broadcast %cst_289 : f32 to vector<64x64xf32>
    %653 = arith.mulf %651, %652 : vector<64x64xf32>
    %cst_290 = arith.constant dense<0xFF800000> : vector<64xf32>
    %654 = vector.multi_reduction <maximumf>, %653, %cst_290 [1] : vector<64x64xf32> to vector<64xf32>
    %655 = vector.shape_cast %654 : vector<64xf32> to vector<64x1xf32>
    %656 = vector.broadcast %655 : vector<64x1xf32> to vector<64x64xf32>
    %657 = arith.subf %653, %656 : vector<64x64xf32>
    %658 = math.exp %657 : vector<64x64xf32>
    %cst_291 = arith.constant dense<0.000000e+00> : vector<64xf32>
    %659 = vector.multi_reduction <add>, %658, %cst_291 [1] : vector<64x64xf32> to vector<64xf32>
    %660 = vector.shape_cast %659 : vector<64xf32> to vector<64x1xf32>
    %661 = tpu.reciprocal %660 {approx = true} : vector<64x1xf32> -> vector<64x1xf32>
    %662 = vector.broadcast %661 : vector<64x1xf32> to vector<64x64xf32>
    %663 = arith.mulf %658, %662 : vector<64x64xf32>
    %664 = arith.truncf %663 : vector<64x64xf32> to vector<64x64xbf16>
    %cst_292 = arith.constant dense<0.000000e+00> : vector<64x8xf32>
    %665 = tpu.matmul %664, %650, %cst_292 {dimension_numbers = #tpu.dot_dimension_numbers<[1], [0], [0], [1], [0, 0, 1, 1], [], []>} : vector<64x64xbf16>, vector<64x8xbf16>, vector<64x8xf32> -> vector<64x8xf32>
    %666 = vector.extract_strided_slice %623 {offsets = [0, 16], sizes = [64, 8], strides = [1, 1]} : vector<64x96xf32> to vector<64x8xf32>
    %667 = arith.truncf %666 : vector<64x8xf32> to vector<64x8xbf16>
    %668 = vector.extract_strided_slice %623 {offsets = [0, 48], sizes = [64, 8], strides = [1, 1]} : vector<64x96xf32> to vector<64x8xf32>
    %669 = arith.truncf %668 : vector<64x8xf32> to vector<64x8xbf16>
    %670 = vector.extract_strided_slice %623 {offsets = [0, 80], sizes = [64, 8], strides = [1, 1]} : vector<64x96xf32> to vector<64x8xf32>
    %671 = arith.truncf %670 : vector<64x8xf32> to vector<64x8xbf16>
    %cst_293 = arith.constant dense<0.000000e+00> : vector<64x64xf32>
    %672 = tpu.matmul %667, %669, %cst_293 {dimension_numbers = #tpu.dot_dimension_numbers<[1], [1], [0], [0], [0, 0, 1, 0], [], []>} : vector<64x8xbf16>, vector<64x8xbf16>, vector<64x64xf32> -> vector<64x64xf32>
    %cst_294 = arith.constant 0.353553385 : f32
    %673 = vector.broadcast %cst_294 : f32 to vector<64x64xf32>
    %674 = arith.mulf %672, %673 : vector<64x64xf32>
    %cst_295 = arith.constant dense<0xFF800000> : vector<64xf32>
    %675 = vector.multi_reduction <maximumf>, %674, %cst_295 [1] : vector<64x64xf32> to vector<64xf32>
    %676 = vector.shape_cast %675 : vector<64xf32> to vector<64x1xf32>
    %677 = vector.broadcast %676 : vector<64x1xf32> to vector<64x64xf32>
    %678 = arith.subf %674, %677 : vector<64x64xf32>
    %679 = math.exp %678 : vector<64x64xf32>
    %cst_296 = arith.constant dense<0.000000e+00> : vector<64xf32>
    %680 = vector.multi_reduction <add>, %679, %cst_296 [1] : vector<64x64xf32> to vector<64xf32>
    %681 = vector.shape_cast %680 : vector<64xf32> to vector<64x1xf32>
    %682 = tpu.reciprocal %681 {approx = true} : vector<64x1xf32> -> vector<64x1xf32>
    %683 = vector.broadcast %682 : vector<64x1xf32> to vector<64x64xf32>
    %684 = arith.mulf %679, %683 : vector<64x64xf32>
    %685 = arith.truncf %684 : vector<64x64xf32> to vector<64x64xbf16>
    %cst_297 = arith.constant dense<0.000000e+00> : vector<64x8xf32>
    %686 = tpu.matmul %685, %671, %cst_297 {dimension_numbers = #tpu.dot_dimension_numbers<[1], [0], [0], [1], [0, 0, 1, 1], [], []>} : vector<64x64xbf16>, vector<64x8xbf16>, vector<64x8xf32> -> vector<64x8xf32>
    %687 = vector.extract_strided_slice %623 {offsets = [0, 24], sizes = [64, 8], strides = [1, 1]} : vector<64x96xf32> to vector<64x8xf32>
    %688 = arith.truncf %687 : vector<64x8xf32> to vector<64x8xbf16>
    %689 = vector.extract_strided_slice %623 {offsets = [0, 56], sizes = [64, 8], strides = [1, 1]} : vector<64x96xf32> to vector<64x8xf32>
    %690 = arith.truncf %689 : vector<64x8xf32> to vector<64x8xbf16>
    %691 = vector.extract_strided_slice %623 {offsets = [0, 88], sizes = [64, 8], strides = [1, 1]} : vector<64x96xf32> to vector<64x8xf32>
    %692 = arith.truncf %691 : vector<64x8xf32> to vector<64x8xbf16>
    %cst_298 = arith.constant dense<0.000000e+00> : vector<64x64xf32>
    %693 = tpu.matmul %688, %690, %cst_298 {dimension_numbers = #tpu.dot_dimension_numbers<[1], [1], [0], [0], [0, 0, 1, 0], [], []>} : vector<64x8xbf16>, vector<64x8xbf16>, vector<64x64xf32> -> vector<64x64xf32>
    %cst_299 = arith.constant 0.353553385 : f32
    %694 = vector.broadcast %cst_299 : f32 to vector<64x64xf32>
    %695 = arith.mulf %693, %694 : vector<64x64xf32>
    %cst_300 = arith.constant dense<0xFF800000> : vector<64xf32>
    %696 = vector.multi_reduction <maximumf>, %695, %cst_300 [1] : vector<64x64xf32> to vector<64xf32>
    %697 = vector.shape_cast %696 : vector<64xf32> to vector<64x1xf32>
    %698 = vector.broadcast %697 : vector<64x1xf32> to vector<64x64xf32>
    %699 = arith.subf %695, %698 : vector<64x64xf32>
    %700 = math.exp %699 : vector<64x64xf32>
    %cst_301 = arith.constant dense<0.000000e+00> : vector<64xf32>
    %701 = vector.multi_reduction <add>, %700, %cst_301 [1] : vector<64x64xf32> to vector<64xf32>
    %702 = vector.shape_cast %701 : vector<64xf32> to vector<64x1xf32>
    %703 = tpu.reciprocal %702 {approx = true} : vector<64x1xf32> -> vector<64x1xf32>
    %704 = vector.broadcast %703 : vector<64x1xf32> to vector<64x64xf32>
    %705 = arith.mulf %700, %704 : vector<64x64xf32>
    %706 = arith.truncf %705 : vector<64x64xf32> to vector<64x64xbf16>
    %cst_302 = arith.constant dense<0.000000e+00> : vector<64x8xf32>
    %707 = tpu.matmul %706, %692, %cst_302 {dimension_numbers = #tpu.dot_dimension_numbers<[1], [0], [0], [1], [0, 0, 1, 1], [], []>} : vector<64x64xbf16>, vector<64x8xbf16>, vector<64x8xf32> -> vector<64x8xf32>
    %708 = tpu.concatenate %644, %665, %686, %707 in 1 : vector<64x8xf32>, vector<64x8xf32>, vector<64x8xf32>, vector<64x8xf32> -> vector<64x32xf32>
    %c2_303 = arith.constant 2 : index
    %c0_304 = arith.constant 0 : index
    %c0_305 = arith.constant 0 : index
    %709 = vector.load %arg10[%c2_303, %c0_304, %c0_305] : memref<3x32x32xbf16, #tpu.memory_space<vmem>>, vector<1x32x32xbf16>
    %710 = vector.shape_cast %709 : vector<1x32x32xbf16> to vector<32x32xbf16>
    %711 = arith.truncf %708 : vector<64x32xf32> to vector<64x32xbf16>
    %cst_306 = arith.constant dense<0.000000e+00> : vector<64x32xf32>
    %712 = tpu.matmul %711, %710, %cst_306 {dimension_numbers = #tpu.dot_dimension_numbers<[1], [0], [0], [1], [0, 0, 1, 1], [], []>} : vector<64x32xbf16>, vector<32x32xbf16>, vector<64x32xf32> -> vector<64x32xf32>
    %713 = arith.addf %591, %712 : vector<64x32xf32>
    %c2_307 = arith.constant 2 : index
    %c0_308 = arith.constant 0 : index
    %c0_309 = arith.constant 0 : index
    %714 = vector.load %arg11[%c2_307, %c0_308, %c0_309] : memref<3x1x32xf32, #tpu.memory_space<vmem>>, vector<1x1x32xf32>
    %715 = vector.shape_cast %714 : vector<1x1x32xf32> to vector<1x32xf32>
    %716 = vector.broadcast %715 : vector<1x32xf32> to vector<64x32xf32>
    %717 = arith.addf %713, %716 : vector<64x32xf32>
    %c2_310 = arith.constant 2 : index
    %c0_311 = arith.constant 0 : index
    %c0_312 = arith.constant 0 : index
    %718 = vector.load %arg12[%c2_310, %c0_311, %c0_312] : memref<3x1x32xf32, #tpu.memory_space<vmem>>, vector<1x1x32xf32>
    %719 = vector.shape_cast %718 : vector<1x1x32xf32> to vector<1x32xf32>
    %c2_313 = arith.constant 2 : index
    %c0_314 = arith.constant 0 : index
    %c0_315 = arith.constant 0 : index
    %720 = vector.load %arg13[%c2_313, %c0_314, %c0_315] : memref<3x1x32xf32, #tpu.memory_space<vmem>>, vector<1x1x32xf32>
    %721 = vector.shape_cast %720 : vector<1x1x32xf32> to vector<1x32xf32>
    %cst_316 = arith.constant dense<0.000000e+00> : vector<64xf32>
    %722 = vector.multi_reduction <add>, %717, %cst_316 [1] : vector<64x32xf32> to vector<64xf32>
    %723 = vector.shape_cast %722 : vector<64xf32> to vector<64x1xf32>
    %cst_317 = arith.constant 3.200000e+01 : f32
    %724 = vector.broadcast %cst_317 : f32 to vector<64x1xf32>
    %725 = arith.divf %723, %724 : vector<64x1xf32>
    %726 = vector.broadcast %725 : vector<64x1xf32> to vector<64x32xf32>
    %727 = arith.subf %717, %726 : vector<64x32xf32>
    %728 = arith.mulf %727, %727 : vector<64x32xf32>
    %cst_318 = arith.constant dense<0.000000e+00> : vector<64xf32>
    %729 = vector.multi_reduction <add>, %728, %cst_318 [1] : vector<64x32xf32> to vector<64xf32>
    %730 = vector.shape_cast %729 : vector<64xf32> to vector<64x1xf32>
    %cst_319 = arith.constant 3.200000e+01 : f32
    %731 = vector.broadcast %cst_319 : f32 to vector<64x1xf32>
    %732 = arith.divf %730, %731 : vector<64x1xf32>
    %cst_320 = arith.constant 9.99999974E-6 : f32
    %733 = vector.broadcast %cst_320 : f32 to vector<64x1xf32>
    %734 = arith.addf %732, %733 : vector<64x1xf32>
    %735 = math.rsqrt %734 : vector<64x1xf32>
    %736 = vector.broadcast %735 : vector<64x1xf32> to vector<64x32xf32>
    %737 = arith.mulf %727, %736 : vector<64x32xf32>
    %738 = vector.broadcast %719 : vector<1x32xf32> to vector<64x32xf32>
    %739 = arith.mulf %737, %738 : vector<64x32xf32>
    %740 = vector.broadcast %721 : vector<1x32xf32> to vector<64x32xf32>
    %741 = arith.addf %739, %740 : vector<64x32xf32>
    %c2_321 = arith.constant 2 : index
    %c0_322 = arith.constant 0 : index
    %c0_323 = arith.constant 0 : index
    %742 = vector.load %arg14[%c2_321, %c0_322, %c0_323] : memref<3x32x128xbf16, #tpu.memory_space<vmem>>, vector<1x32x128xbf16>
    %743 = vector.shape_cast %742 : vector<1x32x128xbf16> to vector<32x128xbf16>
    %744 = arith.truncf %741 : vector<64x32xf32> to vector<64x32xbf16>
    %cst_324 = arith.constant dense<0.000000e+00> : vector<64x128xf32>
    %745 = tpu.matmul %744, %743, %cst_324 {dimension_numbers = #tpu.dot_dimension_numbers<[1], [0], [0], [1], [0, 0, 1, 1], [], []>} : vector<64x32xbf16>, vector<32x128xbf16>, vector<64x128xf32> -> vector<64x128xf32>
    %c2_325 = arith.constant 2 : index
    %c0_326 = arith.constant 0 : index
    %c0_327 = arith.constant 0 : index
    %746 = vector.load %arg15[%c2_325, %c0_326, %c0_327] : memref<3x1x128xf32, #tpu.memory_space<vmem>>, vector<1x1x128xf32>
    %747 = vector.shape_cast %746 : vector<1x1x128xf32> to vector<1x128xf32>
    %748 = vector.broadcast %747 : vector<1x128xf32> to vector<64x128xf32>
    %749 = arith.addf %745, %748 : vector<64x128xf32>
    %750 = vector.shape_cast %749 : vector<64x128xf32> to vector<8x8x128xf32>
    %c1_328 = arith.constant 1 : index
    %c1_329 = arith.constant 1 : index
    %c0_330 = arith.constant 0 : index
    %751 = vector.load %arg23[%c1_328, %c1_329, %c0_330] : memref<10x10x128xf32, #tpu.memory_space<vmem>>, vector<8x8x128xf32>
    tpu.vector_store %arg23[%c1_328, %c1_329, %c0_330], %750 {strides = array<i32>} : memref<10x10x128xf32, #tpu.memory_space<vmem>>, vector<8x8x128xf32>,
    %c2_331 = arith.constant 2 : index
    %c0_332 = arith.constant 0 : index
    %c0_333 = arith.constant 0 : index
    %c0_334 = arith.constant 0 : index
    %752 = vector.load %arg16[%c2_331, %c0_332, %c0_333, %c0_334] : memref<3x3x3x128xf32, #tpu.memory_space<vmem>>, vector<1x3x3x128xf32>
    %753 = vector.shape_cast %752 : vector<1x3x3x128xf32> to vector<3x3x128xf32>
    %cst_335 = arith.constant 0.000000e+00 : f32
    %754 = vector.broadcast %cst_335 : f32 to vector<8x8x128xf32>
    %c0_336 = arith.constant 0 : index
    %c0_337 = arith.constant 0 : index
    %c0_338 = arith.constant 0 : index
    %755 = vector.load %arg23[%c0_336, %c0_337, %c0_338] : memref<10x10x128xf32, #tpu.memory_space<vmem>>, vector<8x8x128xf32>
    %756 = vector.extract_strided_slice %753 {offsets = [0, 0, 0], sizes = [1, 1, 128], strides = [1, 1, 1]} : vector<3x3x128xf32> to vector<1x1x128xf32>
    %757 = vector.shape_cast %756 : vector<1x1x128xf32> to vector<128xf32>
    %758 = vector.shape_cast %757 : vector<128xf32> to vector<1x1x128xf32>
    %759 = vector.broadcast %758 : vector<1x1x128xf32> to vector<8x8x128xf32>
    %760 = arith.mulf %755, %759 : vector<8x8x128xf32>
    %761 = arith.addf %754, %760 : vector<8x8x128xf32>
    %c0_339 = arith.constant 0 : index
    %c1_340 = arith.constant 1 : index
    %c0_341 = arith.constant 0 : index
    %762 = vector.load %arg23[%c0_339, %c1_340, %c0_341] : memref<10x10x128xf32, #tpu.memory_space<vmem>>, vector<8x8x128xf32>
    %763 = vector.extract_strided_slice %753 {offsets = [0, 1, 0], sizes = [1, 1, 128], strides = [1, 1, 1]} : vector<3x3x128xf32> to vector<1x1x128xf32>
    %764 = vector.shape_cast %763 : vector<1x1x128xf32> to vector<128xf32>
    %765 = vector.shape_cast %764 : vector<128xf32> to vector<1x1x128xf32>
    %766 = vector.broadcast %765 : vector<1x1x128xf32> to vector<8x8x128xf32>
    %767 = arith.mulf %762, %766 : vector<8x8x128xf32>
    %768 = arith.addf %761, %767 : vector<8x8x128xf32>
    %c0_342 = arith.constant 0 : index
    %c2_343 = arith.constant 2 : index
    %c0_344 = arith.constant 0 : index
    %769 = vector.load %arg23[%c0_342, %c2_343, %c0_344] : memref<10x10x128xf32, #tpu.memory_space<vmem>>, vector<8x8x128xf32>
    %770 = vector.extract_strided_slice %753 {offsets = [0, 2, 0], sizes = [1, 1, 128], strides = [1, 1, 1]} : vector<3x3x128xf32> to vector<1x1x128xf32>
    %771 = vector.shape_cast %770 : vector<1x1x128xf32> to vector<128xf32>
    %772 = vector.shape_cast %771 : vector<128xf32> to vector<1x1x128xf32>
    %773 = vector.broadcast %772 : vector<1x1x128xf32> to vector<8x8x128xf32>
    %774 = arith.mulf %769, %773 : vector<8x8x128xf32>
    %775 = arith.addf %768, %774 : vector<8x8x128xf32>
    %c1_345 = arith.constant 1 : index
    %c0_346 = arith.constant 0 : index
    %c0_347 = arith.constant 0 : index
    %776 = vector.load %arg23[%c1_345, %c0_346, %c0_347] : memref<10x10x128xf32, #tpu.memory_space<vmem>>, vector<8x8x128xf32>
    %777 = vector.extract_strided_slice %753 {offsets = [1, 0, 0], sizes = [1, 1, 128], strides = [1, 1, 1]} : vector<3x3x128xf32> to vector<1x1x128xf32>
    %778 = vector.shape_cast %777 : vector<1x1x128xf32> to vector<128xf32>
    %779 = vector.shape_cast %778 : vector<128xf32> to vector<1x1x128xf32>
    %780 = vector.broadcast %779 : vector<1x1x128xf32> to vector<8x8x128xf32>
    %781 = arith.mulf %776, %780 : vector<8x8x128xf32>
    %782 = arith.addf %775, %781 : vector<8x8x128xf32>
    %c1_348 = arith.constant 1 : index
    %c1_349 = arith.constant 1 : index
    %c0_350 = arith.constant 0 : index
    %783 = vector.load %arg23[%c1_348, %c1_349, %c0_350] : memref<10x10x128xf32, #tpu.memory_space<vmem>>, vector<8x8x128xf32>
    %784 = vector.extract_strided_slice %753 {offsets = [1, 1, 0], sizes = [1, 1, 128], strides = [1, 1, 1]} : vector<3x3x128xf32> to vector<1x1x128xf32>
    %785 = vector.shape_cast %784 : vector<1x1x128xf32> to vector<128xf32>
    %786 = vector.shape_cast %785 : vector<128xf32> to vector<1x1x128xf32>
    %787 = vector.broadcast %786 : vector<1x1x128xf32> to vector<8x8x128xf32>
    %788 = arith.mulf %783, %787 : vector<8x8x128xf32>
    %789 = arith.addf %782, %788 : vector<8x8x128xf32>
    %c1_351 = arith.constant 1 : index
    %c2_352 = arith.constant 2 : index
    %c0_353 = arith.constant 0 : index
    %790 = vector.load %arg23[%c1_351, %c2_352, %c0_353] : memref<10x10x128xf32, #tpu.memory_space<vmem>>, vector<8x8x128xf32>
    %791 = vector.extract_strided_slice %753 {offsets = [1, 2, 0], sizes = [1, 1, 128], strides = [1, 1, 1]} : vector<3x3x128xf32> to vector<1x1x128xf32>
    %792 = vector.shape_cast %791 : vector<1x1x128xf32> to vector<128xf32>
    %793 = vector.shape_cast %792 : vector<128xf32> to vector<1x1x128xf32>
    %794 = vector.broadcast %793 : vector<1x1x128xf32> to vector<8x8x128xf32>
    %795 = arith.mulf %790, %794 : vector<8x8x128xf32>
    %796 = arith.addf %789, %795 : vector<8x8x128xf32>
    %c2_354 = arith.constant 2 : index
    %c0_355 = arith.constant 0 : index
    %c0_356 = arith.constant 0 : index
    %797 = vector.load %arg23[%c2_354, %c0_355, %c0_356] : memref<10x10x128xf32, #tpu.memory_space<vmem>>, vector<8x8x128xf32>
    %798 = vector.extract_strided_slice %753 {offsets = [2, 0, 0], sizes = [1, 1, 128], strides = [1, 1, 1]} : vector<3x3x128xf32> to vector<1x1x128xf32>
    %799 = vector.shape_cast %798 : vector<1x1x128xf32> to vector<128xf32>
    %800 = vector.shape_cast %799 : vector<128xf32> to vector<1x1x128xf32>
    %801 = vector.broadcast %800 : vector<1x1x128xf32> to vector<8x8x128xf32>
    %802 = arith.mulf %797, %801 : vector<8x8x128xf32>
    %803 = arith.addf %796, %802 : vector<8x8x128xf32>
    %c2_357 = arith.constant 2 : index
    %c1_358 = arith.constant 1 : index
    %c0_359 = arith.constant 0 : index
    %804 = vector.load %arg23[%c2_357, %c1_358, %c0_359] : memref<10x10x128xf32, #tpu.memory_space<vmem>>, vector<8x8x128xf32>
    %805 = vector.extract_strided_slice %753 {offsets = [2, 1, 0], sizes = [1, 1, 128], strides = [1, 1, 1]} : vector<3x3x128xf32> to vector<1x1x128xf32>
    %806 = vector.shape_cast %805 : vector<1x1x128xf32> to vector<128xf32>
    %807 = vector.shape_cast %806 : vector<128xf32> to vector<1x1x128xf32>
    %808 = vector.broadcast %807 : vector<1x1x128xf32> to vector<8x8x128xf32>
    %809 = arith.mulf %804, %808 : vector<8x8x128xf32>
    %810 = arith.addf %803, %809 : vector<8x8x128xf32>
    %c2_360 = arith.constant 2 : index
    %c2_361 = arith.constant 2 : index
    %c0_362 = arith.constant 0 : index
    %811 = vector.load %arg23[%c2_360, %c2_361, %c0_362] : memref<10x10x128xf32, #tpu.memory_space<vmem>>, vector<8x8x128xf32>
    %812 = vector.extract_strided_slice %753 {offsets = [2, 2, 0], sizes = [1, 1, 128], strides = [1, 1, 1]} : vector<3x3x128xf32> to vector<1x1x128xf32>
    %813 = vector.shape_cast %812 : vector<1x1x128xf32> to vector<128xf32>
    %814 = vector.shape_cast %813 : vector<128xf32> to vector<1x1x128xf32>
    %815 = vector.broadcast %814 : vector<1x1x128xf32> to vector<8x8x128xf32>
    %816 = arith.mulf %811, %815 : vector<8x8x128xf32>
    %817 = arith.addf %810, %816 : vector<8x8x128xf32>
    %c2_363 = arith.constant 2 : index
    %c0_364 = arith.constant 0 : index
    %c0_365 = arith.constant 0 : index
    %c0_366 = arith.constant 0 : index
    %818 = vector.load %arg17[%c2_363, %c0_364, %c0_365, %c0_366] : memref<3x1x1x128xf32, #tpu.memory_space<vmem>>, vector<1x1x1x128xf32>
    %819 = vector.shape_cast %818 : vector<1x1x1x128xf32> to vector<1x1x128xf32>
    %820 = vector.broadcast %819 : vector<1x1x128xf32> to vector<8x8x128xf32>
    %821 = arith.addf %817, %820 : vector<8x8x128xf32>
    %822 = vector.shape_cast %821 : vector<8x8x128xf32> to vector<64x128xf32>
    %cst_367 = arith.constant 5.000000e-01 : f32
    %823 = vector.broadcast %cst_367 : f32 to vector<64x128xf32>
    %824 = arith.mulf %823, %822 : vector<64x128xf32>
    %cst_368 = arith.constant 0.707106769 : f32
    %825 = vector.broadcast %cst_368 : f32 to vector<64x128xf32>
    %826 = arith.mulf %822, %825 : vector<64x128xf32>
    %827 = math.absf %826 : vector<64x128xf32>
    %cst_369 = arith.constant 0.327591091 : f32
    %828 = vector.broadcast %cst_369 : f32 to vector<64x128xf32>
    %829 = arith.mulf %828, %827 : vector<64x128xf32>
    %cst_370 = arith.constant 1.000000e+00 : f32
    %830 = vector.broadcast %cst_370 : f32 to vector<64x128xf32>
    %831 = arith.addf %830, %829 : vector<64x128xf32>
    %cst_371 = arith.constant 1.000000e+00 : f32
    %832 = vector.broadcast %cst_371 : f32 to vector<64x128xf32>
    %833 = arith.divf %832, %831 : vector<64x128xf32>
    %cst_372 = arith.constant 1.06140542 : f32
    %834 = vector.broadcast %cst_372 : f32 to vector<64x128xf32>
    %835 = arith.mulf %833, %834 : vector<64x128xf32>
    %cst_373 = arith.constant -1.45315206 : f32
    %836 = vector.broadcast %cst_373 : f32 to vector<64x128xf32>
    %837 = arith.addf %836, %835 : vector<64x128xf32>
    %838 = arith.mulf %833, %837 : vector<64x128xf32>
    %cst_374 = arith.constant 1.42141378 : f32
    %839 = vector.broadcast %cst_374 : f32 to vector<64x128xf32>
    %840 = arith.addf %839, %838 : vector<64x128xf32>
    %841 = arith.mulf %833, %840 : vector<64x128xf32>
    %cst_375 = arith.constant -0.284496725 : f32
    %842 = vector.broadcast %cst_375 : f32 to vector<64x128xf32>
    %843 = arith.addf %842, %841 : vector<64x128xf32>
    %844 = arith.mulf %833, %843 : vector<64x128xf32>
    %cst_376 = arith.constant 0.254829586 : f32
    %845 = vector.broadcast %cst_376 : f32 to vector<64x128xf32>
    %846 = arith.addf %845, %844 : vector<64x128xf32>
    %847 = arith.mulf %833, %846 : vector<64x128xf32>
    %848 = arith.mulf %826, %826 : vector<64x128xf32>
    %cst_377 = arith.constant 0.000000e+00 : f32
    %849 = vector.broadcast %cst_377 : f32 to vector<64x128xf32>
    %850 = arith.subf %849, %848 : vector<64x128xf32>
    %851 = math.exp %850 : vector<64x128xf32>
    %852 = arith.mulf %847, %851 : vector<64x128xf32>
    %cst_378 = arith.constant 1.000000e+00 : f32
    %853 = vector.broadcast %cst_378 : f32 to vector<64x128xf32>
    %854 = arith.subf %853, %852 : vector<64x128xf32>
    %cst_379 = arith.constant 0.000000e+00 : f32
    %855 = vector.broadcast %cst_379 : f32 to vector<64x128xf32>
    %856 = arith.cmpf oge, %826, %855 : vector<64x128xf32>
    %cst_380 = arith.constant 0.000000e+00 : f32
    %857 = vector.broadcast %cst_380 : f32 to vector<64x128xf32>
    %858 = arith.subf %857, %854 : vector<64x128xf32>
    %859 = arith.select %856, %854, %858 : vector<64x128xi1>, vector<64x128xf32>
    %cst_381 = arith.constant 1.000000e+00 : f32
    %860 = vector.broadcast %cst_381 : f32 to vector<64x128xf32>
    %861 = arith.addf %860, %859 : vector<64x128xf32>
    %862 = arith.mulf %824, %861 : vector<64x128xf32>
    %c2_382 = arith.constant 2 : index
    %c0_383 = arith.constant 0 : index
    %c0_384 = arith.constant 0 : index
    %863 = vector.load %arg18[%c2_382, %c0_383, %c0_384] : memref<3x128x32xbf16, #tpu.memory_space<vmem>>, vector<1x128x32xbf16>
    %864 = vector.shape_cast %863 : vector<1x128x32xbf16> to vector<128x32xbf16>
    %865 = arith.truncf %862 : vector<64x128xf32> to vector<64x128xbf16>
    %cst_385 = arith.constant dense<0.000000e+00> : vector<64x32xf32>
    %866 = tpu.matmul %865, %864, %cst_385 {dimension_numbers = #tpu.dot_dimension_numbers<[1], [0], [0], [1], [0, 0, 1, 1], [], []>} : vector<64x128xbf16>, vector<128x32xbf16>, vector<64x32xf32> -> vector<64x32xf32>
    %867 = arith.addf %717, %866 : vector<64x32xf32>
    %c2_386 = arith.constant 2 : index
    %c0_387 = arith.constant 0 : index
    %c0_388 = arith.constant 0 : index
    %868 = vector.load %arg19[%c2_386, %c0_387, %c0_388] : memref<3x1x32xf32, #tpu.memory_space<vmem>>, vector<1x1x32xf32>
    %869 = vector.shape_cast %868 : vector<1x1x32xf32> to vector<1x32xf32>
    %870 = vector.broadcast %869 : vector<1x32xf32> to vector<64x32xf32>
    %871 = arith.addf %867, %870 : vector<64x32xf32>
    %c0_389 = arith.constant 0 : index
    %c0_390 = arith.constant 0 : index
    %872 = vector.load %arg20[%c0_389, %c0_390] : memref<1x32xf32, #tpu.memory_space<vmem>>, vector<1x32xf32>
    %c0_391 = arith.constant 0 : index
    %c0_392 = arith.constant 0 : index
    %873 = vector.load %arg21[%c0_391, %c0_392] : memref<1x32xf32, #tpu.memory_space<vmem>>, vector<1x32xf32>
    %cst_393 = arith.constant dense<0.000000e+00> : vector<64xf32>
    %874 = vector.multi_reduction <add>, %871, %cst_393 [1] : vector<64x32xf32> to vector<64xf32>
    %875 = vector.shape_cast %874 : vector<64xf32> to vector<64x1xf32>
    %cst_394 = arith.constant 3.200000e+01 : f32
    %876 = vector.broadcast %cst_394 : f32 to vector<64x1xf32>
    %877 = arith.divf %875, %876 : vector<64x1xf32>
    %878 = vector.broadcast %877 : vector<64x1xf32> to vector<64x32xf32>
    %879 = arith.subf %871, %878 : vector<64x32xf32>
    %880 = arith.mulf %879, %879 : vector<64x32xf32>
    %cst_395 = arith.constant dense<0.000000e+00> : vector<64xf32>
    %881 = vector.multi_reduction <add>, %880, %cst_395 [1] : vector<64x32xf32> to vector<64xf32>
    %882 = vector.shape_cast %881 : vector<64xf32> to vector<64x1xf32>
    %cst_396 = arith.constant 3.200000e+01 : f32
    %883 = vector.broadcast %cst_396 : f32 to vector<64x1xf32>
    %884 = arith.divf %882, %883 : vector<64x1xf32>
    %cst_397 = arith.constant 9.99999974E-6 : f32
    %885 = vector.broadcast %cst_397 : f32 to vector<64x1xf32>
    %886 = arith.addf %884, %885 : vector<64x1xf32>
    %887 = math.rsqrt %886 : vector<64x1xf32>
    %888 = vector.broadcast %887 : vector<64x1xf32> to vector<64x32xf32>
    %889 = arith.mulf %879, %888 : vector<64x32xf32>
    %890 = vector.broadcast %872 : vector<1x32xf32> to vector<64x32xf32>
    %891 = arith.mulf %889, %890 : vector<64x32xf32>
    %892 = vector.broadcast %873 : vector<1x32xf32> to vector<64x32xf32>
    %893 = arith.addf %891, %892 : vector<64x32xf32>
    %c0_398 = arith.constant 0 : index
    %c0_399 = arith.constant 0 : index
    %c0_400 = arith.constant 0 : index
    %894 = vector.load %arg22[%c0_398, %c0_399, %c0_400] : memref<1x64x32xf32, #tpu.memory_space<vmem>>, vector<1x64x32xf32>
    %895 = vector.shape_cast %894 : vector<1x64x32xf32> to vector<64x32xf32>
    %896 = vector.shape_cast %893 : vector<64x32xf32> to vector<1x64x32xf32>
    tpu.vector_store %arg22[%c0_398, %c0_399, %c0_400], %896 {strides = array<i32>} : memref<1x64x32xf32, #tpu.memory_space<vmem>>, vector<1x64x32xf32>,
    return
  }
  func.func @transform_0(%arg0: i32) -> (i32, i32, i32) {
    %c0_i32 = arith.constant 0 : i32
    %c0_i32_0 = arith.constant 0 : i32
    %c0_i32_1 = arith.constant 0 : i32
    return %arg0, %c0_i32, %c0_i32_0 : i32, i32, i32
  }
  func.func @transform_1(%arg0: i32) -> (i32, i32) {
    %c0_i32 = arith.constant 0 : i32
    %c0_i32_0 = arith.constant 0 : i32
    %c0_i32_1 = arith.constant 0 : i32
    return %c0_i32, %c0_i32_0 : i32, i32
  }
  func.func @transform_2(%arg0: i32) -> (i32, i32) {
    %c0_i32 = arith.constant 0 : i32
    %c0_i32_0 = arith.constant 0 : i32
    %c0_i32_1 = arith.constant 0 : i32
    return %c0_i32, %c0_i32_0 : i32, i32
  }
  func.func @transform_3(%arg0: i32) -> (i32, i32) {
    %c0_i32 = arith.constant 0 : i32
    %c0_i32_0 = arith.constant 0 : i32
    %c0_i32_1 = arith.constant 0 : i32
    return %c0_i32, %c0_i32_0 : i32, i32
  }
  func.func @transform_4(%arg0: i32) -> (i32, i32) {
    %c0_i32 = arith.constant 0 : i32
    %c0_i32_0 = arith.constant 0 : i32
    %c0_i32_1 = arith.constant 0 : i32
    return %c0_i32, %c0_i32_0 : i32, i32
  }
  func.func @transform_5(%arg0: i32) -> (i32, i32, i32) {
    %c0_i32 = arith.constant 0 : i32
    %c0_i32_0 = arith.constant 0 : i32
    %c0_i32_1 = arith.constant 0 : i32
    %c0_i32_2 = arith.constant 0 : i32
    return %c0_i32, %c0_i32_0, %c0_i32_1 : i32, i32, i32
  }
  func.func @transform_6(%arg0: i32) -> (i32, i32, i32) {
    %c0_i32 = arith.constant 0 : i32
    %c0_i32_0 = arith.constant 0 : i32
    %c0_i32_1 = arith.constant 0 : i32
    %c0_i32_2 = arith.constant 0 : i32
    return %c0_i32, %c0_i32_0, %c0_i32_1 : i32, i32, i32
  }
  func.func @transform_7(%arg0: i32) -> (i32, i32, i32) {
    %c0_i32 = arith.constant 0 : i32
    %c0_i32_0 = arith.constant 0 : i32
    %c0_i32_1 = arith.constant 0 : i32
    %c0_i32_2 = arith.constant 0 : i32
    return %c0_i32, %c0_i32_0, %c0_i32_1 : i32, i32, i32
  }
  func.func @transform_8(%arg0: i32) -> (i32, i32, i32) {
    %c0_i32 = arith.constant 0 : i32
    %c0_i32_0 = arith.constant 0 : i32
    %c0_i32_1 = arith.constant 0 : i32
    %c0_i32_2 = arith.constant 0 : i32
    return %c0_i32, %c0_i32_0, %c0_i32_1 : i32, i32, i32
  }
  func.func @transform_9(%arg0: i32) -> (i32, i32, i32) {
    %c0_i32 = arith.constant 0 : i32
    %c0_i32_0 = arith.constant 0 : i32
    %c0_i32_1 = arith.constant 0 : i32
    %c0_i32_2 = arith.constant 0 : i32
    return %c0_i32, %c0_i32_0, %c0_i32_1 : i32, i32, i32
  }
  func.func @transform_10(%arg0: i32) -> (i32, i32, i32) {
    %c0_i32 = arith.constant 0 : i32
    %c0_i32_0 = arith.constant 0 : i32
    %c0_i32_1 = arith.constant 0 : i32
    %c0_i32_2 = arith.constant 0 : i32
    return %c0_i32, %c0_i32_0, %c0_i32_1 : i32, i32, i32
  }
  func.func @transform_11(%arg0: i32) -> (i32, i32, i32) {
    %c0_i32 = arith.constant 0 : i32
    %c0_i32_0 = arith.constant 0 : i32
    %c0_i32_1 = arith.constant 0 : i32
    %c0_i32_2 = arith.constant 0 : i32
    return %c0_i32, %c0_i32_0, %c0_i32_1 : i32, i32, i32
  }
  func.func @transform_12(%arg0: i32) -> (i32, i32, i32) {
    %c0_i32 = arith.constant 0 : i32
    %c0_i32_0 = arith.constant 0 : i32
    %c0_i32_1 = arith.constant 0 : i32
    %c0_i32_2 = arith.constant 0 : i32
    return %c0_i32, %c0_i32_0, %c0_i32_1 : i32, i32, i32
  }
  func.func @transform_13(%arg0: i32) -> (i32, i32, i32) {
    %c0_i32 = arith.constant 0 : i32
    %c0_i32_0 = arith.constant 0 : i32
    %c0_i32_1 = arith.constant 0 : i32
    %c0_i32_2 = arith.constant 0 : i32
    return %c0_i32, %c0_i32_0, %c0_i32_1 : i32, i32, i32
  }
  func.func @transform_14(%arg0: i32) -> (i32, i32, i32) {
    %c0_i32 = arith.constant 0 : i32
    %c0_i32_0 = arith.constant 0 : i32
    %c0_i32_1 = arith.constant 0 : i32
    %c0_i32_2 = arith.constant 0 : i32
    return %c0_i32, %c0_i32_0, %c0_i32_1 : i32, i32, i32
  }
  func.func @transform_15(%arg0: i32) -> (i32, i32, i32, i32) {
    %c0_i32 = arith.constant 0 : i32
    %c0_i32_0 = arith.constant 0 : i32
    %c0_i32_1 = arith.constant 0 : i32
    %c0_i32_2 = arith.constant 0 : i32
    %c0_i32_3 = arith.constant 0 : i32
    return %c0_i32, %c0_i32_0, %c0_i32_1, %c0_i32_2 : i32, i32, i32, i32
  }
  func.func @transform_16(%arg0: i32) -> (i32, i32, i32, i32) {
    %c0_i32 = arith.constant 0 : i32
    %c0_i32_0 = arith.constant 0 : i32
    %c0_i32_1 = arith.constant 0 : i32
    %c0_i32_2 = arith.constant 0 : i32
    %c0_i32_3 = arith.constant 0 : i32
    return %c0_i32, %c0_i32_0, %c0_i32_1, %c0_i32_2 : i32, i32, i32, i32
  }
  func.func @transform_17(%arg0: i32) -> (i32, i32, i32) {
    %c0_i32 = arith.constant 0 : i32
    %c0_i32_0 = arith.constant 0 : i32
    %c0_i32_1 = arith.constant 0 : i32
    %c0_i32_2 = arith.constant 0 : i32
    return %c0_i32, %c0_i32_0, %c0_i32_1 : i32, i32, i32
  }
  func.func @transform_18(%arg0: i32) -> (i32, i32, i32) {
    %c0_i32 = arith.constant 0 : i32
    %c0_i32_0 = arith.constant 0 : i32
    %c0_i32_1 = arith.constant 0 : i32
    %c0_i32_2 = arith.constant 0 : i32
    return %c0_i32, %c0_i32_0, %c0_i32_1 : i32, i32, i32
  }
  func.func @transform_19(%arg0: i32) -> (i32, i32) {
    %c0_i32 = arith.constant 0 : i32
    %c0_i32_0 = arith.constant 0 : i32
    %c0_i32_1 = arith.constant 0 : i32
    return %c0_i32, %c0_i32_0 : i32, i32
  }
  func.func @transform_20(%arg0: i32) -> (i32, i32) {
    %c0_i32 = arith.constant 0 : i32
    %c0_i32_0 = arith.constant 0 : i32
    %c0_i32_1 = arith.constant 0 : i32
    return %c0_i32, %c0_i32_0 : i32, i32
  }
  func.func @transform_21(%arg0: i32) -> (i32, i32, i32) {
    %c0_i32 = arith.constant 0 : i32
    %c0_i32_0 = arith.constant 0 : i32
    %c0_i32_1 = arith.constant 0 : i32
    return %arg0, %c0_i32, %c0_i32_0 : i32, i32, i32
  }
}

</mosaic_0001>

<llo_original>
// kernel: _lambda_.1
$region0: #{_lambda_.1}
  #allocation0 [shape = 'u32[]', space=smem, size = 0x4, offset = 0x4, fixed_abs, tag = 'smem constant byte address 0x4 - core index']
  #allocation1 [shape = 'u32[144,128]{1,0:T(1,128)}', space=vmem, size = 0x12000, scoped, tag = 'internal scratch']
  #allocation2 [shape = 'f32[10,10,128]{2,1,0:T(8,128)}', space=vmem, size = 0x14000, scoped, tag = 'scratch operand']
  %s0 = inlined_call_operand.vmem [shape: f32[2,64,144], index: 0, kind: input, shape index: {}]
  %s1 = inlined_call_operand.vmem [shape: bf16[144,32], index: 1, kind: input, shape index: {}]
  %s2 = inlined_call_operand.vmem [shape: f32[1,32], index: 2, kind: input, shape index: {}]
  %s3 = inlined_call_operand.vmem [shape: f32[1,32], index: 3, kind: input, shape index: {}, may-alias: {3,19}]
  %s4 = inlined_call_operand.vmem [shape: f32[1,32], index: 4, kind: input, shape index: {}, may-alias: {4,20}]
  %s5 = inlined_call_operand.vmem [shape: f32[3,1,32], index: 5, kind: input, shape index: {}, may-alias: {5,11}]
  %s6 = inlined_call_operand.vmem [shape: f32[3,1,32], index: 6, kind: input, shape index: {}, may-alias: {6,12}]
  %s7 = inlined_call_operand.vmem [shape: bf16[3,32,96], index: 7, kind: input, shape index: {}]
  %s8 = inlined_call_operand.vmem [shape: f32[3,1,96], index: 8, kind: input, shape index: {}]
  %s9 = inlined_call_operand.vmem [shape: bf16[3,32,32], index: 9, kind: input, shape index: {}]
  %s10 = inlined_call_operand.vmem [shape: f32[3,1,32], index: 10, kind: input, shape index: {}]
  %s11 = inlined_call_operand.vmem [shape: f32[3,1,32], index: 11, kind: input, shape index: {}, may-alias: {5,11}]
  %s12 = inlined_call_operand.vmem [shape: f32[3,1,32], index: 12, kind: input, shape index: {}, may-alias: {6,12}]
  %s13 = inlined_call_operand.vmem [shape: bf16[3,32,128], index: 13, kind: input, shape index: {}]
  %s14 = inlined_call_operand.vmem [shape: f32[3,1,128], index: 14, kind: input, shape index: {}]
  %s15 = inlined_call_operand.vmem [shape: f32[3,3,3,128], index: 15, kind: input, shape index: {}]
  %s16 = inlined_call_operand.vmem [shape: f32[3,1,1,128], index: 16, kind: input, shape index: {}]
  %s17 = inlined_call_operand.vmem [shape: bf16[3,128,32], index: 17, kind: input, shape index: {}]
  %s18 = inlined_call_operand.vmem [shape: f32[3,1,32], index: 18, kind: input, shape index: {}]
  %s19 = inlined_call_operand.vmem [shape: f32[1,32], index: 19, kind: input, shape index: {}, may-alias: {3,19}]
  %s20 = inlined_call_operand.vmem [shape: f32[1,32], index: 20, kind: input, shape index: {}, may-alias: {4,20}]
  %s21 = inlined_call_operand.hbm [shape: f32[2,64,32], index: 21, kind: output, shape index: {}]
  %s22 = sld [smem:[#allocation0]]
  $region117: #{_lambda_.1} parent=0
    _
  %s24 = ssub.s32 1, %s22
  %s25 = scalar_select 0, %s24, %s22
  $region1: #{_lambda_.1} parent=0
    #allocation3 [shape = 'u8[65536]{0}', space=vmem, size = 0x10000, scoped, tag = 'output window, operand 0']
    #allocation4 [shape = 's32[2]{0}', space=sflag, size = 0x8, scoped, tag = 'scoped memory for _lambda_.1']
    %26 = vsyncpa [#allocation4], 0
    %s27 = scalar_lea.sflag [#allocation4], 1
    %28 = vsyncpa %s27, 0
    loop: start=0, step=1, limit=4
    $region2: #{_lambda_.1} parent=1 // loop_pre_header
      _
    $region3: #{_lambda_.1} parent=1 // loop_header
      %s30 = sphi 0, %s34
      %p31 = scmp.ge.s32.totalorder %s30, 4
      %s40 = sphi 0, %s42
      %s43 = sphi 0, %s40
      %s44 = sphi 0, %s43
      %s60 = sphi 0, %s44
      %s64 = sphi 0, %s64
      %s66 = sphi 0, %s64
      %s67 = sphi 0, %s66
      %s81 = sphi 0, %s67
      %s85 = sphi 0, %s85
      %s87 = sphi 0, %s85
      %s88 = sphi 0, %s87
      %s102 = sphi 0, %s88
      %s106 = sphi 0, %s106
      %s108 = sphi 0, %s106
      %s109 = sphi 0, %s108
      %s123 = sphi 0, %s109
      %s127 = sphi 0, %s127
      %s129 = sphi 0, %s127
      %s130 = sphi 0, %s129
      %s144 = sphi 0, %s130
      %s148 = sphi 0, %s148
      %s150 = sphi 0, %s148
      %s151 = sphi 0, %s150
      %s165 = sphi 0, %s151
      %s169 = sphi 0, %s169
      %s171 = sphi 0, %s169
      %s172 = sphi 0, %s171
      %s186 = sphi 0, %s172
      %s190 = sphi 0, %s190
      %s192 = sphi 0, %s190
      %s193 = sphi 0, %s192
      %s207 = sphi 0, %s193
      %s211 = sphi 0, %s211
      %s213 = sphi 0, %s211
      %s214 = sphi 0, %s213
      %s228 = sphi 0, %s214
      %s232 = sphi 0, %s232
      %s234 = sphi 0, %s232
      %s235 = sphi 0, %s234
      %s249 = sphi 0, %s235
      %s253 = sphi 0, %s253
      %s255 = sphi 0, %s253
      %s256 = sphi 0, %s255
      %s270 = sphi 0, %s256
      %s274 = sphi 0, %s274
      %s276 = sphi 0, %s274
      %s277 = sphi 0, %s276
      %s291 = sphi 0, %s277
      %s295 = sphi 0, %s295
      %s297 = sphi 0, %s295
      %s298 = sphi 0, %s297
      %s312 = sphi 0, %s298
      %s316 = sphi 0, %s316
      %s318 = sphi 0, %s316
      %s319 = sphi 0, %s318
      %s333 = sphi 0, %s319
      %s337 = sphi 0, %s337
      %s339 = sphi 0, %s337
      %s340 = sphi 0, %s339
      %s354 = sphi 0, %s340
      %s358 = sphi 0, %s358
      %s360 = sphi 0, %s358
      %s361 = sphi 0, %s360
      %s375 = sphi 0, %s361
      %s379 = sphi 0, %s379
      %s381 = sphi 0, %s379
      %s382 = sphi 0, %s381
      %s396 = sphi 0, %s382
      %s400 = sphi 0, %s400
      %s402 = sphi 0, %s400
      %s403 = sphi 0, %s402
      %s417 = sphi 0, %s403
      %s421 = sphi 0, %s421
      %s423 = sphi 0, %s421
      %s424 = sphi 0, %s423
      %s438 = sphi 0, %s424
      %s442 = sphi 0, %s442
      %s444 = sphi 0, %s442
      %s445 = sphi 0, %s444
      %s459 = sphi 0, %s445
      %s463 = sphi 0, %s463
      %s465 = sphi 0, %s463
      %s466 = sphi 0, %s465
      %s480 = sphi 0, %s466
      %s486 = sphi 0, %s488
      %s489 = sphi 0, %s486
      %s490 = sphi 0, %s489
      %s506 = sphi 0, %s490
    $region4: #{_lambda_.1} parent=1 // loop_header_branch
      %33 = sbr.rel (%p31) target = $region8
    $region5: #{_lambda_.1} parent=1 // loop_body
      %s35 = ssub.s32 %s30, 1
      %s36 = ssub.s32 %s30, 2
      %s37 = sadd.s32 %s30, 1
      %s38 = ssub.s32 %s30, %s37
      %p39 = scmp.eq.s32.totalorder %s38, 0
      %s41 = sadd.s32 %s40, 1
      %s42 = scalar_select %p39, %s40, %s41
      %p45 = pneg %p39
      %p46 = scmp.eq.s32.totalorder %s30, 1
      %p47 = por %p45, %p46
      %p48 = scmp.ne.s32.totalorder %s40, %s43
      %p49 = scmp.eq.s32.totalorder %s30, 0
      %p50 = por %p48, %p49
      %p51 = scmp.ne.s32.totalorder %s40, %s43
      %p52 = scmp.eq.s32.totalorder %s35, 1
      %p53 = por %p51, %p52
      %p54 = scmp.ne.s32.totalorder %s43, %s44
      %p55 = scmp.eq.s32.totalorder %s35, 0
      %p56 = por %p54, %p55
      %p57 = scmp.ne.s32.totalorder %s43, %s44
      %p58 = scmp.eq.s32.totalorder %s36, 1
      %p59 = por %p57, %p58
      %p61 = scmp.ne.s32.totalorder %s44, %s60
      %p62 = scmp.eq.s32.totalorder %s36, 0
      %p63 = por %p61, %p62
      %s65 = sadd.s32 %s64, 1
      %p68 = scmp.eq.s32.totalorder %s30, 1
      %p69 = scmp.ne.s32.totalorder %s64, %s66
      %p70 = scmp.eq.s32.totalorder %s30, 0
      %p71 = por %p69, %p70
      %p72 = scmp.ne.s32.totalorder %s64, %s66
      %p73 = scmp.eq.s32.totalorder %s35, 1
      %p74 = por %p72, %p73
      %p75 = scmp.ne.s32.totalorder %s66, %s67
      %p76 = scmp.eq.s32.totalorder %s35, 0
      %p77 = por %p75, %p76
      %p78 = scmp.ne.s32.totalorder %s66, %s67
      %p79 = scmp.eq.s32.totalorder %s36, 1
      %p80 = por %p78, %p79
      %p82 = scmp.ne.s32.totalorder %s67, %s81
      %p83 = scmp.eq.s32.totalorder %s36, 0
      %p84 = por %p82, %p83
      %s86 = sadd.s32 %s85, 1
      %p89 = scmp.eq.s32.totalorder %s30, 1
      %p90 = scmp.ne.s32.totalorder %s85, %s87
      %p91 = scmp.eq.s32.totalorder %s30, 0
      %p92 = por %p90, %p91
      %p93 = scmp.ne.s32.totalorder %s85, %s87
      %p94 = scmp.eq.s32.totalorder %s35, 1
      %p95 = por %p93, %p94
      %p96 = scmp.ne.s32.totalorder %s87, %s88
      %p97 = scmp.eq.s32.totalorder %s35, 0
      %p98 = por %p96, %p97
      %p99 = scmp.ne.s32.totalorder %s87, %s88
      %p100 = scmp.eq.s32.totalorder %s36, 1
      %p101 = por %p99, %p100
      %p103 = scmp.ne.s32.totalorder %s88, %s102
      %p104 = scmp.eq.s32.totalorder %s36, 0
      %p105 = por %p103, %p104
      %s107 = sadd.s32 %s106, 1
      %p110 = scmp.eq.s32.totalorder %s30, 1
      %p111 = scmp.ne.s32.totalorder %s106, %s108
      %p112 = scmp.eq.s32.totalorder %s30, 0
      %p113 = por %p111, %p112
      %p114 = scmp.ne.s32.totalorder %s106, %s108
      %p115 = scmp.eq.s32.totalorder %s35, 1
      %p116 = por %p114, %p115
      %p117 = scmp.ne.s32.totalorder %s108, %s109
      %p118 = scmp.eq.s32.totalorder %s35, 0
      %p119 = por %p117, %p118
      %p120 = scmp.ne.s32.totalorder %s108, %s109
      %p121 = scmp.eq.s32.totalorder %s36, 1
      %p122 = por %p120, %p121
      %p124 = scmp.ne.s32.totalorder %s109, %s123
      %p125 = scmp.eq.s32.totalorder %s36, 0
      %p126 = por %p124, %p125
      %s128 = sadd.s32 %s127, 1
      %p131 = scmp.eq.s32.totalorder %s30, 1
      %p132 = scmp.ne.s32.totalorder %s127, %s129
      %p133 = scmp.eq.s32.totalorder %s30, 0
      %p134 = por %p132, %p133
      %p135 = scmp.ne.s32.totalorder %s127, %s129
      %p136 = scmp.eq.s32.totalorder %s35, 1
      %p137 = por %p135, %p136
      %p138 = scmp.ne.s32.totalorder %s129, %s130
      %p139 = scmp.eq.s32.totalorder %s35, 0
      %p140 = por %p138, %p139
      %p141 = scmp.ne.s32.totalorder %s129, %s130
      %p142 = scmp.eq.s32.totalorder %s36, 1
      %p143 = por %p141, %p142
      %p145 = scmp.ne.s32.totalorder %s130, %s144
      %p146 = scmp.eq.s32.totalorder %s36, 0
      %p147 = por %p145, %p146
      %s149 = sadd.s32 %s148, 1
      %p152 = scmp.eq.s32.totalorder %s30, 1
      %p153 = scmp.ne.s32.totalorder %s148, %s150
      %p154 = scmp.eq.s32.totalorder %s30, 0
      %p155 = por %p153, %p154
      %p156 = scmp.ne.s32.totalorder %s148, %s150
      %p157 = scmp.eq.s32.totalorder %s35, 1
      %p158 = por %p156, %p157
      %p159 = scmp.ne.s32.totalorder %s150, %s151
      %p160 = scmp.eq.s32.totalorder %s35, 0
      %p161 = por %p159, %p160
      %p162 = scmp.ne.s32.totalorder %s150, %s151
      %p163 = scmp.eq.s32.totalorder %s36, 1
      %p164 = por %p162, %p163
      %p166 = scmp.ne.s32.totalorder %s151, %s165
      %p167 = scmp.eq.s32.totalorder %s36, 0
      %p168 = por %p166, %p167
      %s170 = sadd.s32 %s169, 1
      %p173 = scmp.eq.s32.totalorder %s30, 1
      %p174 = scmp.ne.s32.totalorder %s169, %s171
      %p175 = scmp.eq.s32.totalorder %s30, 0
      %p176 = por %p174, %p175
      %p177 = scmp.ne.s32.totalorder %s169, %s171
      %p178 = scmp.eq.s32.totalorder %s35, 1
      %p179 = por %p177, %p178
      %p180 = scmp.ne.s32.totalorder %s171, %s172
      %p181 = scmp.eq.s32.totalorder %s35, 0
      %p182 = por %p180, %p181
      %p183 = scmp.ne.s32.totalorder %s171, %s172
      %p184 = scmp.eq.s32.totalorder %s36, 1
      %p185 = por %p183, %p184
      %p187 = scmp.ne.s32.totalorder %s172, %s186
      %p188 = scmp.eq.s32.totalorder %s36, 0
      %p189 = por %p187, %p188
      %s191 = sadd.s32 %s190, 1
      %p194 = scmp.eq.s32.totalorder %s30, 1
      %p195 = scmp.ne.s32.totalorder %s190, %s192
      %p196 = scmp.eq.s32.totalorder %s30, 0
      %p197 = por %p195, %p196
      %p198 = scmp.ne.s32.totalorder %s190, %s192
      %p199 = scmp.eq.s32.totalorder %s35, 1
      %p200 = por %p198, %p199
      %p201 = scmp.ne.s32.totalorder %s192, %s193
      %p202 = scmp.eq.s32.totalorder %s35, 0
      %p203 = por %p201, %p202
      %p204 = scmp.ne.s32.totalorder %s192, %s193
      %p205 = scmp.eq.s32.totalorder %s36, 1
      %p206 = por %p204, %p205
      %p208 = scmp.ne.s32.totalorder %s193, %s207
      %p209 = scmp.eq.s32.totalorder %s36, 0
      %p210 = por %p208, %p209
      %s212 = sadd.s32 %s211, 1
      %p215 = scmp.eq.s32.totalorder %s30, 1
      %p216 = scmp.ne.s32.totalorder %s211, %s213
      %p217 = scmp.eq.s32.totalorder %s30, 0
      %p218 = por %p216, %p217
      %p219 = scmp.ne.s32.totalorder %s211, %s213
      %p220 = scmp.eq.s32.totalorder %s35, 1
      %p221 = por %p219, %p220
      %p222 = scmp.ne.s32.totalorder %s213, %s214
      %p223 = scmp.eq.s32.totalorder %s35, 0
      %p224 = por %p222, %p223
      %p225 = scmp.ne.s32.totalorder %s213, %s214
      %p226 = scmp.eq.s32.totalorder %s36, 1
      %p227 = por %p225, %p226
      %p229 = scmp.ne.s32.totalorder %s214, %s228
      %p230 = scmp.eq.s32.totalorder %s36, 0
      %p231 = por %p229, %p230
      %s233 = sadd.s32 %s232, 1
      %p236 = scmp.eq.s32.totalorder %s30, 1
      %p237 = scmp.ne.s32.totalorder %s232, %s234
      %p238 = scmp.eq.s32.totalorder %s30, 0
      %p239 = por %p237, %p238
      %p240 = scmp.ne.s32.totalorder %s232, %s234
      %p241 = scmp.eq.s32.totalorder %s35, 1
      %p242 = por %p240, %p241
      %p243 = scmp.ne.s32.totalorder %s234, %s235
      %p244 = scmp.eq.s32.totalorder %s35, 0
      %p245 = por %p243, %p244
      %p246 = scmp.ne.s32.totalorder %s234, %s235
      %p247 = scmp.eq.s32.totalorder %s36, 1
      %p248 = por %p246, %p247
      %p250 = scmp.ne.s32.totalorder %s235, %s249
      %p251 = scmp.eq.s32.totalorder %s36, 0
      %p252 = por %p250, %p251
      %s254 = sadd.s32 %s253, 1
      %p257 = scmp.eq.s32.totalorder %s30, 1
      %p258 = scmp.ne.s32.totalorder %s253, %s255
      %p259 = scmp.eq.s32.totalorder %s30, 0
      %p260 = por %p258, %p259
      %p261 = scmp.ne.s32.totalorder %s253, %s255
      %p262 = scmp.eq.s32.totalorder %s35, 1
      %p263 = por %p261, %p262
      %p264 = scmp.ne.s32.totalorder %s255, %s256
      %p265 = scmp.eq.s32.totalorder %s35, 0
      %p266 = por %p264, %p265
      %p267 = scmp.ne.s32.totalorder %s255, %s256
      %p268 = scmp.eq.s32.totalorder %s36, 1
      %p269 = por %p267, %p268
      %p271 = scmp.ne.s32.totalorder %s256, %s270
      %p272 = scmp.eq.s32.totalorder %s36, 0
      %p273 = por %p271, %p272
      %s275 = sadd.s32 %s274, 1
      %p278 = scmp.eq.s32.totalorder %s30, 1
      %p279 = scmp.ne.s32.totalorder %s274, %s276
      %p280 = scmp.eq.s32.totalorder %s30, 0
      %p281 = por %p279, %p280
      %p282 = scmp.ne.s32.totalorder %s274, %s276
      %p283 = scmp.eq.s32.totalorder %s35, 1
      %p284 = por %p282, %p283
      %p285 = scmp.ne.s32.totalorder %s276, %s277
      %p286 = scmp.eq.s32.totalorder %s35, 0
      %p287 = por %p285, %p286
      %p288 = scmp.ne.s32.totalorder %s276, %s277
      %p289 = scmp.eq.s32.totalorder %s36, 1
      %p290 = por %p288, %p289
      %p292 = scmp.ne.s32.totalorder %s277, %s291
      %p293 = scmp.eq.s32.totalorder %s36, 0
      %p294 = por %p292, %p293
      %s296 = sadd.s32 %s295, 1
      %p299 = scmp.eq.s32.totalorder %s30, 1
      %p300 = scmp.ne.s32.totalorder %s295, %s297
      %p301 = scmp.eq.s32.totalorder %s30, 0
      %p302 = por %p300, %p301
      %p303 = scmp.ne.s32.totalorder %s295, %s297
      %p304 = scmp.eq.s32.totalorder %s35, 1
      %p305 = por %p303, %p304
      %p306 = scmp.ne.s32.totalorder %s297, %s298
      %p307 = scmp.eq.s32.totalorder %s35, 0
      %p308 = por %p306, %p307
      %p309 = scmp.ne.s32.totalorder %s297, %s298
      %p310 = scmp.eq.s32.totalorder %s36, 1
      %p311 = por %p309, %p310
      %p313 = scmp.ne.s32.totalorder %s298, %s312
      %p314 = scmp.eq.s32.totalorder %s36, 0
      %p315 = por %p313, %p314
      %s317 = sadd.s32 %s316, 1
      %p320 = scmp.eq.s32.totalorder %s30, 1
      %p321 = scmp.ne.s32.totalorder %s316, %s318
      %p322 = scmp.eq.s32.totalorder %s30, 0
      %p323 = por %p321, %p322
      %p324 = scmp.ne.s32.totalorder %s316, %s318
      %p325 = scmp.eq.s32.totalorder %s35, 1
      %p326 = por %p324, %p325
      %p327 = scmp.ne.s32.totalorder %s318, %s319
      %p328 = scmp.eq.s32.totalorder %s35, 0
      %p329 = por %p327, %p328
      %p330 = scmp.ne.s32.totalorder %s318, %s319
      %p331 = scmp.eq.s32.totalorder %s36, 1
      %p332 = por %p330, %p331
      %p334 = scmp.ne.s32.totalorder %s319, %s333
      %p335 = scmp.eq.s32.totalorder %s36, 0
      %p336 = por %p334, %p335
      %s338 = sadd.s32 %s337, 1
      %p341 = scmp.eq.s32.totalorder %s30, 1
      %p342 = scmp.ne.s32.totalorder %s337, %s339
      %p343 = scmp.eq.s32.totalorder %s30, 0
      %p344 = por %p342, %p343
      %p345 = scmp.ne.s32.totalorder %s337, %s339
      %p346 = scmp.eq.s32.totalorder %s35, 1
      %p347 = por %p345, %p346
      %p348 = scmp.ne.s32.totalorder %s339, %s340
      %p349 = scmp.eq.s32.totalorder %s35, 0
      %p350 = por %p348, %p349
      %p351 = scmp.ne.s32.totalorder %s339, %s340
      %p352 = scmp.eq.s32.totalorder %s36, 1
      %p353 = por %p351, %p352
      %p355 = scmp.ne.s32.totalorder %s340, %s354
      %p356 = scmp.eq.s32.totalorder %s36, 0
      %p357 = por %p355, %p356
      %s359 = sadd.s32 %s358, 1
      %p362 = scmp.eq.s32.totalorder %s30, 1
      %p363 = scmp.ne.s32.totalorder %s358, %s360
      %p364 = scmp.eq.s32.totalorder %s30, 0
      %p365 = por %p363, %p364
      %p366 = scmp.ne.s32.totalorder %s358, %s360
      %p367 = scmp.eq.s32.totalorder %s35, 1
      %p368 = por %p366, %p367
      %p369 = scmp.ne.s32.totalorder %s360, %s361
      %p370 = scmp.eq.s32.totalorder %s35, 0
      %p371 = por %p369, %p370
      %p372 = scmp.ne.s32.totalorder %s360, %s361
      %p373 = scmp.eq.s32.totalorder %s36, 1
      %p374 = por %p372, %p373
      %p376 = scmp.ne.s32.totalorder %s361, %s375
      %p377 = scmp.eq.s32.totalorder %s36, 0
      %p378 = por %p376, %p377
      %s380 = sadd.s32 %s379, 1
      %p383 = scmp.eq.s32.totalorder %s30, 1
      %p384 = scmp.ne.s32.totalorder %s379, %s381
      %p385 = scmp.eq.s32.totalorder %s30, 0
      %p386 = por %p384, %p385
      %p387 = scmp.ne.s32.totalorder %s379, %s381
      %p388 = scmp.eq.s32.totalorder %s35, 1
      %p389 = por %p387, %p388
      %p390 = scmp.ne.s32.totalorder %s381, %s382
      %p391 = scmp.eq.s32.totalorder %s35, 0
      %p392 = por %p390, %p391
      %p393 = scmp.ne.s32.totalorder %s381, %s382
      %p394 = scmp.eq.s32.totalorder %s36, 1
      %p395 = por %p393, %p394
      %p397 = scmp.ne.s32.totalorder %s382, %s396
      %p398 = scmp.eq.s32.totalorder %s36, 0
      %p399 = por %p397, %p398
      %s401 = sadd.s32 %s400, 1
      %p404 = scmp.eq.s32.totalorder %s30, 1
      %p405 = scmp.ne.s32.totalorder %s400, %s402
      %p406 = scmp.eq.s32.totalorder %s30, 0
      %p407 = por %p405, %p406
      %p408 = scmp.ne.s32.totalorder %s400, %s402
      %p409 = scmp.eq.s32.totalorder %s35, 1
      %p410 = por %p408, %p409
      %p411 = scmp.ne.s32.totalorder %s402, %s403
      %p412 = scmp.eq.s32.totalorder %s35, 0
      %p413 = por %p411, %p412
      %p414 = scmp.ne.s32.totalorder %s402, %s403
      %p415 = scmp.eq.s32.totalorder %s36, 1
      %p416 = por %p414, %p415
      %p418 = scmp.ne.s32.totalorder %s403, %s417
      %p419 = scmp.eq.s32.totalorder %s36, 0
      %p420 = por %p418, %p419
      %s422 = sadd.s32 %s421, 1
      %p425 = scmp.eq.s32.totalorder %s30, 1
      %p426 = scmp.ne.s32.totalorder %s421, %s423
      %p427 = scmp.eq.s32.totalorder %s30, 0
      %p428 = por %p426, %p427
      %p429 = scmp.ne.s32.totalorder %s421, %s423
      %p430 = scmp.eq.s32.totalorder %s35, 1
      %p431 = por %p429, %p430
      %p432 = scmp.ne.s32.totalorder %s423, %s424
      %p433 = scmp.eq.s32.totalorder %s35, 0
      %p434 = por %p432, %p433
      %p435 = scmp.ne.s32.totalorder %s423, %s424
      %p436 = scmp.eq.s32.totalorder %s36, 1
      %p437 = por %p435, %p436
      %p439 = scmp.ne.s32.totalorder %s424, %s438
      %p440 = scmp.eq.s32.totalorder %s36, 0
      %p441 = por %p439, %p440
      %s443 = sadd.s32 %s442, 1
      %p446 = scmp.eq.s32.totalorder %s30, 1
      %p447 = scmp.ne.s32.totalorder %s442, %s444
      %p448 = scmp.eq.s32.totalorder %s30, 0
      %p449 = por %p447, %p448
      %p450 = scmp.ne.s32.totalorder %s442, %s444
      %p451 = scmp.eq.s32.totalorder %s35, 1
      %p452 = por %p450, %p451
      %p453 = scmp.ne.s32.totalorder %s444, %s445
      %p454 = scmp.eq.s32.totalorder %s35, 0
      %p455 = por %p453, %p454
      %p456 = scmp.ne.s32.totalorder %s444, %s445
      %p457 = scmp.eq.s32.totalorder %s36, 1
      %p458 = por %p456, %p457
      %p460 = scmp.ne.s32.totalorder %s445, %s459
      %p461 = scmp.eq.s32.totalorder %s36, 0
      %p462 = por %p460, %p461
      %s464 = sadd.s32 %s463, 1
      %p467 = scmp.eq.s32.totalorder %s30, 1
      %p468 = scmp.ne.s32.totalorder %s463, %s465
      %p469 = scmp.eq.s32.totalorder %s30, 0
      %p470 = por %p468, %p469
      %p471 = scmp.ne.s32.totalorder %s463, %s465
      %p472 = scmp.eq.s32.totalorder %s35, 1
      %p473 = por %p471, %p472
      %p474 = scmp.ne.s32.totalorder %s465, %s466
      %p475 = scmp.eq.s32.totalorder %s35, 0
      %p476 = por %p474, %p475
      %p477 = scmp.ne.s32.totalorder %s465, %s466
      %p478 = scmp.eq.s32.totalorder %s36, 1
      %p479 = por %p477, %p478
      %p481 = scmp.ne.s32.totalorder %s466, %s480
      %p482 = scmp.eq.s32.totalorder %s36, 0
      %p483 = por %p481, %p482
      %s484 = ssub.s32 %s30, %s37
      %p485 = scmp.eq.s32.totalorder %s484, 0
      %s487 = sadd.s32 %s486, 1
      %s488 = scalar_select %p485, %s486, %s487
      %p491 = pneg %p485
      %p492 = scmp.eq.s32.totalorder %s30, 1
      %p493 = por %p491, %p492
      %p494 = scmp.ne.s32.totalorder %s486, %s489
      %p495 = scmp.eq.s32.totalorder %s30, 0
      %p496 = por %p494, %p495
      %p497 = scmp.ne.s32.totalorder %s486, %s489
      %p498 = scmp.eq.s32.totalorder %s35, 1
      %p499 = por %p497, %p498
      %p500 = scmp.ne.s32.totalorder %s489, %s490
      %p501 = scmp.eq.s32.totalorder %s35, 0
      %p502 = por %p500, %p501
      %p503 = scmp.ne.s32.totalorder %s489, %s490
      %p504 = scmp.eq.s32.totalorder %s36, 1
      %p505 = por %p503, %p504
      %p507 = scmp.ne.s32.totalorder %s490, %s506
      %p508 = scmp.eq.s32.totalorder %s36, 0
      %p509 = por %p507, %p508
      %p510 = scmp.le.s32.totalorder 1, %s30
      %p511 = scmp.lt.s32.totalorder %s30, 3
      %p512 = pnand %p510, %p511
      %p513 = pneg %p512
      // Predicated region
      $region9: #{_lambda_.1} parent=5 // pred_check
        _
      $region10: #{_lambda_.1} parent=5 // pred_check_branch
        %515 = sbr.rel (%p512) target = $region12
      $region11: #{_lambda_.1} parent=5 // pred_region
        %s516 = ssub.s32 %s30, 1
        // Predicated region
        $region13: #{_lambda_.1} parent=11 // pred_check
          %p517 = pneg %p77
        $region14: #{_lambda_.1} parent=11 // pred_check_branch
          %519 = sbr.rel (%p517) target = $region16
        $region15: #{_lambda_.1} parent=11 // pred_region
          _
        $region16: #{_lambda_.1} parent=11 // pred_fallthru
          _
        // Predicated region
        $region17: #{_lambda_.1} parent=11 // pred_check
          %p520 = pneg %p98
        $region18: #{_lambda_.1} parent=11 // pred_check_branch
          %522 = sbr.rel (%p520) target = $region20
        $region19: #{_lambda_.1} parent=11 // pred_region
          _
        $region20: #{_lambda_.1} parent=11 // pred_fallthru
          _
        // Predicated region
        $region21: #{_lambda_.1} parent=11 // pred_check
          %p523 = pneg %p119
        $region22: #{_lambda_.1} parent=11 // pred_check_branch
          %525 = sbr.rel (%p523) target = $region24
        $region23: #{_lambda_.1} parent=11 // pred_region
          _
        $region24: #{_lambda_.1} parent=11 // pred_fallthru
          _
        // Predicated region
        $region25: #{_lambda_.1} parent=11 // pred_check
          %p526 = pneg %p140
        $region26: #{_lambda_.1} parent=11 // pred_check_branch
          %528 = sbr.rel (%p526) target = $region28
        $region27: #{_lambda_.1} parent=11 // pred_region
          _
        $region28: #{_lambda_.1} parent=11 // pred_fallthru
          _
        // Predicated region
        $region29: #{_lambda_.1} parent=11 // pred_check
          %p529 = pneg %p161
        $region30: #{_lambda_.1} parent=11 // pred_check_branch
          %531 = sbr.rel (%p529) target = $region32
        $region31: #{_lambda_.1} parent=11 // pred_region
          _
        $region32: #{_lambda_.1} parent=11 // pred_fallthru
          _
        // Predicated region
        $region33: #{_lambda_.1} parent=11 // pred_check
          %p532 = pneg %p182
        $region34: #{_lambda_.1} parent=11 // pred_check_branch
          %534 = sbr.rel (%p532) target = $region36
        $region35: #{_lambda_.1} parent=11 // pred_region
          _
        $region36: #{_lambda_.1} parent=11 // pred_fallthru
          _
        // Predicated region
        $region37: #{_lambda_.1} parent=11 // pred_check
          %p535 = pneg %p203
        $region38: #{_lambda_.1} parent=11 // pred_check_branch
          %537 = sbr.rel (%p535) target = $region40
        $region39: #{_lambda_.1} parent=11 // pred_region
          _
        $region40: #{_lambda_.1} parent=11 // pred_fallthru
          _
        // Predicated region
        $region41: #{_lambda_.1} parent=11 // pred_check
          %p538 = pneg %p224
        $region42: #{_lambda_.1} parent=11 // pred_check_branch
          %540 = sbr.rel (%p538) target = $region44
        $region43: #{_lambda_.1} parent=11 // pred_region
          _
        $region44: #{_lambda_.1} parent=11 // pred_fallthru
          _
        // Predicated region
        $region45: #{_lambda_.1} parent=11 // pred_check
          %p541 = pneg %p245
        $region46: #{_lambda_.1} parent=11 // pred_check_branch
          %543 = sbr.rel (%p541) target = $region48
        $region47: #{_lambda_.1} parent=11 // pred_region
          _
        $region48: #{_lambda_.1} parent=11 // pred_fallthru
          _
        // Predicated region
        $region49: #{_lambda_.1} parent=11 // pred_check
          %p544 = pneg %p266
        $region50: #{_lambda_.1} parent=11 // pred_check_branch
          %546 = sbr.rel (%p544) target = $region52
        $region51: #{_lambda_.1} parent=11 // pred_region
          _
        $region52: #{_lambda_.1} parent=11 // pred_fallthru
          _
        // Predicated region
        $region53: #{_lambda_.1} parent=11 // pred_check
          %p547 = pneg %p287
        $region54: #{_lambda_.1} parent=11 // pred_check_branch
          %549 = sbr.rel (%p547) target = $region56
        $region55: #{_lambda_.1} parent=11 // pred_region
          _
        $region56: #{_lambda_.1} parent=11 // pred_fallthru
          _
        // Predicated region
        $region57: #{_lambda_.1} parent=11 // pred_check
          %p550 = pneg %p308
        $region58: #{_lambda_.1} parent=11 // pred_check_branch
          %552 = sbr.rel (%p550) target = $region60
        $region59: #{_lambda_.1} parent=11 // pred_region
          _
        $region60: #{_lambda_.1} parent=11 // pred_fallthru
          _
        // Predicated region
        $region61: #{_lambda_.1} parent=11 // pred_check
          %p553 = pneg %p329
        $region62: #{_lambda_.1} parent=11 // pred_check_branch
          %555 = sbr.rel (%p553) target = $region64
        $region63: #{_lambda_.1} parent=11 // pred_region
          _
        $region64: #{_lambda_.1} parent=11 // pred_fallthru
          _
        // Predicated region
        $region65: #{_lambda_.1} parent=11 // pred_check
          %p556 = pneg %p350
        $region66: #{_lambda_.1} parent=11 // pred_check_branch
          %558 = sbr.rel (%p556) target = $region68
        $region67: #{_lambda_.1} parent=11 // pred_region
          _
        $region68: #{_lambda_.1} parent=11 // pred_fallthru
          _
        // Predicated region
        $region69: #{_lambda_.1} parent=11 // pred_check
          %p559 = pneg %p371
        $region70: #{_lambda_.1} parent=11 // pred_check_branch
          %561 = sbr.rel (%p559) target = $region72
        $region71: #{_lambda_.1} parent=11 // pred_region
          _
        $region72: #{_lambda_.1} parent=11 // pred_fallthru
          _
        // Predicated region
        $region73: #{_lambda_.1} parent=11 // pred_check
          %p562 = pneg %p392
        $region74: #{_lambda_.1} parent=11 // pred_check_branch
          %564 = sbr.rel (%p562) target = $region76
        $region75: #{_lambda_.1} parent=11 // pred_region
          _
        $region76: #{_lambda_.1} parent=11 // pred_fallthru
          _
        // Predicated region
        $region77: #{_lambda_.1} parent=11 // pred_check
          %p565 = pneg %p413
        $region78: #{_lambda_.1} parent=11 // pred_check_branch
          %567 = sbr.rel (%p565) target = $region80
        $region79: #{_lambda_.1} parent=11 // pred_region
          _
        $region80: #{_lambda_.1} parent=11 // pred_fallthru
          _
        // Predicated region
        $region81: #{_lambda_.1} parent=11 // pred_check
          %p568 = pneg %p434
        $region82: #{_lambda_.1} parent=11 // pred_check_branch
          %570 = sbr.rel (%p568) target = $region84
        $region83: #{_lambda_.1} parent=11 // pred_region
          _
        $region84: #{_lambda_.1} parent=11 // pred_fallthru
          _
        // Predicated region
        $region85: #{_lambda_.1} parent=11 // pred_check
          %p571 = pneg %p455
        $region86: #{_lambda_.1} parent=11 // pred_check_branch
          %573 = sbr.rel (%p571) target = $region88
        $region87: #{_lambda_.1} parent=11 // pred_region
          _
        $region88: #{_lambda_.1} parent=11 // pred_fallthru
          _
        // Predicated region
        $region89: #{_lambda_.1} parent=11 // pred_check
          %p574 = pneg %p476
        $region90: #{_lambda_.1} parent=11 // pred_check_branch
          %576 = sbr.rel (%p574) target = $region92
        $region91: #{_lambda_.1} parent=11 // pred_region
          _
        $region92: #{_lambda_.1} parent=11 // pred_fallthru
          _
      $region12: #{_lambda_.1} parent=5 // pred_fallthru
        _
      %p577 = scmp.lt.s32.totalorder %s30, 2
      // Predicated region
      $region93: #{_lambda_.1} parent=5 // pred_check
        %p578 = pneg %p577
      $region94: #{_lambda_.1} parent=5 // pred_check_branch
        %580 = sbr.rel (%p578) target = $region96
      $region95: #{_lambda_.1} parent=5 // pred_region
        // Predicated region
        $region97: #{_lambda_.1} parent=95 // pred_check
          %p581 = pneg %p50
        $region98: #{_lambda_.1} parent=95 // pred_check_branch
          %583 = sbr.rel (%p581) target = $region100
        $region99: #{_lambda_.1} parent=95 // pred_region
          %p584 = scmp.lt.s32.totalorder %s30, 1
          %s585 = scalar_select %p584, %s30, 1
          %s586 = smul.addr %s585, 16
          %s587 = smul.addr %s586, 8
          %s588 = scalar_lea.vmem %s0, %s587
        $region100: #{_lambda_.1} parent=95 // pred_fallthru
          _
      $region96: #{_lambda_.1} parent=5 // pred_fallthru
        _
      %p589 = scmp.le.s32.totalorder 1, %s30
      %p590 = scmp.lt.s32.totalorder %s30, 3
      %p591 = pnand %p589, %p590
      %p592 = pneg %p591
      // Predicated region
      $region101: #{_lambda_.1} parent=5 // pred_check
        _
      $region102: #{_lambda_.1} parent=5 // pred_check_branch
        %594 = sbr.rel (%p591) target = $region104
      $region103: #{_lambda_.1} parent=5 // pred_region
        %s595 = ssub.s32 %s30, 1
        %p596 = scmp.lt.s32.totalorder %s35, 1
        %s597 = scalar_select %p596, %s35, 1
        %s598 = smul.addr %s597, 16
        %s599 = smul.addr %s598, 8
        %s600 = scalar_lea.vmem %s0, %s599
        %p601 = pneg %p56
        %p602 = pneg %p53
        %p603 = pneg %p77
        %p604 = pneg %p74
        %p605 = pneg %p98
        %p606 = pneg %p95
        %p607 = pneg %p119
        %p608 = pneg %p116
        %p609 = pneg %p140
        %p610 = pneg %p137
        %p611 = pneg %p161
        %p612 = pneg %p158
        %p613 = pneg %p182
        %p614 = pneg %p179
        %p615 = pneg %p203
        %p616 = pneg %p200
        %p617 = pneg %p224
        %p618 = pneg %p221
        %p619 = pneg %p245
        %p620 = pneg %p242
        %p621 = pneg %p266
        %p622 = pneg %p263
        %p623 = pneg %p287
        %p624 = pneg %p284
        %p625 = pneg %p308
        %p626 = pneg %p305
        %p627 = pneg %p329
        %p628 = pneg %p326
        %p629 = pneg %p350
        %p630 = pneg %p347
        %p631 = pneg %p371
        %p632 = pneg %p368
        %p633 = pneg %p392
        %p634 = pneg %p389
        %p635 = pneg %p413
        %p636 = pneg %p410
        %p637 = pneg %p434
        %p638 = pneg %p431
        %p639 = pneg %p455
        %p640 = pneg %p452
        %p641 = pneg %p476
        %p642 = pneg %p473
        %p643 = pneg %p502
        %p644 = pneg %p499
        %s645 = sand.u32 %s489, 1
        %s646 = scalar_lea.sflag [#allocation4], %s645
        %s647 = sand.u32 %s489, 1
        %s648 = smul.addr %s647, 64
        %s649 = scalar_lea.vmem [#allocation3], %s648
        %p650 = scmp.lt.s32.totalorder %s35, 1
        %s651 = scalar_select %p650, %s35, 1
        %s652 = smul.addr %s651, 16
        %s653 = smul.addr %s652, 8
        %s654 = scalar_lea.vmem %s0, %s653
        %656 = vst [vmem:[#allocation2] sm:$0xff] 0.0
        %657 = vst [vmem:[#allocation2 + $0x8] sm:$0x3] 0.0
        %658 = vst [vmem:[#allocation2 + $0x10] sm:$0xff] 0.0
        %659 = vst [vmem:[#allocation2 + $0x18] sm:$0x3] 0.0
        %660 = vst [vmem:[#allocation2 + $0x20] sm:$0xff] 0.0
        %661 = vst [vmem:[#allocation2 + $0x28] sm:$0x3] 0.0
        %662 = vst [vmem:[#allocation2 + $0x30] sm:$0xff] 0.0
        %663 = vst [vmem:[#allocation2 + $0x38] sm:$0x3] 0.0
        %664 = vst [vmem:[#allocation2 + $0x40] sm:$0xff] 0.0
        %665 = vst [vmem:[#allocation2 + $0x48] sm:$0x3] 0.0
        %666 = vst [vmem:[#allocation2 + $0x50] sm:$0xff] 0.0
        %667 = vst [vmem:[#allocation2 + $0x58] sm:$0x3] 0.0
        %668 = vst [vmem:[#allocation2 + $0x60] sm:$0xff] 0.0
        %669 = vst [vmem:[#allocation2 + $0x68] sm:$0x3] 0.0
        %670 = vst [vmem:[#allocation2 + $0x70] sm:$0xff] 0.0
        %671 = vst [vmem:[#allocation2 + $0x78] sm:$0x3] 0.0
        %672 = vst [vmem:[#allocation2 + $0x80] sm:$0xff] 0.0
        %673 = vst [vmem:[#allocation2 + $0x88] sm:$0x3] 0.0
        %674 = vst [vmem:[#allocation2 + $0x90] sm:$0xff] 0.0
        %675 = vst [vmem:[#allocation2 + $0x98] sm:$0x3] 0.0
        %v676 = vld [vmem:[%s654] sm:$0xff]
        %v677 = vld [vmem:[%s654 + $0x8] sm:$0xff]
        %v678 = vld [vmem:[%s654 + $0x10] sm:$0xff]
        %v679 = vld [vmem:[%s654 + $0x18] sm:$0xff]
        %v680 = vld [vmem:[%s654 + $0x20] sm:$0xff]
        %v681 = vld [vmem:[%s654 + $0x28] sm:$0xff]
        %v682 = vld [vmem:[%s654 + $0x30] sm:$0xff]
        %v683 = vld [vmem:[%s654 + $0x38] sm:$0xff]
        %v684 = vld [vmem:[%s654 + $0x40] sm:$0xff]
        %v685 = vld [vmem:[%s654 + $0x48] sm:$0xff]
        %v686 = vld [vmem:[%s654 + $0x50] sm:$0xff]
        %v687 = vld [vmem:[%s654 + $0x58] sm:$0xff]
        %v688 = vld [vmem:[%s654 + $0x60] sm:$0xff]
        %v689 = vld [vmem:[%s654 + $0x68] sm:$0xff]
        %v690 = vld [vmem:[%s654 + $0x70] sm:$0xff]
        %v691 = vld [vmem:[%s654 + $0x78] sm:$0xff]
        %v692 = vld [vmem:[%s1] sm:$0xf]
        %v693 = vld [vmem:[%s1 + $0x4] sm:$0xf]
        %v694 = vld [vmem:[%s1 + $0x8] sm:$0xf]
        %v695 = vld [vmem:[%s1 + $0xc] sm:$0xf]
        %v696 = vld [vmem:[%s1 + $0x10] sm:$0xf]
        %v697 = vld [vmem:[%s1 + $0x14] sm:$0xf]
        %v698 = vld [vmem:[%s1 + $0x18] sm:$0xf]
        %v699 = vld [vmem:[%s1 + $0x1c] sm:$0xf]
        %v700 = vld [vmem:[%s1 + $0x20] sm:$0xf]
        %v701 = vld [vmem:[%s1 + $0x24] sm:$0xf]
        %v702 = vld [vmem:[%s1 + $0x28] sm:$0xf]
        %v703 = vld [vmem:[%s1 + $0x2c] sm:$0xf]
        %v704 = vld [vmem:[%s1 + $0x30] sm:$0xf]
        %v705 = vld [vmem:[%s1 + $0x34] sm:$0xf]
        %v706 = vld [vmem:[%s1 + $0x38] sm:$0xf]
        %v707 = vld [vmem:[%s1 + $0x3c] sm:$0xf]
        %v708 = vld [vmem:[%s1 + $0x40] sm:$0xf]
        %v709 = vld [vmem:[%s1 + $0x44] sm:$0xf]
        %v710 = vpack.c.bf16 %v678, %v676
        %v711 = vpack.c.bf16 %v679, %v677
        %v712 = vpack.c.bf16 %v682, %v680
        %v713 = vpack.c.bf16 %v683, %v681
        %v714 = vpack.c.bf16 %v686, %v684
        %v715 = vpack.c.bf16 %v687, %v685
        %v716 = vpack.c.bf16 %v690, %v688
        %v717 = vpack.c.bf16 %v691, %v689
        %v718 = vld [vmem:[%s2] sm:$0x1]
        %v720 = vlaneseq
        %v721 = vshrl.u32 %v720, 7
        %v722 = vsub.s32 0, %v721
        %v723 = vrot.slane %v718, %v722
        %v743 = vunpack.c.l.b16 %v692
        %v744 = vunpack.c.l.b16 %v693
        %v745 = vunpack.c.l.b16 %v694
        %v746 = vunpack.c.l.b16 %v695
        %v747 = vunpack.c.l.b16 %v696
        %v748 = vunpack.c.l.b16 %v697
        %v749 = vunpack.c.l.b16 %v698
        %v750 = vunpack.c.l.b16 %v699
        %v751 = vunpack.c.l.b16 %v700
        %v752 = vunpack.c.l.b16 %v701
        %v753 = vunpack.c.l.b16 %v702
        %v754 = vunpack.c.l.b16 %v703
        %v755 = vunpack.c.l.b16 %v704
        %v756 = vunpack.c.l.b16 %v705
        %v757 = vunpack.c.l.b16 %v706
        %v758 = vunpack.c.l.b16 %v707
        %v759 = vunpack.c.l.b16 %v708
        %v760 = vunpack.c.l.b16 %v709
        %v761 = vpack.c.b16 %v744, %v743
        %v762 = vpack.c.b16 %v746, %v745
        %v763 = vpack.c.b16 %v748, %v747
        %v764 = vpack.c.b16 %v750, %v749
        %v765 = vpack.c.b16 %v752, %v751
        %v766 = vpack.c.b16 %v754, %v753
        %v767 = vpack.c.b16 %v756, %v755
        %v768 = vpack.c.b16 %v758, %v757
        %v769 = vpack.c.b16 %v760, %v759
        %vm779 = vcmask 130048
        %v781 = vsel %vm779, %v711, 0
        %v784 = vsel %vm779, %v713, 0
        %v787 = vsel %vm779, %v715, 0
        %v790 = vsel %vm779, %v717, 0
        %792 = vmatprep.subr.bf16.mxu0 0
        %793 = vmatpush1.bf16.msra.mxu0 %v761
        %794 = vmatprep.subr.bf16.mxu0 0
        %795 = vmatpush1.bf16.msra.mxu0 %v762
        %796 = vmatprep.subr.bf16.mxu0 0
        %797 = vmatpush1.bf16.msra.mxu0 %v763
        %798 = vmatprep.subr.bf16.mxu0 0
        %799 = vmatpush1.bf16.msra.mxu0 %v764
        %800 = vmatprep.subr.bf16.mxu0 0
        %801 = vmatpush1.bf16.msra.mxu0 %v765
        %802 = vmatprep.subr.bf16.mxu0 0
        %803 = vmatpush1.bf16.msra.mxu0 %v766
        %804 = vmatprep.subr.bf16.mxu0 0
        %805 = vmatpush1.bf16.msra.mxu0 %v767
        %806 = vmatprep.subr.bf16.mxu0 0
        %807 = vmatpush1.bf16.msra.mxu0 %v768
        %808 = vmatprep.subr.bf16.mxu0 0
        %809 = vmatpush1.bf16.msra.mxu0 %v769
        %810 = vmatprep.subr.bf16.mxu0 0
        %811 = vmatpush1.bf16.msra.mxu0 0
        %812 = vmatprep.subr.bf16.mxu0 0
        %813 = vmatpush1.bf16.msra.mxu0 0
        %814 = vmatprep.subr.bf16.mxu0 0
        %815 = vmatpush1.bf16.msra.mxu0 0
        %816 = vmatprep.subr.bf16.mxu0 0
        %817 = vmatpush1.bf16.msra.mxu0 0
        %818 = vmatprep.subr.bf16.mxu0 0
        %819 = vmatpush1.bf16.msra.mxu0 0
        %820 = vmatprep.subr.bf16.mxu0 0
        %821 = vmatpush1.bf16.msra.mxu0 0
        %822 = vmatprep.subr.bf16.mxu0 0
        %823 = vmatpush1.bf16.msra.mxu0 0
        %824 = vmatprep.mubr.bf16.mxu0 %v781
        %825 = vmatmul.mubr.bf16.gmra.mrb[0].mxu0 %v710
        %v826 = vpop.f32.mrb[0].mxu0
        %v827 = vadd.f32 %v723, %v826
        %v828 = vpop.f32.mrb[0].mxu0
        %v829 = vpop.f32.mrb[0].mxu0
        %v830 = vadd.f32 %v723, %v829
        %v831 = vpop.f32.mrb[0].mxu0
        %832 = vmatprep.mubr.bf16.mxu0 %v784
        %833 = vmatmul.mubr.bf16.gmra.mrb[0].mxu0 %v712
        %v834 = vpop.f32.mrb[0].mxu0
        %v835 = vadd.f32 %v723, %v834
        %v836 = vpop.f32.mrb[0].mxu0
        %v837 = vpop.f32.mrb[0].mxu0
        %v838 = vadd.f32 %v723, %v837
        %v839 = vpop.f32.mrb[0].mxu0
        %840 = vmatprep.mubr.bf16.mxu0 %v787
        %841 = vmatmul.mubr.bf16.gmra.mrb[0].mxu0 %v714
        %v842 = vpop.f32.mrb[0].mxu0
        %v843 = vadd.f32 %v723, %v842
        %v844 = vpop.f32.mrb[0].mxu0
        %v845 = vpop.f32.mrb[0].mxu0
        %v846 = vadd.f32 %v723, %v845
        %v847 = vpop.f32.mrb[0].mxu0
        %848 = vmatprep.mubr.bf16.mxu0 %v790
        %849 = vmatmul.mubr.bf16.gmra.mrb[0].mxu0 %v716
        %v850 = vpop.f32.mrb[0].mxu0
        %v851 = vadd.f32 %v723, %v850
        %v852 = vpop.f32.mrb[0].mxu0
        %v853 = vpop.f32.mrb[0].mxu0
        %v854 = vadd.f32 %v723, %v853
        %v855 = vpop.f32.mrb[0].mxu0
        %856 = vdwg.mxu0
        %v857 = vld [vmem:[%s3] sm:$0x1]
        %v858 = vld [vmem:[%s4] sm:$0x1]
        %vm859 = vcmask 261120
        %v860 = vsel %vm859, %v827, 0.0
        %861 = vadd.xlane.f32.xlu0 %v860
        %v862 = vpop.xlane.xlu0 %861
        %v863 = vsel %vm859, %v830, 0.0
        %864 = vadd.xlane.f32.xlu0 %v863
        %v865 = vpop.xlane.xlu0 %864
        %v866 = vsel %vm859, %v835, 0.0
        %867 = vadd.xlane.f32.xlu0 %v866
        %v868 = vpop.xlane.xlu0 %867
        %v869 = vsel %vm859, %v838, 0.0
        %870 = vadd.xlane.f32.xlu0 %v869
        %v871 = vpop.xlane.xlu0 %870
        %v872 = vsel %vm859, %v843, 0.0
        %873 = vadd.xlane.f32.xlu0 %v872
        %v874 = vpop.xlane.xlu0 %873
        %v875 = vsel %vm859, %v846, 0.0
        %876 = vadd.xlane.f32.xlu0 %v875
        %v877 = vpop.xlane.xlu0 %876
        %v878 = vsel %vm859, %v851, 0.0
        %879 = vadd.xlane.f32.xlu0 %v878
        %v880 = vpop.xlane.xlu0 %879
        %v881 = vsel %vm859, %v854, 0.0
        %882 = vadd.xlane.f32.xlu0 %v881
        %v883 = vpop.xlane.xlu0 %882
        %v884 = vrcp.pop 32.0
        %v885 = vmul.f32 %v862, %v884
        %v886 = vmul.f32 %v865, %v884
        %v887 = vmul.f32 %v868, %v884
        %v888 = vmul.f32 %v871, %v884
        %v889 = vmul.f32 %v874, %v884
        %v890 = vmul.f32 %v877, %v884
        %v891 = vmul.f32 %v880, %v884
        %v892 = vmul.f32 %v883, %v884
        %v893 = vsub.f32 %v827, %v885
        %v894 = vsub.f32 %v830, %v886
        %v895 = vsub.f32 %v835, %v887
        %v896 = vsub.f32 %v838, %v888
        %v897 = vsub.f32 %v843, %v889
        %v898 = vsub.f32 %v846, %v890
        %v899 = vsub.f32 %v851, %v891
        %v900 = vsub.f32 %v854, %v892
        %v901 = vmul.f32 %v893, %v893
        %v902 = vmul.f32 %v894, %v894
        %v903 = vmul.f32 %v895, %v895
        %v904 = vmul.f32 %v896, %v896
        %v905 = vmul.f32 %v897, %v897
        %v906 = vmul.f32 %v898, %v898
        %v907 = vmul.f32 %v899, %v899
        %v908 = vmul.f32 %v900, %v900
        %v909 = vsel %vm859, %v901, 0.0
        %910 = vadd.xlane.f32.xlu0 %v909
        %v911 = vpop.xlane.xlu0 %910
        %v912 = vsel %vm859, %v902, 0.0
        %913 = vadd.xlane.f32.xlu0 %v912
        %v914 = vpop.xlane.xlu0 %913
        %v915 = vsel %vm859, %v903, 0.0
        %916 = vadd.xlane.f32.xlu0 %v915
        %v917 = vpop.xlane.xlu0 %916
        %v918 = vsel %vm859, %v904, 0.0
        %919 = vadd.xlane.f32.xlu0 %v918
        %v920 = vpop.xlane.xlu0 %919
        %v921 = vsel %vm859, %v905, 0.0
        %922 = vadd.xlane.f32.xlu0 %v921
        %v923 = vpop.xlane.xlu0 %922
        %v924 = vsel %vm859, %v906, 0.0
        %925 = vadd.xlane.f32.xlu0 %v924
        %v926 = vpop.xlane.xlu0 %925
        %v927 = vsel %vm859, %v907, 0.0
        %928 = vadd.xlane.f32.xlu0 %v927
        %v929 = vpop.xlane.xlu0 %928
        %v930 = vsel %vm859, %v908, 0.0
        %931 = vadd.xlane.f32.xlu0 %v930
        %v932 = vpop.xlane.xlu0 %931
        %v933 = vmul.f32 %v911, %v884
        %v934 = vmul.f32 %v914, %v884
        %v935 = vmul.f32 %v917, %v884
        %v936 = vmul.f32 %v920, %v884
        %v937 = vmul.f32 %v923, %v884
        %v938 = vmul.f32 %v926, %v884
        %v939 = vmul.f32 %v929, %v884
        %v940 = vmul.f32 %v932, %v884
        %v941 = vadd.f32 %v933, 1e-05
        %v942 = vadd.f32 %v934, 1e-05
        %v943 = vadd.f32 %v935, 1e-05
        %v944 = vadd.f32 %v936, 1e-05
        %v945 = vadd.f32 %v937, 1e-05
        %v946 = vadd.f32 %v938, 1e-05
        %v947 = vadd.f32 %v939, 1e-05
        %v948 = vadd.f32 %v940, 1e-05
        %v949 = vrsqrt.pop %v941
        %v950 = vrsqrt.pop %v942
        %v951 = vrsqrt.pop %v943
        %v952 = vrsqrt.pop %v944
        %v953 = vrsqrt.pop %v945
        %v954 = vrsqrt.pop %v946
        %v955 = vrsqrt.pop %v947
        %v956 = vrsqrt.pop %v948
        %v957 = vmul.f32 %v893, %v949
        %v958 = vmul.f32 %v894, %v950
        %v959 = vmul.f32 %v895, %v951
        %v960 = vmul.f32 %v896, %v952
        %v961 = vmul.f32 %v897, %v953
        %v962 = vmul.f32 %v898, %v954
        %v963 = vmul.f32 %v899, %v955
        %v964 = vmul.f32 %v900, %v956
        %v966 = vlaneseq
        %v967 = vshrl.u32 %v966, 7
        %v968 = vsub.s32 0, %v967
        %v969 = vrot.slane %v857, %v968
        %v971 = vmul.f32 %v957, %v969
        %v972 = vmul.f32 %v958, %v969
        %v973 = vmul.f32 %v959, %v969
        %v974 = vmul.f32 %v960, %v969
        %v975 = vmul.f32 %v961, %v969
        %v976 = vmul.f32 %v962, %v969
        %v977 = vmul.f32 %v963, %v969
        %v978 = vmul.f32 %v964, %v969
        %v980 = vlaneseq
        %v981 = vshrl.u32 %v980, 7
        %v982 = vsub.s32 0, %v981
        %v983 = vrot.slane %v858, %v982
        %v985 = vadd.f32 %v971, %v983
        %v986 = vadd.f32 %v972, %v983
        %v987 = vadd.f32 %v973, %v983
        %v988 = vadd.f32 %v974, %v983
        %v989 = vadd.f32 %v975, %v983
        %v990 = vadd.f32 %v976, %v983
        %v991 = vadd.f32 %v977, %v983
        %v992 = vadd.f32 %v978, %v983
        %v993 = vld [vmem:[%s5] sm:$0x1]
        %v994 = vld [vmem:[%s6] sm:$0x1]
        %v995 = vsel %vm859, %v985, 0.0
        %996 = vadd.xlane.f32.xlu0 %v995
        %v997 = vpop.xlane.xlu0 %996
        %v998 = vsel %vm859, %v986, 0.0
        %999 = vadd.xlane.f32.xlu0 %v998
        %v1000 = vpop.xlane.xlu0 %999
        %v1001 = vsel %vm859, %v987, 0.0
        %1002 = vadd.xlane.f32.xlu0 %v1001
        %v1003 = vpop.xlane.xlu0 %1002
        %v1004 = vsel %vm859, %v988, 0.0
        %1005 = vadd.xlane.f32.xlu0 %v1004
        %v1006 = vpop.xlane.xlu0 %1005
        %v1007 = vsel %vm859, %v989, 0.0
        %1008 = vadd.xlane.f32.xlu0 %v1007
        %v1009 = vpop.xlane.xlu0 %1008
        %v1010 = vsel %vm859, %v990, 0.0
        %1011 = vadd.xlane.f32.xlu0 %v1010
        %v1012 = vpop.xlane.xlu0 %1011
        %v1013 = vsel %vm859, %v991, 0.0
        %1014 = vadd.xlane.f32.xlu0 %v1013
        %v1015 = vpop.xlane.xlu0 %1014
        %v1016 = vsel %vm859, %v992, 0.0
        %1017 = vadd.xlane.f32.xlu0 %v1016
        %v1018 = vpop.xlane.xlu0 %1017
        %v1019 = vmul.f32 %v997, %v884
        %v1020 = vmul.f32 %v1000, %v884
        %v1021 = vmul.f32 %v1003, %v884
        %v1022 = vmul.f32 %v1006, %v884
        %v1023 = vmul.f32 %v1009, %v884
        %v1024 = vmul.f32 %v1012, %v884
        %v1025 = vmul.f32 %v1015, %v884
        %v1026 = vmul.f32 %v1018, %v884
        %v1027 = vsub.f32 %v985, %v1019
        %v1028 = vsub.f32 %v986, %v1020
        %v1029 = vsub.f32 %v987, %v1021
        %v1030 = vsub.f32 %v988, %v1022
        %v1031 = vsub.f32 %v989, %v1023
        %v1032 = vsub.f32 %v990, %v1024
        %v1033 = vsub.f32 %v991, %v1025
        %v1034 = vsub.f32 %v992, %v1026
        %v1035 = vmul.f32 %v1027, %v1027
        %v1036 = vmul.f32 %v1028, %v1028
        %v1037 = vmul.f32 %v1029, %v1029
        %v1038 = vmul.f32 %v1030, %v1030
        %v1039 = vmul.f32 %v1031, %v1031
        %v1040 = vmul.f32 %v1032, %v1032
        %v1041 = vmul.f32 %v1033, %v1033
        %v1042 = vmul.f32 %v1034, %v1034
        %v1043 = vsel %vm859, %v1035, 0.0
        %1044 = vadd.xlane.f32.xlu0 %v1043
        %v1045 = vpop.xlane.xlu0 %1044
        %v1046 = vsel %vm859, %v1036, 0.0
        %1047 = vadd.xlane.f32.xlu0 %v1046
        %v1048 = vpop.xlane.xlu0 %1047
        %v1049 = vsel %vm859, %v1037, 0.0
        %1050 = vadd.xlane.f32.xlu0 %v1049
        %v1051 = vpop.xlane.xlu0 %1050
        %v1052 = vsel %vm859, %v1038, 0.0
        %1053 = vadd.xlane.f32.xlu0 %v1052
        %v1054 = vpop.xlane.xlu0 %1053
        %v1055 = vsel %vm859, %v1039, 0.0
        %1056 = vadd.xlane.f32.xlu0 %v1055
        %v1057 = vpop.xlane.xlu0 %1056
        %v1058 = vsel %vm859, %v1040, 0.0
        %1059 = vadd.xlane.f32.xlu0 %v1058
        %v1060 = vpop.xlane.xlu0 %1059
        %v1061 = vsel %vm859, %v1041, 0.0
        %1062 = vadd.xlane.f32.xlu0 %v1061
        %v1063 = vpop.xlane.xlu0 %1062
        %v1064 = vsel %vm859, %v1042, 0.0
        %1065 = vadd.xlane.f32.xlu0 %v1064
        %v1066 = vpop.xlane.xlu0 %1065
        %v1067 = vmul.f32 %v1045, %v884
        %v1068 = vmul.f32 %v1048, %v884
        %v1069 = vmul.f32 %v1051, %v884
        %v1070 = vmul.f32 %v1054, %v884
        %v1071 = vmul.f32 %v1057, %v884
        %v1072 = vmul.f32 %v1060, %v884
        %v1073 = vmul.f32 %v1063, %v884
        %v1074 = vmul.f32 %v1066, %v884
        %v1075 = vadd.f32 %v1067, 1e-05
        %v1076 = vadd.f32 %v1068, 1e-05
        %v1077 = vadd.f32 %v1069, 1e-05
        %v1078 = vadd.f32 %v1070, 1e-05
        %v1079 = vadd.f32 %v1071, 1e-05
        %v1080 = vadd.f32 %v1072, 1e-05
        %v1081 = vadd.f32 %v1073, 1e-05
        %v1082 = vadd.f32 %v1074, 1e-05
        %v1083 = vrsqrt.pop %v1075
        %v1084 = vrsqrt.pop %v1076
        %v1085 = vrsqrt.pop %v1077
        %v1086 = vrsqrt.pop %v1078
        %v1087 = vrsqrt.pop %v1079
        %v1088 = vrsqrt.pop %v1080
        %v1089 = vrsqrt.pop %v1081
        %v1090 = vrsqrt.pop %v1082
        %v1091 = vmul.f32 %v1027, %v1083
        %v1092 = vmul.f32 %v1028, %v1084
        %v1093 = vmul.f32 %v1029, %v1085
        %v1094 = vmul.f32 %v1030, %v1086
        %v1095 = vmul.f32 %v1031, %v1087
        %v1096 = vmul.f32 %v1032, %v1088
        %v1097 = vmul.f32 %v1033, %v1089
        %v1098 = vmul.f32 %v1034, %v1090
        %v1100 = vlaneseq
        %v1101 = vshrl.u32 %v1100, 7
        %v1102 = vsub.s32 0, %v1101
        %v1103 = vrot.slane %v993, %v1102
        %v1105 = vmul.f32 %v1091, %v1103
        %v1106 = vmul.f32 %v1092, %v1103
        %v1107 = vmul.f32 %v1093, %v1103
        %v1108 = vmul.f32 %v1094, %v1103
        %v1109 = vmul.f32 %v1095, %v1103
        %v1110 = vmul.f32 %v1096, %v1103
        %v1111 = vmul.f32 %v1097, %v1103
        %v1112 = vmul.f32 %v1098, %v1103
        %v1114 = vlaneseq
        %v1115 = vshrl.u32 %v1114, 7
        %v1116 = vsub.s32 0, %v1115
        %v1117 = vrot.slane %v994, %v1116
        %v1119 = vadd.f32 %v1105, %v1117
        %v1120 = vadd.f32 %v1106, %v1117
        %v1121 = vadd.f32 %v1107, %v1117
        %v1122 = vadd.f32 %v1108, %v1117
        %v1123 = vadd.f32 %v1109, %v1117
        %v1124 = vadd.f32 %v1110, %v1117
        %v1125 = vadd.f32 %v1111, %v1117
        %v1126 = vadd.f32 %v1112, %v1117
        %v1127 = vld [vmem:[%s7] sm:$0xf]
        %v1128 = vld [vmem:[%s7 + $0x4] sm:$0xf]
        %v1129 = vld [vmem:[%s7 + $0x8] sm:$0xf]
        %v1130 = vld [vmem:[%s7 + $0xc] sm:$0xf]
        %v1131 = vpack.c.bf16 %v1120, %v1119
        %v1132 = vpack.c.bf16 %v1122, %v1121
        %v1133 = vpack.c.bf16 %v1124, %v1123
        %v1134 = vpack.c.bf16 %v1126, %v1125
        %v1135 = vld [vmem:[%s8] sm:$0x1]
        %v1137 = vlaneseq
        %v1138 = vshrl.u32 %v1137, 7
        %v1139 = vsub.s32 0, %v1138
        %v1140 = vrot.slane %v1135, %v1139
        %v1146 = vunpack.c.l.b16 %v1127
        %v1147 = vunpack.c.l.b16 %v1128
        %v1148 = vunpack.c.l.b16 %v1129
        %v1149 = vunpack.c.l.b16 %v1130
        %v1150 = vpack.c.b16 %v1147, %v1146
        %v1151 = vpack.c.b16 %v1149, %v1148
        %v1155 = vsel %vm859, %v1131, 0
        %v1158 = vsel %vm859, %v1132, 0
        %v1161 = vsel %vm859, %v1133, 0
        %v1164 = vsel %vm859, %v1134, 0
        %1166 = vmatprep.subr.bf16.mxu0 0
        %1167 = vmatpush1.bf16.msra.mxu0 %v1150
        %1168 = vmatprep.subr.bf16.mxu0 0
        %1169 = vmatpush1.bf16.msra.mxu0 %v1151
        %1170 = vmatprep.subr.bf16.mxu0 0
        %1171 = vmatpush1.bf16.msra.mxu0 0
        %1172 = vmatprep.subr.bf16.mxu0 0
        %1173 = vmatpush1.bf16.msra.mxu0 0
        %1174 = vmatprep.subr.bf16.mxu0 0
        %1175 = vmatpush1.bf16.msra.mxu0 0
        %1176 = vmatprep.subr.bf16.mxu0 0
        %1177 = vmatpush1.bf16.msra.mxu0 0
        %1178 = vmatprep.subr.bf16.mxu0 0
        %1179 = vmatpush1.bf16.msra.mxu0 0
        %1180 = vmatprep.subr.bf16.mxu0 0
        %1181 = vmatpush1.bf16.msra.mxu0 0
        %1182 = vmatprep.subr.bf16.mxu0 0
        %1183 = vmatpush1.bf16.msra.mxu0 0
        %1184 = vmatprep.subr.bf16.mxu0 0
        %1185 = vmatpush1.bf16.msra.mxu0 0
        %1186 = vmatprep.subr.bf16.mxu0 0
        %1187 = vmatpush1.bf16.msra.mxu0 0
        %1188 = vmatprep.subr.bf16.mxu0 0
        %1189 = vmatpush1.bf16.msra.mxu0 0
        %1190 = vmatprep.subr.bf16.mxu0 0
        %1191 = vmatpush1.bf16.msra.mxu0 0
        %1192 = vmatprep.subr.bf16.mxu0 0
        %1193 = vmatpush1.bf16.msra.mxu0 0
        %1194 = vmatprep.subr.bf16.mxu0 0
        %1195 = vmatpush1.bf16.msra.mxu0 0
        %1196 = vmatprep.subr.bf16.mxu0 0
        %1197 = vmatpush1.bf16.msra.mxu0 0
        %1198 = vmatprep.mubr.bf16.mxu0 0
        %1199 = vmatmul.mubr.bf16.gmra.mrb[0].mxu0 %v1155
        %v1200 = vpop.f32.mrb[0].mxu0
        %v1201 = vadd.f32 %v1140, %v1200
        %v1202 = vpop.f32.mrb[0].mxu0
        %v1203 = vpop.f32.mrb[0].mxu0
        %v1204 = vadd.f32 %v1140, %v1203
        %v1205 = vpop.f32.mrb[0].mxu0
        %1206 = vmatprep.mubr.bf16.mxu0 0
        %1207 = vmatmul.mubr.bf16.gmra.mrb[0].mxu0 %v1158
        %v1208 = vpop.f32.mrb[0].mxu0
        %v1209 = vadd.f32 %v1140, %v1208
        %v1210 = vpop.f32.mrb[0].mxu0
        %v1211 = vpop.f32.mrb[0].mxu0
        %v1212 = vadd.f32 %v1140, %v1211
        %v1213 = vpop.f32.mrb[0].mxu0
        %1214 = vmatprep.mubr.bf16.mxu0 0
        %1215 = vmatmul.mubr.bf16.gmra.mrb[0].mxu0 %v1161
        %v1216 = vpop.f32.mrb[0].mxu0
        %v1217 = vadd.f32 %v1140, %v1216
        %v1218 = vpop.f32.mrb[0].mxu0
        %v1219 = vpop.f32.mrb[0].mxu0
        %v1220 = vadd.f32 %v1140, %v1219
        %v1221 = vpop.f32.mrb[0].mxu0
        %1222 = vmatprep.mubr.bf16.mxu0 0
        %1223 = vmatmul.mubr.bf16.gmra.mrb[0].mxu0 %v1164
        %v1224 = vpop.f32.mrb[0].mxu0
        %v1225 = vadd.f32 %v1140, %v1224
        %v1226 = vpop.f32.mrb[0].mxu0
        %v1227 = vpop.f32.mrb[0].mxu0
        %v1228 = vadd.f32 %v1140, %v1227
        %v1229 = vpop.f32.mrb[0].mxu0
        %1230 = vdwg.mxu0
        %v1231 = vpack.c.bf16 %v1204, %v1201
        %v1232 = vpack.c.bf16 %v1212, %v1209
        %v1233 = vpack.c.bf16 %v1220, %v1217
        %v1234 = vpack.c.bf16 %v1228, %v1225
        %1239 = vrot.lane.b32.xlu0 %v1231, 96
        %v1240 = vpop.permute.xlu0 %1239
        %1241 = vrot.lane.b32.xlu0 %v1232, 96
        %v1242 = vpop.permute.xlu0 %1241
        %1243 = vrot.lane.b32.xlu0 %v1233, 96
        %v1244 = vpop.permute.xlu0 %1243
        %1245 = vrot.lane.b32.xlu0 %v1234, 96
        %v1246 = vpop.permute.xlu0 %1245
        %vm1247 = vcmask 64512
        %v1249 = vsel %vm1247, %v1231, 0
        %v1252 = vsel %vm1247, %v1232, 0
        %v1255 = vsel %vm1247, %v1233, 0
        %v1258 = vsel %vm1247, %v1234, 0
        %v1261 = vsel %vm1247, %v1240, 0
        %v1264 = vsel %vm1247, %v1242, 0
        %v1267 = vsel %vm1247, %v1244, 0
        %v1270 = vsel %vm1247, %v1246, 0
        %1272 = vmatprep.subr.bf16.mxu0 0
        %1273 = vmatpush1.bf16.xpose.msra.mxu0 %v1261
        %1274 = vmatprep.subr.bf16.mxu0 0
        %1275 = vmatpush1.bf16.xpose.msra.mxu0 %v1264
        %1276 = vmatprep.subr.bf16.mxu0 0
        %1277 = vmatpush1.bf16.xpose.msra.mxu0 %v1267
        %1278 = vmatprep.subr.bf16.mxu0 0
        %1279 = vmatpush1.bf16.xpose.msra.mxu0 %v1270
        %1280 = vmatprep.subr.bf16.mxu0 0
        %1281 = vmatpush1.bf16.xpose.msra.mxu0 0
        %1282 = vmatprep.subr.bf16.mxu0 0
        %1283 = vmatpush1.bf16.xpose.msra.mxu0 0
        %1284 = vmatprep.subr.bf16.mxu0 0
        %1285 = vmatpush1.bf16.xpose.msra.mxu0 0
        %1286 = vmatprep.subr.bf16.mxu0 0
        %1287 = vmatpush1.bf16.xpose.msra.mxu0 0
        %1288 = vmatprep.subr.bf16.mxu0 0
        %1289 = vmatpush1.bf16.xpose.msra.mxu0 0
        %1290 = vmatprep.subr.bf16.mxu0 0
        %1291 = vmatpush1.bf16.xpose.msra.mxu0 0
        %1292 = vmatprep.subr.bf16.mxu0 0
        %1293 = vmatpush1.bf16.xpose.msra.mxu0 0
        %1294 = vmatprep.subr.bf16.mxu0 0
        %1295 = vmatpush1.bf16.xpose.msra.mxu0 0
        %1296 = vmatprep.subr.bf16.mxu0 0
        %1297 = vmatpush1.bf16.xpose.msra.mxu0 0
        %1298 = vmatprep.subr.bf16.mxu0 0
        %1299 = vmatpush1.bf16.xpose.msra.mxu0 0
        %1300 = vmatprep.subr.bf16.mxu0 0
        %1301 = vmatpush1.bf16.xpose.msra.mxu0 0
        %1302 = vmatprep.subr.bf16.mxu0 0
        %1303 = vmatpush1.bf16.xpose.msra.mxu0 0
        %1304 = vmatprep.mubr.bf16.mxu0 0
        %1305 = vmatmul.mubr.bf16.gmra.mrb[0].mxu0 %v1249
        %v1306 = vpop.f32.mrb[0].mxu0
        %v1307 = vadd.f32 0.0, %v1306
        %v1308 = vpop.f32.mrb[0].mxu0
        %v1309 = vpop.f32.mrb[0].mxu0
        %v1310 = vadd.f32 0.0, %v1309
        %v1311 = vpop.f32.mrb[0].mxu0
        %1312 = vmatprep.mubr.bf16.mxu0 0
        %1313 = vmatmul.mubr.bf16.gmra.mrb[0].mxu0 %v1252
        %v1314 = vpop.f32.mrb[0].mxu0
        %v1315 = vadd.f32 0.0, %v1314
        %v1316 = vpop.f32.mrb[0].mxu0
        %v1317 = vpop.f32.mrb[0].mxu0
        %v1318 = vadd.f32 0.0, %v1317
        %v1319 = vpop.f32.mrb[0].mxu0
        %1320 = vmatprep.mubr.bf16.mxu0 0
        %1321 = vmatmul.mubr.bf16.gmra.mrb[0].mxu0 %v1255
        %v1322 = vpop.f32.mrb[0].mxu0
        %v1323 = vadd.f32 0.0, %v1322
        %v1324 = vpop.f32.mrb[0].mxu0
        %v1325 = vpop.f32.mrb[0].mxu0
        %v1326 = vadd.f32 0.0, %v1325
        %v1327 = vpop.f32.mrb[0].mxu0
        %1328 = vmatprep.mubr.bf16.mxu0 0
        %1329 = vmatmul.mubr.bf16.gmra.mrb[0].mxu0 %v1258
        %v1330 = vpop.f32.mrb[0].mxu0
        %v1331 = vadd.f32 0.0, %v1330
        %v1332 = vpop.f32.mrb[0].mxu0
        %v1333 = vpop.f32.mrb[0].mxu0
        %v1334 = vadd.f32 0.0, %v1333
        %v1335 = vpop.f32.mrb[0].mxu0
        %1336 = vdwg.mxu0
        %v1337 = vmul.f32 %v1307, 0.35355338
        %v1338 = vmul.f32 %v1310, 0.35355338
        %v1339 = vmul.f32 %v1315, 0.35355338
        %v1340 = vmul.f32 %v1318, 0.35355338
        %v1341 = vmul.f32 %v1323, 0.35355338
        %v1342 = vmul.f32 %v1326, 0.35355338
        %v1343 = vmul.f32 %v1331, 0.35355338
        %v1344 = vmul.f32 %v1334, 0.35355338
        %vm1345 = vcmask 523264
        %v1346 = vsel %vm1345, %v1337, -inf
        %1347 = vmax.xlane.f32.xlu0 %v1346
        %v1348 = vpop.xlane.xlu0 %1347
        %v1349 = vsel %vm1345, %v1338, -inf
        %1350 = vmax.xlane.f32.xlu0 %v1349
        %v1351 = vpop.xlane.xlu0 %1350
        %v1352 = vsel %vm1345, %v1339, -inf
        %1353 = vmax.xlane.f32.xlu0 %v1352
        %v1354 = vpop.xlane.xlu0 %1353
        %v1355 = vsel %vm1345, %v1340, -inf
        %1356 = vmax.xlane.f32.xlu0 %v1355
        %v1357 = vpop.xlane.xlu0 %1356
        %v1358 = vsel %vm1345, %v1341, -inf
        %1359 = vmax.xlane.f32.xlu0 %v1358
        %v1360 = vpop.xlane.xlu0 %1359
        %v1361 = vsel %vm1345, %v1342, -inf
        %1362 = vmax.xlane.f32.xlu0 %v1361
        %v1363 = vpop.xlane.xlu0 %1362
        %v1364 = vsel %vm1345, %v1343, -inf
        %1365 = vmax.xlane.f32.xlu0 %v1364
        %v1366 = vpop.xlane.xlu0 %1365
        %v1367 = vsel %vm1345, %v1344, -inf
        %1368 = vmax.xlane.f32.xlu0 %v1367
        %v1369 = vpop.xlane.xlu0 %1368
        %v1370 = vsub.f32 %v1337, %v1348
        %v1371 = vsub.f32 %v1338, %v1351
        %v1372 = vsub.f32 %v1339, %v1354
        %v1373 = vsub.f32 %v1340, %v1357
        %v1374 = vsub.f32 %v1341, %v1360
        %v1375 = vsub.f32 %v1342, %v1363
        %v1376 = vsub.f32 %v1343, %v1366
        %v1377 = vsub.f32 %v1344, %v1369
        %v1378 = vmul.f32 %v1370, 1.442695
        %v1379 = vpow.pop %v1378
        %v1380 = vmul.f32 %v1371, 1.442695
        %v1381 = vpow.pop %v1380
        %v1382 = vmul.f32 %v1372, 1.442695
        %v1383 = vpow.pop %v1382
        %v1384 = vmul.f32 %v1373, 1.442695
        %v1385 = vpow.pop %v1384
        %v1386 = vmul.f32 %v1374, 1.442695
        %v1387 = vpow.pop %v1386
        %v1388 = vmul.f32 %v1375, 1.442695
        %v1389 = vpow.pop %v1388
        %v1390 = vmul.f32 %v1376, 1.442695
        %v1391 = vpow.pop %v1390
        %v1392 = vmul.f32 %v1377, 1.442695
        %v1393 = vpow.pop %v1392
        %v1394 = vsel %vm1345, %v1379, 0.0
        %1395 = vadd.xlane.f32.xlu0 %v1394
        %v1396 = vpop.xlane.xlu0 %1395
        %v1397 = vsel %vm1345, %v1381, 0.0
        %1398 = vadd.xlane.f32.xlu0 %v1397
        %v1399 = vpop.xlane.xlu0 %1398
        %v1400 = vsel %vm1345, %v1383, 0.0
        %1401 = vadd.xlane.f32.xlu0 %v1400
        %v1402 = vpop.xlane.xlu0 %1401
        %v1403 = vsel %vm1345, %v1385, 0.0
        %1404 = vadd.xlane.f32.xlu0 %v1403
        %v1405 = vpop.xlane.xlu0 %1404
        %v1406 = vsel %vm1345, %v1387, 0.0
        %1407 = vadd.xlane.f32.xlu0 %v1406
        %v1408 = vpop.xlane.xlu0 %1407
        %v1409 = vsel %vm1345, %v1389, 0.0
        %1410 = vadd.xlane.f32.xlu0 %v1409
        %v1411 = vpop.xlane.xlu0 %1410
        %v1412 = vsel %vm1345, %v1391, 0.0
        %1413 = vadd.xlane.f32.xlu0 %v1412
        %v1414 = vpop.xlane.xlu0 %1413
        %v1415 = vsel %vm1345, %v1393, 0.0
        %1416 = vadd.xlane.f32.xlu0 %v1415
        %v1417 = vpop.xlane.xlu0 %1416
        %v1418 = vrcp.pop %v1396
        %v1419 = vrcp.pop %v1399
        %v1420 = vrcp.pop %v1402
        %v1421 = vrcp.pop %v1405
        %v1422 = vrcp.pop %v1408
        %v1423 = vrcp.pop %v1411
        %v1424 = vrcp.pop %v1414
        %v1425 = vrcp.pop %v1417
        %v1426 = vmul.f32 %v1379, %v1418
        %v1427 = vmul.f32 %v1381, %v1419
        %v1428 = vmul.f32 %v1383, %v1420
        %v1429 = vmul.f32 %v1385, %v1421
        %v1430 = vmul.f32 %v1387, %v1422
        %v1431 = vmul.f32 %v1389, %v1423
        %v1432 = vmul.f32 %v1391, %v1424
        %v1433 = vmul.f32 %v1393, %v1425
        %v1434 = vpack.c.bf16 %v1427, %v1426
        %v1435 = vpack.c.bf16 %v1429, %v1428
        %v1436 = vpack.c.bf16 %v1431, %v1430
        %v1437 = vpack.c.bf16 %v1433, %v1432
        %1438 = vrot.lane.b32.xlu0 %v1231, 64
        %v1439 = vpop.permute.xlu0 %1438
        %1440 = vrot.lane.b32.xlu0 %v1232, 64
        %v1441 = vpop.permute.xlu0 %1440
        %1442 = vrot.lane.b32.xlu0 %v1233, 64
        %v1443 = vpop.permute.xlu0 %1442
        %1444 = vrot.lane.b32.xlu0 %v1234, 64
        %v1445 = vpop.permute.xlu0 %1444
        %v1451 = vsel %vm1345, %v1434, 0
        %v1454 = vsel %vm1345, %v1435, 0
        %v1457 = vsel %vm1345, %v1436, 0
        %v1460 = vsel %vm1345, %v1437, 0
        %1462 = vmatprep.subr.bf16.mxu0 0
        %1463 = vmatpush1.bf16.msra.mxu0 %v1439
        %1464 = vmatprep.subr.bf16.mxu0 0
        %1465 = vmatpush1.bf16.msra.mxu0 %v1441
        %1466 = vmatprep.subr.bf16.mxu0 0
        %1467 = vmatpush1.bf16.msra.mxu0 %v1443
        %1468 = vmatprep.subr.bf16.mxu0 0
        %1469 = vmatpush1.bf16.msra.mxu0 %v1445
        %1470 = vmatprep.subr.bf16.mxu0 0
        %1471 = vmatpush1.bf16.msra.mxu0 0
        %1472 = vmatprep.subr.bf16.mxu0 0
        %1473 = vmatpush1.bf16.msra.mxu0 0
        %1474 = vmatprep.subr.bf16.mxu0 0
        %1475 = vmatpush1.bf16.msra.mxu0 0
        %1476 = vmatprep.subr.bf16.mxu0 0
        %1477 = vmatpush1.bf16.msra.mxu0 0
        %1478 = vmatprep.subr.bf16.mxu0 0
        %1479 = vmatpush1.bf16.msra.mxu0 0
        %1480 = vmatprep.subr.bf16.mxu0 0
        %1481 = vmatpush1.bf16.msra.mxu0 0
        %1482 = vmatprep.subr.bf16.mxu0 0
        %1483 = vmatpush1.bf16.msra.mxu0 0
        %1484 = vmatprep.subr.bf16.mxu0 0
        %1485 = vmatpush1.bf16.msra.mxu0 0
        %1486 = vmatprep.subr.bf16.mxu0 0
        %1487 = vmatpush1.bf16.msra.mxu0 0
        %1488 = vmatprep.subr.bf16.mxu0 0
        %1489 = vmatpush1.bf16.msra.mxu0 0
        %1490 = vmatprep.subr.bf16.mxu0 0
        %1491 = vmatpush1.bf16.msra.mxu0 0
        %1492 = vmatprep.subr.bf16.mxu0 0
        %1493 = vmatpush1.bf16.msra.mxu0 0
        %1494 = vmatprep.mubr.bf16.mxu0 0
        %1495 = vmatmul.mubr.bf16.gmra.mrb[0].mxu0 %v1451
        %v1496 = vpop.f32.mrb[0].mxu0
        %v1497 = vadd.f32 0.0, %v1496
        %v1498 = vpop.f32.mrb[0].mxu0
        %v1499 = vpop.f32.mrb[0].mxu0
        %v1500 = vadd.f32 0.0, %v1499
        %v1501 = vpop.f32.mrb[0].mxu0
        %1502 = vmatprep.mubr.bf16.mxu0 0
        %1503 = vmatmul.mubr.bf16.gmra.mrb[0].mxu0 %v1454
        %v1504 = vpop.f32.mrb[0].mxu0
        %v1505 = vadd.f32 0.0, %v1504
        %v1506 = vpop.f32.mrb[0].mxu0
        %v1507 = vpop.f32.mrb[0].mxu0
        %v1508 = vadd.f32 0.0, %v1507
        %v1509 = vpop.f32.mrb[0].mxu0
        %1510 = vmatprep.mubr.bf16.mxu0 0
        %1511 = vmatmul.mubr.bf16.gmra.mrb[0].mxu0 %v1457
        %v1512 = vpop.f32.mrb[0].mxu0
        %v1513 = vadd.f32 0.0, %v1512
        %v1514 = vpop.f32.mrb[0].mxu0
        %v1515 = vpop.f32.mrb[0].mxu0
        %v1516 = vadd.f32 0.0, %v1515
        %v1517 = vpop.f32.mrb[0].mxu0
        %1518 = vmatprep.mubr.bf16.mxu0 0
        %1519 = vmatmul.mubr.bf16.gmra.mrb[0].mxu0 %v1460
        %v1520 = vpop.f32.mrb[0].mxu0
        %v1521 = vadd.f32 0.0, %v1520
        %v1522 = vpop.f32.mrb[0].mxu0
        %v1523 = vpop.f32.mrb[0].mxu0
        %v1524 = vadd.f32 0.0, %v1523
        %v1525 = vpop.f32.mrb[0].mxu0
        %1526 = vdwg.mxu0
        %1527 = vrot.lane.b32.xlu0 %v1231, 120
        %v1528 = vpop.permute.xlu0 %1527
        %1529 = vrot.lane.b32.xlu0 %v1232, 120
        %v1530 = vpop.permute.xlu0 %1529
        %1531 = vrot.lane.b32.xlu0 %v1233, 120
        %v1532 = vpop.permute.xlu0 %1531
        %1533 = vrot.lane.b32.xlu0 %v1234, 120
        %v1534 = vpop.permute.xlu0 %1533
        %1535 = vrot.lane.b32.xlu0 %v1231, 88
        %v1536 = vpop.permute.xlu0 %1535
        %1537 = vrot.lane.b32.xlu0 %v1232, 88
        %v1538 = vpop.permute.xlu0 %1537
        %1539 = vrot.lane.b32.xlu0 %v1233, 88
        %v1540 = vpop.permute.xlu0 %1539
        %1541 = vrot.lane.b32.xlu0 %v1234, 88
        %v1542 = vpop.permute.xlu0 %1541
        %v1544 = vsel %vm1247, %v1528, 0
        %v1547 = vsel %vm1247, %v1530, 0
        %v1550 = vsel %vm1247, %v1532, 0
        %v1553 = vsel %vm1247, %v1534, 0
        %v1556 = vsel %vm1247, %v1536, 0
        %v1559 = vsel %vm1247, %v1538, 0
        %v1562 = vsel %vm1247, %v1540, 0
        %v1565 = vsel %vm1247, %v1542, 0
        %1567 = vmatprep.subr.bf16.mxu0 0
        %1568 = vmatpush1.bf16.xpose.msra.mxu0 %v1556
        %1569 = vmatprep.subr.bf16.mxu0 0
        %1570 = vmatpush1.bf16.xpose.msra.mxu0 %v1559
        %1571 = vmatprep.subr.bf16.mxu0 0
        %1572 = vmatpush1.bf16.xpose.msra.mxu0 %v1562
        %1573 = vmatprep.subr.bf16.mxu0 0
        %1574 = vmatpush1.bf16.xpose.msra.mxu0 %v1565
        %1575 = vmatprep.subr.bf16.mxu0 0
        %1576 = vmatpush1.bf16.xpose.msra.mxu0 0
        %1577 = vmatprep.subr.bf16.mxu0 0
        %1578 = vmatpush1.bf16.xpose.msra.mxu0 0
        %1579 = vmatprep.subr.bf16.mxu0 0
        %1580 = vmatpush1.bf16.xpose.msra.mxu0 0
        %1581 = vmatprep.subr.bf16.mxu0 0
        %1582 = vmatpush1.bf16.xpose.msra.mxu0 0
        %1583 = vmatprep.subr.bf16.mxu0 0
        %1584 = vmatpush1.bf16.xpose.msra.mxu0 0
        %1585 = vmatprep.subr.bf16.mxu0 0
        %1586 = vmatpush1.bf16.xpose.msra.mxu0 0
        %1587 = vmatprep.subr.bf16.mxu0 0
        %1588 = vmatpush1.bf16.xpose.msra.mxu0 0
        %1589 = vmatprep.subr.bf16.mxu0 0
        %1590 = vmatpush1.bf16.xpose.msra.mxu0 0
        %1591 = vmatprep.subr.bf16.mxu0 0
        %1592 = vmatpush1.bf16.xpose.msra.mxu0 0
        %1593 = vmatprep.subr.bf16.mxu0 0
        %1594 = vmatpush1.bf16.xpose.msra.mxu0 0
        %1595 = vmatprep.subr.bf16.mxu0 0
        %1596 = vmatpush1.bf16.xpose.msra.mxu0 0
        %1597 = vmatprep.subr.bf16.mxu0 0
        %1598 = vmatpush1.bf16.xpose.msra.mxu0 0
        %1599 = vmatprep.mubr.bf16.mxu0 0
        %1600 = vmatmul.mubr.bf16.gmra.mrb[0].mxu0 %v1544
        %v1601 = vpop.f32.mrb[0].mxu0
        %v1602 = vadd.f32 0.0, %v1601
        %v1603 = vpop.f32.mrb[0].mxu0
        %v1604 = vpop.f32.mrb[0].mxu0
        %v1605 = vadd.f32 0.0, %v1604
        %v1606 = vpop.f32.mrb[0].mxu0
        %1607 = vmatprep.mubr.bf16.mxu0 0
        %1608 = vmatmul.mubr.bf16.gmra.mrb[0].mxu0 %v1547
        %v1609 = vpop.f32.mrb[0].mxu0
        %v1610 = vadd.f32 0.0, %v1609
        %v1611 = vpop.f32.mrb[0].mxu0
        %v1612 = vpop.f32.mrb[0].mxu0
        %v1613 = vadd.f32 0.0, %v1612
        %v1614 = vpop.f32.mrb[0].mxu0
        %1615 = vmatprep.mubr.bf16.mxu0 0
        %1616 = vmatmul.mubr.bf16.gmra.mrb[0].mxu0 %v1550
        %v1617 = vpop.f32.mrb[0].mxu0
        %v1618 = vadd.f32 0.0, %v1617
        %v1619 = vpop.f32.mrb[0].mxu0
        %v1620 = vpop.f32.mrb[0].mxu0
        %v1621 = vadd.f32 0.0, %v1620
        %v1622 = vpop.f32.mrb[0].mxu0
        %1623 = vmatprep.mubr.bf16.mxu0 0
        %1624 = vmatmul.mubr.bf16.gmra.mrb[0].mxu0 %v1553
        %v1625 = vpop.f32.mrb[0].mxu0
        %v1626 = vadd.f32 0.0, %v1625
        %v1627 = vpop.f32.mrb[0].mxu0
        %v1628 = vpop.f32.mrb[0].mxu0
        %v1629 = vadd.f32 0.0, %v1628
        %v1630 = vpop.f32.mrb[0].mxu0
        %1631 = vdwg.mxu0
        %v1632 = vmul.f32 %v1602, 0.35355338
        %v1633 = vmul.f32 %v1605, 0.35355338
        %v1634 = vmul.f32 %v1610, 0.35355338
        %v1635 = vmul.f32 %v1613, 0.35355338
        %v1636 = vmul.f32 %v1618, 0.35355338
        %v1637 = vmul.f32 %v1621, 0.35355338
        %v1638 = vmul.f32 %v1626, 0.35355338
        %v1639 = vmul.f32 %v1629, 0.35355338
        %v1640 = vsel %vm1345, %v1632, -inf
        %1641 = vmax.xlane.f32.xlu0 %v1640
        %v1642 = vpop.xlane.xlu0 %1641
        %v1643 = vsel %vm1345, %v1633, -inf
        %1644 = vmax.xlane.f32.xlu0 %v1643
        %v1645 = vpop.xlane.xlu0 %1644
        %v1646 = vsel %vm1345, %v1634, -inf
        %1647 = vmax.xlane.f32.xlu0 %v1646
        %v1648 = vpop.xlane.xlu0 %1647
        %v1649 = vsel %vm1345, %v1635, -inf
        %1650 = vmax.xlane.f32.xlu0 %v1649
        %v1651 = vpop.xlane.xlu0 %1650
        %v1652 = vsel %vm1345, %v1636, -inf
        %1653 = vmax.xlane.f32.xlu0 %v1652
        %v1654 = vpop.xlane.xlu0 %1653
        %v1655 = vsel %vm1345, %v1637, -inf
        %1656 = vmax.xlane.f32.xlu0 %v1655
        %v1657 = vpop.xlane.xlu0 %1656
        %v1658 = vsel %vm1345, %v1638, -inf
        %1659 = vmax.xlane.f32.xlu0 %v1658
        %v1660 = vpop.xlane.xlu0 %1659
        %v1661 = vsel %vm1345, %v1639, -inf
        %1662 = vmax.xlane.f32.xlu0 %v1661
        %v1663 = vpop.xlane.xlu0 %1662
        %v1664 = vsub.f32 %v1632, %v1642
        %v1665 = vsub.f32 %v1633, %v1645
        %v1666 = vsub.f32 %v1634, %v1648
        %v1667 = vsub.f32 %v1635, %v1651
        %v1668 = vsub.f32 %v1636, %v1654
        %v1669 = vsub.f32 %v1637, %v1657
        %v1670 = vsub.f32 %v1638, %v1660
        %v1671 = vsub.f32 %v1639, %v1663
        %v1672 = vmul.f32 %v1664, 1.442695
        %v1673 = vpow.pop %v1672
        %v1674 = vmul.f32 %v1665, 1.442695
        %v1675 = vpow.pop %v1674
        %v1676 = vmul.f32 %v1666, 1.442695
        %v1677 = vpow.pop %v1676
        %v1678 = vmul.f32 %v1667, 1.442695
        %v1679 = vpow.pop %v1678
        %v1680 = vmul.f32 %v1668, 1.442695
        %v1681 = vpow.pop %v1680
        %v1682 = vmul.f32 %v1669, 1.442695
        %v1683 = vpow.pop %v1682
        %v1684 = vmul.f32 %v1670, 1.442695
        %v1685 = vpow.pop %v1684
        %v1686 = vmul.f32 %v1671, 1.442695
        %v1687 = vpow.pop %v1686
        %v1688 = vsel %vm1345, %v1673, 0.0
        %1689 = vadd.xlane.f32.xlu0 %v1688
        %v1690 = vpop.xlane.xlu0 %1689
        %v1691 = vsel %vm1345, %v1675, 0.0
        %1692 = vadd.xlane.f32.xlu0 %v1691
        %v1693 = vpop.xlane.xlu0 %1692
        %v1694 = vsel %vm1345, %v1677, 0.0
        %1695 = vadd.xlane.f32.xlu0 %v1694
        %v1696 = vpop.xlane.xlu0 %1695
        %v1697 = vsel %vm1345, %v1679, 0.0
        %1698 = vadd.xlane.f32.xlu0 %v1697
        %v1699 = vpop.xlane.xlu0 %1698
        %v1700 = vsel %vm1345, %v1681, 0.0
        %1701 = vadd.xlane.f32.xlu0 %v1700
        %v1702 = vpop.xlane.xlu0 %1701
        %v1703 = vsel %vm1345, %v1683, 0.0
        %1704 = vadd.xlane.f32.xlu0 %v1703
        %v1705 = vpop.xlane.xlu0 %1704
        %v1706 = vsel %vm1345, %v1685, 0.0
        %1707 = vadd.xlane.f32.xlu0 %v1706
        %v1708 = vpop.xlane.xlu0 %1707
        %v1709 = vsel %vm1345, %v1687, 0.0
        %1710 = vadd.xlane.f32.xlu0 %v1709
        %v1711 = vpop.xlane.xlu0 %1710
        %v1712 = vrcp.pop %v1690
        %v1713 = vrcp.pop %v1693
        %v1714 = vrcp.pop %v1696
        %v1715 = vrcp.pop %v1699
        %v1716 = vrcp.pop %v1702
        %v1717 = vrcp.pop %v1705
        %v1718 = vrcp.pop %v1708
        %v1719 = vrcp.pop %v1711
        %v1720 = vmul.f32 %v1673, %v1712
        %v1721 = vmul.f32 %v1675, %v1713
        %v1722 = vmul.f32 %v1677, %v1714
        %v1723 = vmul.f32 %v1679, %v1715
        %v1724 = vmul.f32 %v1681, %v1716
        %v1725 = vmul.f32 %v1683, %v1717
        %v1726 = vmul.f32 %v1685, %v1718
        %v1727 = vmul.f32 %v1687, %v1719
        %v1728 = vpack.c.bf16 %v1721, %v1720
        %v1729 = vpack.c.bf16 %v1723, %v1722
        %v1730 = vpack.c.bf16 %v1725, %v1724
        %v1731 = vpack.c.bf16 %v1727, %v1726
        %1732 = vrot.lane.b32.xlu0 %v1231, 56
        %v1733 = vpop.permute.xlu0 %1732
        %1734 = vrot.lane.b32.xlu0 %v1232, 56
        %v1735 = vpop.permute.xlu0 %1734
        %1736 = vrot.lane.b32.xlu0 %v1233, 56
        %v1737 = vpop.permute.xlu0 %1736
        %1738 = vrot.lane.b32.xlu0 %v1234, 56
        %v1739 = vpop.permute.xlu0 %1738
        %v1745 = vsel %vm1345, %v1728, 0
        %v1748 = vsel %vm1345, %v1729, 0
        %v1751 = vsel %vm1345, %v1730, 0
        %v1754 = vsel %vm1345, %v1731, 0
        %1756 = vmatprep.subr.bf16.mxu0 0
        %1757 = vmatpush1.bf16.msra.mxu0 %v1733
        %1758 = vmatprep.subr.bf16.mxu0 0
        %1759 = vmatpush1.bf16.msra.mxu0 %v1735
        %1760 = vmatprep.subr.bf16.mxu0 0
        %1761 = vmatpush1.bf16.msra.mxu0 %v1737
        %1762 = vmatprep.subr.bf16.mxu0 0
        %1763 = vmatpush1.bf16.msra.mxu0 %v1739
        %1764 = vmatprep.subr.bf16.mxu0 0
        %1765 = vmatpush1.bf16.msra.mxu0 0
        %1766 = vmatprep.subr.bf16.mxu0 0
        %1767 = vmatpush1.bf16.msra.mxu0 0
        %1768 = vmatprep.subr.bf16.mxu0 0
        %1769 = vmatpush1.bf16.msra.mxu0 0
        %1770 = vmatprep.subr.bf16.mxu0 0
        %1771 = vmatpush1.bf16.msra.mxu0 0
        %1772 = vmatprep.subr.bf16.mxu0 0
        %1773 = vmatpush1.bf16.msra.mxu0 0
        %1774 = vmatprep.subr.bf16.mxu0 0
        %1775 = vmatpush1.bf16.msra.mxu0 0
        %1776 = vmatprep.subr.bf16.mxu0 0
        %1777 = vmatpush1.bf16.msra.mxu0 0
        %1778 = vmatprep.subr.bf16.mxu0 0
        %1779 = vmatpush1.bf16.msra.mxu0 0
        %1780 = vmatprep.subr.bf16.mxu0 0
        %1781 = vmatpush1.bf16.msra.mxu0 0
        %1782 = vmatprep.subr.bf16.mxu0 0
        %1783 = vmatpush1.bf16.msra.mxu0 0
        %1784 = vmatprep.subr.bf16.mxu0 0
        %1785 = vmatpush1.bf16.msra.mxu0 0
        %1786 = vmatprep.subr.bf16.mxu0 0
        %1787 = vmatpush1.bf16.msra.mxu0 0
        %1788 = vmatprep.mubr.bf16.mxu0 0
        %1789 = vmatmul.mubr.bf16.gmra.mrb[0].mxu0 %v1745
        %v1790 = vpop.f32.mrb[0].mxu0
        %v1791 = vadd.f32 0.0, %v1790
        %v1792 = vpop.f32.mrb[0].mxu0
        %v1793 = vpop.f32.mrb[0].mxu0
        %v1794 = vadd.f32 0.0, %v1793
        %v1795 = vpop.f32.mrb[0].mxu0
        %1796 = vmatprep.mubr.bf16.mxu0 0
        %1797 = vmatmul.mubr.bf16.gmra.mrb[0].mxu0 %v1748
        %v1798 = vpop.f32.mrb[0].mxu0
        %v1799 = vadd.f32 0.0, %v1798
        %v1800 = vpop.f32.mrb[0].mxu0
        %v1801 = vpop.f32.mrb[0].mxu0
        %v1802 = vadd.f32 0.0, %v1801
        %v1803 = vpop.f32.mrb[0].mxu0
        %1804 = vmatprep.mubr.bf16.mxu0 0
        %1805 = vmatmul.mubr.bf16.gmra.mrb[0].mxu0 %v1751
        %v1806 = vpop.f32.mrb[0].mxu0
        %v1807 = vadd.f32 0.0, %v1806
        %v1808 = vpop.f32.mrb[0].mxu0
        %v1809 = vpop.f32.mrb[0].mxu0
        %v1810 = vadd.f32 0.0, %v1809
        %v1811 = vpop.f32.mrb[0].mxu0
        %1812 = vmatprep.mubr.bf16.mxu0 0
        %1813 = vmatmul.mubr.bf16.gmra.mrb[0].mxu0 %v1754
        %v1814 = vpop.f32.mrb[0].mxu0
        %v1815 = vadd.f32 0.0, %v1814
        %v1816 = vpop.f32.mrb[0].mxu0
        %v1817 = vpop.f32.mrb[0].mxu0
        %v1818 = vadd.f32 0.0, %v1817
        %v1819 = vpop.f32.mrb[0].mxu0
        %1820 = vdwg.mxu0
        %1821 = vrot.lane.b32.xlu0 %v1231, 112
        %v1822 = vpop.permute.xlu0 %1821
        %1823 = vrot.lane.b32.xlu0 %v1232, 112
        %v1824 = vpop.permute.xlu0 %1823
        %1825 = vrot.lane.b32.xlu0 %v1233, 112
        %v1826 = vpop.permute.xlu0 %1825
        %1827 = vrot.lane.b32.xlu0 %v1234, 112
        %v1828 = vpop.permute.xlu0 %1827
        %1829 = vrot.lane.b32.xlu0 %v1231, 80
        %v1830 = vpop.permute.xlu0 %1829
        %1831 = vrot.lane.b32.xlu0 %v1232, 80
        %v1832 = vpop.permute.xlu0 %1831
        %1833 = vrot.lane.b32.xlu0 %v1233, 80
        %v1834 = vpop.permute.xlu0 %1833
        %1835 = vrot.lane.b32.xlu0 %v1234, 80
        %v1836 = vpop.permute.xlu0 %1835
        %v1838 = vsel %vm1247, %v1822, 0
        %v1841 = vsel %vm1247, %v1824, 0
        %v1844 = vsel %vm1247, %v1826, 0
        %v1847 = vsel %vm1247, %v1828, 0
        %v1850 = vsel %vm1247, %v1830, 0
        %v1853 = vsel %vm1247, %v1832, 0
        %v1856 = vsel %vm1247, %v1834, 0
        %v1859 = vsel %vm1247, %v1836, 0
        %1861 = vmatprep.subr.bf16.mxu0 0
        %1862 = vmatpush1.bf16.xpose.msra.mxu0 %v1850
        %1863 = vmatprep.subr.bf16.mxu0 0
        %1864 = vmatpush1.bf16.xpose.msra.mxu0 %v1853
        %1865 = vmatprep.subr.bf16.mxu0 0
        %1866 = vmatpush1.bf16.xpose.msra.mxu0 %v1856
        %1867 = vmatprep.subr.bf16.mxu0 0
        %1868 = vmatpush1.bf16.xpose.msra.mxu0 %v1859
        %1869 = vmatprep.subr.bf16.mxu0 0
        %1870 = vmatpush1.bf16.xpose.msra.mxu0 0
        %1871 = vmatprep.subr.bf16.mxu0 0
        %1872 = vmatpush1.bf16.xpose.msra.mxu0 0
        %1873 = vmatprep.subr.bf16.mxu0 0
        %1874 = vmatpush1.bf16.xpose.msra.mxu0 0
        %1875 = vmatprep.subr.bf16.mxu0 0
        %1876 = vmatpush1.bf16.xpose.msra.mxu0 0
        %1877 = vmatprep.subr.bf16.mxu0 0
        %1878 = vmatpush1.bf16.xpose.msra.mxu0 0
        %1879 = vmatprep.subr.bf16.mxu0 0
        %1880 = vmatpush1.bf16.xpose.msra.mxu0 0
        %1881 = vmatprep.subr.bf16.mxu0 0
        %1882 = vmatpush1.bf16.xpose.msra.mxu0 0
        %1883 = vmatprep.subr.bf16.mxu0 0
        %1884 = vmatpush1.bf16.xpose.msra.mxu0 0
        %1885 = vmatprep.subr.bf16.mxu0 0
        %1886 = vmatpush1.bf16.xpose.msra.mxu0 0
        %1887 = vmatprep.subr.bf16.mxu0 0
        %1888 = vmatpush1.bf16.xpose.msra.mxu0 0
        %1889 = vmatprep.subr.bf16.mxu0 0
        %1890 = vmatpush1.bf16.xpose.msra.mxu0 0
        %1891 = vmatprep.subr.bf16.mxu0 0
        %1892 = vmatpush1.bf16.xpose.msra.mxu0 0
        %1893 = vmatprep.mubr.bf16.mxu0 0
        %1894 = vmatmul.mubr.bf16.gmra.mrb[0].mxu0 %v1838
        %v1895 = vpop.f32.mrb[0].mxu0
        %v1896 = vadd.f32 0.0, %v1895
        %v1897 = vpop.f32.mrb[0].mxu0
        %v1898 = vpop.f32.mrb[0].mxu0
        %v1899 = vadd.f32 0.0, %v1898
        %v1900 = vpop.f32.mrb[0].mxu0
        %1901 = vmatprep.mubr.bf16.mxu0 0
        %1902 = vmatmul.mubr.bf16.gmra.mrb[0].mxu0 %v1841
        %v1903 = vpop.f32.mrb[0].mxu0
        %v1904 = vadd.f32 0.0, %v1903
        %v1905 = vpop.f32.mrb[0].mxu0
        %v1906 = vpop.f32.mrb[0].mxu0
        %v1907 = vadd.f32 0.0, %v1906
        %v1908 = vpop.f32.mrb[0].mxu0
        %1909 = vmatprep.mubr.bf16.mxu0 0
        %1910 = vmatmul.mubr.bf16.gmra.mrb[0].mxu0 %v1844
        %v1911 = vpop.f32.mrb[0].mxu0
        %v1912 = vadd.f32 0.0, %v1911
        %v1913 = vpop.f32.mrb[0].mxu0
        %v1914 = vpop.f32.mrb[0].mxu0
        %v1915 = vadd.f32 0.0, %v1914
        %v1916 = vpop.f32.mrb[0].mxu0
        %1917 = vmatprep.mubr.bf16.mxu0 0
        %1918 = vmatmul.mubr.bf16.gmra.mrb[0].mxu0 %v1847
        %v1919 = vpop.f32.mrb[0].mxu0
        %v1920 = vadd.f32 0.0, %v1919
        %v1921 = vpop.f32.mrb[0].mxu0
        %v1922 = vpop.f32.mrb[0].mxu0
        %v1923 = vadd.f32 0.0, %v1922
        %v1924 = vpop.f32.mrb[0].mxu0
        %1925 = vdwg.mxu0
        %v1926 = vmul.f32 %v1896, 0.35355338
        %v1927 = vmul.f32 %v1899, 0.35355338
        %v1928 = vmul.f32 %v1904, 0.35355338
        %v1929 = vmul.f32 %v1907, 0.35355338
        %v1930 = vmul.f32 %v1912, 0.35355338
        %v1931 = vmul.f32 %v1915, 0.35355338
        %v1932 = vmul.f32 %v1920, 0.35355338
        %v1933 = vmul.f32 %v1923, 0.35355338
        %v1934 = vsel %vm1345, %v1926, -inf
        %1935 = vmax.xlane.f32.xlu0 %v1934
        %v1936 = vpop.xlane.xlu0 %1935
        %v1937 = vsel %vm1345, %v1927, -inf
        %1938 = vmax.xlane.f32.xlu0 %v1937
        %v1939 = vpop.xlane.xlu0 %1938
        %v1940 = vsel %vm1345, %v1928, -inf
        %1941 = vmax.xlane.f32.xlu0 %v1940
        %v1942 = vpop.xlane.xlu0 %1941
        %v1943 = vsel %vm1345, %v1929, -inf
        %1944 = vmax.xlane.f32.xlu0 %v1943
        %v1945 = vpop.xlane.xlu0 %1944
        %v1946 = vsel %vm1345, %v1930, -inf
        %1947 = vmax.xlane.f32.xlu0 %v1946
        %v1948 = vpop.xlane.xlu0 %1947
        %v1949 = vsel %vm1345, %v1931, -inf
        %1950 = vmax.xlane.f32.xlu0 %v1949
        %v1951 = vpop.xlane.xlu0 %1950
        %v1952 = vsel %vm1345, %v1932, -inf
        %1953 = vmax.xlane.f32.xlu0 %v1952
        %v1954 = vpop.xlane.xlu0 %1953
        %v1955 = vsel %vm1345, %v1933, -inf
        %1956 = vmax.xlane.f32.xlu0 %v1955
        %v1957 = vpop.xlane.xlu0 %1956
        %v1958 = vsub.f32 %v1926, %v1936
        %v1959 = vsub.f32 %v1927, %v1939
        %v1960 = vsub.f32 %v1928, %v1942
        %v1961 = vsub.f32 %v1929, %v1945
        %v1962 = vsub.f32 %v1930, %v1948
        %v1963 = vsub.f32 %v1931, %v1951
        %v1964 = vsub.f32 %v1932, %v1954
        %v1965 = vsub.f32 %v1933, %v1957
        %v1966 = vmul.f32 %v1958, 1.442695
        %v1967 = vpow.pop %v1966
        %v1968 = vmul.f32 %v1959, 1.442695
        %v1969 = vpow.pop %v1968
        %v1970 = vmul.f32 %v1960, 1.442695
        %v1971 = vpow.pop %v1970
        %v1972 = vmul.f32 %v1961, 1.442695
        %v1973 = vpow.pop %v1972
        %v1974 = vmul.f32 %v1962, 1.442695
        %v1975 = vpow.pop %v1974
        %v1976 = vmul.f32 %v1963, 1.442695
        %v1977 = vpow.pop %v1976
        %v1978 = vmul.f32 %v1964, 1.442695
        %v1979 = vpow.pop %v1978
        %v1980 = vmul.f32 %v1965, 1.442695
        %v1981 = vpow.pop %v1980
        %v1982 = vsel %vm1345, %v1967, 0.0
        %1983 = vadd.xlane.f32.xlu0 %v1982
        %v1984 = vpop.xlane.xlu0 %1983
        %v1985 = vsel %vm1345, %v1969, 0.0
        %1986 = vadd.xlane.f32.xlu0 %v1985
        %v1987 = vpop.xlane.xlu0 %1986
        %v1988 = vsel %vm1345, %v1971, 0.0
        %1989 = vadd.xlane.f32.xlu0 %v1988
        %v1990 = vpop.xlane.xlu0 %1989
        %v1991 = vsel %vm1345, %v1973, 0.0
        %1992 = vadd.xlane.f32.xlu0 %v1991
        %v1993 = vpop.xlane.xlu0 %1992
        %v1994 = vsel %vm1345, %v1975, 0.0
        %1995 = vadd.xlane.f32.xlu0 %v1994
        %v1996 = vpop.xlane.xlu0 %1995
        %v1997 = vsel %vm1345, %v1977, 0.0
        %1998 = vadd.xlane.f32.xlu0 %v1997
        %v1999 = vpop.xlane.xlu0 %1998
        %v2000 = vsel %vm1345, %v1979, 0.0
        %2001 = vadd.xlane.f32.xlu0 %v2000
        %v2002 = vpop.xlane.xlu0 %2001
        %v2003 = vsel %vm1345, %v1981, 0.0
        %2004 = vadd.xlane.f32.xlu0 %v2003
        %v2005 = vpop.xlane.xlu0 %2004
        %v2006 = vrcp.pop %v1984
        %v2007 = vrcp.pop %v1987
        %v2008 = vrcp.pop %v1990
        %v2009 = vrcp.pop %v1993
        %v2010 = vrcp.pop %v1996
        %v2011 = vrcp.pop %v1999
        %v2012 = vrcp.pop %v2002
        %v2013 = vrcp.pop %v2005
        %v2014 = vmul.f32 %v1967, %v2006
        %v2015 = vmul.f32 %v1969, %v2007
        %v2016 = vmul.f32 %v1971, %v2008
        %v2017 = vmul.f32 %v1973, %v2009
        %v2018 = vmul.f32 %v1975, %v2010
        %v2019 = vmul.f32 %v1977, %v2011
        %v2020 = vmul.f32 %v1979, %v2012
        %v2021 = vmul.f32 %v1981, %v2013
        %v2022 = vpack.c.bf16 %v2015, %v2014
        %v2023 = vpack.c.bf16 %v2017, %v2016
        %v2024 = vpack.c.bf16 %v2019, %v2018
        %v2025 = vpack.c.bf16 %v2021, %v2020
        %2026 = vrot.lane.b32.xlu0 %v1231, 48
        %v2027 = vpop.permute.xlu0 %2026
        %2028 = vrot.lane.b32.xlu0 %v1232, 48
        %v2029 = vpop.permute.xlu0 %2028
        %2030 = vrot.lane.b32.xlu0 %v1233, 48
        %v2031 = vpop.permute.xlu0 %2030
        %2032 = vrot.lane.b32.xlu0 %v1234, 48
        %v2033 = vpop.permute.xlu0 %2032
        %v2039 = vsel %vm1345, %v2022, 0
        %v2042 = vsel %vm1345, %v2023, 0
        %v2045 = vsel %vm1345, %v2024, 0
        %v2048 = vsel %vm1345, %v2025, 0
        %2050 = vmatprep.subr.bf16.mxu0 0
        %2051 = vmatpush1.bf16.msra.mxu0 %v2027
        %2052 = vmatprep.subr.bf16.mxu0 0
        %2053 = vmatpush1.bf16.msra.mxu0 %v2029
        %2054 = vmatprep.subr.bf16.mxu0 0
        %2055 = vmatpush1.bf16.msra.mxu0 %v2031
        %2056 = vmatprep.subr.bf16.mxu0 0
        %2057 = vmatpush1.bf16.msra.mxu0 %v2033
        %2058 = vmatprep.subr.bf16.mxu0 0
        %2059 = vmatpush1.bf16.msra.mxu0 0
        %2060 = vmatprep.subr.bf16.mxu0 0
        %2061 = vmatpush1.bf16.msra.mxu0 0
        %2062 = vmatprep.subr.bf16.mxu0 0
        %2063 = vmatpush1.bf16.msra.mxu0 0
        %2064 = vmatprep.subr.bf16.mxu0 0
        %2065 = vmatpush1.bf16.msra.mxu0 0
        %2066 = vmatprep.subr.bf16.mxu0 0
        %2067 = vmatpush1.bf16.msra.mxu0 0
        %2068 = vmatprep.subr.bf16.mxu0 0
        %2069 = vmatpush1.bf16.msra.mxu0 0
        %2070 = vmatprep.subr.bf16.mxu0 0
        %2071 = vmatpush1.bf16.msra.mxu0 0
        %2072 = vmatprep.subr.bf16.mxu0 0
        %2073 = vmatpush1.bf16.msra.mxu0 0
        %2074 = vmatprep.subr.bf16.mxu0 0
        %2075 = vmatpush1.bf16.msra.mxu0 0
        %2076 = vmatprep.subr.bf16.mxu0 0
        %2077 = vmatpush1.bf16.msra.mxu0 0
        %2078 = vmatprep.subr.bf16.mxu0 0
        %2079 = vmatpush1.bf16.msra.mxu0 0
        %2080 = vmatprep.subr.bf16.mxu0 0
        %2081 = vmatpush1.bf16.msra.mxu0 0
        %2082 = vmatprep.mubr.bf16.mxu0 0
        %2083 = vmatmul.mubr.bf16.gmra.mrb[0].mxu0 %v2039
        %v2084 = vpop.f32.mrb[0].mxu0
        %v2085 = vadd.f32 0.0, %v2084
        %v2086 = vpop.f32.mrb[0].mxu0
        %v2087 = vpop.f32.mrb[0].mxu0
        %v2088 = vadd.f32 0.0, %v2087
        %v2089 = vpop.f32.mrb[0].mxu0
        %2090 = vmatprep.mubr.bf16.mxu0 0
        %2091 = vmatmul.mubr.bf16.gmra.mrb[0].mxu0 %v2042
        %v2092 = vpop.f32.mrb[0].mxu0
        %v2093 = vadd.f32 0.0, %v2092
        %v2094 = vpop.f32.mrb[0].mxu0
        %v2095 = vpop.f32.mrb[0].mxu0
        %v2096 = vadd.f32 0.0, %v2095
        %v2097 = vpop.f32.mrb[0].mxu0
        %2098 = vmatprep.mubr.bf16.mxu0 0
        %2099 = vmatmul.mubr.bf16.gmra.mrb[0].mxu0 %v2045
        %v2100 = vpop.f32.mrb[0].mxu0
        %v2101 = vadd.f32 0.0, %v2100
        %v2102 = vpop.f32.mrb[0].mxu0
        %v2103 = vpop.f32.mrb[0].mxu0
        %v2104 = vadd.f32 0.0, %v2103
        %v2105 = vpop.f32.mrb[0].mxu0
        %2106 = vmatprep.mubr.bf16.mxu0 0
        %2107 = vmatmul.mubr.bf16.gmra.mrb[0].mxu0 %v2048
        %v2108 = vpop.f32.mrb[0].mxu0
        %v2109 = vadd.f32 0.0, %v2108
        %v2110 = vpop.f32.mrb[0].mxu0
        %v2111 = vpop.f32.mrb[0].mxu0
        %v2112 = vadd.f32 0.0, %v2111
        %v2113 = vpop.f32.mrb[0].mxu0
        %2114 = vdwg.mxu0
        %2115 = vrot.lane.b32.xlu0 %v1231, 104
        %v2116 = vpop.permute.xlu0 %2115
        %2117 = vrot.lane.b32.xlu0 %v1232, 104
        %v2118 = vpop.permute.xlu0 %2117
        %2119 = vrot.lane.b32.xlu0 %v1233, 104
        %v2120 = vpop.permute.xlu0 %2119
        %2121 = vrot.lane.b32.xlu0 %v1234, 104
        %v2122 = vpop.permute.xlu0 %2121
        %2123 = vrot.lane.b32.xlu0 %v1231, 72
        %v2124 = vpop.permute.xlu0 %2123
        %2125 = vrot.lane.b32.xlu0 %v1232, 72
        %v2126 = vpop.permute.xlu0 %2125
        %2127 = vrot.lane.b32.xlu0 %v1233, 72
        %v2128 = vpop.permute.xlu0 %2127
        %2129 = vrot.lane.b32.xlu0 %v1234, 72
        %v2130 = vpop.permute.xlu0 %2129
        %v2132 = vsel %vm1247, %v2116, 0
        %v2135 = vsel %vm1247, %v2118, 0
        %v2138 = vsel %vm1247, %v2120, 0
        %v2141 = vsel %vm1247, %v2122, 0
        %v2144 = vsel %vm1247, %v2124, 0
        %v2147 = vsel %vm1247, %v2126, 0
        %v2150 = vsel %vm1247, %v2128, 0
        %v2153 = vsel %vm1247, %v2130, 0
        %2155 = vmatprep.subr.bf16.mxu0 0
        %2156 = vmatpush1.bf16.xpose.msra.mxu0 %v2144
        %2157 = vmatprep.subr.bf16.mxu0 0
        %2158 = vmatpush1.bf16.xpose.msra.mxu0 %v2147
        %2159 = vmatprep.subr.bf16.mxu0 0
        %2160 = vmatpush1.bf16.xpose.msra.mxu0 %v2150
        %2161 = vmatprep.subr.bf16.mxu0 0
        %2162 = vmatpush1.bf16.xpose.msra.mxu0 %v2153
        %2163 = vmatprep.subr.bf16.mxu0 0
        %2164 = vmatpush1.bf16.xpose.msra.mxu0 0
        %2165 = vmatprep.subr.bf16.mxu0 0
        %2166 = vmatpush1.bf16.xpose.msra.mxu0 0
        %2167 = vmatprep.subr.bf16.mxu0 0
        %2168 = vmatpush1.bf16.xpose.msra.mxu0 0
        %2169 = vmatprep.subr.bf16.mxu0 0
        %2170 = vmatpush1.bf16.xpose.msra.mxu0 0
        %2171 = vmatprep.subr.bf16.mxu0 0
        %2172 = vmatpush1.bf16.xpose.msra.mxu0 0
        %2173 = vmatprep.subr.bf16.mxu0 0
        %2174 = vmatpush1.bf16.xpose.msra.mxu0 0
        %2175 = vmatprep.subr.bf16.mxu0 0
        %2176 = vmatpush1.bf16.xpose.msra.mxu0 0
        %2177 = vmatprep.subr.bf16.mxu0 0
        %2178 = vmatpush1.bf16.xpose.msra.mxu0 0
        %2179 = vmatprep.subr.bf16.mxu0 0
        %2180 = vmatpush1.bf16.xpose.msra.mxu0 0
        %2181 = vmatprep.subr.bf16.mxu0 0
        %2182 = vmatpush1.bf16.xpose.msra.mxu0 0
        %2183 = vmatprep.subr.bf16.mxu0 0
        %2184 = vmatpush1.bf16.xpose.msra.mxu0 0
        %2185 = vmatprep.subr.bf16.mxu0 0
        %2186 = vmatpush1.bf16.xpose.msra.mxu0 0
        %2187 = vmatprep.mubr.bf16.mxu0 0
        %2188 = vmatmul.mubr.bf16.gmra.mrb[0].mxu0 %v2132
        %v2189 = vpop.f32.mrb[0].mxu0
        %v2190 = vadd.f32 0.0, %v2189
        %v2191 = vpop.f32.mrb[0].mxu0
        %v2192 = vpop.f32.mrb[0].mxu0
        %v2193 = vadd.f32 0.0, %v2192
        %v2194 = vpop.f32.mrb[0].mxu0
        %2195 = vmatprep.mubr.bf16.mxu0 0
        %2196 = vmatmul.mubr.bf16.gmra.mrb[0].mxu0 %v2135
        %v2197 = vpop.f32.mrb[0].mxu0
        %v2198 = vadd.f32 0.0, %v2197
        %v2199 = vpop.f32.mrb[0].mxu0
        %v2200 = vpop.f32.mrb[0].mxu0
        %v2201 = vadd.f32 0.0, %v2200
        %v2202 = vpop.f32.mrb[0].mxu0
        %2203 = vmatprep.mubr.bf16.mxu0 0
        %2204 = vmatmul.mubr.bf16.gmra.mrb[0].mxu0 %v2138
        %v2205 = vpop.f32.mrb[0].mxu0
        %v2206 = vadd.f32 0.0, %v2205
        %v2207 = vpop.f32.mrb[0].mxu0
        %v2208 = vpop.f32.mrb[0].mxu0
        %v2209 = vadd.f32 0.0, %v2208
        %v2210 = vpop.f32.mrb[0].mxu0
        %2211 = vmatprep.mubr.bf16.mxu0 0
        %2212 = vmatmul.mubr.bf16.gmra.mrb[0].mxu0 %v2141
        %v2213 = vpop.f32.mrb[0].mxu0
        %v2214 = vadd.f32 0.0, %v2213
        %v2215 = vpop.f32.mrb[0].mxu0
        %v2216 = vpop.f32.mrb[0].mxu0
        %v2217 = vadd.f32 0.0, %v2216
        %v2218 = vpop.f32.mrb[0].mxu0
        %2219 = vdwg.mxu0
        %v2220 = vmul.f32 %v2190, 0.35355338
        %v2221 = vmul.f32 %v2193, 0.35355338
        %v2222 = vmul.f32 %v2198, 0.35355338
        %v2223 = vmul.f32 %v2201, 0.35355338
        %v2224 = vmul.f32 %v2206, 0.35355338
        %v2225 = vmul.f32 %v2209, 0.35355338
        %v2226 = vmul.f32 %v2214, 0.35355338
        %v2227 = vmul.f32 %v2217, 0.35355338
        %v2228 = vsel %vm1345, %v2220, -inf
        %2229 = vmax.xlane.f32.xlu0 %v2228
        %v2230 = vpop.xlane.xlu0 %2229
        %v2231 = vsel %vm1345, %v2221, -inf
        %2232 = vmax.xlane.f32.xlu0 %v2231
        %v2233 = vpop.xlane.xlu0 %2232
        %v2234 = vsel %vm1345, %v2222, -inf
        %2235 = vmax.xlane.f32.xlu0 %v2234
        %v2236 = vpop.xlane.xlu0 %2235
        %v2237 = vsel %vm1345, %v2223, -inf
        %2238 = vmax.xlane.f32.xlu0 %v2237
        %v2239 = vpop.xlane.xlu0 %2238
        %v2240 = vsel %vm1345, %v2224, -inf
        %2241 = vmax.xlane.f32.xlu0 %v2240
        %v2242 = vpop.xlane.xlu0 %2241
        %v2243 = vsel %vm1345, %v2225, -inf
        %2244 = vmax.xlane.f32.xlu0 %v2243
        %v2245 = vpop.xlane.xlu0 %2244
        %v2246 = vsel %vm1345, %v2226, -inf
        %2247 = vmax.xlane.f32.xlu0 %v2246
        %v2248 = vpop.xlane.xlu0 %2247
        %v2249 = vsel %vm1345, %v2227, -inf
        %2250 = vmax.xlane.f32.xlu0 %v2249
        %v2251 = vpop.xlane.xlu0 %2250
        %v2252 = vsub.f32 %v2220, %v2230
        %v2253 = vsub.f32 %v2221, %v2233
        %v2254 = vsub.f32 %v2222, %v2236
        %v2255 = vsub.f32 %v2223, %v2239
        %v2256 = vsub.f32 %v2224, %v2242
        %v2257 = vsub.f32 %v2225, %v2245
        %v2258 = vsub.f32 %v2226, %v2248
        %v2259 = vsub.f32 %v2227, %v2251
        %v2260 = vmul.f32 %v2252, 1.442695
        %v2261 = vpow.pop %v2260
        %v2262 = vmul.f32 %v2253, 1.442695
        %v2263 = vpow.pop %v2262
        %v2264 = vmul.f32 %v2254, 1.442695
        %v2265 = vpow.pop %v2264
        %v2266 = vmul.f32 %v2255, 1.442695
        %v2267 = vpow.pop %v2266
        %v2268 = vmul.f32 %v2256, 1.442695
        %v2269 = vpow.pop %v2268
        %v2270 = vmul.f32 %v2257, 1.442695
        %v2271 = vpow.pop %v2270
        %v2272 = vmul.f32 %v2258, 1.442695
        %v2273 = vpow.pop %v2272
        %v2274 = vmul.f32 %v2259, 1.442695
        %v2275 = vpow.pop %v2274
        %v2276 = vsel %vm1345, %v2261, 0.0
        %2277 = vadd.xlane.f32.xlu0 %v2276
        %v2278 = vpop.xlane.xlu0 %2277
        %v2279 = vsel %vm1345, %v2263, 0.0
        %2280 = vadd.xlane.f32.xlu0 %v2279
        %v2281 = vpop.xlane.xlu0 %2280
        %v2282 = vsel %vm1345, %v2265, 0.0
        %2283 = vadd.xlane.f32.xlu0 %v2282
        %v2284 = vpop.xlane.xlu0 %2283
        %v2285 = vsel %vm1345, %v2267, 0.0
        %2286 = vadd.xlane.f32.xlu0 %v2285
        %v2287 = vpop.xlane.xlu0 %2286
        %v2288 = vsel %vm1345, %v2269, 0.0
        %2289 = vadd.xlane.f32.xlu0 %v2288
        %v2290 = vpop.xlane.xlu0 %2289
        %v2291 = vsel %vm1345, %v2271, 0.0
        %2292 = vadd.xlane.f32.xlu0 %v2291
        %v2293 = vpop.xlane.xlu0 %2292
        %v2294 = vsel %vm1345, %v2273, 0.0
        %2295 = vadd.xlane.f32.xlu0 %v2294
        %v2296 = vpop.xlane.xlu0 %2295
        %v2297 = vsel %vm1345, %v2275, 0.0
        %2298 = vadd.xlane.f32.xlu0 %v2297
        %v2299 = vpop.xlane.xlu0 %2298
        %v2300 = vrcp.pop %v2278
        %v2301 = vrcp.pop %v2281
        %v2302 = vrcp.pop %v2284
        %v2303 = vrcp.pop %v2287
        %v2304 = vrcp.pop %v2290
        %v2305 = vrcp.pop %v2293
        %v2306 = vrcp.pop %v2296
        %v2307 = vrcp.pop %v2299
        %v2308 = vmul.f32 %v2261, %v2300
        %v2309 = vmul.f32 %v2263, %v2301
        %v2310 = vmul.f32 %v2265, %v2302
        %v2311 = vmul.f32 %v2267, %v2303
        %v2312 = vmul.f32 %v2269, %v2304
        %v2313 = vmul.f32 %v2271, %v2305
        %v2314 = vmul.f32 %v2273, %v2306
        %v2315 = vmul.f32 %v2275, %v2307
        %v2316 = vpack.c.bf16 %v2309, %v2308
        %v2317 = vpack.c.bf16 %v2311, %v2310
        %v2318 = vpack.c.bf16 %v2313, %v2312
        %v2319 = vpack.c.bf16 %v2315, %v2314
        %2320 = vrot.lane.b32.xlu0 %v1231, 40
        %v2321 = vpop.permute.xlu0 %2320
        %2322 = vrot.lane.b32.xlu0 %v1232, 40
        %v2323 = vpop.permute.xlu0 %2322
        %2324 = vrot.lane.b32.xlu0 %v1233, 40
        %v2325 = vpop.permute.xlu0 %2324
        %2326 = vrot.lane.b32.xlu0 %v1234, 40
        %v2327 = vpop.permute.xlu0 %2326
        %v2333 = vsel %vm1345, %v2316, 0
        %v2336 = vsel %vm1345, %v2317, 0
        %v2339 = vsel %vm1345, %v2318, 0
        %v2342 = vsel %vm1345, %v2319, 0
        %2344 = vmatprep.subr.bf16.mxu0 0
        %2345 = vmatpush1.bf16.msra.mxu0 %v2321
        %2346 = vmatprep.subr.bf16.mxu0 0
        %2347 = vmatpush1.bf16.msra.mxu0 %v2323
        %2348 = vmatprep.subr.bf16.mxu0 0
        %2349 = vmatpush1.bf16.msra.mxu0 %v2325
        %2350 = vmatprep.subr.bf16.mxu0 0
        %2351 = vmatpush1.bf16.msra.mxu0 %v2327
        %2352 = vmatprep.subr.bf16.mxu0 0
        %2353 = vmatpush1.bf16.msra.mxu0 0
        %2354 = vmatprep.subr.bf16.mxu0 0
        %2355 = vmatpush1.bf16.msra.mxu0 0
        %2356 = vmatprep.subr.bf16.mxu0 0
        %2357 = vmatpush1.bf16.msra.mxu0 0
        %2358 = vmatprep.subr.bf16.mxu0 0
        %2359 = vmatpush1.bf16.msra.mxu0 0
        %2360 = vmatprep.subr.bf16.mxu0 0
        %2361 = vmatpush1.bf16.msra.mxu0 0
        %2362 = vmatprep.subr.bf16.mxu0 0
        %2363 = vmatpush1.bf16.msra.mxu0 0
        %2364 = vmatprep.subr.bf16.mxu0 0
        %2365 = vmatpush1.bf16.msra.mxu0 0
        %2366 = vmatprep.subr.bf16.mxu0 0
        %2367 = vmatpush1.bf16.msra.mxu0 0
        %2368 = vmatprep.subr.bf16.mxu0 0
        %2369 = vmatpush1.bf16.msra.mxu0 0
        %2370 = vmatprep.subr.bf16.mxu0 0
        %2371 = vmatpush1.bf16.msra.mxu0 0
        %2372 = vmatprep.subr.bf16.mxu0 0
        %2373 = vmatpush1.bf16.msra.mxu0 0
        %2374 = vmatprep.subr.bf16.mxu0 0
        %2375 = vmatpush1.bf16.msra.mxu0 0
        %2376 = vmatprep.mubr.bf16.mxu0 0
        %2377 = vmatmul.mubr.bf16.gmra.mrb[0].mxu0 %v2333
        %v2378 = vpop.f32.mrb[0].mxu0
        %v2379 = vadd.f32 0.0, %v2378
        %v2380 = vpop.f32.mrb[0].mxu0
        %v2381 = vpop.f32.mrb[0].mxu0
        %v2382 = vadd.f32 0.0, %v2381
        %v2383 = vpop.f32.mrb[0].mxu0
        %2384 = vmatprep.mubr.bf16.mxu0 0
        %2385 = vmatmul.mubr.bf16.gmra.mrb[0].mxu0 %v2336
        %v2386 = vpop.f32.mrb[0].mxu0
        %v2387 = vadd.f32 0.0, %v2386
        %v2388 = vpop.f32.mrb[0].mxu0
        %v2389 = vpop.f32.mrb[0].mxu0
        %v2390 = vadd.f32 0.0, %v2389
        %v2391 = vpop.f32.mrb[0].mxu0
        %2392 = vmatprep.mubr.bf16.mxu0 0
        %2393 = vmatmul.mubr.bf16.gmra.mrb[0].mxu0 %v2339
        %v2394 = vpop.f32.mrb[0].mxu0
        %v2395 = vadd.f32 0.0, %v2394
        %v2396 = vpop.f32.mrb[0].mxu0
        %v2397 = vpop.f32.mrb[0].mxu0
        %v2398 = vadd.f32 0.0, %v2397
        %v2399 = vpop.f32.mrb[0].mxu0
        %2400 = vmatprep.mubr.bf16.mxu0 0
        %2401 = vmatmul.mubr.bf16.gmra.mrb[0].mxu0 %v2342
        %v2402 = vpop.f32.mrb[0].mxu0
        %v2403 = vadd.f32 0.0, %v2402
        %v2404 = vpop.f32.mrb[0].mxu0
        %v2405 = vpop.f32.mrb[0].mxu0
        %v2406 = vadd.f32 0.0, %v2405
        %v2407 = vpop.f32.mrb[0].mxu0
        %2408 = vdwg.mxu0
        %2417 = vrot.lane.b32.xlu0 %v1791, 8
        %v2418 = vpop.permute.xlu0 %2417
        %2419 = vrot.lane.b32.xlu0 %v1794, 8
        %v2420 = vpop.permute.xlu0 %2419
        %2421 = vrot.lane.b32.xlu0 %v1799, 8
        %v2422 = vpop.permute.xlu0 %2421
        %2423 = vrot.lane.b32.xlu0 %v1802, 8
        %v2424 = vpop.permute.xlu0 %2423
        %2425 = vrot.lane.b32.xlu0 %v1807, 8
        %v2426 = vpop.permute.xlu0 %2425
        %2427 = vrot.lane.b32.xlu0 %v1810, 8
        %v2428 = vpop.permute.xlu0 %2427
        %2429 = vrot.lane.b32.xlu0 %v1815, 8
        %v2430 = vpop.permute.xlu0 %2429
        %2431 = vrot.lane.b32.xlu0 %v1818, 8
        %v2432 = vpop.permute.xlu0 %2431
        %2449 = vrot.lane.b32.xlu0 %v2085, 16
        %v2450 = vpop.permute.xlu0 %2449
        %2451 = vrot.lane.b32.xlu0 %v2088, 16
        %v2452 = vpop.permute.xlu0 %2451
        %2453 = vrot.lane.b32.xlu0 %v2093, 16
        %v2454 = vpop.permute.xlu0 %2453
        %2455 = vrot.lane.b32.xlu0 %v2096, 16
        %v2456 = vpop.permute.xlu0 %2455
        %2457 = vrot.lane.b32.xlu0 %v2101, 16
        %v2458 = vpop.permute.xlu0 %2457
        %2459 = vrot.lane.b32.xlu0 %v2104, 16
        %v2460 = vpop.permute.xlu0 %2459
        %2461 = vrot.lane.b32.xlu0 %v2109, 16
        %v2462 = vpop.permute.xlu0 %2461
        %2463 = vrot.lane.b32.xlu0 %v2112, 16
        %v2464 = vpop.permute.xlu0 %2463
        %2481 = vrot.lane.b32.xlu0 %v2379, 24
        %v2482 = vpop.permute.xlu0 %2481
        %2483 = vrot.lane.b32.xlu0 %v2382, 24
        %v2484 = vpop.permute.xlu0 %2483
        %2485 = vrot.lane.b32.xlu0 %v2387, 24
        %v2486 = vpop.permute.xlu0 %2485
        %2487 = vrot.lane.b32.xlu0 %v2390, 24
        %v2488 = vpop.permute.xlu0 %2487
        %2489 = vrot.lane.b32.xlu0 %v2395, 24
        %v2490 = vpop.permute.xlu0 %2489
        %2491 = vrot.lane.b32.xlu0 %v2398, 24
        %v2492 = vpop.permute.xlu0 %2491
        %2493 = vrot.lane.b32.xlu0 %v2403, 24
        %v2494 = vpop.permute.xlu0 %2493
        %2495 = vrot.lane.b32.xlu0 %v2406, 24
        %v2496 = vpop.permute.xlu0 %2495
        %v2505 = vsel %vm1247, %v1497, %v2418
        %v2506 = vsel %vm1247, %v1500, %v2420
        %v2507 = vsel %vm1247, %v1505, %v2422
        %v2508 = vsel %vm1247, %v1508, %v2424
        %v2509 = vsel %vm1247, %v1513, %v2426
        %v2510 = vsel %vm1247, %v1516, %v2428
        %v2511 = vsel %vm1247, %v1521, %v2430
        %v2512 = vsel %vm1247, %v1524, %v2432
        %v2513 = vsel %vm779, %v2505, %v2450
        %v2514 = vsel %vm779, %v2506, %v2452
        %v2515 = vsel %vm779, %v2507, %v2454
        %v2516 = vsel %vm779, %v2508, %v2456
        %v2517 = vsel %vm779, %v2509, %v2458
        %v2518 = vsel %vm779, %v2510, %v2460
        %v2519 = vsel %vm779, %v2511, %v2462
        %v2520 = vsel %vm779, %v2512, %v2464
        %vm2521 = vcmask 195584
        %v2522 = vsel %vm2521, %v2513, %v2482
        %v2523 = vsel %vm2521, %v2514, %v2484
        %v2524 = vsel %vm2521, %v2515, %v2486
        %v2525 = vsel %vm2521, %v2516, %v2488
        %v2526 = vsel %vm2521, %v2517, %v2490
        %v2527 = vsel %vm2521, %v2518, %v2492
        %v2528 = vsel %vm2521, %v2519, %v2494
        %v2529 = vsel %vm2521, %v2520, %v2496
        %v2530 = vld [vmem:[%s9] sm:$0xf]
        %v2531 = vld [vmem:[%s9 + $0x4] sm:$0xf]
        %v2532 = vld [vmem:[%s9 + $0x8] sm:$0xf]
        %v2533 = vld [vmem:[%s9 + $0xc] sm:$0xf]
        %v2534 = vpack.c.bf16 %v2523, %v2522
        %v2535 = vpack.c.bf16 %v2525, %v2524
        %v2536 = vpack.c.bf16 %v2527, %v2526
        %v2537 = vpack.c.bf16 %v2529, %v2528
        %v2542 = vunpack.c.l.b16 %v2530
        %v2543 = vunpack.c.l.b16 %v2531
        %v2544 = vunpack.c.l.b16 %v2532
        %v2545 = vunpack.c.l.b16 %v2533
        %v2546 = vpack.c.b16 %v2543, %v2542
        %v2547 = vpack.c.b16 %v2545, %v2544
        %v2551 = vsel %vm859, %v2534, 0
        %v2554 = vsel %vm859, %v2535, 0
        %v2557 = vsel %vm859, %v2536, 0
        %v2560 = vsel %vm859, %v2537, 0
        %2562 = vmatprep.subr.bf16.mxu0 0
        %2563 = vmatpush1.bf16.msra.mxu0 %v2546
        %2564 = vmatprep.subr.bf16.mxu0 0
        %2565 = vmatpush1.bf16.msra.mxu0 %v2547
        %2566 = vmatprep.subr.bf16.mxu0 0
        %2567 = vmatpush1.bf16.msra.mxu0 0
        %2568 = vmatprep.subr.bf16.mxu0 0
        %2569 = vmatpush1.bf16.msra.mxu0 0
        %2570 = vmatprep.subr.bf16.mxu0 0
        %2571 = vmatpush1.bf16.msra.mxu0 0
        %2572 = vmatprep.subr.bf16.mxu0 0
        %2573 = vmatpush1.bf16.msra.mxu0 0
        %2574 = vmatprep.subr.bf16.mxu0 0
        %2575 = vmatpush1.bf16.msra.mxu0 0
        %2576 = vmatprep.subr.bf16.mxu0 0
        %2577 = vmatpush1.bf16.msra.mxu0 0
        %2578 = vmatprep.subr.bf16.mxu0 0
        %2579 = vmatpush1.bf16.msra.mxu0 0
        %2580 = vmatprep.subr.bf16.mxu0 0
        %2581 = vmatpush1.bf16.msra.mxu0 0
        %2582 = vmatprep.subr.bf16.mxu0 0
        %2583 = vmatpush1.bf16.msra.mxu0 0
        %2584 = vmatprep.subr.bf16.mxu0 0
        %2585 = vmatpush1.bf16.msra.mxu0 0
        %2586 = vmatprep.subr.bf16.mxu0 0
        %2587 = vmatpush1.bf16.msra.mxu0 0
        %2588 = vmatprep.subr.bf16.mxu0 0
        %2589 = vmatpush1.bf16.msra.mxu0 0
        %2590 = vmatprep.subr.bf16.mxu0 0
        %2591 = vmatpush1.bf16.msra.mxu0 0
        %2592 = vmatprep.subr.bf16.mxu0 0
        %2593 = vmatpush1.bf16.msra.mxu0 0
        %2594 = vmatprep.mubr.bf16.mxu0 0
        %2595 = vmatmul.mubr.bf16.gmra.mrb[0].mxu0 %v2551
        %v2596 = vpop.f32.mrb[0].mxu0
        %v2597 = vadd.f32 0.0, %v2596
        %v2598 = vpop.f32.mrb[0].mxu0
        %v2599 = vpop.f32.mrb[0].mxu0
        %v2600 = vadd.f32 0.0, %v2599
        %v2601 = vpop.f32.mrb[0].mxu0
        %2602 = vmatprep.mubr.bf16.mxu0 0
        %2603 = vmatmul.mubr.bf16.gmra.mrb[0].mxu0 %v2554
        %v2604 = vpop.f32.mrb[0].mxu0
        %v2605 = vadd.f32 0.0, %v2604
        %v2606 = vpop.f32.mrb[0].mxu0
        %v2607 = vpop.f32.mrb[0].mxu0
        %v2608 = vadd.f32 0.0, %v2607
        %v2609 = vpop.f32.mrb[0].mxu0
        %2610 = vmatprep.mubr.bf16.mxu0 0
        %2611 = vmatmul.mubr.bf16.gmra.mrb[0].mxu0 %v2557
        %v2612 = vpop.f32.mrb[0].mxu0
        %v2613 = vadd.f32 0.0, %v2612
        %v2614 = vpop.f32.mrb[0].mxu0
        %v2615 = vpop.f32.mrb[0].mxu0
        %v2616 = vadd.f32 0.0, %v2615
        %v2617 = vpop.f32.mrb[0].mxu0
        %2618 = vmatprep.mubr.bf16.mxu0 0
        %2619 = vmatmul.mubr.bf16.gmra.mrb[0].mxu0 %v2560
        %v2620 = vpop.f32.mrb[0].mxu0
        %v2621 = vadd.f32 0.0, %v2620
        %v2622 = vpop.f32.mrb[0].mxu0
        %v2623 = vpop.f32.mrb[0].mxu0
        %v2624 = vadd.f32 0.0, %v2623
        %v2625 = vpop.f32.mrb[0].mxu0
        %2626 = vdwg.mxu0
        %v2627 = vadd.f32 %v985, %v2597
        %v2628 = vadd.f32 %v986, %v2600
        %v2629 = vadd.f32 %v987, %v2605
        %v2630 = vadd.f32 %v988, %v2608
        %v2631 = vadd.f32 %v989, %v2613
        %v2632 = vadd.f32 %v990, %v2616
        %v2633 = vadd.f32 %v991, %v2621
        %v2634 = vadd.f32 %v992, %v2624
        %v2635 = vld [vmem:[%s10] sm:$0x1]
        %v2637 = vlaneseq
        %v2638 = vshrl.u32 %v2637, 7
        %v2639 = vsub.s32 0, %v2638
        %v2640 = vrot.slane %v2635, %v2639
        %v2642 = vadd.f32 %v2627, %v2640
        %v2643 = vadd.f32 %v2628, %v2640
        %v2644 = vadd.f32 %v2629, %v2640
        %v2645 = vadd.f32 %v2630, %v2640
        %v2646 = vadd.f32 %v2631, %v2640
        %v2647 = vadd.f32 %v2632, %v2640
        %v2648 = vadd.f32 %v2633, %v2640
        %v2649 = vadd.f32 %v2634, %v2640
        %v2650 = vld [vmem:[%s11] sm:$0x1]
        %v2651 = vld [vmem:[%s12] sm:$0x1]
        %v2652 = vsel %vm859, %v2642, 0.0
        %2653 = vadd.xlane.f32.xlu0 %v2652
        %v2654 = vpop.xlane.xlu0 %2653
        %v2655 = vsel %vm859, %v2643, 0.0
        %2656 = vadd.xlane.f32.xlu0 %v2655
        %v2657 = vpop.xlane.xlu0 %2656
        %v2658 = vsel %vm859, %v2644, 0.0
        %2659 = vadd.xlane.f32.xlu0 %v2658
        %v2660 = vpop.xlane.xlu0 %2659
        %v2661 = vsel %vm859, %v2645, 0.0
        %2662 = vadd.xlane.f32.xlu0 %v2661
        %v2663 = vpop.xlane.xlu0 %2662
        %v2664 = vsel %vm859, %v2646, 0.0
        %2665 = vadd.xlane.f32.xlu0 %v2664
        %v2666 = vpop.xlane.xlu0 %2665
        %v2667 = vsel %vm859, %v2647, 0.0
        %2668 = vadd.xlane.f32.xlu0 %v2667
        %v2669 = vpop.xlane.xlu0 %2668
        %v2670 = vsel %vm859, %v2648, 0.0
        %2671 = vadd.xlane.f32.xlu0 %v2670
        %v2672 = vpop.xlane.xlu0 %2671
        %v2673 = vsel %vm859, %v2649, 0.0
        %2674 = vadd.xlane.f32.xlu0 %v2673
        %v2675 = vpop.xlane.xlu0 %2674
        %v2676 = vmul.f32 %v2654, %v884
        %v2677 = vmul.f32 %v2657, %v884
        %v2678 = vmul.f32 %v2660, %v884
        %v2679 = vmul.f32 %v2663, %v884
        %v2680 = vmul.f32 %v2666, %v884
        %v2681 = vmul.f32 %v2669, %v884
        %v2682 = vmul.f32 %v2672, %v884
        %v2683 = vmul.f32 %v2675, %v884
        %v2684 = vsub.f32 %v2642, %v2676
        %v2685 = vsub.f32 %v2643, %v2677
        %v2686 = vsub.f32 %v2644, %v2678
        %v2687 = vsub.f32 %v2645, %v2679
        %v2688 = vsub.f32 %v2646, %v2680
        %v2689 = vsub.f32 %v2647, %v2681
        %v2690 = vsub.f32 %v2648, %v2682
        %v2691 = vsub.f32 %v2649, %v2683
        %v2692 = vmul.f32 %v2684, %v2684
        %v2693 = vmul.f32 %v2685, %v2685
        %v2694 = vmul.f32 %v2686, %v2686
        %v2695 = vmul.f32 %v2687, %v2687
        %v2696 = vmul.f32 %v2688, %v2688
        %v2697 = vmul.f32 %v2689, %v2689
        %v2698 = vmul.f32 %v2690, %v2690
        %v2699 = vmul.f32 %v2691, %v2691
        %v2700 = vsel %vm859, %v2692, 0.0
        %2701 = vadd.xlane.f32.xlu0 %v2700
        %v2702 = vpop.xlane.xlu0 %2701
        %v2703 = vsel %vm859, %v2693, 0.0
        %2704 = vadd.xlane.f32.xlu0 %v2703
        %v2705 = vpop.xlane.xlu0 %2704
        %v2706 = vsel %vm859, %v2694, 0.0
        %2707 = vadd.xlane.f32.xlu0 %v2706
        %v2708 = vpop.xlane.xlu0 %2707
        %v2709 = vsel %vm859, %v2695, 0.0
        %2710 = vadd.xlane.f32.xlu0 %v2709
        %v2711 = vpop.xlane.xlu0 %2710
        %v2712 = vsel %vm859, %v2696, 0.0
        %2713 = vadd.xlane.f32.xlu0 %v2712
        %v2714 = vpop.xlane.xlu0 %2713
        %v2715 = vsel %vm859, %v2697, 0.0
        %2716 = vadd.xlane.f32.xlu0 %v2715
        %v2717 = vpop.xlane.xlu0 %2716
        %v2718 = vsel %vm859, %v2698, 0.0
        %2719 = vadd.xlane.f32.xlu0 %v2718
        %v2720 = vpop.xlane.xlu0 %2719
        %v2721 = vsel %vm859, %v2699, 0.0
        %2722 = vadd.xlane.f32.xlu0 %v2721
        %v2723 = vpop.xlane.xlu0 %2722
        %v2724 = vmul.f32 %v2702, %v884
        %v2725 = vmul.f32 %v2705, %v884
        %v2726 = vmul.f32 %v2708, %v884
        %v2727 = vmul.f32 %v2711, %v884
        %v2728 = vmul.f32 %v2714, %v884
        %v2729 = vmul.f32 %v2717, %v884
        %v2730 = vmul.f32 %v2720, %v884
        %v2731 = vmul.f32 %v2723, %v884
        %v2732 = vadd.f32 %v2724, 1e-05
        %v2733 = vadd.f32 %v2725, 1e-05
        %v2734 = vadd.f32 %v2726, 1e-05
        %v2735 = vadd.f32 %v2727, 1e-05
        %v2736 = vadd.f32 %v2728, 1e-05
        %v2737 = vadd.f32 %v2729, 1e-05
        %v2738 = vadd.f32 %v2730, 1e-05
        %v2739 = vadd.f32 %v2731, 1e-05
        %v2740 = vrsqrt.pop %v2732
        %v2741 = vrsqrt.pop %v2733
        %v2742 = vrsqrt.pop %v2734
        %v2743 = vrsqrt.pop %v2735
        %v2744 = vrsqrt.pop %v2736
        %v2745 = vrsqrt.pop %v2737
        %v2746 = vrsqrt.pop %v2738
        %v2747 = vrsqrt.pop %v2739
        %v2748 = vmul.f32 %v2684, %v2740
        %v2749 = vmul.f32 %v2685, %v2741
        %v2750 = vmul.f32 %v2686, %v2742
        %v2751 = vmul.f32 %v2687, %v2743
        %v2752 = vmul.f32 %v2688, %v2744
        %v2753 = vmul.f32 %v2689, %v2745
        %v2754 = vmul.f32 %v2690, %v2746
        %v2755 = vmul.f32 %v2691, %v2747
        %v2757 = vlaneseq
        %v2758 = vshrl.u32 %v2757, 7
        %v2759 = vsub.s32 0, %v2758
        %v2760 = vrot.slane %v2650, %v2759
        %v2762 = vmul.f32 %v2748, %v2760
        %v2763 = vmul.f32 %v2749, %v2760
        %v2764 = vmul.f32 %v2750, %v2760
        %v2765 = vmul.f32 %v2751, %v2760
        %v2766 = vmul.f32 %v2752, %v2760
        %v2767 = vmul.f32 %v2753, %v2760
        %v2768 = vmul.f32 %v2754, %v2760
        %v2769 = vmul.f32 %v2755, %v2760
        %v2771 = vlaneseq
        %v2772 = vshrl.u32 %v2771, 7
        %v2773 = vsub.s32 0, %v2772
        %v2774 = vrot.slane %v2651, %v2773
        %v2776 = vadd.f32 %v2762, %v2774
        %v2777 = vadd.f32 %v2763, %v2774
        %v2778 = vadd.f32 %v2764, %v2774
        %v2779 = vadd.f32 %v2765, %v2774
        %v2780 = vadd.f32 %v2766, %v2774
        %v2781 = vadd.f32 %v2767, %v2774
        %v2782 = vadd.f32 %v2768, %v2774
        %v2783 = vadd.f32 %v2769, %v2774
        %v2784 = vld [vmem:[%s13] sm:$0xf]
        %v2785 = vld [vmem:[%s13 + $0x4] sm:$0xf]
        %v2786 = vld [vmem:[%s13 + $0x8] sm:$0xf]
        %v2787 = vld [vmem:[%s13 + $0xc] sm:$0xf]
        %v2788 = vpack.c.bf16 %v2777, %v2776
        %v2789 = vpack.c.bf16 %v2779, %v2778
        %v2790 = vpack.c.bf16 %v2781, %v2780
        %v2791 = vpack.c.bf16 %v2783, %v2782
        %v2792 = vld [vmem:[%s14] sm:$0x1]
        %v2794 = vlaneseq
        %v2795 = vshrl.u32 %v2794, 7
        %v2796 = vsub.s32 0, %v2795
        %v2797 = vrot.slane %v2792, %v2796
        %v2803 = vunpack.c.l.b16 %v2784
        %v2804 = vunpack.c.l.b16 %v2785
        %v2805 = vunpack.c.l.b16 %v2786
        %v2806 = vunpack.c.l.b16 %v2787
        %v2807 = vpack.c.b16 %v2804, %v2803
        %v2808 = vpack.c.b16 %v2806, %v2805
        %v2812 = vsel %vm859, %v2788, 0
        %v2815 = vsel %vm859, %v2789, 0
        %v2818 = vsel %vm859, %v2790, 0
        %v2821 = vsel %vm859, %v2791, 0
        %2823 = vmatprep.subr.bf16.mxu0 0
        %2824 = vmatpush1.bf16.msra.mxu0 %v2807
        %2825 = vmatprep.subr.bf16.mxu0 0
        %2826 = vmatpush1.bf16.msra.mxu0 %v2808
        %2827 = vmatprep.subr.bf16.mxu0 0
        %2828 = vmatpush1.bf16.msra.mxu0 0
        %2829 = vmatprep.subr.bf16.mxu0 0
        %2830 = vmatpush1.bf16.msra.mxu0 0
        %2831 = vmatprep.subr.bf16.mxu0 0
        %2832 = vmatpush1.bf16.msra.mxu0 0
        %2833 = vmatprep.subr.bf16.mxu0 0
        %2834 = vmatpush1.bf16.msra.mxu0 0
        %2835 = vmatprep.subr.bf16.mxu0 0
        %2836 = vmatpush1.bf16.msra.mxu0 0
        %2837 = vmatprep.subr.bf16.mxu0 0
        %2838 = vmatpush1.bf16.msra.mxu0 0
        %2839 = vmatprep.subr.bf16.mxu0 0
        %2840 = vmatpush1.bf16.msra.mxu0 0
        %2841 = vmatprep.subr.bf16.mxu0 0
        %2842 = vmatpush1.bf16.msra.mxu0 0
        %2843 = vmatprep.subr.bf16.mxu0 0
        %2844 = vmatpush1.bf16.msra.mxu0 0
        %2845 = vmatprep.subr.bf16.mxu0 0
        %2846 = vmatpush1.bf16.msra.mxu0 0
        %2847 = vmatprep.subr.bf16.mxu0 0
        %2848 = vmatpush1.bf16.msra.mxu0 0
        %2849 = vmatprep.subr.bf16.mxu0 0
        %2850 = vmatpush1.bf16.msra.mxu0 0
        %2851 = vmatprep.subr.bf16.mxu0 0
        %2852 = vmatpush1.bf16.msra.mxu0 0
        %2853 = vmatprep.subr.bf16.mxu0 0
        %2854 = vmatpush1.bf16.msra.mxu0 0
        %2855 = vmatprep.mubr.bf16.mxu0 0
        %2856 = vmatmul.mubr.bf16.gmra.mrb[0].mxu0 %v2812
        %v2857 = vpop.f32.mrb[0].mxu0
        %v2858 = vadd.f32 %v2797, %v2857
        %v2859 = vpop.f32.mrb[0].mxu0
        %v2860 = vpop.f32.mrb[0].mxu0
        %v2861 = vadd.f32 %v2797, %v2860
        %v2862 = vpop.f32.mrb[0].mxu0
        %2863 = vmatprep.mubr.bf16.mxu0 0
        %2864 = vmatmul.mubr.bf16.gmra.mrb[0].mxu0 %v2815
        %v2865 = vpop.f32.mrb[0].mxu0
        %v2866 = vadd.f32 %v2797, %v2865
        %v2867 = vpop.f32.mrb[0].mxu0
        %v2868 = vpop.f32.mrb[0].mxu0
        %v2869 = vadd.f32 %v2797, %v2868
        %v2870 = vpop.f32.mrb[0].mxu0
        %2871 = vmatprep.mubr.bf16.mxu0 0
        %2872 = vmatmul.mubr.bf16.gmra.mrb[0].mxu0 %v2818
        %v2873 = vpop.f32.mrb[0].mxu0
        %v2874 = vadd.f32 %v2797, %v2873
        %v2875 = vpop.f32.mrb[0].mxu0
        %v2876 = vpop.f32.mrb[0].mxu0
        %v2877 = vadd.f32 %v2797, %v2876
        %v2878 = vpop.f32.mrb[0].mxu0
        %2879 = vmatprep.mubr.bf16.mxu0 0
        %2880 = vmatmul.mubr.bf16.gmra.mrb[0].mxu0 %v2821
        %v2881 = vpop.f32.mrb[0].mxu0
        %v2882 = vadd.f32 %v2797, %v2881
        %v2883 = vpop.f32.mrb[0].mxu0
        %v2884 = vpop.f32.mrb[0].mxu0
        %v2885 = vadd.f32 %v2797, %v2884
        %v2886 = vpop.f32.mrb[0].mxu0
        %2887 = vdwg.mxu0
        %s2888 = scalar_lea.vmem [#allocation2], 16
        %2889 = vst [vmem:[%s2888 + $0x1] sm:$0xff] %v2858
        %2890 = vst [vmem:[%s2888 + $0x11] sm:$0xff] %v2861
        %2891 = vst [vmem:[%s2888 + $0x21] sm:$0xff] %v2866
        %2892 = vst [vmem:[%s2888 + $0x31] sm:$0xff] %v2869
        %2893 = vst [vmem:[%s2888 + $0x41] sm:$0xff] %v2874
        %2894 = vst [vmem:[%s2888 + $0x51] sm:$0xff] %v2877
        %2895 = vst [vmem:[%s2888 + $0x61] sm:$0xff] %v2882
        %2896 = vst [vmem:[%s2888 + $0x71] sm:$0xff] %v2885
        %v2897 = vld [vmem:[%s15] sm:$0x7]
        %v2898 = vld [vmem:[%s15 + $0x4] sm:$0x7]
        %v2899 = vld [vmem:[%s15 + $0x8] sm:$0x7]
        %v2900 = vld [vmem:[#allocation2] sm:$0xff]
        %v2901 = vld [vmem:[#allocation2 + $0x10] sm:$0xff]
        %v2902 = vld [vmem:[#allocation2 + $0x20] sm:$0xff]
        %v2903 = vld [vmem:[#allocation2 + $0x30] sm:$0xff]
        %v2904 = vld [vmem:[#allocation2 + $0x40] sm:$0xff]
        %v2905 = vld [vmem:[#allocation2 + $0x50] sm:$0xff]
        %v2906 = vld [vmem:[#allocation2 + $0x60] sm:$0xff]
        %v2907 = vld [vmem:[#allocation2 + $0x70] sm:$0xff]
        %v2908 = vlaneseq
        %v2909 = vshrl.u32 %v2908, 7
        %v2910 = vsub.s32 0, %v2909
        %v2911 = vrot.slane %v2897, %v2910
        %v2912 = vmul.f32 %v2900, %v2911
        %v2913 = vmul.f32 %v2901, %v2911
        %v2914 = vmul.f32 %v2902, %v2911
        %v2915 = vmul.f32 %v2903, %v2911
        %v2916 = vmul.f32 %v2904, %v2911
        %v2917 = vmul.f32 %v2905, %v2911
        %v2918 = vmul.f32 %v2906, %v2911
        %v2919 = vmul.f32 %v2907, %v2911
        %v2920 = vadd.f32 %v2912, 0.0
        %v2921 = vadd.f32 %v2913, 0.0
        %v2922 = vadd.f32 %v2914, 0.0
        %v2923 = vadd.f32 %v2915, 0.0
        %v2924 = vadd.f32 %v2916, 0.0
        %v2925 = vadd.f32 %v2917, 0.0
        %v2926 = vadd.f32 %v2918, 0.0
        %v2927 = vadd.f32 %v2919, 0.0
        %v2928 = vld [vmem:[#allocation2 + $0x1] sm:$0xff]
        %v2929 = vld [vmem:[#allocation2 + $0x11] sm:$0xff]
        %v2930 = vld [vmem:[#allocation2 + $0x21] sm:$0xff]
        %v2931 = vld [vmem:[#allocation2 + $0x31] sm:$0xff]
        %v2932 = vld [vmem:[#allocation2 + $0x41] sm:$0xff]
        %v2933 = vld [vmem:[#allocation2 + $0x51] sm:$0xff]
        %v2934 = vld [vmem:[#allocation2 + $0x61] sm:$0xff]
        %v2935 = vld [vmem:[#allocation2 + $0x71] sm:$0xff]
        %v2936 = vlaneseq
        %v2937 = vshrl.u32 %v2936, 7
        %v2938 = vsub.s32 1, %v2937
        %v2939 = vrot.slane %v2897, %v2938
        %v2940 = vmul.f32 %v2928, %v2939
        %v2941 = vmul.f32 %v2929, %v2939
        %v2942 = vmul.f32 %v2930, %v2939
        %v2943 = vmul.f32 %v2931, %v2939
        %v2944 = vmul.f32 %v2932, %v2939
        %v2945 = vmul.f32 %v2933, %v2939
        %v2946 = vmul.f32 %v2934, %v2939
        %v2947 = vmul.f32 %v2935, %v2939
        %v2948 = vadd.f32 %v2920, %v2940
        %v2949 = vadd.f32 %v2921, %v2941
        %v2950 = vadd.f32 %v2922, %v2942
        %v2951 = vadd.f32 %v2923, %v2943
        %v2952 = vadd.f32 %v2924, %v2944
        %v2953 = vadd.f32 %v2925, %v2945
        %v2954 = vadd.f32 %v2926, %v2946
        %v2955 = vadd.f32 %v2927, %v2947
        %v2956 = vld [vmem:[#allocation2 + $0x2] sm:$0xff]
        %v2957 = vld [vmem:[#allocation2 + $0x12] sm:$0xff]
        %v2958 = vld [vmem:[#allocation2 + $0x22] sm:$0xff]
        %v2959 = vld [vmem:[#allocation2 + $0x32] sm:$0xff]
        %v2960 = vld [vmem:[#allocation2 + $0x42] sm:$0xff]
        %v2961 = vld [vmem:[#allocation2 + $0x52] sm:$0xff]
        %v2962 = vld [vmem:[#allocation2 + $0x62] sm:$0xff]
        %v2963 = vld [vmem:[#allocation2 + $0x72] sm:$0xff]
        %v2964 = vlaneseq
        %v2965 = vshrl.u32 %v2964, 7
        %v2966 = vsub.s32 2, %v2965
        %v2967 = vrot.slane %v2897, %v2966
        %v2968 = vmul.f32 %v2956, %v2967
        %v2969 = vmul.f32 %v2957, %v2967
        %v2970 = vmul.f32 %v2958, %v2967
        %v2971 = vmul.f32 %v2959, %v2967
        %v2972 = vmul.f32 %v2960, %v2967
        %v2973 = vmul.f32 %v2961, %v2967
        %v2974 = vmul.f32 %v2962, %v2967
        %v2975 = vmul.f32 %v2963, %v2967
        %v2976 = vadd.f32 %v2948, %v2968
        %v2977 = vadd.f32 %v2949, %v2969
        %v2978 = vadd.f32 %v2950, %v2970
        %v2979 = vadd.f32 %v2951, %v2971
        %v2980 = vadd.f32 %v2952, %v2972
        %v2981 = vadd.f32 %v2953, %v2973
        %v2982 = vadd.f32 %v2954, %v2974
        %v2983 = vadd.f32 %v2955, %v2975
        %v2984 = vld [vmem:[%s2888] sm:$0xff]
        %v2985 = vld [vmem:[%s2888 + $0x10] sm:$0xff]
        %v2986 = vld [vmem:[%s2888 + $0x20] sm:$0xff]
        %v2987 = vld [vmem:[%s2888 + $0x30] sm:$0xff]
        %v2988 = vld [vmem:[%s2888 + $0x40] sm:$0xff]
        %v2989 = vld [vmem:[%s2888 + $0x50] sm:$0xff]
        %v2990 = vld [vmem:[%s2888 + $0x60] sm:$0xff]
        %v2991 = vld [vmem:[%s2888 + $0x70] sm:$0xff]
        %v2992 = vlaneseq
        %v2993 = vshrl.u32 %v2992, 7
        %v2994 = vsub.s32 0, %v2993
        %v2995 = vrot.slane %v2898, %v2994
        %v2996 = vmul.f32 %v2984, %v2995
        %v2997 = vmul.f32 %v2985, %v2995
        %v2998 = vmul.f32 %v2986, %v2995
        %v2999 = vmul.f32 %v2987, %v2995
        %v3000 = vmul.f32 %v2988, %v2995
        %v3001 = vmul.f32 %v2989, %v2995
        %v3002 = vmul.f32 %v2990, %v2995
        %v3003 = vmul.f32 %v2991, %v2995
        %v3004 = vadd.f32 %v2976, %v2996
        %v3005 = vadd.f32 %v2977, %v2997
        %v3006 = vadd.f32 %v2978, %v2998
        %v3007 = vadd.f32 %v2979, %v2999
        %v3008 = vadd.f32 %v2980, %v3000
        %v3009 = vadd.f32 %v2981, %v3001
        %v3010 = vadd.f32 %v2982, %v3002
        %v3011 = vadd.f32 %v2983, %v3003
        %v3012 = vld [vmem:[%s2888 + $0x1] sm:$0xff]
        %v3013 = vld [vmem:[%s2888 + $0x11] sm:$0xff]
        %v3014 = vld [vmem:[%s2888 + $0x21] sm:$0xff]
        %v3015 = vld [vmem:[%s2888 + $0x31] sm:$0xff]
        %v3016 = vld [vmem:[%s2888 + $0x41] sm:$0xff]
        %v3017 = vld [vmem:[%s2888 + $0x51] sm:$0xff]
        %v3018 = vld [vmem:[%s2888 + $0x61] sm:$0xff]
        %v3019 = vld [vmem:[%s2888 + $0x71] sm:$0xff]
        %v3020 = vlaneseq
        %v3021 = vshrl.u32 %v3020, 7
        %v3022 = vsub.s32 1, %v3021
        %v3023 = vrot.slane %v2898, %v3022
        %v3024 = vmul.f32 %v3012, %v3023
        %v3025 = vmul.f32 %v3013, %v3023
        %v3026 = vmul.f32 %v3014, %v3023
        %v3027 = vmul.f32 %v3015, %v3023
        %v3028 = vmul.f32 %v3016, %v3023
        %v3029 = vmul.f32 %v3017, %v3023
        %v3030 = vmul.f32 %v3018, %v3023
        %v3031 = vmul.f32 %v3019, %v3023
        %v3032 = vadd.f32 %v3004, %v3024
        %v3033 = vadd.f32 %v3005, %v3025
        %v3034 = vadd.f32 %v3006, %v3026
        %v3035 = vadd.f32 %v3007, %v3027
        %v3036 = vadd.f32 %v3008, %v3028
        %v3037 = vadd.f32 %v3009, %v3029
        %v3038 = vadd.f32 %v3010, %v3030
        %v3039 = vadd.f32 %v3011, %v3031
        %v3040 = vld [vmem:[%s2888 + $0x2] sm:$0xff]
        %v3041 = vld [vmem:[%s2888 + $0x12] sm:$0xff]
        %v3042 = vld [vmem:[%s2888 + $0x22] sm:$0xff]
        %v3043 = vld [vmem:[%s2888 + $0x32] sm:$0xff]
        %v3044 = vld [vmem:[%s2888 + $0x42] sm:$0xff]
        %v3045 = vld [vmem:[%s2888 + $0x52] sm:$0xff]
        %v3046 = vld [vmem:[%s2888 + $0x62] sm:$0xff]
        %v3047 = vld [vmem:[%s2888 + $0x72] sm:$0xff]
        %v3048 = vlaneseq
        %v3049 = vshrl.u32 %v3048, 7
        %v3050 = vsub.s32 2, %v3049
        %v3051 = vrot.slane %v2898, %v3050
        %v3052 = vmul.f32 %v3040, %v3051
        %v3053 = vmul.f32 %v3041, %v3051
        %v3054 = vmul.f32 %v3042, %v3051
        %v3055 = vmul.f32 %v3043, %v3051
        %v3056 = vmul.f32 %v3044, %v3051
        %v3057 = vmul.f32 %v3045, %v3051
        %v3058 = vmul.f32 %v3046, %v3051
        %v3059 = vmul.f32 %v3047, %v3051
        %v3060 = vadd.f32 %v3032, %v3052
        %v3061 = vadd.f32 %v3033, %v3053
        %v3062 = vadd.f32 %v3034, %v3054
        %v3063 = vadd.f32 %v3035, %v3055
        %v3064 = vadd.f32 %v3036, %v3056
        %v3065 = vadd.f32 %v3037, %v3057
        %v3066 = vadd.f32 %v3038, %v3058
        %v3067 = vadd.f32 %v3039, %v3059
        %s3068 = scalar_lea.vmem [#allocation2], 32
        %v3069 = vld [vmem:[%s3068] sm:$0xff]
        %v3070 = vld [vmem:[%s3068 + $0x10] sm:$0xff]
        %v3071 = vld [vmem:[%s3068 + $0x20] sm:$0xff]
        %v3072 = vld [vmem:[%s3068 + $0x30] sm:$0xff]
        %v3073 = vld [vmem:[%s3068 + $0x40] sm:$0xff]
        %v3074 = vld [vmem:[%s3068 + $0x50] sm:$0xff]
        %v3075 = vld [vmem:[%s3068 + $0x60] sm:$0xff]
        %v3076 = vld [vmem:[%s3068 + $0x70] sm:$0xff]
        %v3077 = vlaneseq
        %v3078 = vshrl.u32 %v3077, 7
        %v3079 = vsub.s32 0, %v3078
        %v3080 = vrot.slane %v2899, %v3079
        %v3081 = vmul.f32 %v3069, %v3080
        %v3082 = vmul.f32 %v3070, %v3080
        %v3083 = vmul.f32 %v3071, %v3080
        %v3084 = vmul.f32 %v3072, %v3080
        %v3085 = vmul.f32 %v3073, %v3080
        %v3086 = vmul.f32 %v3074, %v3080
        %v3087 = vmul.f32 %v3075, %v3080
        %v3088 = vmul.f32 %v3076, %v3080
        %v3089 = vadd.f32 %v3060, %v3081
        %v3090 = vadd.f32 %v3061, %v3082
        %v3091 = vadd.f32 %v3062, %v3083
        %v3092 = vadd.f32 %v3063, %v3084
        %v3093 = vadd.f32 %v3064, %v3085
        %v3094 = vadd.f32 %v3065, %v3086
        %v3095 = vadd.f32 %v3066, %v3087
        %v3096 = vadd.f32 %v3067, %v3088
        %v3097 = vld [vmem:[%s3068 + $0x1] sm:$0xff]
        %v3098 = vld [vmem:[%s3068 + $0x11] sm:$0xff]
        %v3099 = vld [vmem:[%s3068 + $0x21] sm:$0xff]
        %v3100 = vld [vmem:[%s3068 + $0x31] sm:$0xff]
        %v3101 = vld [vmem:[%s3068 + $0x41] sm:$0xff]
        %v3102 = vld [vmem:[%s3068 + $0x51] sm:$0xff]
        %v3103 = vld [vmem:[%s3068 + $0x61] sm:$0xff]
        %v3104 = vld [vmem:[%s3068 + $0x71] sm:$0xff]
        %v3105 = vlaneseq
        %v3106 = vshrl.u32 %v3105, 7
        %v3107 = vsub.s32 1, %v3106
        %v3108 = vrot.slane %v2899, %v3107
        %v3109 = vmul.f32 %v3097, %v3108
        %v3110 = vmul.f32 %v3098, %v3108
        %v3111 = vmul.f32 %v3099, %v3108
        %v3112 = vmul.f32 %v3100, %v3108
        %v3113 = vmul.f32 %v3101, %v3108
        %v3114 = vmul.f32 %v3102, %v3108
        %v3115 = vmul.f32 %v3103, %v3108
        %v3116 = vmul.f32 %v3104, %v3108
        %v3117 = vadd.f32 %v3089, %v3109
        %v3118 = vadd.f32 %v3090, %v3110
        %v3119 = vadd.f32 %v3091, %v3111
        %v3120 = vadd.f32 %v3092, %v3112
        %v3121 = vadd.f32 %v3093, %v3113
        %v3122 = vadd.f32 %v3094, %v3114
        %v3123 = vadd.f32 %v3095, %v3115
        %v3124 = vadd.f32 %v3096, %v3116
        %v3125 = vld [vmem:[%s3068 + $0x2] sm:$0xff]
        %v3126 = vld [vmem:[%s3068 + $0x12] sm:$0xff]
        %v3127 = vld [vmem:[%s3068 + $0x22] sm:$0xff]
        %v3128 = vld [vmem:[%s3068 + $0x32] sm:$0xff]
        %v3129 = vld [vmem:[%s3068 + $0x42] sm:$0xff]
        %v3130 = vld [vmem:[%s3068 + $0x52] sm:$0xff]
        %v3131 = vld [vmem:[%s3068 + $0x62] sm:$0xff]
        %v3132 = vld [vmem:[%s3068 + $0x72] sm:$0xff]
        %v3133 = vlaneseq
        %v3134 = vshrl.u32 %v3133, 7
        %v3135 = vsub.s32 2, %v3134
        %v3136 = vrot.slane %v2899, %v3135
        %v3137 = vmul.f32 %v3125, %v3136
        %v3138 = vmul.f32 %v3126, %v3136
        %v3139 = vmul.f32 %v3127, %v3136
        %v3140 = vmul.f32 %v3128, %v3136
        %v3141 = vmul.f32 %v3129, %v3136
        %v3142 = vmul.f32 %v3130, %v3136
        %v3143 = vmul.f32 %v3131, %v3136
        %v3144 = vmul.f32 %v3132, %v3136
        %v3145 = vadd.f32 %v3117, %v3137
        %v3146 = vadd.f32 %v3118, %v3138
        %v3147 = vadd.f32 %v3119, %v3139
        %v3148 = vadd.f32 %v3120, %v3140
        %v3149 = vadd.f32 %v3121, %v3141
        %v3150 = vadd.f32 %v3122, %v3142
        %v3151 = vadd.f32 %v3123, %v3143
        %v3152 = vadd.f32 %v3124, %v3144
        %v3153 = vld [vmem:[%s16] sm:$0x1]
        %v3155 = vlaneseq
        %v3156 = vshrl.u32 %v3155, 7
        %v3157 = vsub.s32 0, %v3156
        %v3158 = vrot.slane %v3153, %v3157
        %v3160 = vadd.f32 %v3145, %v3158
        %v3161 = vadd.f32 %v3146, %v3158
        %v3162 = vadd.f32 %v3147, %v3158
        %v3163 = vadd.f32 %v3148, %v3158
        %v3164 = vadd.f32 %v3149, %v3158
        %v3165 = vadd.f32 %v3150, %v3158
        %v3166 = vadd.f32 %v3151, %v3158
        %v3167 = vadd.f32 %v3152, %v3158
        %v3168 = vmul.f32 %v3160, 0.5
        %v3169 = vmul.f32 %v3161, 0.5
        %v3170 = vmul.f32 %v3162, 0.5
        %v3171 = vmul.f32 %v3163, 0.5
        %v3172 = vmul.f32 %v3164, 0.5
        %v3173 = vmul.f32 %v3165, 0.5
        %v3174 = vmul.f32 %v3166, 0.5
        %v3175 = vmul.f32 %v3167, 0.5
        %v3176 = vmul.f32 %v3160, 0.70710677
        %v3177 = vmul.f32 %v3161, 0.70710677
        %v3178 = vmul.f32 %v3162, 0.70710677
        %v3179 = vmul.f32 %v3163, 0.70710677
        %v3180 = vmul.f32 %v3164, 0.70710677
        %v3181 = vmul.f32 %v3165, 0.70710677
        %v3182 = vmul.f32 %v3166, 0.70710677
        %v3183 = vmul.f32 %v3167, 0.70710677
        %v3184 = vand.u32 2147483647, %v3176
        %v3185 = vand.u32 2147483647, %v3177
        %v3186 = vand.u32 2147483647, %v3178
        %v3187 = vand.u32 2147483647, %v3179
        %v3188 = vand.u32 2147483647, %v3180
        %v3189 = vand.u32 2147483647, %v3181
        %v3190 = vand.u32 2147483647, %v3182
        %v3191 = vand.u32 2147483647, %v3183
        %v3192 = vmul.f32 %v3184, 0.3275911
        %v3193 = vmul.f32 %v3185, 0.3275911
        %v3194 = vmul.f32 %v3186, 0.3275911
        %v3195 = vmul.f32 %v3187, 0.3275911
        %v3196 = vmul.f32 %v3188, 0.3275911
        %v3197 = vmul.f32 %v3189, 0.3275911
        %v3198 = vmul.f32 %v3190, 0.3275911
        %v3199 = vmul.f32 %v3191, 0.3275911
        %v3200 = vadd.f32 %v3192, 1.0
        %v3201 = vadd.f32 %v3193, 1.0
        %v3202 = vadd.f32 %v3194, 1.0
        %v3203 = vadd.f32 %v3195, 1.0
        %v3204 = vadd.f32 %v3196, 1.0
        %v3205 = vadd.f32 %v3197, 1.0
        %v3206 = vadd.f32 %v3198, 1.0
        %v3207 = vadd.f32 %v3199, 1.0
        %v3208 = vrcp.pop %v3200
        %v3209 = vmul.f32 1.0, %v3208
        %v3210 = vrcp.pop %v3201
        %v3211 = vmul.f32 1.0, %v3210
        %v3212 = vrcp.pop %v3202
        %v3213 = vmul.f32 1.0, %v3212
        %v3214 = vrcp.pop %v3203
        %v3215 = vmul.f32 1.0, %v3214
        %v3216 = vrcp.pop %v3204
        %v3217 = vmul.f32 1.0, %v3216
        %v3218 = vrcp.pop %v3205
        %v3219 = vmul.f32 1.0, %v3218
        %v3220 = vrcp.pop %v3206
        %v3221 = vmul.f32 1.0, %v3220
        %v3222 = vrcp.pop %v3207
        %v3223 = vmul.f32 1.0, %v3222
        %v3224 = vmul.f32 %v3209, 1.0614054
        %v3225 = vmul.f32 %v3211, 1.0614054
        %v3226 = vmul.f32 %v3213, 1.0614054
        %v3227 = vmul.f32 %v3215, 1.0614054
        %v3228 = vmul.f32 %v3217, 1.0614054
        %v3229 = vmul.f32 %v3219, 1.0614054
        %v3230 = vmul.f32 %v3221, 1.0614054
        %v3231 = vmul.f32 %v3223, 1.0614054
        %v3232 = vadd.f32 %v3224, -1.4531521
        %v3233 = vadd.f32 %v3225, -1.4531521
        %v3234 = vadd.f32 %v3226, -1.4531521
        %v3235 = vadd.f32 %v3227, -1.4531521
        %v3236 = vadd.f32 %v3228, -1.4531521
        %v3237 = vadd.f32 %v3229, -1.4531521
        %v3238 = vadd.f32 %v3230, -1.4531521
        %v3239 = vadd.f32 %v3231, -1.4531521
        %v3240 = vmul.f32 %v3209, %v3232
        %v3241 = vmul.f32 %v3211, %v3233
        %v3242 = vmul.f32 %v3213, %v3234
        %v3243 = vmul.f32 %v3215, %v3235
        %v3244 = vmul.f32 %v3217, %v3236
        %v3245 = vmul.f32 %v3219, %v3237
        %v3246 = vmul.f32 %v3221, %v3238
        %v3247 = vmul.f32 %v3223, %v3239
        %v3248 = vadd.f32 %v3240, 1.4214138
        %v3249 = vadd.f32 %v3241, 1.4214138
        %v3250 = vadd.f32 %v3242, 1.4214138
        %v3251 = vadd.f32 %v3243, 1.4214138
        %v3252 = vadd.f32 %v3244, 1.4214138
        %v3253 = vadd.f32 %v3245, 1.4214138
        %v3254 = vadd.f32 %v3246, 1.4214138
        %v3255 = vadd.f32 %v3247, 1.4214138
        %v3256 = vmul.f32 %v3209, %v3248
        %v3257 = vmul.f32 %v3211, %v3249
        %v3258 = vmul.f32 %v3213, %v3250
        %v3259 = vmul.f32 %v3215, %v3251
        %v3260 = vmul.f32 %v3217, %v3252
        %v3261 = vmul.f32 %v3219, %v3253
        %v3262 = vmul.f32 %v3221, %v3254
        %v3263 = vmul.f32 %v3223, %v3255
        %v3264 = vadd.f32 %v3256, -0.28449672
        %v3265 = vadd.f32 %v3257, -0.28449672
        %v3266 = vadd.f32 %v3258, -0.28449672
        %v3267 = vadd.f32 %v3259, -0.28449672
        %v3268 = vadd.f32 %v3260, -0.28449672
        %v3269 = vadd.f32 %v3261, -0.28449672
        %v3270 = vadd.f32 %v3262, -0.28449672
        %v3271 = vadd.f32 %v3263, -0.28449672
        %v3272 = vmul.f32 %v3209, %v3264
        %v3273 = vmul.f32 %v3211, %v3265
        %v3274 = vmul.f32 %v3213, %v3266
        %v3275 = vmul.f32 %v3215, %v3267
        %v3276 = vmul.f32 %v3217, %v3268
        %v3277 = vmul.f32 %v3219, %v3269
        %v3278 = vmul.f32 %v3221, %v3270
        %v3279 = vmul.f32 %v3223, %v3271
        %v3280 = vadd.f32 %v3272, 0.2548296
        %v3281 = vadd.f32 %v3273, 0.2548296
        %v3282 = vadd.f32 %v3274, 0.2548296
        %v3283 = vadd.f32 %v3275, 0.2548296
        %v3284 = vadd.f32 %v3276, 0.2548296
        %v3285 = vadd.f32 %v3277, 0.2548296
        %v3286 = vadd.f32 %v3278, 0.2548296
        %v3287 = vadd.f32 %v3279, 0.2548296
        %v3288 = vmul.f32 %v3209, %v3280
        %v3289 = vmul.f32 %v3211, %v3281
        %v3290 = vmul.f32 %v3213, %v3282
        %v3291 = vmul.f32 %v3215, %v3283
        %v3292 = vmul.f32 %v3217, %v3284
        %v3293 = vmul.f32 %v3219, %v3285
        %v3294 = vmul.f32 %v3221, %v3286
        %v3295 = vmul.f32 %v3223, %v3287
        %v3296 = vmul.f32 %v3176, %v3176
        %v3297 = vmul.f32 %v3177, %v3177
        %v3298 = vmul.f32 %v3178, %v3178
        %v3299 = vmul.f32 %v3179, %v3179
        %v3300 = vmul.f32 %v3180, %v3180
        %v3301 = vmul.f32 %v3181, %v3181
        %v3302 = vmul.f32 %v3182, %v3182
        %v3303 = vmul.f32 %v3183, %v3183
        %v3304 = vsub.f32 0.0, %v3296
        %v3305 = vsub.f32 0.0, %v3297
        %v3306 = vsub.f32 0.0, %v3298
        %v3307 = vsub.f32 0.0, %v3299
        %v3308 = vsub.f32 0.0, %v3300
        %v3309 = vsub.f32 0.0, %v3301
        %v3310 = vsub.f32 0.0, %v3302
        %v3311 = vsub.f32 0.0, %v3303
        %v3312 = vmul.f32 %v3304, 1.442695
        %v3313 = vpow.pop %v3312
        %v3314 = vmul.f32 %v3305, 1.442695
        %v3315 = vpow.pop %v3314
        %v3316 = vmul.f32 %v3306, 1.442695
        %v3317 = vpow.pop %v3316
        %v3318 = vmul.f32 %v3307, 1.442695
        %v3319 = vpow.pop %v3318
        %v3320 = vmul.f32 %v3308, 1.442695
        %v3321 = vpow.pop %v3320
        %v3322 = vmul.f32 %v3309, 1.442695
        %v3323 = vpow.pop %v3322
        %v3324 = vmul.f32 %v3310, 1.442695
        %v3325 = vpow.pop %v3324
        %v3326 = vmul.f32 %v3311, 1.442695
        %v3327 = vpow.pop %v3326
        %v3328 = vmul.f32 %v3288, %v3313
        %v3329 = vmul.f32 %v3289, %v3315
        %v3330 = vmul.f32 %v3290, %v3317
        %v3331 = vmul.f32 %v3291, %v3319
        %v3332 = vmul.f32 %v3292, %v3321
        %v3333 = vmul.f32 %v3293, %v3323
        %v3334 = vmul.f32 %v3294, %v3325
        %v3335 = vmul.f32 %v3295, %v3327
        %v3336 = vsub.f32 1.0, %v3328
        %v3337 = vsub.f32 1.0, %v3329
        %v3338 = vsub.f32 1.0, %v3330
        %v3339 = vsub.f32 1.0, %v3331
        %v3340 = vsub.f32 1.0, %v3332
        %v3341 = vsub.f32 1.0, %v3333
        %v3342 = vsub.f32 1.0, %v3334
        %v3343 = vsub.f32 1.0, %v3335
        %vm3344 = vcmp.ge.f32.partialorder %v3176, 0.0
        %vm3345 = vcmp.ge.f32.partialorder %v3177, 0.0
        %vm3346 = vcmp.ge.f32.partialorder %v3178, 0.0
        %vm3347 = vcmp.ge.f32.partialorder %v3179, 0.0
        %vm3348 = vcmp.ge.f32.partialorder %v3180, 0.0
        %vm3349 = vcmp.ge.f32.partialorder %v3181, 0.0
        %vm3350 = vcmp.ge.f32.partialorder %v3182, 0.0
        %vm3351 = vcmp.ge.f32.partialorder %v3183, 0.0
        %v3352 = vsub.f32 0.0, %v3336
        %v3353 = vsub.f32 0.0, %v3337
        %v3354 = vsub.f32 0.0, %v3338
        %v3355 = vsub.f32 0.0, %v3339
        %v3356 = vsub.f32 0.0, %v3340
        %v3357 = vsub.f32 0.0, %v3341
        %v3358 = vsub.f32 0.0, %v3342
        %v3359 = vsub.f32 0.0, %v3343
        %v3360 = vsel %vm3344, %v3336, %v3352
        %v3361 = vsel %vm3345, %v3337, %v3353
        %v3362 = vsel %vm3346, %v3338, %v3354
        %v3363 = vsel %vm3347, %v3339, %v3355
        %v3364 = vsel %vm3348, %v3340, %v3356
        %v3365 = vsel %vm3349, %v3341, %v3357
        %v3366 = vsel %vm3350, %v3342, %v3358
        %v3367 = vsel %vm3351, %v3343, %v3359
        %v3368 = vadd.f32 %v3360, 1.0
        %v3369 = vadd.f32 %v3361, 1.0
        %v3370 = vadd.f32 %v3362, 1.0
        %v3371 = vadd.f32 %v3363, 1.0
        %v3372 = vadd.f32 %v3364, 1.0
        %v3373 = vadd.f32 %v3365, 1.0
        %v3374 = vadd.f32 %v3366, 1.0
        %v3375 = vadd.f32 %v3367, 1.0
        %v3376 = vmul.f32 %v3168, %v3368
        %v3377 = vmul.f32 %v3169, %v3369
        %v3378 = vmul.f32 %v3170, %v3370
        %v3379 = vmul.f32 %v3171, %v3371
        %v3380 = vmul.f32 %v3172, %v3372
        %v3381 = vmul.f32 %v3173, %v3373
        %v3382 = vmul.f32 %v3174, %v3374
        %v3383 = vmul.f32 %v3175, %v3375
        %v3384 = vld [vmem:[%s17] sm:$0xf]
        %v3385 = vld [vmem:[%s17 + $0x4] sm:$0xf]
        %v3386 = vld [vmem:[%s17 + $0x8] sm:$0xf]
        %v3387 = vld [vmem:[%s17 + $0xc] sm:$0xf]
        %v3388 = vld [vmem:[%s17 + $0x10] sm:$0xf]
        %v3389 = vld [vmem:[%s17 + $0x14] sm:$0xf]
        %v3390 = vld [vmem:[%s17 + $0x18] sm:$0xf]
        %v3391 = vld [vmem:[%s17 + $0x1c] sm:$0xf]
        %v3392 = vld [vmem:[%s17 + $0x20] sm:$0xf]
        %v3393 = vld [vmem:[%s17 + $0x24] sm:$0xf]
        %v3394 = vld [vmem:[%s17 + $0x28] sm:$0xf]
        %v3395 = vld [vmem:[%s17 + $0x2c] sm:$0xf]
        %v3396 = vld [vmem:[%s17 + $0x30] sm:$0xf]
        %v3397 = vld [vmem:[%s17 + $0x34] sm:$0xf]
        %v3398 = vld [vmem:[%s17 + $0x38] sm:$0xf]
        %v3399 = vld [vmem:[%s17 + $0x3c] sm:$0xf]
        %v3400 = vpack.c.bf16 %v3377, %v3376
        %v3401 = vpack.c.bf16 %v3379, %v3378
        %v3402 = vpack.c.bf16 %v3381, %v3380
        %v3403 = vpack.c.bf16 %v3383, %v3382
        %v3420 = vunpack.c.l.b16 %v3384
        %v3421 = vunpack.c.l.b16 %v3385
        %v3422 = vunpack.c.l.b16 %v3386
        %v3423 = vunpack.c.l.b16 %v3387
        %v3424 = vunpack.c.l.b16 %v3388
        %v3425 = vunpack.c.l.b16 %v3389
        %v3426 = vunpack.c.l.b16 %v3390
        %v3427 = vunpack.c.l.b16 %v3391
        %v3428 = vunpack.c.l.b16 %v3392
        %v3429 = vunpack.c.l.b16 %v3393
        %v3430 = vunpack.c.l.b16 %v3394
        %v3431 = vunpack.c.l.b16 %v3395
        %v3432 = vunpack.c.l.b16 %v3396
        %v3433 = vunpack.c.l.b16 %v3397
        %v3434 = vunpack.c.l.b16 %v3398
        %v3435 = vunpack.c.l.b16 %v3399
        %v3436 = vpack.c.b16 %v3421, %v3420
        %v3437 = vpack.c.b16 %v3423, %v3422
        %v3438 = vpack.c.b16 %v3425, %v3424
        %v3439 = vpack.c.b16 %v3427, %v3426
        %v3440 = vpack.c.b16 %v3429, %v3428
        %v3441 = vpack.c.b16 %v3431, %v3430
        %v3442 = vpack.c.b16 %v3433, %v3432
        %v3443 = vpack.c.b16 %v3435, %v3434
        %3452 = vmatprep.subr.bf16.mxu0 0
        %3453 = vmatpush1.bf16.msra.mxu0 %v3436
        %3454 = vmatprep.subr.bf16.mxu0 0
        %3455 = vmatpush1.bf16.msra.mxu0 %v3437
        %3456 = vmatprep.subr.bf16.mxu0 0
        %3457 = vmatpush1.bf16.msra.mxu0 %v3438
        %3458 = vmatprep.subr.bf16.mxu0 0
        %3459 = vmatpush1.bf16.msra.mxu0 %v3439
        %3460 = vmatprep.subr.bf16.mxu0 0
        %3461 = vmatpush1.bf16.msra.mxu0 %v3440
        %3462 = vmatprep.subr.bf16.mxu0 0
        %3463 = vmatpush1.bf16.msra.mxu0 %v3441
        %3464 = vmatprep.subr.bf16.mxu0 0
        %3465 = vmatpush1.bf16.msra.mxu0 %v3442
        %3466 = vmatprep.subr.bf16.mxu0 0
        %3467 = vmatpush1.bf16.msra.mxu0 %v3443
        %3468 = vmatprep.subr.bf16.mxu0 0
        %3469 = vmatpush1.bf16.msra.mxu0 0
        %3470 = vmatprep.subr.bf16.mxu0 0
        %3471 = vmatpush1.bf16.msra.mxu0 0
        %3472 = vmatprep.subr.bf16.mxu0 0
        %3473 = vmatpush1.bf16.msra.mxu0 0
        %3474 = vmatprep.subr.bf16.mxu0 0
        %3475 = vmatpush1.bf16.msra.mxu0 0
        %3476 = vmatprep.subr.bf16.mxu0 0
        %3477 = vmatpush1.bf16.msra.mxu0 0
        %3478 = vmatprep.subr.bf16.mxu0 0
        %3479 = vmatpush1.bf16.msra.mxu0 0
        %3480 = vmatprep.subr.bf16.mxu0 0
        %3481 = vmatpush1.bf16.msra.mxu0 0
        %3482 = vmatprep.subr.bf16.mxu0 0
        %3483 = vmatpush1.bf16.msra.mxu0 0
        %3484 = vmatprep.mubr.bf16.mxu0 0
        %3485 = vmatmul.mubr.bf16.gmra.mrb[0].mxu0 %v3400
        %v3486 = vpop.f32.mrb[0].mxu0
        %v3487 = vadd.f32 0.0, %v3486
        %v3488 = vpop.f32.mrb[0].mxu0
        %v3489 = vpop.f32.mrb[0].mxu0
        %v3490 = vadd.f32 0.0, %v3489
        %v3491 = vpop.f32.mrb[0].mxu0
        %3492 = vmatprep.mubr.bf16.mxu0 0
        %3493 = vmatmul.mubr.bf16.gmra.mrb[0].mxu0 %v3401
        %v3494 = vpop.f32.mrb[0].mxu0
        %v3495 = vadd.f32 0.0, %v3494
        %v3496 = vpop.f32.mrb[0].mxu0
        %v3497 = vpop.f32.mrb[0].mxu0
        %v3498 = vadd.f32 0.0, %v3497
        %v3499 = vpop.f32.mrb[0].mxu0
        %3500 = vmatprep.mubr.bf16.mxu0 0
        %3501 = vmatmul.mubr.bf16.gmra.mrb[0].mxu0 %v3402
        %v3502 = vpop.f32.mrb[0].mxu0
        %v3503 = vadd.f32 0.0, %v3502
        %v3504 = vpop.f32.mrb[0].mxu0
        %v3505 = vpop.f32.mrb[0].mxu0
        %v3506 = vadd.f32 0.0, %v3505
        %v3507 = vpop.f32.mrb[0].mxu0
        %3508 = vmatprep.mubr.bf16.mxu0 0
        %3509 = vmatmul.mubr.bf16.gmra.mrb[0].mxu0 %v3403
        %v3510 = vpop.f32.mrb[0].mxu0
        %v3511 = vadd.f32 0.0, %v3510
        %v3512 = vpop.f32.mrb[0].mxu0
        %v3513 = vpop.f32.mrb[0].mxu0
        %v3514 = vadd.f32 0.0, %v3513
        %v3515 = vpop.f32.mrb[0].mxu0
        %3516 = vdwg.mxu0
        %v3517 = vadd.f32 %v2642, %v3487
        %v3518 = vadd.f32 %v2643, %v3490
        %v3519 = vadd.f32 %v2644, %v3495
        %v3520 = vadd.f32 %v2645, %v3498
        %v3521 = vadd.f32 %v2646, %v3503
        %v3522 = vadd.f32 %v2647, %v3506
        %v3523 = vadd.f32 %v2648, %v3511
        %v3524 = vadd.f32 %v2649, %v3514
        %v3525 = vld [vmem:[%s18] sm:$0x1]
        %v3527 = vlaneseq
        %v3528 = vshrl.u32 %v3527, 7
        %v3529 = vsub.s32 0, %v3528
        %v3530 = vrot.slane %v3525, %v3529
        %v3532 = vadd.f32 %v3517, %v3530
        %v3533 = vadd.f32 %v3518, %v3530
        %v3534 = vadd.f32 %v3519, %v3530
        %v3535 = vadd.f32 %v3520, %v3530
        %v3536 = vadd.f32 %v3521, %v3530
        %v3537 = vadd.f32 %v3522, %v3530
        %v3538 = vadd.f32 %v3523, %v3530
        %v3539 = vadd.f32 %v3524, %v3530
        %s3540 = scalar_lea.vmem %s5, 1
        %v3541 = vld [vmem:[%s3540] sm:$0x1]
        %s3542 = scalar_lea.vmem %s6, 1
        %v3543 = vld [vmem:[%s3542] sm:$0x1]
        %v3544 = vsel %vm859, %v3532, 0.0
        %3545 = vadd.xlane.f32.xlu0 %v3544
        %v3546 = vpop.xlane.xlu0 %3545
        %v3547 = vsel %vm859, %v3533, 0.0
        %3548 = vadd.xlane.f32.xlu0 %v3547
        %v3549 = vpop.xlane.xlu0 %3548
        %v3550 = vsel %vm859, %v3534, 0.0
        %3551 = vadd.xlane.f32.xlu0 %v3550
        %v3552 = vpop.xlane.xlu0 %3551
        %v3553 = vsel %vm859, %v3535, 0.0
        %3554 = vadd.xlane.f32.xlu0 %v3553
        %v3555 = vpop.xlane.xlu0 %3554
        %v3556 = vsel %vm859, %v3536, 0.0
        %3557 = vadd.xlane.f32.xlu0 %v3556
        %v3558 = vpop.xlane.xlu0 %3557
        %v3559 = vsel %vm859, %v3537, 0.0
        %3560 = vadd.xlane.f32.xlu0 %v3559
        %v3561 = vpop.xlane.xlu0 %3560
        %v3562 = vsel %vm859, %v3538, 0.0
        %3563 = vadd.xlane.f32.xlu0 %v3562
        %v3564 = vpop.xlane.xlu0 %3563
        %v3565 = vsel %vm859, %v3539, 0.0
        %3566 = vadd.xlane.f32.xlu0 %v3565
        %v3567 = vpop.xlane.xlu0 %3566
        %v3568 = vmul.f32 %v3546, %v884
        %v3569 = vmul.f32 %v3549, %v884
        %v3570 = vmul.f32 %v3552, %v884
        %v3571 = vmul.f32 %v3555, %v884
        %v3572 = vmul.f32 %v3558, %v884
        %v3573 = vmul.f32 %v3561, %v884
        %v3574 = vmul.f32 %v3564, %v884
        %v3575 = vmul.f32 %v3567, %v884
        %v3576 = vsub.f32 %v3532, %v3568
        %v3577 = vsub.f32 %v3533, %v3569
        %v3578 = vsub.f32 %v3534, %v3570
        %v3579 = vsub.f32 %v3535, %v3571
        %v3580 = vsub.f32 %v3536, %v3572
        %v3581 = vsub.f32 %v3537, %v3573
        %v3582 = vsub.f32 %v3538, %v3574
        %v3583 = vsub.f32 %v3539, %v3575
        %v3584 = vmul.f32 %v3576, %v3576
        %v3585 = vmul.f32 %v3577, %v3577
        %v3586 = vmul.f32 %v3578, %v3578
        %v3587 = vmul.f32 %v3579, %v3579
        %v3588 = vmul.f32 %v3580, %v3580
        %v3589 = vmul.f32 %v3581, %v3581
        %v3590 = vmul.f32 %v3582, %v3582
        %v3591 = vmul.f32 %v3583, %v3583
        %v3592 = vsel %vm859, %v3584, 0.0
        %3593 = vadd.xlane.f32.xlu0 %v3592
        %v3594 = vpop.xlane.xlu0 %3593
        %v3595 = vsel %vm859, %v3585, 0.0
        %3596 = vadd.xlane.f32.xlu0 %v3595
        %v3597 = vpop.xlane.xlu0 %3596
        %v3598 = vsel %vm859, %v3586, 0.0
        %3599 = vadd.xlane.f32.xlu0 %v3598
        %v3600 = vpop.xlane.xlu0 %3599
        %v3601 = vsel %vm859, %v3587, 0.0
        %3602 = vadd.xlane.f32.xlu0 %v3601
        %v3603 = vpop.xlane.xlu0 %3602
        %v3604 = vsel %vm859, %v3588, 0.0
        %3605 = vadd.xlane.f32.xlu0 %v3604
        %v3606 = vpop.xlane.xlu0 %3605
        %v3607 = vsel %vm859, %v3589, 0.0
        %3608 = vadd.xlane.f32.xlu0 %v3607
        %v3609 = vpop.xlane.xlu0 %3608
        %v3610 = vsel %vm859, %v3590, 0.0
        %3611 = vadd.xlane.f32.xlu0 %v3610
        %v3612 = vpop.xlane.xlu0 %3611
        %v3613 = vsel %vm859, %v3591, 0.0
        %3614 = vadd.xlane.f32.xlu0 %v3613
        %v3615 = vpop.xlane.xlu0 %3614
        %v3616 = vmul.f32 %v3594, %v884
        %v3617 = vmul.f32 %v3597, %v884
        %v3618 = vmul.f32 %v3600, %v884
        %v3619 = vmul.f32 %v3603, %v884
        %v3620 = vmul.f32 %v3606, %v884
        %v3621 = vmul.f32 %v3609, %v884
        %v3622 = vmul.f32 %v3612, %v884
        %v3623 = vmul.f32 %v3615, %v884
        %v3624 = vadd.f32 %v3616, 1e-05
        %v3625 = vadd.f32 %v3617, 1e-05
        %v3626 = vadd.f32 %v3618, 1e-05
        %v3627 = vadd.f32 %v3619, 1e-05
        %v3628 = vadd.f32 %v3620, 1e-05
        %v3629 = vadd.f32 %v3621, 1e-05
        %v3630 = vadd.f32 %v3622, 1e-05
        %v3631 = vadd.f32 %v3623, 1e-05
        %v3632 = vrsqrt.pop %v3624
        %v3633 = vrsqrt.pop %v3625
        %v3634 = vrsqrt.pop %v3626
        %v3635 = vrsqrt.pop %v3627
        %v3636 = vrsqrt.pop %v3628
        %v3637 = vrsqrt.pop %v3629
        %v3638 = vrsqrt.pop %v3630
        %v3639 = vrsqrt.pop %v3631
        %v3640 = vmul.f32 %v3576, %v3632
        %v3641 = vmul.f32 %v3577, %v3633
        %v3642 = vmul.f32 %v3578, %v3634
        %v3643 = vmul.f32 %v3579, %v3635
        %v3644 = vmul.f32 %v3580, %v3636
        %v3645 = vmul.f32 %v3581, %v3637
        %v3646 = vmul.f32 %v3582, %v3638
        %v3647 = vmul.f32 %v3583, %v3639
        %v3649 = vlaneseq
        %v3650 = vshrl.u32 %v3649, 7
        %v3651 = vsub.s32 0, %v3650
        %v3652 = vrot.slane %v3541, %v3651
        %v3654 = vmul.f32 %v3640, %v3652
        %v3655 = vmul.f32 %v3641, %v3652
        %v3656 = vmul.f32 %v3642, %v3652
        %v3657 = vmul.f32 %v3643, %v3652
        %v3658 = vmul.f32 %v3644, %v3652
        %v3659 = vmul.f32 %v3645, %v3652
        %v3660 = vmul.f32 %v3646, %v3652
        %v3661 = vmul.f32 %v3647, %v3652
        %v3663 = vlaneseq
        %v3664 = vshrl.u32 %v3663, 7
        %v3665 = vsub.s32 0, %v3664
        %v3666 = vrot.slane %v3543, %v3665
        %v3668 = vadd.f32 %v3654, %v3666
        %v3669 = vadd.f32 %v3655, %v3666
        %v3670 = vadd.f32 %v3656, %v3666
        %v3671 = vadd.f32 %v3657, %v3666
        %v3672 = vadd.f32 %v3658, %v3666
        %v3673 = vadd.f32 %v3659, %v3666
        %v3674 = vadd.f32 %v3660, %v3666
        %v3675 = vadd.f32 %v3661, %v3666
        %s3676 = scalar_lea.vmem %s7, 16
        %v3677 = vld [vmem:[%s3676] sm:$0xf]
        %v3678 = vld [vmem:[%s3676 + $0x4] sm:$0xf]
        %v3679 = vld [vmem:[%s3676 + $0x8] sm:$0xf]
        %v3680 = vld [vmem:[%s3676 + $0xc] sm:$0xf]
        %v3681 = vpack.c.bf16 %v3669, %v3668
        %v3682 = vpack.c.bf16 %v3671, %v3670
        %v3683 = vpack.c.bf16 %v3673, %v3672
        %v3684 = vpack.c.bf16 %v3675, %v3674
        %s3685 = scalar_lea.vmem %s8, 1
        %v3686 = vld [vmem:[%s3685] sm:$0x1]
        %v3688 = vlaneseq
        %v3689 = vshrl.u32 %v3688, 7
        %v3690 = vsub.s32 0, %v3689
        %v3691 = vrot.slane %v3686, %v3690
        %v3697 = vunpack.c.l.b16 %v3677
        %v3698 = vunpack.c.l.b16 %v3678
        %v3699 = vunpack.c.l.b16 %v3679
        %v3700 = vunpack.c.l.b16 %v3680
        %v3701 = vpack.c.b16 %v3698, %v3697
        %v3702 = vpack.c.b16 %v3700, %v3699
        %v3706 = vsel %vm859, %v3681, 0
        %v3709 = vsel %vm859, %v3682, 0
        %v3712 = vsel %vm859, %v3683, 0
        %v3715 = vsel %vm859, %v3684, 0
        %3717 = vmatprep.subr.bf16.mxu0 0
        %3718 = vmatpush1.bf16.msra.mxu0 %v3701
        %3719 = vmatprep.subr.bf16.mxu0 0
        %3720 = vmatpush1.bf16.msra.mxu0 %v3702
        %3721 = vmatprep.subr.bf16.mxu0 0
        %3722 = vmatpush1.bf16.msra.mxu0 0
        %3723 = vmatprep.subr.bf16.mxu0 0
        %3724 = vmatpush1.bf16.msra.mxu0 0
        %3725 = vmatprep.subr.bf16.mxu0 0
        %3726 = vmatpush1.bf16.msra.mxu0 0
        %3727 = vmatprep.subr.bf16.mxu0 0
        %3728 = vmatpush1.bf16.msra.mxu0 0
        %3729 = vmatprep.subr.bf16.mxu0 0
        %3730 = vmatpush1.bf16.msra.mxu0 0
        %3731 = vmatprep.subr.bf16.mxu0 0
        %3732 = vmatpush1.bf16.msra.mxu0 0
        %3733 = vmatprep.subr.bf16.mxu0 0
        %3734 = vmatpush1.bf16.msra.mxu0 0
        %3735 = vmatprep.subr.bf16.mxu0 0
        %3736 = vmatpush1.bf16.msra.mxu0 0
        %3737 = vmatprep.subr.bf16.mxu0 0
        %3738 = vmatpush1.bf16.msra.mxu0 0
        %3739 = vmatprep.subr.bf16.mxu0 0
        %3740 = vmatpush1.bf16.msra.mxu0 0
        %3741 = vmatprep.subr.bf16.mxu0 0
        %3742 = vmatpush1.bf16.msra.mxu0 0
        %3743 = vmatprep.subr.bf16.mxu0 0
        %3744 = vmatpush1.bf16.msra.mxu0 0
        %3745 = vmatprep.subr.bf16.mxu0 0
        %3746 = vmatpush1.bf16.msra.mxu0 0
        %3747 = vmatprep.subr.bf16.mxu0 0
        %3748 = vmatpush1.bf16.msra.mxu0 0
        %3749 = vmatprep.mubr.bf16.mxu0 0
        %3750 = vmatmul.mubr.bf16.gmra.mrb[0].mxu0 %v3706
        %v3751 = vpop.f32.mrb[0].mxu0
        %v3752 = vadd.f32 %v3691, %v3751
        %v3753 = vpop.f32.mrb[0].mxu0
        %v3754 = vpop.f32.mrb[0].mxu0
        %v3755 = vadd.f32 %v3691, %v3754
        %v3756 = vpop.f32.mrb[0].mxu0
        %3757 = vmatprep.mubr.bf16.mxu0 0
        %3758 = vmatmul.mubr.bf16.gmra.mrb[0].mxu0 %v3709
        %v3759 = vpop.f32.mrb[0].mxu0
        %v3760 = vadd.f32 %v3691, %v3759
        %v3761 = vpop.f32.mrb[0].mxu0
        %v3762 = vpop.f32.mrb[0].mxu0
        %v3763 = vadd.f32 %v3691, %v3762
        %v3764 = vpop.f32.mrb[0].mxu0
        %3765 = vmatprep.mubr.bf16.mxu0 0
        %3766 = vmatmul.mubr.bf16.gmra.mrb[0].mxu0 %v3712
        %v3767 = vpop.f32.mrb[0].mxu0
        %v3768 = vadd.f32 %v3691, %v3767
        %v3769 = vpop.f32.mrb[0].mxu0
        %v3770 = vpop.f32.mrb[0].mxu0
        %v3771 = vadd.f32 %v3691, %v3770
        %v3772 = vpop.f32.mrb[0].mxu0
        %3773 = vmatprep.mubr.bf16.mxu0 0
        %3774 = vmatmul.mubr.bf16.gmra.mrb[0].mxu0 %v3715
        %v3775 = vpop.f32.mrb[0].mxu0
        %v3776 = vadd.f32 %v3691, %v3775
        %v3777 = vpop.f32.mrb[0].mxu0
        %v3778 = vpop.f32.mrb[0].mxu0
        %v3779 = vadd.f32 %v3691, %v3778
        %v3780 = vpop.f32.mrb[0].mxu0
        %3781 = vdwg.mxu0
        %v3782 = vpack.c.bf16 %v3755, %v3752
        %v3783 = vpack.c.bf16 %v3763, %v3760
        %v3784 = vpack.c.bf16 %v3771, %v3768
        %v3785 = vpack.c.bf16 %v3779, %v3776
        %3790 = vrot.lane.b32.xlu0 %v3782, 96
        %v3791 = vpop.permute.xlu0 %3790
        %3792 = vrot.lane.b32.xlu0 %v3783, 96
        %v3793 = vpop.permute.xlu0 %3792
        %3794 = vrot.lane.b32.xlu0 %v3784, 96
        %v3795 = vpop.permute.xlu0 %3794
        %3796 = vrot.lane.b32.xlu0 %v3785, 96
        %v3797 = vpop.permute.xlu0 %3796
        %v3799 = vsel %vm1247, %v3782, 0
        %v3802 = vsel %vm1247, %v3783, 0
        %v3805 = vsel %vm1247, %v3784, 0
        %v3808 = vsel %vm1247, %v3785, 0
        %v3811 = vsel %vm1247, %v3791, 0
        %v3814 = vsel %vm1247, %v3793, 0
        %v3817 = vsel %vm1247, %v3795, 0
        %v3820 = vsel %vm1247, %v3797, 0
        %3822 = vmatprep.subr.bf16.mxu0 0
        %3823 = vmatpush1.bf16.xpose.msra.mxu0 %v3811
        %3824 = vmatprep.subr.bf16.mxu0 0
        %3825 = vmatpush1.bf16.xpose.msra.mxu0 %v3814
        %3826 = vmatprep.subr.bf16.mxu0 0
        %3827 = vmatpush1.bf16.xpose.msra.mxu0 %v3817
        %3828 = vmatprep.subr.bf16.mxu0 0
        %3829 = vmatpush1.bf16.xpose.msra.mxu0 %v3820
        %3830 = vmatprep.subr.bf16.mxu0 0
        %3831 = vmatpush1.bf16.xpose.msra.mxu0 0
        %3832 = vmatprep.subr.bf16.mxu0 0
        %3833 = vmatpush1.bf16.xpose.msra.mxu0 0
        %3834 = vmatprep.subr.bf16.mxu0 0
        %3835 = vmatpush1.bf16.xpose.msra.mxu0 0
        %3836 = vmatprep.subr.bf16.mxu0 0
        %3837 = vmatpush1.bf16.xpose.msra.mxu0 0
        %3838 = vmatprep.subr.bf16.mxu0 0
        %3839 = vmatpush1.bf16.xpose.msra.mxu0 0
        %3840 = vmatprep.subr.bf16.mxu0 0
        %3841 = vmatpush1.bf16.xpose.msra.mxu0 0
        %3842 = vmatprep.subr.bf16.mxu0 0
        %3843 = vmatpush1.bf16.xpose.msra.mxu0 0
        %3844 = vmatprep.subr.bf16.mxu0 0
        %3845 = vmatpush1.bf16.xpose.msra.mxu0 0
        %3846 = vmatprep.subr.bf16.mxu0 0
        %3847 = vmatpush1.bf16.xpose.msra.mxu0 0
        %3848 = vmatprep.subr.bf16.mxu0 0
        %3849 = vmatpush1.bf16.xpose.msra.mxu0 0
        %3850 = vmatprep.subr.bf16.mxu0 0
        %3851 = vmatpush1.bf16.xpose.msra.mxu0 0
        %3852 = vmatprep.subr.bf16.mxu0 0
        %3853 = vmatpush1.bf16.xpose.msra.mxu0 0
        %3854 = vmatprep.mubr.bf16.mxu0 0
        %3855 = vmatmul.mubr.bf16.gmra.mrb[0].mxu0 %v3799
        %v3856 = vpop.f32.mrb[0].mxu0
        %v3857 = vadd.f32 0.0, %v3856
        %v3858 = vpop.f32.mrb[0].mxu0
        %v3859 = vpop.f32.mrb[0].mxu0
        %v3860 = vadd.f32 0.0, %v3859
        %v3861 = vpop.f32.mrb[0].mxu0
        %3862 = vmatprep.mubr.bf16.mxu0 0
        %3863 = vmatmul.mubr.bf16.gmra.mrb[0].mxu0 %v3802
        %v3864 = vpop.f32.mrb[0].mxu0
        %v3865 = vadd.f32 0.0, %v3864
        %v3866 = vpop.f32.mrb[0].mxu0
        %v3867 = vpop.f32.mrb[0].mxu0
        %v3868 = vadd.f32 0.0, %v3867
        %v3869 = vpop.f32.mrb[0].mxu0
        %3870 = vmatprep.mubr.bf16.mxu0 0
        %3871 = vmatmul.mubr.bf16.gmra.mrb[0].mxu0 %v3805
        %v3872 = vpop.f32.mrb[0].mxu0
        %v3873 = vadd.f32 0.0, %v3872
        %v3874 = vpop.f32.mrb[0].mxu0
        %v3875 = vpop.f32.mrb[0].mxu0
        %v3876 = vadd.f32 0.0, %v3875
        %v3877 = vpop.f32.mrb[0].mxu0
        %3878 = vmatprep.mubr.bf16.mxu0 0
        %3879 = vmatmul.mubr.bf16.gmra.mrb[0].mxu0 %v3808
        %v3880 = vpop.f32.mrb[0].mxu0
        %v3881 = vadd.f32 0.0, %v3880
        %v3882 = vpop.f32.mrb[0].mxu0
        %v3883 = vpop.f32.mrb[0].mxu0
        %v3884 = vadd.f32 0.0, %v3883
        %v3885 = vpop.f32.mrb[0].mxu0
        %3886 = vdwg.mxu0
        %v3887 = vmul.f32 %v3857, 0.35355338
        %v3888 = vmul.f32 %v3860, 0.35355338
        %v3889 = vmul.f32 %v3865, 0.35355338
        %v3890 = vmul.f32 %v3868, 0.35355338
        %v3891 = vmul.f32 %v3873, 0.35355338
        %v3892 = vmul.f32 %v3876, 0.35355338
        %v3893 = vmul.f32 %v3881, 0.35355338
        %v3894 = vmul.f32 %v3884, 0.35355338
        %v3895 = vsel %vm1345, %v3887, -inf
        %3896 = vmax.xlane.f32.xlu0 %v3895
        %v3897 = vpop.xlane.xlu0 %3896
        %v3898 = vsel %vm1345, %v3888, -inf
        %3899 = vmax.xlane.f32.xlu0 %v3898
        %v3900 = vpop.xlane.xlu0 %3899
        %v3901 = vsel %vm1345, %v3889, -inf
        %3902 = vmax.xlane.f32.xlu0 %v3901
        %v3903 = vpop.xlane.xlu0 %3902
        %v3904 = vsel %vm1345, %v3890, -inf
        %3905 = vmax.xlane.f32.xlu0 %v3904
        %v3906 = vpop.xlane.xlu0 %3905
        %v3907 = vsel %vm1345, %v3891, -inf
        %3908 = vmax.xlane.f32.xlu0 %v3907
        %v3909 = vpop.xlane.xlu0 %3908
        %v3910 = vsel %vm1345, %v3892, -inf
        %3911 = vmax.xlane.f32.xlu0 %v3910
        %v3912 = vpop.xlane.xlu0 %3911
        %v3913 = vsel %vm1345, %v3893, -inf
        %3914 = vmax.xlane.f32.xlu0 %v3913
        %v3915 = vpop.xlane.xlu0 %3914
        %v3916 = vsel %vm1345, %v3894, -inf
        %3917 = vmax.xlane.f32.xlu0 %v3916
        %v3918 = vpop.xlane.xlu0 %3917
        %v3919 = vsub.f32 %v3887, %v3897
        %v3920 = vsub.f32 %v3888, %v3900
        %v3921 = vsub.f32 %v3889, %v3903
        %v3922 = vsub.f32 %v3890, %v3906
        %v3923 = vsub.f32 %v3891, %v3909
        %v3924 = vsub.f32 %v3892, %v3912
        %v3925 = vsub.f32 %v3893, %v3915
        %v3926 = vsub.f32 %v3894, %v3918
        %v3927 = vmul.f32 %v3919, 1.442695
        %v3928 = vpow.pop %v3927
        %v3929 = vmul.f32 %v3920, 1.442695
        %v3930 = vpow.pop %v3929
        %v3931 = vmul.f32 %v3921, 1.442695
        %v3932 = vpow.pop %v3931
        %v3933 = vmul.f32 %v3922, 1.442695
        %v3934 = vpow.pop %v3933
        %v3935 = vmul.f32 %v3923, 1.442695
        %v3936 = vpow.pop %v3935
        %v3937 = vmul.f32 %v3924, 1.442695
        %v3938 = vpow.pop %v3937
        %v3939 = vmul.f32 %v3925, 1.442695
        %v3940 = vpow.pop %v3939
        %v3941 = vmul.f32 %v3926, 1.442695
        %v3942 = vpow.pop %v3941
        %v3943 = vsel %vm1345, %v3928, 0.0
        %3944 = vadd.xlane.f32.xlu0 %v3943
        %v3945 = vpop.xlane.xlu0 %3944
        %v3946 = vsel %vm1345, %v3930, 0.0
        %3947 = vadd.xlane.f32.xlu0 %v3946
        %v3948 = vpop.xlane.xlu0 %3947
        %v3949 = vsel %vm1345, %v3932, 0.0
        %3950 = vadd.xlane.f32.xlu0 %v3949
        %v3951 = vpop.xlane.xlu0 %3950
        %v3952 = vsel %vm1345, %v3934, 0.0
        %3953 = vadd.xlane.f32.xlu0 %v3952
        %v3954 = vpop.xlane.xlu0 %3953
        %v3955 = vsel %vm1345, %v3936, 0.0
        %3956 = vadd.xlane.f32.xlu0 %v3955
        %v3957 = vpop.xlane.xlu0 %3956
        %v3958 = vsel %vm1345, %v3938, 0.0
        %3959 = vadd.xlane.f32.xlu0 %v3958
        %v3960 = vpop.xlane.xlu0 %3959
        %v3961 = vsel %vm1345, %v3940, 0.0
        %3962 = vadd.xlane.f32.xlu0 %v3961
        %v3963 = vpop.xlane.xlu0 %3962
        %v3964 = vsel %vm1345, %v3942, 0.0
        %3965 = vadd.xlane.f32.xlu0 %v3964
        %v3966 = vpop.xlane.xlu0 %3965
        %v3967 = vrcp.pop %v3945
        %v3968 = vrcp.pop %v3948
        %v3969 = vrcp.pop %v3951
        %v3970 = vrcp.pop %v3954
        %v3971 = vrcp.pop %v3957
        %v3972 = vrcp.pop %v3960
        %v3973 = vrcp.pop %v3963
        %v3974 = vrcp.pop %v3966
        %v3975 = vmul.f32 %v3928, %v3967
        %v3976 = vmul.f32 %v3930, %v3968
        %v3977 = vmul.f32 %v3932, %v3969
        %v3978 = vmul.f32 %v3934, %v3970
        %v3979 = vmul.f32 %v3936, %v3971
        %v3980 = vmul.f32 %v3938, %v3972
        %v3981 = vmul.f32 %v3940, %v3973
        %v3982 = vmul.f32 %v3942, %v3974
        %v3983 = vpack.c.bf16 %v3976, %v3975
        %v3984 = vpack.c.bf16 %v3978, %v3977
        %v3985 = vpack.c.bf16 %v3980, %v3979
        %v3986 = vpack.c.bf16 %v3982, %v3981
        %3987 = vrot.lane.b32.xlu0 %v3782, 64
        %v3988 = vpop.permute.xlu0 %3987
        %3989 = vrot.lane.b32.xlu0 %v3783, 64
        %v3990 = vpop.permute.xlu0 %3989
        %3991 = vrot.lane.b32.xlu0 %v3784, 64
        %v3992 = vpop.permute.xlu0 %3991
        %3993 = vrot.lane.b32.xlu0 %v3785, 64
        %v3994 = vpop.permute.xlu0 %3993
        %v4000 = vsel %vm1345, %v3983, 0
        %v4003 = vsel %vm1345, %v3984, 0
        %v4006 = vsel %vm1345, %v3985, 0
        %v4009 = vsel %vm1345, %v3986, 0
        %4011 = vmatprep.subr.bf16.mxu0 0
        %4012 = vmatpush1.bf16.msra.mxu0 %v3988
        %4013 = vmatprep.subr.bf16.mxu0 0
        %4014 = vmatpush1.bf16.msra.mxu0 %v3990
        %4015 = vmatprep.subr.bf16.mxu0 0
        %4016 = vmatpush1.bf16.msra.mxu0 %v3992
        %4017 = vmatprep.subr.bf16.mxu0 0
        %4018 = vmatpush1.bf16.msra.mxu0 %v3994
        %4019 = vmatprep.subr.bf16.mxu0 0
        %4020 = vmatpush1.bf16.msra.mxu0 0
        %4021 = vmatprep.subr.bf16.mxu0 0
        %4022 = vmatpush1.bf16.msra.mxu0 0
        %4023 = vmatprep.subr.bf16.mxu0 0
        %4024 = vmatpush1.bf16.msra.mxu0 0
        %4025 = vmatprep.subr.bf16.mxu0 0
        %4026 = vmatpush1.bf16.msra.mxu0 0
        %4027 = vmatprep.subr.bf16.mxu0 0
        %4028 = vmatpush1.bf16.msra.mxu0 0
        %4029 = vmatprep.subr.bf16.mxu0 0
        %4030 = vmatpush1.bf16.msra.mxu0 0
        %4031 = vmatprep.subr.bf16.mxu0 0
        %4032 = vmatpush1.bf16.msra.mxu0 0
        %4033 = vmatprep.subr.bf16.mxu0 0
        %4034 = vmatpush1.bf16.msra.mxu0 0
        %4035 = vmatprep.subr.bf16.mxu0 0
        %4036 = vmatpush1.bf16.msra.mxu0 0
        %4037 = vmatprep.subr.bf16.mxu0 0
        %4038 = vmatpush1.bf16.msra.mxu0 0
        %4039 = vmatprep.subr.bf16.mxu0 0
        %4040 = vmatpush1.bf16.msra.mxu0 0
        %4041 = vmatprep.subr.bf16.mxu0 0
        %4042 = vmatpush1.bf16.msra.mxu0 0
        %4043 = vmatprep.mubr.bf16.mxu0 0
        %4044 = vmatmul.mubr.bf16.gmra.mrb[0].mxu0 %v4000
        %v4045 = vpop.f32.mrb[0].mxu0
        %v4046 = vadd.f32 0.0, %v4045
        %v4047 = vpop.f32.mrb[0].mxu0
        %v4048 = vpop.f32.mrb[0].mxu0
        %v4049 = vadd.f32 0.0, %v4048
        %v4050 = vpop.f32.mrb[0].mxu0
        %4051 = vmatprep.mubr.bf16.mxu0 0
        %4052 = vmatmul.mubr.bf16.gmra.mrb[0].mxu0 %v4003
        %v4053 = vpop.f32.mrb[0].mxu0
        %v4054 = vadd.f32 0.0, %v4053
        %v4055 = vpop.f32.mrb[0].mxu0
        %v4056 = vpop.f32.mrb[0].mxu0
        %v4057 = vadd.f32 0.0, %v4056
        %v4058 = vpop.f32.mrb[0].mxu0
        %4059 = vmatprep.mubr.bf16.mxu0 0
        %4060 = vmatmul.mubr.bf16.gmra.mrb[0].mxu0 %v4006
        %v4061 = vpop.f32.mrb[0].mxu0
        %v4062 = vadd.f32 0.0, %v4061
        %v4063 = vpop.f32.mrb[0].mxu0
        %v4064 = vpop.f32.mrb[0].mxu0
        %v4065 = vadd.f32 0.0, %v4064
        %v4066 = vpop.f32.mrb[0].mxu0
        %4067 = vmatprep.mubr.bf16.mxu0 0
        %4068 = vmatmul.mubr.bf16.gmra.mrb[0].mxu0 %v4009
        %v4069 = vpop.f32.mrb[0].mxu0
        %v4070 = vadd.f32 0.0, %v4069
        %v4071 = vpop.f32.mrb[0].mxu0
        %v4072 = vpop.f32.mrb[0].mxu0
        %v4073 = vadd.f32 0.0, %v4072
        %v4074 = vpop.f32.mrb[0].mxu0
        %4075 = vdwg.mxu0
        %4076 = vrot.lane.b32.xlu0 %v3782, 120
        %v4077 = vpop.permute.xlu0 %4076
        %4078 = vrot.lane.b32.xlu0 %v3783, 120
        %v4079 = vpop.permute.xlu0 %4078
        %4080 = vrot.lane.b32.xlu0 %v3784, 120
        %v4081 = vpop.permute.xlu0 %4080
        %4082 = vrot.lane.b32.xlu0 %v3785, 120
        %v4083 = vpop.permute.xlu0 %4082
        %4084 = vrot.lane.b32.xlu0 %v3782, 88
        %v4085 = vpop.permute.xlu0 %4084
        %4086 = vrot.lane.b32.xlu0 %v3783, 88
        %v4087 = vpop.permute.xlu0 %4086
        %4088 = vrot.lane.b32.xlu0 %v3784, 88
        %v4089 = vpop.permute.xlu0 %4088
        %4090 = vrot.lane.b32.xlu0 %v3785, 88
        %v4091 = vpop.permute.xlu0 %4090
        %v4093 = vsel %vm1247, %v4077, 0
        %v4096 = vsel %vm1247, %v4079, 0
        %v4099 = vsel %vm1247, %v4081, 0
        %v4102 = vsel %vm1247, %v4083, 0
        %v4105 = vsel %vm1247, %v4085, 0
        %v4108 = vsel %vm1247, %v4087, 0
        %v4111 = vsel %vm1247, %v4089, 0
        %v4114 = vsel %vm1247, %v4091, 0
        %4116 = vmatprep.subr.bf16.mxu0 0
        %4117 = vmatpush1.bf16.xpose.msra.mxu0 %v4105
        %4118 = vmatprep.subr.bf16.mxu0 0
        %4119 = vmatpush1.bf16.xpose.msra.mxu0 %v4108
        %4120 = vmatprep.subr.bf16.mxu0 0
        %4121 = vmatpush1.bf16.xpose.msra.mxu0 %v4111
        %4122 = vmatprep.subr.bf16.mxu0 0
        %4123 = vmatpush1.bf16.xpose.msra.mxu0 %v4114
        %4124 = vmatprep.subr.bf16.mxu0 0
        %4125 = vmatpush1.bf16.xpose.msra.mxu0 0
        %4126 = vmatprep.subr.bf16.mxu0 0
        %4127 = vmatpush1.bf16.xpose.msra.mxu0 0
        %4128 = vmatprep.subr.bf16.mxu0 0
        %4129 = vmatpush1.bf16.xpose.msra.mxu0 0
        %4130 = vmatprep.subr.bf16.mxu0 0
        %4131 = vmatpush1.bf16.xpose.msra.mxu0 0
        %4132 = vmatprep.subr.bf16.mxu0 0
        %4133 = vmatpush1.bf16.xpose.msra.mxu0 0
        %4134 = vmatprep.subr.bf16.mxu0 0
        %4135 = vmatpush1.bf16.xpose.msra.mxu0 0
        %4136 = vmatprep.subr.bf16.mxu0 0
        %4137 = vmatpush1.bf16.xpose.msra.mxu0 0
        %4138 = vmatprep.subr.bf16.mxu0 0
        %4139 = vmatpush1.bf16.xpose.msra.mxu0 0
        %4140 = vmatprep.subr.bf16.mxu0 0
        %4141 = vmatpush1.bf16.xpose.msra.mxu0 0
        %4142 = vmatprep.subr.bf16.mxu0 0
        %4143 = vmatpush1.bf16.xpose.msra.mxu0 0
        %4144 = vmatprep.subr.bf16.mxu0 0
        %4145 = vmatpush1.bf16.xpose.msra.mxu0 0
        %4146 = vmatprep.subr.bf16.mxu0 0
        %4147 = vmatpush1.bf16.xpose.msra.mxu0 0
        %4148 = vmatprep.mubr.bf16.mxu0 0
        %4149 = vmatmul.mubr.bf16.gmra.mrb[0].mxu0 %v4093
        %v4150 = vpop.f32.mrb[0].mxu0
        %v4151 = vadd.f32 0.0, %v4150
        %v4152 = vpop.f32.mrb[0].mxu0
        %v4153 = vpop.f32.mrb[0].mxu0
        %v4154 = vadd.f32 0.0, %v4153
        %v4155 = vpop.f32.mrb[0].mxu0
        %4156 = vmatprep.mubr.bf16.mxu0 0
        %4157 = vmatmul.mubr.bf16.gmra.mrb[0].mxu0 %v4096
        %v4158 = vpop.f32.mrb[0].mxu0
        %v4159 = vadd.f32 0.0, %v4158
        %v4160 = vpop.f32.mrb[0].mxu0
        %v4161 = vpop.f32.mrb[0].mxu0
        %v4162 = vadd.f32 0.0, %v4161
        %v4163 = vpop.f32.mrb[0].mxu0
        %4164 = vmatprep.mubr.bf16.mxu0 0
        %4165 = vmatmul.mubr.bf16.gmra.mrb[0].mxu0 %v4099
        %v4166 = vpop.f32.mrb[0].mxu0
        %v4167 = vadd.f32 0.0, %v4166
        %v4168 = vpop.f32.mrb[0].mxu0
        %v4169 = vpop.f32.mrb[0].mxu0
        %v4170 = vadd.f32 0.0, %v4169
        %v4171 = vpop.f32.mrb[0].mxu0
        %4172 = vmatprep.mubr.bf16.mxu0 0
        %4173 = vmatmul.mubr.bf16.gmra.mrb[0].mxu0 %v4102
        %v4174 = vpop.f32.mrb[0].mxu0
        %v4175 = vadd.f32 0.0, %v4174
        %v4176 = vpop.f32.mrb[0].mxu0
        %v4177 = vpop.f32.mrb[0].mxu0
        %v4178 = vadd.f32 0.0, %v4177
        %v4179 = vpop.f32.mrb[0].mxu0
        %4180 = vdwg.mxu0
        %v4181 = vmul.f32 %v4151, 0.35355338
        %v4182 = vmul.f32 %v4154, 0.35355338
        %v4183 = vmul.f32 %v4159, 0.35355338
        %v4184 = vmul.f32 %v4162, 0.35355338
        %v4185 = vmul.f32 %v4167, 0.35355338
        %v4186 = vmul.f32 %v4170, 0.35355338
        %v4187 = vmul.f32 %v4175, 0.35355338
        %v4188 = vmul.f32 %v4178, 0.35355338
        %v4189 = vsel %vm1345, %v4181, -inf
        %4190 = vmax.xlane.f32.xlu0 %v4189
        %v4191 = vpop.xlane.xlu0 %4190
        %v4192 = vsel %vm1345, %v4182, -inf
        %4193 = vmax.xlane.f32.xlu0 %v4192
        %v4194 = vpop.xlane.xlu0 %4193
        %v4195 = vsel %vm1345, %v4183, -inf
        %4196 = vmax.xlane.f32.xlu0 %v4195
        %v4197 = vpop.xlane.xlu0 %4196
        %v4198 = vsel %vm1345, %v4184, -inf
        %4199 = vmax.xlane.f32.xlu0 %v4198
        %v4200 = vpop.xlane.xlu0 %4199
        %v4201 = vsel %vm1345, %v4185, -inf
        %4202 = vmax.xlane.f32.xlu0 %v4201
        %v4203 = vpop.xlane.xlu0 %4202
        %v4204 = vsel %vm1345, %v4186, -inf
        %4205 = vmax.xlane.f32.xlu0 %v4204
        %v4206 = vpop.xlane.xlu0 %4205
        %v4207 = vsel %vm1345, %v4187, -inf
        %4208 = vmax.xlane.f32.xlu0 %v4207
        %v4209 = vpop.xlane.xlu0 %4208
        %v4210 = vsel %vm1345, %v4188, -inf
        %4211 = vmax.xlane.f32.xlu0 %v4210
        %v4212 = vpop.xlane.xlu0 %4211
        %v4213 = vsub.f32 %v4181, %v4191
        %v4214 = vsub.f32 %v4182, %v4194
        %v4215 = vsub.f32 %v4183, %v4197
        %v4216 = vsub.f32 %v4184, %v4200
        %v4217 = vsub.f32 %v4185, %v4203
        %v4218 = vsub.f32 %v4186, %v4206
        %v4219 = vsub.f32 %v4187, %v4209
        %v4220 = vsub.f32 %v4188, %v4212
        %v4221 = vmul.f32 %v4213, 1.442695
        %v4222 = vpow.pop %v4221
        %v4223 = vmul.f32 %v4214, 1.442695
        %v4224 = vpow.pop %v4223
        %v4225 = vmul.f32 %v4215, 1.442695
        %v4226 = vpow.pop %v4225
        %v4227 = vmul.f32 %v4216, 1.442695
        %v4228 = vpow.pop %v4227
        %v4229 = vmul.f32 %v4217, 1.442695
        %v4230 = vpow.pop %v4229
        %v4231 = vmul.f32 %v4218, 1.442695
        %v4232 = vpow.pop %v4231
        %v4233 = vmul.f32 %v4219, 1.442695
        %v4234 = vpow.pop %v4233
        %v4235 = vmul.f32 %v4220, 1.442695
        %v4236 = vpow.pop %v4235
        %v4237 = vsel %vm1345, %v4222, 0.0
        %4238 = vadd.xlane.f32.xlu0 %v4237
        %v4239 = vpop.xlane.xlu0 %4238
        %v4240 = vsel %vm1345, %v4224, 0.0
        %4241 = vadd.xlane.f32.xlu0 %v4240
        %v4242 = vpop.xlane.xlu0 %4241
        %v4243 = vsel %vm1345, %v4226, 0.0
        %4244 = vadd.xlane.f32.xlu0 %v4243
        %v4245 = vpop.xlane.xlu0 %4244
        %v4246 = vsel %vm1345, %v4228, 0.0
        %4247 = vadd.xlane.f32.xlu0 %v4246
        %v4248 = vpop.xlane.xlu0 %4247
        %v4249 = vsel %vm1345, %v4230, 0.0
        %4250 = vadd.xlane.f32.xlu0 %v4249
        %v4251 = vpop.xlane.xlu0 %4250
        %v4252 = vsel %vm1345, %v4232, 0.0
        %4253 = vadd.xlane.f32.xlu0 %v4252
        %v4254 = vpop.xlane.xlu0 %4253
        %v4255 = vsel %vm1345, %v4234, 0.0
        %4256 = vadd.xlane.f32.xlu0 %v4255
        %v4257 = vpop.xlane.xlu0 %4256
        %v4258 = vsel %vm1345, %v4236, 0.0
        %4259 = vadd.xlane.f32.xlu0 %v4258
        %v4260 = vpop.xlane.xlu0 %4259
        %v4261 = vrcp.pop %v4239
        %v4262 = vrcp.pop %v4242
        %v4263 = vrcp.pop %v4245
        %v4264 = vrcp.pop %v4248
        %v4265 = vrcp.pop %v4251
        %v4266 = vrcp.pop %v4254
        %v4267 = vrcp.pop %v4257
        %v4268 = vrcp.pop %v4260
        %v4269 = vmul.f32 %v4222, %v4261
        %v4270 = vmul.f32 %v4224, %v4262
        %v4271 = vmul.f32 %v4226, %v4263
        %v4272 = vmul.f32 %v4228, %v4264
        %v4273 = vmul.f32 %v4230, %v4265
        %v4274 = vmul.f32 %v4232, %v4266
        %v4275 = vmul.f32 %v4234, %v4267
        %v4276 = vmul.f32 %v4236, %v4268
        %v4277 = vpack.c.bf16 %v4270, %v4269
        %v4278 = vpack.c.bf16 %v4272, %v4271
        %v4279 = vpack.c.bf16 %v4274, %v4273
        %v4280 = vpack.c.bf16 %v4276, %v4275
        %4281 = vrot.lane.b32.xlu0 %v3782, 56
        %v4282 = vpop.permute.xlu0 %4281
        %4283 = vrot.lane.b32.xlu0 %v3783, 56
        %v4284 = vpop.permute.xlu0 %4283
        %4285 = vrot.lane.b32.xlu0 %v3784, 56
        %v4286 = vpop.permute.xlu0 %4285
        %4287 = vrot.lane.b32.xlu0 %v3785, 56
        %v4288 = vpop.permute.xlu0 %4287
        %v4294 = vsel %vm1345, %v4277, 0
        %v4297 = vsel %vm1345, %v4278, 0
        %v4300 = vsel %vm1345, %v4279, 0
        %v4303 = vsel %vm1345, %v4280, 0
        %4305 = vmatprep.subr.bf16.mxu0 0
        %4306 = vmatpush1.bf16.msra.mxu0 %v4282
        %4307 = vmatprep.subr.bf16.mxu0 0
        %4308 = vmatpush1.bf16.msra.mxu0 %v4284
        %4309 = vmatprep.subr.bf16.mxu0 0
        %4310 = vmatpush1.bf16.msra.mxu0 %v4286
        %4311 = vmatprep.subr.bf16.mxu0 0
        %4312 = vmatpush1.bf16.msra.mxu0 %v4288
        %4313 = vmatprep.subr.bf16.mxu0 0
        %4314 = vmatpush1.bf16.msra.mxu0 0
        %4315 = vmatprep.subr.bf16.mxu0 0
        %4316 = vmatpush1.bf16.msra.mxu0 0
        %4317 = vmatprep.subr.bf16.mxu0 0
        %4318 = vmatpush1.bf16.msra.mxu0 0
        %4319 = vmatprep.subr.bf16.mxu0 0
        %4320 = vmatpush1.bf16.msra.mxu0 0
        %4321 = vmatprep.subr.bf16.mxu0 0
        %4322 = vmatpush1.bf16.msra.mxu0 0
        %4323 = vmatprep.subr.bf16.mxu0 0
        %4324 = vmatpush1.bf16.msra.mxu0 0
        %4325 = vmatprep.subr.bf16.mxu0 0
        %4326 = vmatpush1.bf16.msra.mxu0 0
        %4327 = vmatprep.subr.bf16.mxu0 0
        %4328 = vmatpush1.bf16.msra.mxu0 0
        %4329 = vmatprep.subr.bf16.mxu0 0
        %4330 = vmatpush1.bf16.msra.mxu0 0
        %4331 = vmatprep.subr.bf16.mxu0 0
        %4332 = vmatpush1.bf16.msra.mxu0 0
        %4333 = vmatprep.subr.bf16.mxu0 0
        %4334 = vmatpush1.bf16.msra.mxu0 0
        %4335 = vmatprep.subr.bf16.mxu0 0
        %4336 = vmatpush1.bf16.msra.mxu0 0
        %4337 = vmatprep.mubr.bf16.mxu0 0
        %4338 = vmatmul.mubr.bf16.gmra.mrb[0].mxu0 %v4294
        %v4339 = vpop.f32.mrb[0].mxu0
        %v4340 = vadd.f32 0.0, %v4339
        %v4341 = vpop.f32.mrb[0].mxu0
        %v4342 = vpop.f32.mrb[0].mxu0
        %v4343 = vadd.f32 0.0, %v4342
        %v4344 = vpop.f32.mrb[0].mxu0
        %4345 = vmatprep.mubr.bf16.mxu0 0
        %4346 = vmatmul.mubr.bf16.gmra.mrb[0].mxu0 %v4297
        %v4347 = vpop.f32.mrb[0].mxu0
        %v4348 = vadd.f32 0.0, %v4347
        %v4349 = vpop.f32.mrb[0].mxu0
        %v4350 = vpop.f32.mrb[0].mxu0
        %v4351 = vadd.f32 0.0, %v4350
        %v4352 = vpop.f32.mrb[0].mxu0
        %4353 = vmatprep.mubr.bf16.mxu0 0
        %4354 = vmatmul.mubr.bf16.gmra.mrb[0].mxu0 %v4300
        %v4355 = vpop.f32.mrb[0].mxu0
        %v4356 = vadd.f32 0.0, %v4355
        %v4357 = vpop.f32.mrb[0].mxu0
        %v4358 = vpop.f32.mrb[0].mxu0
        %v4359 = vadd.f32 0.0, %v4358
        %v4360 = vpop.f32.mrb[0].mxu0
        %4361 = vmatprep.mubr.bf16.mxu0 0
        %4362 = vmatmul.mubr.bf16.gmra.mrb[0].mxu0 %v4303
        %v4363 = vpop.f32.mrb[0].mxu0
        %v4364 = vadd.f32 0.0, %v4363
        %v4365 = vpop.f32.mrb[0].mxu0
        %v4366 = vpop.f32.mrb[0].mxu0
        %v4367 = vadd.f32 0.0, %v4366
        %v4368 = vpop.f32.mrb[0].mxu0
        %4369 = vdwg.mxu0
        %4370 = vrot.lane.b32.xlu0 %v3782, 112
        %v4371 = vpop.permute.xlu0 %4370
        %4372 = vrot.lane.b32.xlu0 %v3783, 112
        %v4373 = vpop.permute.xlu0 %4372
        %4374 = vrot.lane.b32.xlu0 %v3784, 112
        %v4375 = vpop.permute.xlu0 %4374
        %4376 = vrot.lane.b32.xlu0 %v3785, 112
        %v4377 = vpop.permute.xlu0 %4376
        %4378 = vrot.lane.b32.xlu0 %v3782, 80
        %v4379 = vpop.permute.xlu0 %4378
        %4380 = vrot.lane.b32.xlu0 %v3783, 80
        %v4381 = vpop.permute.xlu0 %4380
        %4382 = vrot.lane.b32.xlu0 %v3784, 80
        %v4383 = vpop.permute.xlu0 %4382
        %4384 = vrot.lane.b32.xlu0 %v3785, 80
        %v4385 = vpop.permute.xlu0 %4384
        %v4387 = vsel %vm1247, %v4371, 0
        %v4390 = vsel %vm1247, %v4373, 0
        %v4393 = vsel %vm1247, %v4375, 0
        %v4396 = vsel %vm1247, %v4377, 0
        %v4399 = vsel %vm1247, %v4379, 0
        %v4402 = vsel %vm1247, %v4381, 0
        %v4405 = vsel %vm1247, %v4383, 0
        %v4408 = vsel %vm1247, %v4385, 0
        %4410 = vmatprep.subr.bf16.mxu0 0
        %4411 = vmatpush1.bf16.xpose.msra.mxu0 %v4399
        %4412 = vmatprep.subr.bf16.mxu0 0
        %4413 = vmatpush1.bf16.xpose.msra.mxu0 %v4402
        %4414 = vmatprep.subr.bf16.mxu0 0
        %4415 = vmatpush1.bf16.xpose.msra.mxu0 %v4405
        %4416 = vmatprep.subr.bf16.mxu0 0
        %4417 = vmatpush1.bf16.xpose.msra.mxu0 %v4408
        %4418 = vmatprep.subr.bf16.mxu0 0
        %4419 = vmatpush1.bf16.xpose.msra.mxu0 0
        %4420 = vmatprep.subr.bf16.mxu0 0
        %4421 = vmatpush1.bf16.xpose.msra.mxu0 0
        %4422 = vmatprep.subr.bf16.mxu0 0
        %4423 = vmatpush1.bf16.xpose.msra.mxu0 0
        %4424 = vmatprep.subr.bf16.mxu0 0
        %4425 = vmatpush1.bf16.xpose.msra.mxu0 0
        %4426 = vmatprep.subr.bf16.mxu0 0
        %4427 = vmatpush1.bf16.xpose.msra.mxu0 0
        %4428 = vmatprep.subr.bf16.mxu0 0
        %4429 = vmatpush1.bf16.xpose.msra.mxu0 0
        %4430 = vmatprep.subr.bf16.mxu0 0
        %4431 = vmatpush1.bf16.xpose.msra.mxu0 0
        %4432 = vmatprep.subr.bf16.mxu0 0
        %4433 = vmatpush1.bf16.xpose.msra.mxu0 0
        %4434 = vmatprep.subr.bf16.mxu0 0
        %4435 = vmatpush1.bf16.xpose.msra.mxu0 0
        %4436 = vmatprep.subr.bf16.mxu0 0
        %4437 = vmatpush1.bf16.xpose.msra.mxu0 0
        %4438 = vmatprep.subr.bf16.mxu0 0
        %4439 = vmatpush1.bf16.xpose.msra.mxu0 0
        %4440 = vmatprep.subr.bf16.mxu0 0
        %4441 = vmatpush1.bf16.xpose.msra.mxu0 0
        %4442 = vmatprep.mubr.bf16.mxu0 0
        %4443 = vmatmul.mubr.bf16.gmra.mrb[0].mxu0 %v4387
        %v4444 = vpop.f32.mrb[0].mxu0
        %v4445 = vadd.f32 0.0, %v4444
        %v4446 = vpop.f32.mrb[0].mxu0
        %v4447 = vpop.f32.mrb[0].mxu0
        %v4448 = vadd.f32 0.0, %v4447
        %v4449 = vpop.f32.mrb[0].mxu0
        %4450 = vmatprep.mubr.bf16.mxu0 0
        %4451 = vmatmul.mubr.bf16.gmra.mrb[0].mxu0 %v4390
        %v4452 = vpop.f32.mrb[0].mxu0
        %v4453 = vadd.f32 0.0, %v4452
        %v4454 = vpop.f32.mrb[0].mxu0
        %v4455 = vpop.f32.mrb[0].mxu0
        %v4456 = vadd.f32 0.0, %v4455
        %v4457 = vpop.f32.mrb[0].mxu0
        %4458 = vmatprep.mubr.bf16.mxu0 0
        %4459 = vmatmul.mubr.bf16.gmra.mrb[0].mxu0 %v4393
        %v4460 = vpop.f32.mrb[0].mxu0
        %v4461 = vadd.f32 0.0, %v4460
        %v4462 = vpop.f32.mrb[0].mxu0
        %v4463 = vpop.f32.mrb[0].mxu0
        %v4464 = vadd.f32 0.0, %v4463
        %v4465 = vpop.f32.mrb[0].mxu0
        %4466 = vmatprep.mubr.bf16.mxu0 0
        %4467 = vmatmul.mubr.bf16.gmra.mrb[0].mxu0 %v4396
        %v4468 = vpop.f32.mrb[0].mxu0
        %v4469 = vadd.f32 0.0, %v4468
        %v4470 = vpop.f32.mrb[0].mxu0
        %v4471 = vpop.f32.mrb[0].mxu0
        %v4472 = vadd.f32 0.0, %v4471
        %v4473 = vpop.f32.mrb[0].mxu0
        %4474 = vdwg.mxu0
        %v4475 = vmul.f32 %v4445, 0.35355338
        %v4476 = vmul.f32 %v4448, 0.35355338
        %v4477 = vmul.f32 %v4453, 0.35355338
        %v4478 = vmul.f32 %v4456, 0.35355338
        %v4479 = vmul.f32 %v4461, 0.35355338
        %v4480 = vmul.f32 %v4464, 0.35355338
        %v4481 = vmul.f32 %v4469, 0.35355338
        %v4482 = vmul.f32 %v4472, 0.35355338
        %v4483 = vsel %vm1345, %v4475, -inf
        %4484 = vmax.xlane.f32.xlu0 %v4483
        %v4485 = vpop.xlane.xlu0 %4484
        %v4486 = vsel %vm1345, %v4476, -inf
        %4487 = vmax.xlane.f32.xlu0 %v4486
        %v4488 = vpop.xlane.xlu0 %4487
        %v4489 = vsel %vm1345, %v4477, -inf
        %4490 = vmax.xlane.f32.xlu0 %v4489
        %v4491 = vpop.xlane.xlu0 %4490
        %v4492 = vsel %vm1345, %v4478, -inf
        %4493 = vmax.xlane.f32.xlu0 %v4492
        %v4494 = vpop.xlane.xlu0 %4493
        %v4495 = vsel %vm1345, %v4479, -inf
        %4496 = vmax.xlane.f32.xlu0 %v4495
        %v4497 = vpop.xlane.xlu0 %4496
        %v4498 = vsel %vm1345, %v4480, -inf
        %4499 = vmax.xlane.f32.xlu0 %v4498
        %v4500 = vpop.xlane.xlu0 %4499
        %v4501 = vsel %vm1345, %v4481, -inf
        %4502 = vmax.xlane.f32.xlu0 %v4501
        %v4503 = vpop.xlane.xlu0 %4502
        %v4504 = vsel %vm1345, %v4482, -inf
        %4505 = vmax.xlane.f32.xlu0 %v4504
        %v4506 = vpop.xlane.xlu0 %4505
        %v4507 = vsub.f32 %v4475, %v4485
        %v4508 = vsub.f32 %v4476, %v4488
        %v4509 = vsub.f32 %v4477, %v4491
        %v4510 = vsub.f32 %v4478, %v4494
        %v4511 = vsub.f32 %v4479, %v4497
        %v4512 = vsub.f32 %v4480, %v4500
        %v4513 = vsub.f32 %v4481, %v4503
        %v4514 = vsub.f32 %v4482, %v4506
        %v4515 = vmul.f32 %v4507, 1.442695
        %v4516 = vpow.pop %v4515
        %v4517 = vmul.f32 %v4508, 1.442695
        %v4518 = vpow.pop %v4517
        %v4519 = vmul.f32 %v4509, 1.442695
        %v4520 = vpow.pop %v4519
        %v4521 = vmul.f32 %v4510, 1.442695
        %v4522 = vpow.pop %v4521
        %v4523 = vmul.f32 %v4511, 1.442695
        %v4524 = vpow.pop %v4523
        %v4525 = vmul.f32 %v4512, 1.442695
        %v4526 = vpow.pop %v4525
        %v4527 = vmul.f32 %v4513, 1.442695
        %v4528 = vpow.pop %v4527
        %v4529 = vmul.f32 %v4514, 1.442695
        %v4530 = vpow.pop %v4529
        %v4531 = vsel %vm1345, %v4516, 0.0
        %4532 = vadd.xlane.f32.xlu0 %v4531
        %v4533 = vpop.xlane.xlu0 %4532
        %v4534 = vsel %vm1345, %v4518, 0.0
        %4535 = vadd.xlane.f32.xlu0 %v4534
        %v4536 = vpop.xlane.xlu0 %4535
        %v4537 = vsel %vm1345, %v4520, 0.0
        %4538 = vadd.xlane.f32.xlu0 %v4537
        %v4539 = vpop.xlane.xlu0 %4538
        %v4540 = vsel %vm1345, %v4522, 0.0
        %4541 = vadd.xlane.f32.xlu0 %v4540
        %v4542 = vpop.xlane.xlu0 %4541
        %v4543 = vsel %vm1345, %v4524, 0.0
        %4544 = vadd.xlane.f32.xlu0 %v4543
        %v4545 = vpop.xlane.xlu0 %4544
        %v4546 = vsel %vm1345, %v4526, 0.0
        %4547 = vadd.xlane.f32.xlu0 %v4546
        %v4548 = vpop.xlane.xlu0 %4547
        %v4549 = vsel %vm1345, %v4528, 0.0
        %4550 = vadd.xlane.f32.xlu0 %v4549
        %v4551 = vpop.xlane.xlu0 %4550
        %v4552 = vsel %vm1345, %v4530, 0.0
        %4553 = vadd.xlane.f32.xlu0 %v4552
        %v4554 = vpop.xlane.xlu0 %4553
        %v4555 = vrcp.pop %v4533
        %v4556 = vrcp.pop %v4536
        %v4557 = vrcp.pop %v4539
        %v4558 = vrcp.pop %v4542
        %v4559 = vrcp.pop %v4545
        %v4560 = vrcp.pop %v4548
        %v4561 = vrcp.pop %v4551
        %v4562 = vrcp.pop %v4554
        %v4563 = vmul.f32 %v4516, %v4555
        %v4564 = vmul.f32 %v4518, %v4556
        %v4565 = vmul.f32 %v4520, %v4557
        %v4566 = vmul.f32 %v4522, %v4558
        %v4567 = vmul.f32 %v4524, %v4559
        %v4568 = vmul.f32 %v4526, %v4560
        %v4569 = vmul.f32 %v4528, %v4561
        %v4570 = vmul.f32 %v4530, %v4562
        %v4571 = vpack.c.bf16 %v4564, %v4563
        %v4572 = vpack.c.bf16 %v4566, %v4565
        %v4573 = vpack.c.bf16 %v4568, %v4567
        %v4574 = vpack.c.bf16 %v4570, %v4569
        %4575 = vrot.lane.b32.xlu0 %v3782, 48
        %v4576 = vpop.permute.xlu0 %4575
        %4577 = vrot.lane.b32.xlu0 %v3783, 48
        %v4578 = vpop.permute.xlu0 %4577
        %4579 = vrot.lane.b32.xlu0 %v3784, 48
        %v4580 = vpop.permute.xlu0 %4579
        %4581 = vrot.lane.b32.xlu0 %v3785, 48
        %v4582 = vpop.permute.xlu0 %4581
        %v4588 = vsel %vm1345, %v4571, 0
        %v4591 = vsel %vm1345, %v4572, 0
        %v4594 = vsel %vm1345, %v4573, 0
        %v4597 = vsel %vm1345, %v4574, 0
        %4599 = vmatprep.subr.bf16.mxu0 0
        %4600 = vmatpush1.bf16.msra.mxu0 %v4576
        %4601 = vmatprep.subr.bf16.mxu0 0
        %4602 = vmatpush1.bf16.msra.mxu0 %v4578
        %4603 = vmatprep.subr.bf16.mxu0 0
        %4604 = vmatpush1.bf16.msra.mxu0 %v4580
        %4605 = vmatprep.subr.bf16.mxu0 0
        %4606 = vmatpush1.bf16.msra.mxu0 %v4582
        %4607 = vmatprep.subr.bf16.mxu0 0
        %4608 = vmatpush1.bf16.msra.mxu0 0
        %4609 = vmatprep.subr.bf16.mxu0 0
        %4610 = vmatpush1.bf16.msra.mxu0 0
        %4611 = vmatprep.subr.bf16.mxu0 0
        %4612 = vmatpush1.bf16.msra.mxu0 0
        %4613 = vmatprep.subr.bf16.mxu0 0
        %4614 = vmatpush1.bf16.msra.mxu0 0
        %4615 = vmatprep.subr.bf16.mxu0 0
        %4616 = vmatpush1.bf16.msra.mxu0 0
        %4617 = vmatprep.subr.bf16.mxu0 0
        %4618 = vmatpush1.bf16.msra.mxu0 0
        %4619 = vmatprep.subr.bf16.mxu0 0
        %4620 = vmatpush1.bf16.msra.mxu0 0
        %4621 = vmatprep.subr.bf16.mxu0 0
        %4622 = vmatpush1.bf16.msra.mxu0 0
        %4623 = vmatprep.subr.bf16.mxu0 0
        %4624 = vmatpush1.bf16.msra.mxu0 0
        %4625 = vmatprep.subr.bf16.mxu0 0
        %4626 = vmatpush1.bf16.msra.mxu0 0
        %4627 = vmatprep.subr.bf16.mxu0 0
        %4628 = vmatpush1.bf16.msra.mxu0 0
        %4629 = vmatprep.subr.bf16.mxu0 0
        %4630 = vmatpush1.bf16.msra.mxu0 0
        %4631 = vmatprep.mubr.bf16.mxu0 0
        %4632 = vmatmul.mubr.bf16.gmra.mrb[0].mxu0 %v4588
        %v4633 = vpop.f32.mrb[0].mxu0
        %v4634 = vadd.f32 0.0, %v4633
        %v4635 = vpop.f32.mrb[0].mxu0
        %v4636 = vpop.f32.mrb[0].mxu0
        %v4637 = vadd.f32 0.0, %v4636
        %v4638 = vpop.f32.mrb[0].mxu0
        %4639 = vmatprep.mubr.bf16.mxu0 0
        %4640 = vmatmul.mubr.bf16.gmra.mrb[0].mxu0 %v4591
        %v4641 = vpop.f32.mrb[0].mxu0
        %v4642 = vadd.f32 0.0, %v4641
        %v4643 = vpop.f32.mrb[0].mxu0
        %v4644 = vpop.f32.mrb[0].mxu0
        %v4645 = vadd.f32 0.0, %v4644
        %v4646 = vpop.f32.mrb[0].mxu0
        %4647 = vmatprep.mubr.bf16.mxu0 0
        %4648 = vmatmul.mubr.bf16.gmra.mrb[0].mxu0 %v4594
        %v4649 = vpop.f32.mrb[0].mxu0
        %v4650 = vadd.f32 0.0, %v4649
        %v4651 = vpop.f32.mrb[0].mxu0
        %v4652 = vpop.f32.mrb[0].mxu0
        %v4653 = vadd.f32 0.0, %v4652
        %v4654 = vpop.f32.mrb[0].mxu0
        %4655 = vmatprep.mubr.bf16.mxu0 0
        %4656 = vmatmul.mubr.bf16.gmra.mrb[0].mxu0 %v4597
        %v4657 = vpop.f32.mrb[0].mxu0
        %v4658 = vadd.f32 0.0, %v4657
        %v4659 = vpop.f32.mrb[0].mxu0
        %v4660 = vpop.f32.mrb[0].mxu0
        %v4661 = vadd.f32 0.0, %v4660
        %v4662 = vpop.f32.mrb[0].mxu0
        %4663 = vdwg.mxu0
        %4664 = vrot.lane.b32.xlu0 %v3782, 104
        %v4665 = vpop.permute.xlu0 %4664
        %4666 = vrot.lane.b32.xlu0 %v3783, 104
        %v4667 = vpop.permute.xlu0 %4666
        %4668 = vrot.lane.b32.xlu0 %v3784, 104
        %v4669 = vpop.permute.xlu0 %4668
        %4670 = vrot.lane.b32.xlu0 %v3785, 104
        %v4671 = vpop.permute.xlu0 %4670
        %4672 = vrot.lane.b32.xlu0 %v3782, 72
        %v4673 = vpop.permute.xlu0 %4672
        %4674 = vrot.lane.b32.xlu0 %v3783, 72
        %v4675 = vpop.permute.xlu0 %4674
        %4676 = vrot.lane.b32.xlu0 %v3784, 72
        %v4677 = vpop.permute.xlu0 %4676
        %4678 = vrot.lane.b32.xlu0 %v3785, 72
        %v4679 = vpop.permute.xlu0 %4678
        %v4681 = vsel %vm1247, %v4665, 0
        %v4684 = vsel %vm1247, %v4667, 0
        %v4687 = vsel %vm1247, %v4669, 0
        %v4690 = vsel %vm1247, %v4671, 0
        %v4693 = vsel %vm1247, %v4673, 0
        %v4696 = vsel %vm1247, %v4675, 0
        %v4699 = vsel %vm1247, %v4677, 0
        %v4702 = vsel %vm1247, %v4679, 0
        %4704 = vmatprep.subr.bf16.mxu0 0
        %4705 = vmatpush1.bf16.xpose.msra.mxu0 %v4693
        %4706 = vmatprep.subr.bf16.mxu0 0
        %4707 = vmatpush1.bf16.xpose.msra.mxu0 %v4696
        %4708 = vmatprep.subr.bf16.mxu0 0
        %4709 = vmatpush1.bf16.xpose.msra.mxu0 %v4699
        %4710 = vmatprep.subr.bf16.mxu0 0
        %4711 = vmatpush1.bf16.xpose.msra.mxu0 %v4702
        %4712 = vmatprep.subr.bf16.mxu0 0
        %4713 = vmatpush1.bf16.xpose.msra.mxu0 0
        %4714 = vmatprep.subr.bf16.mxu0 0
        %4715 = vmatpush1.bf16.xpose.msra.mxu0 0
        %4716 = vmatprep.subr.bf16.mxu0 0
        %4717 = vmatpush1.bf16.xpose.msra.mxu0 0
        %4718 = vmatprep.subr.bf16.mxu0 0
        %4719 = vmatpush1.bf16.xpose.msra.mxu0 0
        %4720 = vmatprep.subr.bf16.mxu0 0
        %4721 = vmatpush1.bf16.xpose.msra.mxu0 0
        %4722 = vmatprep.subr.bf16.mxu0 0
        %4723 = vmatpush1.bf16.xpose.msra.mxu0 0
        %4724 = vmatprep.subr.bf16.mxu0 0
        %4725 = vmatpush1.bf16.xpose.msra.mxu0 0
        %4726 = vmatprep.subr.bf16.mxu0 0
        %4727 = vmatpush1.bf16.xpose.msra.mxu0 0
        %4728 = vmatprep.subr.bf16.mxu0 0
        %4729 = vmatpush1.bf16.xpose.msra.mxu0 0
        %4730 = vmatprep.subr.bf16.mxu0 0
        %4731 = vmatpush1.bf16.xpose.msra.mxu0 0
        %4732 = vmatprep.subr.bf16.mxu0 0
        %4733 = vmatpush1.bf16.xpose.msra.mxu0 0
        %4734 = vmatprep.subr.bf16.mxu0 0
        %4735 = vmatpush1.bf16.xpose.msra.mxu0 0
        %4736 = vmatprep.mubr.bf16.mxu0 0
        %4737 = vmatmul.mubr.bf16.gmra.mrb[0].mxu0 %v4681
        %v4738 = vpop.f32.mrb[0].mxu0
        %v4739 = vadd.f32 0.0, %v4738
        %v4740 = vpop.f32.mrb[0].mxu0
        %v4741 = vpop.f32.mrb[0].mxu0
        %v4742 = vadd.f32 0.0, %v4741
        %v4743 = vpop.f32.mrb[0].mxu0
        %4744 = vmatprep.mubr.bf16.mxu0 0
        %4745 = vmatmul.mubr.bf16.gmra.mrb[0].mxu0 %v4684
        %v4746 = vpop.f32.mrb[0].mxu0
        %v4747 = vadd.f32 0.0, %v4746
        %v4748 = vpop.f32.mrb[0].mxu0
        %v4749 = vpop.f32.mrb[0].mxu0
        %v4750 = vadd.f32 0.0, %v4749
        %v4751 = vpop.f32.mrb[0].mxu0
        %4752 = vmatprep.mubr.bf16.mxu0 0
        %4753 = vmatmul.mubr.bf16.gmra.mrb[0].mxu0 %v4687
        %v4754 = vpop.f32.mrb[0].mxu0
        %v4755 = vadd.f32 0.0, %v4754
        %v4756 = vpop.f32.mrb[0].mxu0
        %v4757 = vpop.f32.mrb[0].mxu0
        %v4758 = vadd.f32 0.0, %v4757
        %v4759 = vpop.f32.mrb[0].mxu0
        %4760 = vmatprep.mubr.bf16.mxu0 0
        %4761 = vmatmul.mubr.bf16.gmra.mrb[0].mxu0 %v4690
        %v4762 = vpop.f32.mrb[0].mxu0
        %v4763 = vadd.f32 0.0, %v4762
        %v4764 = vpop.f32.mrb[0].mxu0
        %v4765 = vpop.f32.mrb[0].mxu0
        %v4766 = vadd.f32 0.0, %v4765
        %v4767 = vpop.f32.mrb[0].mxu0
        %4768 = vdwg.mxu0
        %v4769 = vmul.f32 %v4739, 0.35355338
        %v4770 = vmul.f32 %v4742, 0.35355338
        %v4771 = vmul.f32 %v4747, 0.35355338
        %v4772 = vmul.f32 %v4750, 0.35355338
        %v4773 = vmul.f32 %v4755, 0.35355338
        %v4774 = vmul.f32 %v4758, 0.35355338
        %v4775 = vmul.f32 %v4763, 0.35355338
        %v4776 = vmul.f32 %v4766, 0.35355338
        %v4777 = vsel %vm1345, %v4769, -inf
        %4778 = vmax.xlane.f32.xlu0 %v4777
        %v4779 = vpop.xlane.xlu0 %4778
        %v4780 = vsel %vm1345, %v4770, -inf
        %4781 = vmax.xlane.f32.xlu0 %v4780
        %v4782 = vpop.xlane.xlu0 %4781
        %v4783 = vsel %vm1345, %v4771, -inf
        %4784 = vmax.xlane.f32.xlu0 %v4783
        %v4785 = vpop.xlane.xlu0 %4784
        %v4786 = vsel %vm1345, %v4772, -inf
        %4787 = vmax.xlane.f32.xlu0 %v4786
        %v4788 = vpop.xlane.xlu0 %4787
        %v4789 = vsel %vm1345, %v4773, -inf
        %4790 = vmax.xlane.f32.xlu0 %v4789
        %v4791 = vpop.xlane.xlu0 %4790
        %v4792 = vsel %vm1345, %v4774, -inf
        %4793 = vmax.xlane.f32.xlu0 %v4792
        %v4794 = vpop.xlane.xlu0 %4793
        %v4795 = vsel %vm1345, %v4775, -inf
        %4796 = vmax.xlane.f32.xlu0 %v4795
        %v4797 = vpop.xlane.xlu0 %4796
        %v4798 = vsel %vm1345, %v4776, -inf
        %4799 = vmax.xlane.f32.xlu0 %v4798
        %v4800 = vpop.xlane.xlu0 %4799
        %v4801 = vsub.f32 %v4769, %v4779
        %v4802 = vsub.f32 %v4770, %v4782
        %v4803 = vsub.f32 %v4771, %v4785
        %v4804 = vsub.f32 %v4772, %v4788
        %v4805 = vsub.f32 %v4773, %v4791
        %v4806 = vsub.f32 %v4774, %v4794
        %v4807 = vsub.f32 %v4775, %v4797
        %v4808 = vsub.f32 %v4776, %v4800
        %v4809 = vmul.f32 %v4801, 1.442695
        %v4810 = vpow.pop %v4809
        %v4811 = vmul.f32 %v4802, 1.442695
        %v4812 = vpow.pop %v4811
        %v4813 = vmul.f32 %v4803, 1.442695
        %v4814 = vpow.pop %v4813
        %v4815 = vmul.f32 %v4804, 1.442695
        %v4816 = vpow.pop %v4815
        %v4817 = vmul.f32 %v4805, 1.442695
        %v4818 = vpow.pop %v4817
        %v4819 = vmul.f32 %v4806, 1.442695
        %v4820 = vpow.pop %v4819
        %v4821 = vmul.f32 %v4807, 1.442695
        %v4822 = vpow.pop %v4821
        %v4823 = vmul.f32 %v4808, 1.442695
        %v4824 = vpow.pop %v4823
        %v4825 = vsel %vm1345, %v4810, 0.0
        %4826 = vadd.xlane.f32.xlu0 %v4825
        %v4827 = vpop.xlane.xlu0 %4826
        %v4828 = vsel %vm1345, %v4812, 0.0
        %4829 = vadd.xlane.f32.xlu0 %v4828
        %v4830 = vpop.xlane.xlu0 %4829
        %v4831 = vsel %vm1345, %v4814, 0.0
        %4832 = vadd.xlane.f32.xlu0 %v4831
        %v4833 = vpop.xlane.xlu0 %4832
        %v4834 = vsel %vm1345, %v4816, 0.0
        %4835 = vadd.xlane.f32.xlu0 %v4834
        %v4836 = vpop.xlane.xlu0 %4835
        %v4837 = vsel %vm1345, %v4818, 0.0
        %4838 = vadd.xlane.f32.xlu0 %v4837
        %v4839 = vpop.xlane.xlu0 %4838
        %v4840 = vsel %vm1345, %v4820, 0.0
        %4841 = vadd.xlane.f32.xlu0 %v4840
        %v4842 = vpop.xlane.xlu0 %4841
        %v4843 = vsel %vm1345, %v4822, 0.0
        %4844 = vadd.xlane.f32.xlu0 %v4843
        %v4845 = vpop.xlane.xlu0 %4844
        %v4846 = vsel %vm1345, %v4824, 0.0
        %4847 = vadd.xlane.f32.xlu0 %v4846
        %v4848 = vpop.xlane.xlu0 %4847
        %v4849 = vrcp.pop %v4827
        %v4850 = vrcp.pop %v4830
        %v4851 = vrcp.pop %v4833
        %v4852 = vrcp.pop %v4836
        %v4853 = vrcp.pop %v4839
        %v4854 = vrcp.pop %v4842
        %v4855 = vrcp.pop %v4845
        %v4856 = vrcp.pop %v4848
        %v4857 = vmul.f32 %v4810, %v4849
        %v4858 = vmul.f32 %v4812, %v4850
        %v4859 = vmul.f32 %v4814, %v4851
        %v4860 = vmul.f32 %v4816, %v4852
        %v4861 = vmul.f32 %v4818, %v4853
        %v4862 = vmul.f32 %v4820, %v4854
        %v4863 = vmul.f32 %v4822, %v4855
        %v4864 = vmul.f32 %v4824, %v4856
        %v4865 = vpack.c.bf16 %v4858, %v4857
        %v4866 = vpack.c.bf16 %v4860, %v4859
        %v4867 = vpack.c.bf16 %v4862, %v4861
        %v4868 = vpack.c.bf16 %v4864, %v4863
        %4869 = vrot.lane.b32.xlu0 %v3782, 40
        %v4870 = vpop.permute.xlu0 %4869
        %4871 = vrot.lane.b32.xlu0 %v3783, 40
        %v4872 = vpop.permute.xlu0 %4871
        %4873 = vrot.lane.b32.xlu0 %v3784, 40
        %v4874 = vpop.permute.xlu0 %4873
        %4875 = vrot.lane.b32.xlu0 %v3785, 40
        %v4876 = vpop.permute.xlu0 %4875
        %v4882 = vsel %vm1345, %v4865, 0
        %v4885 = vsel %vm1345, %v4866, 0
        %v4888 = vsel %vm1345, %v4867, 0
        %v4891 = vsel %vm1345, %v4868, 0
        %4893 = vmatprep.subr.bf16.mxu0 0
        %4894 = vmatpush1.bf16.msra.mxu0 %v4870
        %4895 = vmatprep.subr.bf16.mxu0 0
        %4896 = vmatpush1.bf16.msra.mxu0 %v4872
        %4897 = vmatprep.subr.bf16.mxu0 0
        %4898 = vmatpush1.bf16.msra.mxu0 %v4874
        %4899 = vmatprep.subr.bf16.mxu0 0
        %4900 = vmatpush1.bf16.msra.mxu0 %v4876
        %4901 = vmatprep.subr.bf16.mxu0 0
        %4902 = vmatpush1.bf16.msra.mxu0 0
        %4903 = vmatprep.subr.bf16.mxu0 0
        %4904 = vmatpush1.bf16.msra.mxu0 0
        %4905 = vmatprep.subr.bf16.mxu0 0
        %4906 = vmatpush1.bf16.msra.mxu0 0
        %4907 = vmatprep.subr.bf16.mxu0 0
        %4908 = vmatpush1.bf16.msra.mxu0 0
        %4909 = vmatprep.subr.bf16.mxu0 0
        %4910 = vmatpush1.bf16.msra.mxu0 0
        %4911 = vmatprep.subr.bf16.mxu0 0
        %4912 = vmatpush1.bf16.msra.mxu0 0
        %4913 = vmatprep.subr.bf16.mxu0 0
        %4914 = vmatpush1.bf16.msra.mxu0 0
        %4915 = vmatprep.subr.bf16.mxu0 0
        %4916 = vmatpush1.bf16.msra.mxu0 0
        %4917 = vmatprep.subr.bf16.mxu0 0
        %4918 = vmatpush1.bf16.msra.mxu0 0
        %4919 = vmatprep.subr.bf16.mxu0 0
        %4920 = vmatpush1.bf16.msra.mxu0 0
        %4921 = vmatprep.subr.bf16.mxu0 0
        %4922 = vmatpush1.bf16.msra.mxu0 0
        %4923 = vmatprep.subr.bf16.mxu0 0
        %4924 = vmatpush1.bf16.msra.mxu0 0
        %4925 = vmatprep.mubr.bf16.mxu0 0
        %4926 = vmatmul.mubr.bf16.gmra.mrb[0].mxu0 %v4882
        %v4927 = vpop.f32.mrb[0].mxu0
        %v4928 = vadd.f32 0.0, %v4927
        %v4929 = vpop.f32.mrb[0].mxu0
        %v4930 = vpop.f32.mrb[0].mxu0
        %v4931 = vadd.f32 0.0, %v4930
        %v4932 = vpop.f32.mrb[0].mxu0
        %4933 = vmatprep.mubr.bf16.mxu0 0
        %4934 = vmatmul.mubr.bf16.gmra.mrb[0].mxu0 %v4885
        %v4935 = vpop.f32.mrb[0].mxu0
        %v4936 = vadd.f32 0.0, %v4935
        %v4937 = vpop.f32.mrb[0].mxu0
        %v4938 = vpop.f32.mrb[0].mxu0
        %v4939 = vadd.f32 0.0, %v4938
        %v4940 = vpop.f32.mrb[0].mxu0
        %4941 = vmatprep.mubr.bf16.mxu0 0
        %4942 = vmatmul.mubr.bf16.gmra.mrb[0].mxu0 %v4888
        %v4943 = vpop.f32.mrb[0].mxu0
        %v4944 = vadd.f32 0.0, %v4943
        %v4945 = vpop.f32.mrb[0].mxu0
        %v4946 = vpop.f32.mrb[0].mxu0
        %v4947 = vadd.f32 0.0, %v4946
        %v4948 = vpop.f32.mrb[0].mxu0
        %4949 = vmatprep.mubr.bf16.mxu0 0
        %4950 = vmatmul.mubr.bf16.gmra.mrb[0].mxu0 %v4891
        %v4951 = vpop.f32.mrb[0].mxu0
        %v4952 = vadd.f32 0.0, %v4951
        %v4953 = vpop.f32.mrb[0].mxu0
        %v4954 = vpop.f32.mrb[0].mxu0
        %v4955 = vadd.f32 0.0, %v4954
        %v4956 = vpop.f32.mrb[0].mxu0
        %4957 = vdwg.mxu0
        %4966 = vrot.lane.b32.xlu0 %v4340, 8
        %v4967 = vpop.permute.xlu0 %4966
        %4968 = vrot.lane.b32.xlu0 %v4343, 8
        %v4969 = vpop.permute.xlu0 %4968
        %4970 = vrot.lane.b32.xlu0 %v4348, 8
        %v4971 = vpop.permute.xlu0 %4970
        %4972 = vrot.lane.b32.xlu0 %v4351, 8
        %v4973 = vpop.permute.xlu0 %4972
        %4974 = vrot.lane.b32.xlu0 %v4356, 8
        %v4975 = vpop.permute.xlu0 %4974
        %4976 = vrot.lane.b32.xlu0 %v4359, 8
        %v4977 = vpop.permute.xlu0 %4976
        %4978 = vrot.lane.b32.xlu0 %v4364, 8
        %v4979 = vpop.permute.xlu0 %4978
        %4980 = vrot.lane.b32.xlu0 %v4367, 8
        %v4981 = vpop.permute.xlu0 %4980
        %4998 = vrot.lane.b32.xlu0 %v4634, 16
        %v4999 = vpop.permute.xlu0 %4998
        %5000 = vrot.lane.b32.xlu0 %v4637, 16
        %v5001 = vpop.permute.xlu0 %5000
        %5002 = vrot.lane.b32.xlu0 %v4642, 16
        %v5003 = vpop.permute.xlu0 %5002
        %5004 = vrot.lane.b32.xlu0 %v4645, 16
        %v5005 = vpop.permute.xlu0 %5004
        %5006 = vrot.lane.b32.xlu0 %v4650, 16
        %v5007 = vpop.permute.xlu0 %5006
        %5008 = vrot.lane.b32.xlu0 %v4653, 16
        %v5009 = vpop.permute.xlu0 %5008
        %5010 = vrot.lane.b32.xlu0 %v4658, 16
        %v5011 = vpop.permute.xlu0 %5010
        %5012 = vrot.lane.b32.xlu0 %v4661, 16
        %v5013 = vpop.permute.xlu0 %5012
        %5030 = vrot.lane.b32.xlu0 %v4928, 24
        %v5031 = vpop.permute.xlu0 %5030
        %5032 = vrot.lane.b32.xlu0 %v4931, 24
        %v5033 = vpop.permute.xlu0 %5032
        %5034 = vrot.lane.b32.xlu0 %v4936, 24
        %v5035 = vpop.permute.xlu0 %5034
        %5036 = vrot.lane.b32.xlu0 %v4939, 24
        %v5037 = vpop.permute.xlu0 %5036
        %5038 = vrot.lane.b32.xlu0 %v4944, 24
        %v5039 = vpop.permute.xlu0 %5038
        %5040 = vrot.lane.b32.xlu0 %v4947, 24
        %v5041 = vpop.permute.xlu0 %5040
        %5042 = vrot.lane.b32.xlu0 %v4952, 24
        %v5043 = vpop.permute.xlu0 %5042
        %5044 = vrot.lane.b32.xlu0 %v4955, 24
        %v5045 = vpop.permute.xlu0 %5044
        %v5054 = vsel %vm1247, %v4046, %v4967
        %v5055 = vsel %vm1247, %v4049, %v4969
        %v5056 = vsel %vm1247, %v4054, %v4971
        %v5057 = vsel %vm1247, %v4057, %v4973
        %v5058 = vsel %vm1247, %v4062, %v4975
        %v5059 = vsel %vm1247, %v4065, %v4977
        %v5060 = vsel %vm1247, %v4070, %v4979
        %v5061 = vsel %vm1247, %v4073, %v4981
        %v5062 = vsel %vm779, %v5054, %v4999
        %v5063 = vsel %vm779, %v5055, %v5001
        %v5064 = vsel %vm779, %v5056, %v5003
        %v5065 = vsel %vm779, %v5057, %v5005
        %v5066 = vsel %vm779, %v5058, %v5007
        %v5067 = vsel %vm779, %v5059, %v5009
        %v5068 = vsel %vm779, %v5060, %v5011
        %v5069 = vsel %vm779, %v5061, %v5013
        %v5070 = vsel %vm2521, %v5062, %v5031
        %v5071 = vsel %vm2521, %v5063, %v5033
        %v5072 = vsel %vm2521, %v5064, %v5035
        %v5073 = vsel %vm2521, %v5065, %v5037
        %v5074 = vsel %vm2521, %v5066, %v5039
        %v5075 = vsel %vm2521, %v5067, %v5041
        %v5076 = vsel %vm2521, %v5068, %v5043
        %v5077 = vsel %vm2521, %v5069, %v5045
        %s5078 = scalar_lea.vmem %s9, 16
        %v5079 = vld [vmem:[%s5078] sm:$0xf]
        %v5080 = vld [vmem:[%s5078 + $0x4] sm:$0xf]
        %v5081 = vld [vmem:[%s5078 + $0x8] sm:$0xf]
        %v5082 = vld [vmem:[%s5078 + $0xc] sm:$0xf]
        %v5083 = vpack.c.bf16 %v5071, %v5070
        %v5084 = vpack.c.bf16 %v5073, %v5072
        %v5085 = vpack.c.bf16 %v5075, %v5074
        %v5086 = vpack.c.bf16 %v5077, %v5076
        %v5091 = vunpack.c.l.b16 %v5079
        %v5092 = vunpack.c.l.b16 %v5080
        %v5093 = vunpack.c.l.b16 %v5081
        %v5094 = vunpack.c.l.b16 %v5082
        %v5095 = vpack.c.b16 %v5092, %v5091
        %v5096 = vpack.c.b16 %v5094, %v5093
        %v5100 = vsel %vm859, %v5083, 0
        %v5103 = vsel %vm859, %v5084, 0
        %v5106 = vsel %vm859, %v5085, 0
        %v5109 = vsel %vm859, %v5086, 0
        %5111 = vmatprep.subr.bf16.mxu0 0
        %5112 = vmatpush1.bf16.msra.mxu0 %v5095
        %5113 = vmatprep.subr.bf16.mxu0 0
        %5114 = vmatpush1.bf16.msra.mxu0 %v5096
        %5115 = vmatprep.subr.bf16.mxu0 0
        %5116 = vmatpush1.bf16.msra.mxu0 0
        %5117 = vmatprep.subr.bf16.mxu0 0
        %5118 = vmatpush1.bf16.msra.mxu0 0
        %5119 = vmatprep.subr.bf16.mxu0 0
        %5120 = vmatpush1.bf16.msra.mxu0 0
        %5121 = vmatprep.subr.bf16.mxu0 0
        %5122 = vmatpush1.bf16.msra.mxu0 0
        %5123 = vmatprep.subr.bf16.mxu0 0
        %5124 = vmatpush1.bf16.msra.mxu0 0
        %5125 = vmatprep.subr.bf16.mxu0 0
        %5126 = vmatpush1.bf16.msra.mxu0 0
        %5127 = vmatprep.subr.bf16.mxu0 0
        %5128 = vmatpush1.bf16.msra.mxu0 0
        %5129 = vmatprep.subr.bf16.mxu0 0
        %5130 = vmatpush1.bf16.msra.mxu0 0
        %5131 = vmatprep.subr.bf16.mxu0 0
        %5132 = vmatpush1.bf16.msra.mxu0 0
        %5133 = vmatprep.subr.bf16.mxu0 0
        %5134 = vmatpush1.bf16.msra.mxu0 0
        %5135 = vmatprep.subr.bf16.mxu0 0
        %5136 = vmatpush1.bf16.msra.mxu0 0
        %5137 = vmatprep.subr.bf16.mxu0 0
        %5138 = vmatpush1.bf16.msra.mxu0 0
        %5139 = vmatprep.subr.bf16.mxu0 0
        %5140 = vmatpush1.bf16.msra.mxu0 0
        %5141 = vmatprep.subr.bf16.mxu0 0
        %5142 = vmatpush1.bf16.msra.mxu0 0
        %5143 = vmatprep.mubr.bf16.mxu0 0
        %5144 = vmatmul.mubr.bf16.gmra.mrb[0].mxu0 %v5100
        %v5145 = vpop.f32.mrb[0].mxu0
        %v5146 = vadd.f32 0.0, %v5145
        %v5147 = vpop.f32.mrb[0].mxu0
        %v5148 = vpop.f32.mrb[0].mxu0
        %v5149 = vadd.f32 0.0, %v5148
        %v5150 = vpop.f32.mrb[0].mxu0
        %5151 = vmatprep.mubr.bf16.mxu0 0
        %5152 = vmatmul.mubr.bf16.gmra.mrb[0].mxu0 %v5103
        %v5153 = vpop.f32.mrb[0].mxu0
        %v5154 = vadd.f32 0.0, %v5153
        %v5155 = vpop.f32.mrb[0].mxu0
        %v5156 = vpop.f32.mrb[0].mxu0
        %v5157 = vadd.f32 0.0, %v5156
        %v5158 = vpop.f32.mrb[0].mxu0
        %5159 = vmatprep.mubr.bf16.mxu0 0
        %5160 = vmatmul.mubr.bf16.gmra.mrb[0].mxu0 %v5106
        %v5161 = vpop.f32.mrb[0].mxu0
        %v5162 = vadd.f32 0.0, %v5161
        %v5163 = vpop.f32.mrb[0].mxu0
        %v5164 = vpop.f32.mrb[0].mxu0
        %v5165 = vadd.f32 0.0, %v5164
        %v5166 = vpop.f32.mrb[0].mxu0
        %5167 = vmatprep.mubr.bf16.mxu0 0
        %5168 = vmatmul.mubr.bf16.gmra.mrb[0].mxu0 %v5109
        %v5169 = vpop.f32.mrb[0].mxu0
        %v5170 = vadd.f32 0.0, %v5169
        %v5171 = vpop.f32.mrb[0].mxu0
        %v5172 = vpop.f32.mrb[0].mxu0
        %v5173 = vadd.f32 0.0, %v5172
        %v5174 = vpop.f32.mrb[0].mxu0
        %5175 = vdwg.mxu0
        %v5176 = vadd.f32 %v3532, %v5146
        %v5177 = vadd.f32 %v3533, %v5149
        %v5178 = vadd.f32 %v3534, %v5154
        %v5179 = vadd.f32 %v3535, %v5157
        %v5180 = vadd.f32 %v3536, %v5162
        %v5181 = vadd.f32 %v3537, %v5165
        %v5182 = vadd.f32 %v3538, %v5170
        %v5183 = vadd.f32 %v3539, %v5173
        %s5184 = scalar_lea.vmem %s10, 1
        %v5185 = vld [vmem:[%s5184] sm:$0x1]
        %v5187 = vlaneseq
        %v5188 = vshrl.u32 %v5187, 7
        %v5189 = vsub.s32 0, %v5188
        %v5190 = vrot.slane %v5185, %v5189
        %v5192 = vadd.f32 %v5176, %v5190
        %v5193 = vadd.f32 %v5177, %v5190
        %v5194 = vadd.f32 %v5178, %v5190
        %v5195 = vadd.f32 %v5179, %v5190
        %v5196 = vadd.f32 %v5180, %v5190
        %v5197 = vadd.f32 %v5181, %v5190
        %v5198 = vadd.f32 %v5182, %v5190
        %v5199 = vadd.f32 %v5183, %v5190
        %s5200 = scalar_lea.vmem %s11, 1
        %v5201 = vld [vmem:[%s5200] sm:$0x1]
        %s5202 = scalar_lea.vmem %s12, 1
        %v5203 = vld [vmem:[%s5202] sm:$0x1]
        %v5204 = vsel %vm859, %v5192, 0.0
        %5205 = vadd.xlane.f32.xlu0 %v5204
        %v5206 = vpop.xlane.xlu0 %5205
        %v5207 = vsel %vm859, %v5193, 0.0
        %5208 = vadd.xlane.f32.xlu0 %v5207
        %v5209 = vpop.xlane.xlu0 %5208
        %v5210 = vsel %vm859, %v5194, 0.0
        %5211 = vadd.xlane.f32.xlu0 %v5210
        %v5212 = vpop.xlane.xlu0 %5211
        %v5213 = vsel %vm859, %v5195, 0.0
        %5214 = vadd.xlane.f32.xlu0 %v5213
        %v5215 = vpop.xlane.xlu0 %5214
        %v5216 = vsel %vm859, %v5196, 0.0
        %5217 = vadd.xlane.f32.xlu0 %v5216
        %v5218 = vpop.xlane.xlu0 %5217
        %v5219 = vsel %vm859, %v5197, 0.0
        %5220 = vadd.xlane.f32.xlu0 %v5219
        %v5221 = vpop.xlane.xlu0 %5220
        %v5222 = vsel %vm859, %v5198, 0.0
        %5223 = vadd.xlane.f32.xlu0 %v5222
        %v5224 = vpop.xlane.xlu0 %5223
        %v5225 = vsel %vm859, %v5199, 0.0
        %5226 = vadd.xlane.f32.xlu0 %v5225
        %v5227 = vpop.xlane.xlu0 %5226
        %v5228 = vmul.f32 %v5206, %v884
        %v5229 = vmul.f32 %v5209, %v884
        %v5230 = vmul.f32 %v5212, %v884
        %v5231 = vmul.f32 %v5215, %v884
        %v5232 = vmul.f32 %v5218, %v884
        %v5233 = vmul.f32 %v5221, %v884
        %v5234 = vmul.f32 %v5224, %v884
        %v5235 = vmul.f32 %v5227, %v884
        %v5236 = vsub.f32 %v5192, %v5228
        %v5237 = vsub.f32 %v5193, %v5229
        %v5238 = vsub.f32 %v5194, %v5230
        %v5239 = vsub.f32 %v5195, %v5231
        %v5240 = vsub.f32 %v5196, %v5232
        %v5241 = vsub.f32 %v5197, %v5233
        %v5242 = vsub.f32 %v5198, %v5234
        %v5243 = vsub.f32 %v5199, %v5235
        %v5244 = vmul.f32 %v5236, %v5236
        %v5245 = vmul.f32 %v5237, %v5237
        %v5246 = vmul.f32 %v5238, %v5238
        %v5247 = vmul.f32 %v5239, %v5239
        %v5248 = vmul.f32 %v5240, %v5240
        %v5249 = vmul.f32 %v5241, %v5241
        %v5250 = vmul.f32 %v5242, %v5242
        %v5251 = vmul.f32 %v5243, %v5243
        %v5252 = vsel %vm859, %v5244, 0.0
        %5253 = vadd.xlane.f32.xlu0 %v5252
        %v5254 = vpop.xlane.xlu0 %5253
        %v5255 = vsel %vm859, %v5245, 0.0
        %5256 = vadd.xlane.f32.xlu0 %v5255
        %v5257 = vpop.xlane.xlu0 %5256
        %v5258 = vsel %vm859, %v5246, 0.0
        %5259 = vadd.xlane.f32.xlu0 %v5258
        %v5260 = vpop.xlane.xlu0 %5259
        %v5261 = vsel %vm859, %v5247, 0.0
        %5262 = vadd.xlane.f32.xlu0 %v5261
        %v5263 = vpop.xlane.xlu0 %5262
        %v5264 = vsel %vm859, %v5248, 0.0
        %5265 = vadd.xlane.f32.xlu0 %v5264
        %v5266 = vpop.xlane.xlu0 %5265
        %v5267 = vsel %vm859, %v5249, 0.0
        %5268 = vadd.xlane.f32.xlu0 %v5267
        %v5269 = vpop.xlane.xlu0 %5268
        %v5270 = vsel %vm859, %v5250, 0.0
        %5271 = vadd.xlane.f32.xlu0 %v5270
        %v5272 = vpop.xlane.xlu0 %5271
        %v5273 = vsel %vm859, %v5251, 0.0
        %5274 = vadd.xlane.f32.xlu0 %v5273
        %v5275 = vpop.xlane.xlu0 %5274
        %v5276 = vmul.f32 %v5254, %v884
        %v5277 = vmul.f32 %v5257, %v884
        %v5278 = vmul.f32 %v5260, %v884
        %v5279 = vmul.f32 %v5263, %v884
        %v5280 = vmul.f32 %v5266, %v884
        %v5281 = vmul.f32 %v5269, %v884
        %v5282 = vmul.f32 %v5272, %v884
        %v5283 = vmul.f32 %v5275, %v884
        %v5284 = vadd.f32 %v5276, 1e-05
        %v5285 = vadd.f32 %v5277, 1e-05
        %v5286 = vadd.f32 %v5278, 1e-05
        %v5287 = vadd.f32 %v5279, 1e-05
        %v5288 = vadd.f32 %v5280, 1e-05
        %v5289 = vadd.f32 %v5281, 1e-05
        %v5290 = vadd.f32 %v5282, 1e-05
        %v5291 = vadd.f32 %v5283, 1e-05
        %v5292 = vrsqrt.pop %v5284
        %v5293 = vrsqrt.pop %v5285
        %v5294 = vrsqrt.pop %v5286
        %v5295 = vrsqrt.pop %v5287
        %v5296 = vrsqrt.pop %v5288
        %v5297 = vrsqrt.pop %v5289
        %v5298 = vrsqrt.pop %v5290
        %v5299 = vrsqrt.pop %v5291
        %v5300 = vmul.f32 %v5236, %v5292
        %v5301 = vmul.f32 %v5237, %v5293
        %v5302 = vmul.f32 %v5238, %v5294
        %v5303 = vmul.f32 %v5239, %v5295
        %v5304 = vmul.f32 %v5240, %v5296
        %v5305 = vmul.f32 %v5241, %v5297
        %v5306 = vmul.f32 %v5242, %v5298
        %v5307 = vmul.f32 %v5243, %v5299
        %v5309 = vlaneseq
        %v5310 = vshrl.u32 %v5309, 7
        %v5311 = vsub.s32 0, %v5310
        %v5312 = vrot.slane %v5201, %v5311
        %v5314 = vmul.f32 %v5300, %v5312
        %v5315 = vmul.f32 %v5301, %v5312
        %v5316 = vmul.f32 %v5302, %v5312
        %v5317 = vmul.f32 %v5303, %v5312
        %v5318 = vmul.f32 %v5304, %v5312
        %v5319 = vmul.f32 %v5305, %v5312
        %v5320 = vmul.f32 %v5306, %v5312
        %v5321 = vmul.f32 %v5307, %v5312
        %v5323 = vlaneseq
        %v5324 = vshrl.u32 %v5323, 7
        %v5325 = vsub.s32 0, %v5324
        %v5326 = vrot.slane %v5203, %v5325
        %v5328 = vadd.f32 %v5314, %v5326
        %v5329 = vadd.f32 %v5315, %v5326
        %v5330 = vadd.f32 %v5316, %v5326
        %v5331 = vadd.f32 %v5317, %v5326
        %v5332 = vadd.f32 %v5318, %v5326
        %v5333 = vadd.f32 %v5319, %v5326
        %v5334 = vadd.f32 %v5320, %v5326
        %v5335 = vadd.f32 %v5321, %v5326
        %s5336 = scalar_lea.vmem %s13, 16
        %v5337 = vld [vmem:[%s5336] sm:$0xf]
        %v5338 = vld [vmem:[%s5336 + $0x4] sm:$0xf]
        %v5339 = vld [vmem:[%s5336 + $0x8] sm:$0xf]
        %v5340 = vld [vmem:[%s5336 + $0xc] sm:$0xf]
        %v5341 = vpack.c.bf16 %v5329, %v5328
        %v5342 = vpack.c.bf16 %v5331, %v5330
        %v5343 = vpack.c.bf16 %v5333, %v5332
        %v5344 = vpack.c.bf16 %v5335, %v5334
        %s5345 = scalar_lea.vmem %s14, 1
        %v5346 = vld [vmem:[%s5345] sm:$0x1]
        %v5348 = vlaneseq
        %v5349 = vshrl.u32 %v5348, 7
        %v5350 = vsub.s32 0, %v5349
        %v5351 = vrot.slane %v5346, %v5350
        %v5357 = vunpack.c.l.b16 %v5337
        %v5358 = vunpack.c.l.b16 %v5338
        %v5359 = vunpack.c.l.b16 %v5339
        %v5360 = vunpack.c.l.b16 %v5340
        %v5361 = vpack.c.b16 %v5358, %v5357
        %v5362 = vpack.c.b16 %v5360, %v5359
        %v5366 = vsel %vm859, %v5341, 0
        %v5369 = vsel %vm859, %v5342, 0
        %v5372 = vsel %vm859, %v5343, 0
        %v5375 = vsel %vm859, %v5344, 0
        %5377 = vmatprep.subr.bf16.mxu0 0
        %5378 = vmatpush1.bf16.msra.mxu0 %v5361
        %5379 = vmatprep.subr.bf16.mxu0 0
        %5380 = vmatpush1.bf16.msra.mxu0 %v5362
        %5381 = vmatprep.subr.bf16.mxu0 0
        %5382 = vmatpush1.bf16.msra.mxu0 0
        %5383 = vmatprep.subr.bf16.mxu0 0
        %5384 = vmatpush1.bf16.msra.mxu0 0
        %5385 = vmatprep.subr.bf16.mxu0 0
        %5386 = vmatpush1.bf16.msra.mxu0 0
        %5387 = vmatprep.subr.bf16.mxu0 0
        %5388 = vmatpush1.bf16.msra.mxu0 0
        %5389 = vmatprep.subr.bf16.mxu0 0
        %5390 = vmatpush1.bf16.msra.mxu0 0
        %5391 = vmatprep.subr.bf16.mxu0 0
        %5392 = vmatpush1.bf16.msra.mxu0 0
        %5393 = vmatprep.subr.bf16.mxu0 0
        %5394 = vmatpush1.bf16.msra.mxu0 0
        %5395 = vmatprep.subr.bf16.mxu0 0
        %5396 = vmatpush1.bf16.msra.mxu0 0
        %5397 = vmatprep.subr.bf16.mxu0 0
        %5398 = vmatpush1.bf16.msra.mxu0 0
        %5399 = vmatprep.subr.bf16.mxu0 0
        %5400 = vmatpush1.bf16.msra.mxu0 0
        %5401 = vmatprep.subr.bf16.mxu0 0
        %5402 = vmatpush1.bf16.msra.mxu0 0
        %5403 = vmatprep.subr.bf16.mxu0 0
        %5404 = vmatpush1.bf16.msra.mxu0 0
        %5405 = vmatprep.subr.bf16.mxu0 0
        %5406 = vmatpush1.bf16.msra.mxu0 0
        %5407 = vmatprep.subr.bf16.mxu0 0
        %5408 = vmatpush1.bf16.msra.mxu0 0
        %5409 = vmatprep.mubr.bf16.mxu0 0
        %5410 = vmatmul.mubr.bf16.gmra.mrb[0].mxu0 %v5366
        %v5411 = vpop.f32.mrb[0].mxu0
        %v5412 = vadd.f32 %v5351, %v5411
        %v5413 = vpop.f32.mrb[0].mxu0
        %v5414 = vpop.f32.mrb[0].mxu0
        %v5415 = vadd.f32 %v5351, %v5414
        %v5416 = vpop.f32.mrb[0].mxu0
        %5417 = vmatprep.mubr.bf16.mxu0 0
        %5418 = vmatmul.mubr.bf16.gmra.mrb[0].mxu0 %v5369
        %v5419 = vpop.f32.mrb[0].mxu0
        %v5420 = vadd.f32 %v5351, %v5419
        %v5421 = vpop.f32.mrb[0].mxu0
        %v5422 = vpop.f32.mrb[0].mxu0
        %v5423 = vadd.f32 %v5351, %v5422
        %v5424 = vpop.f32.mrb[0].mxu0
        %5425 = vmatprep.mubr.bf16.mxu0 0
        %5426 = vmatmul.mubr.bf16.gmra.mrb[0].mxu0 %v5372
        %v5427 = vpop.f32.mrb[0].mxu0
        %v5428 = vadd.f32 %v5351, %v5427
        %v5429 = vpop.f32.mrb[0].mxu0
        %v5430 = vpop.f32.mrb[0].mxu0
        %v5431 = vadd.f32 %v5351, %v5430
        %v5432 = vpop.f32.mrb[0].mxu0
        %5433 = vmatprep.mubr.bf16.mxu0 0
        %5434 = vmatmul.mubr.bf16.gmra.mrb[0].mxu0 %v5375
        %v5435 = vpop.f32.mrb[0].mxu0
        %v5436 = vadd.f32 %v5351, %v5435
        %v5437 = vpop.f32.mrb[0].mxu0
        %v5438 = vpop.f32.mrb[0].mxu0
        %v5439 = vadd.f32 %v5351, %v5438
        %v5440 = vpop.f32.mrb[0].mxu0
        %5441 = vdwg.mxu0
        %5442 = vst [vmem:[%s2888 + $0x1] sm:$0xff] %v5412
        %5443 = vst [vmem:[%s2888 + $0x11] sm:$0xff] %v5415
        %5444 = vst [vmem:[%s2888 + $0x21] sm:$0xff] %v5420
        %5445 = vst [vmem:[%s2888 + $0x31] sm:$0xff] %v5423
        %5446 = vst [vmem:[%s2888 + $0x41] sm:$0xff] %v5428
        %5447 = vst [vmem:[%s2888 + $0x51] sm:$0xff] %v5431
        %5448 = vst [vmem:[%s2888 + $0x61] sm:$0xff] %v5436
        %5449 = vst [vmem:[%s2888 + $0x71] sm:$0xff] %v5439
        %s5450 = scalar_lea.vmem %s15, 12
        %v5451 = vld [vmem:[%s5450] sm:$0x7]
        %v5452 = vld [vmem:[%s5450 + $0x4] sm:$0x7]
        %v5453 = vld [vmem:[%s5450 + $0x8] sm:$0x7]
        %v5454 = vld [vmem:[#allocation2] sm:$0xff]
        %v5455 = vld [vmem:[#allocation2 + $0x10] sm:$0xff]
        %v5456 = vld [vmem:[#allocation2 + $0x20] sm:$0xff]
        %v5457 = vld [vmem:[#allocation2 + $0x30] sm:$0xff]
        %v5458 = vld [vmem:[#allocation2 + $0x40] sm:$0xff]
        %v5459 = vld [vmem:[#allocation2 + $0x50] sm:$0xff]
        %v5460 = vld [vmem:[#allocation2 + $0x60] sm:$0xff]
        %v5461 = vld [vmem:[#allocation2 + $0x70] sm:$0xff]
        %v5462 = vlaneseq
        %v5463 = vshrl.u32 %v5462, 7
        %v5464 = vsub.s32 0, %v5463
        %v5465 = vrot.slane %v5451, %v5464
        %v5466 = vmul.f32 %v5454, %v5465
        %v5467 = vmul.f32 %v5455, %v5465
        %v5468 = vmul.f32 %v5456, %v5465
        %v5469 = vmul.f32 %v5457, %v5465
        %v5470 = vmul.f32 %v5458, %v5465
        %v5471 = vmul.f32 %v5459, %v5465
        %v5472 = vmul.f32 %v5460, %v5465
        %v5473 = vmul.f32 %v5461, %v5465
        %v5474 = vadd.f32 %v5466, 0.0
        %v5475 = vadd.f32 %v5467, 0.0
        %v5476 = vadd.f32 %v5468, 0.0
        %v5477 = vadd.f32 %v5469, 0.0
        %v5478 = vadd.f32 %v5470, 0.0
        %v5479 = vadd.f32 %v5471, 0.0
        %v5480 = vadd.f32 %v5472, 0.0
        %v5481 = vadd.f32 %v5473, 0.0
        %v5482 = vld [vmem:[#allocation2 + $0x1] sm:$0xff]
        %v5483 = vld [vmem:[#allocation2 + $0x11] sm:$0xff]
        %v5484 = vld [vmem:[#allocation2 + $0x21] sm:$0xff]
        %v5485 = vld [vmem:[#allocation2 + $0x31] sm:$0xff]
        %v5486 = vld [vmem:[#allocation2 + $0x41] sm:$0xff]
        %v5487 = vld [vmem:[#allocation2 + $0x51] sm:$0xff]
        %v5488 = vld [vmem:[#allocation2 + $0x61] sm:$0xff]
        %v5489 = vld [vmem:[#allocation2 + $0x71] sm:$0xff]
        %v5490 = vlaneseq
        %v5491 = vshrl.u32 %v5490, 7
        %v5492 = vsub.s32 1, %v5491
        %v5493 = vrot.slane %v5451, %v5492
        %v5494 = vmul.f32 %v5482, %v5493
        %v5495 = vmul.f32 %v5483, %v5493
        %v5496 = vmul.f32 %v5484, %v5493
        %v5497 = vmul.f32 %v5485, %v5493
        %v5498 = vmul.f32 %v5486, %v5493
        %v5499 = vmul.f32 %v5487, %v5493
        %v5500 = vmul.f32 %v5488, %v5493
        %v5501 = vmul.f32 %v5489, %v5493
        %v5502 = vadd.f32 %v5474, %v5494
        %v5503 = vadd.f32 %v5475, %v5495
        %v5504 = vadd.f32 %v5476, %v5496
        %v5505 = vadd.f32 %v5477, %v5497
        %v5506 = vadd.f32 %v5478, %v5498
        %v5507 = vadd.f32 %v5479, %v5499
        %v5508 = vadd.f32 %v5480, %v5500
        %v5509 = vadd.f32 %v5481, %v5501
        %v5510 = vld [vmem:[#allocation2 + $0x2] sm:$0xff]
        %v5511 = vld [vmem:[#allocation2 + $0x12] sm:$0xff]
        %v5512 = vld [vmem:[#allocation2 + $0x22] sm:$0xff]
        %v5513 = vld [vmem:[#allocation2 + $0x32] sm:$0xff]
        %v5514 = vld [vmem:[#allocation2 + $0x42] sm:$0xff]
        %v5515 = vld [vmem:[#allocation2 + $0x52] sm:$0xff]
        %v5516 = vld [vmem:[#allocation2 + $0x62] sm:$0xff]
        %v5517 = vld [vmem:[#allocation2 + $0x72] sm:$0xff]
        %v5518 = vlaneseq
        %v5519 = vshrl.u32 %v5518, 7
        %v5520 = vsub.s32 2, %v5519
        %v5521 = vrot.slane %v5451, %v5520
        %v5522 = vmul.f32 %v5510, %v5521
        %v5523 = vmul.f32 %v5511, %v5521
        %v5524 = vmul.f32 %v5512, %v5521
        %v5525 = vmul.f32 %v5513, %v5521
        %v5526 = vmul.f32 %v5514, %v5521
        %v5527 = vmul.f32 %v5515, %v5521
        %v5528 = vmul.f32 %v5516, %v5521
        %v5529 = vmul.f32 %v5517, %v5521
        %v5530 = vadd.f32 %v5502, %v5522
        %v5531 = vadd.f32 %v5503, %v5523
        %v5532 = vadd.f32 %v5504, %v5524
        %v5533 = vadd.f32 %v5505, %v5525
        %v5534 = vadd.f32 %v5506, %v5526
        %v5535 = vadd.f32 %v5507, %v5527
        %v5536 = vadd.f32 %v5508, %v5528
        %v5537 = vadd.f32 %v5509, %v5529
        %v5538 = vld [vmem:[%s2888] sm:$0xff]
        %v5539 = vld [vmem:[%s2888 + $0x10] sm:$0xff]
        %v5540 = vld [vmem:[%s2888 + $0x20] sm:$0xff]
        %v5541 = vld [vmem:[%s2888 + $0x30] sm:$0xff]
        %v5542 = vld [vmem:[%s2888 + $0x40] sm:$0xff]
        %v5543 = vld [vmem:[%s2888 + $0x50] sm:$0xff]
        %v5544 = vld [vmem:[%s2888 + $0x60] sm:$0xff]
        %v5545 = vld [vmem:[%s2888 + $0x70] sm:$0xff]
        %v5546 = vlaneseq
        %v5547 = vshrl.u32 %v5546, 7
        %v5548 = vsub.s32 0, %v5547
        %v5549 = vrot.slane %v5452, %v5548
        %v5550 = vmul.f32 %v5538, %v5549
        %v5551 = vmul.f32 %v5539, %v5549
        %v5552 = vmul.f32 %v5540, %v5549
        %v5553 = vmul.f32 %v5541, %v5549
        %v5554 = vmul.f32 %v5542, %v5549
        %v5555 = vmul.f32 %v5543, %v5549
        %v5556 = vmul.f32 %v5544, %v5549
        %v5557 = vmul.f32 %v5545, %v5549
        %v5558 = vadd.f32 %v5530, %v5550
        %v5559 = vadd.f32 %v5531, %v5551
        %v5560 = vadd.f32 %v5532, %v5552
        %v5561 = vadd.f32 %v5533, %v5553
        %v5562 = vadd.f32 %v5534, %v5554
        %v5563 = vadd.f32 %v5535, %v5555
        %v5564 = vadd.f32 %v5536, %v5556
        %v5565 = vadd.f32 %v5537, %v5557
        %v5566 = vld [vmem:[%s2888 + $0x1] sm:$0xff]
        %v5567 = vld [vmem:[%s2888 + $0x11] sm:$0xff]
        %v5568 = vld [vmem:[%s2888 + $0x21] sm:$0xff]
        %v5569 = vld [vmem:[%s2888 + $0x31] sm:$0xff]
        %v5570 = vld [vmem:[%s2888 + $0x41] sm:$0xff]
        %v5571 = vld [vmem:[%s2888 + $0x51] sm:$0xff]
        %v5572 = vld [vmem:[%s2888 + $0x61] sm:$0xff]
        %v5573 = vld [vmem:[%s2888 + $0x71] sm:$0xff]
        %v5574 = vlaneseq
        %v5575 = vshrl.u32 %v5574, 7
        %v5576 = vsub.s32 1, %v5575
        %v5577 = vrot.slane %v5452, %v5576
        %v5578 = vmul.f32 %v5566, %v5577
        %v5579 = vmul.f32 %v5567, %v5577
        %v5580 = vmul.f32 %v5568, %v5577
        %v5581 = vmul.f32 %v5569, %v5577
        %v5582 = vmul.f32 %v5570, %v5577
        %v5583 = vmul.f32 %v5571, %v5577
        %v5584 = vmul.f32 %v5572, %v5577
        %v5585 = vmul.f32 %v5573, %v5577
        %v5586 = vadd.f32 %v5558, %v5578
        %v5587 = vadd.f32 %v5559, %v5579
        %v5588 = vadd.f32 %v5560, %v5580
        %v5589 = vadd.f32 %v5561, %v5581
        %v5590 = vadd.f32 %v5562, %v5582
        %v5591 = vadd.f32 %v5563, %v5583
        %v5592 = vadd.f32 %v5564, %v5584
        %v5593 = vadd.f32 %v5565, %v5585
        %v5594 = vld [vmem:[%s2888 + $0x2] sm:$0xff]
        %v5595 = vld [vmem:[%s2888 + $0x12] sm:$0xff]
        %v5596 = vld [vmem:[%s2888 + $0x22] sm:$0xff]
        %v5597 = vld [vmem:[%s2888 + $0x32] sm:$0xff]
        %v5598 = vld [vmem:[%s2888 + $0x42] sm:$0xff]
        %v5599 = vld [vmem:[%s2888 + $0x52] sm:$0xff]
        %v5600 = vld [vmem:[%s2888 + $0x62] sm:$0xff]
        %v5601 = vld [vmem:[%s2888 + $0x72] sm:$0xff]
        %v5602 = vlaneseq
        %v5603 = vshrl.u32 %v5602, 7
        %v5604 = vsub.s32 2, %v5603
        %v5605 = vrot.slane %v5452, %v5604
        %v5606 = vmul.f32 %v5594, %v5605
        %v5607 = vmul.f32 %v5595, %v5605
        %v5608 = vmul.f32 %v5596, %v5605
        %v5609 = vmul.f32 %v5597, %v5605
        %v5610 = vmul.f32 %v5598, %v5605
        %v5611 = vmul.f32 %v5599, %v5605
        %v5612 = vmul.f32 %v5600, %v5605
        %v5613 = vmul.f32 %v5601, %v5605
        %v5614 = vadd.f32 %v5586, %v5606
        %v5615 = vadd.f32 %v5587, %v5607
        %v5616 = vadd.f32 %v5588, %v5608
        %v5617 = vadd.f32 %v5589, %v5609
        %v5618 = vadd.f32 %v5590, %v5610
        %v5619 = vadd.f32 %v5591, %v5611
        %v5620 = vadd.f32 %v5592, %v5612
        %v5621 = vadd.f32 %v5593, %v5613
        %v5622 = vld [vmem:[%s3068] sm:$0xff]
        %v5623 = vld [vmem:[%s3068 + $0x10] sm:$0xff]
        %v5624 = vld [vmem:[%s3068 + $0x20] sm:$0xff]
        %v5625 = vld [vmem:[%s3068 + $0x30] sm:$0xff]
        %v5626 = vld [vmem:[%s3068 + $0x40] sm:$0xff]
        %v5627 = vld [vmem:[%s3068 + $0x50] sm:$0xff]
        %v5628 = vld [vmem:[%s3068 + $0x60] sm:$0xff]
        %v5629 = vld [vmem:[%s3068 + $0x70] sm:$0xff]
        %v5630 = vlaneseq
        %v5631 = vshrl.u32 %v5630, 7
        %v5632 = vsub.s32 0, %v5631
        %v5633 = vrot.slane %v5453, %v5632
        %v5634 = vmul.f32 %v5622, %v5633
        %v5635 = vmul.f32 %v5623, %v5633
        %v5636 = vmul.f32 %v5624, %v5633
        %v5637 = vmul.f32 %v5625, %v5633
        %v5638 = vmul.f32 %v5626, %v5633
        %v5639 = vmul.f32 %v5627, %v5633
        %v5640 = vmul.f32 %v5628, %v5633
        %v5641 = vmul.f32 %v5629, %v5633
        %v5642 = vadd.f32 %v5614, %v5634
        %v5643 = vadd.f32 %v5615, %v5635
        %v5644 = vadd.f32 %v5616, %v5636
        %v5645 = vadd.f32 %v5617, %v5637
        %v5646 = vadd.f32 %v5618, %v5638
        %v5647 = vadd.f32 %v5619, %v5639
        %v5648 = vadd.f32 %v5620, %v5640
        %v5649 = vadd.f32 %v5621, %v5641
        %v5650 = vld [vmem:[%s3068 + $0x1] sm:$0xff]
        %v5651 = vld [vmem:[%s3068 + $0x11] sm:$0xff]
        %v5652 = vld [vmem:[%s3068 + $0x21] sm:$0xff]
        %v5653 = vld [vmem:[%s3068 + $0x31] sm:$0xff]
        %v5654 = vld [vmem:[%s3068 + $0x41] sm:$0xff]
        %v5655 = vld [vmem:[%s3068 + $0x51] sm:$0xff]
        %v5656 = vld [vmem:[%s3068 + $0x61] sm:$0xff]
        %v5657 = vld [vmem:[%s3068 + $0x71] sm:$0xff]
        %v5658 = vlaneseq
        %v5659 = vshrl.u32 %v5658, 7
        %v5660 = vsub.s32 1, %v5659
        %v5661 = vrot.slane %v5453, %v5660
        %v5662 = vmul.f32 %v5650, %v5661
        %v5663 = vmul.f32 %v5651, %v5661
        %v5664 = vmul.f32 %v5652, %v5661
        %v5665 = vmul.f32 %v5653, %v5661
        %v5666 = vmul.f32 %v5654, %v5661
        %v5667 = vmul.f32 %v5655, %v5661
        %v5668 = vmul.f32 %v5656, %v5661
        %v5669 = vmul.f32 %v5657, %v5661
        %v5670 = vadd.f32 %v5642, %v5662
        %v5671 = vadd.f32 %v5643, %v5663
        %v5672 = vadd.f32 %v5644, %v5664
        %v5673 = vadd.f32 %v5645, %v5665
        %v5674 = vadd.f32 %v5646, %v5666
        %v5675 = vadd.f32 %v5647, %v5667
        %v5676 = vadd.f32 %v5648, %v5668
        %v5677 = vadd.f32 %v5649, %v5669
        %v5678 = vld [vmem:[%s3068 + $0x2] sm:$0xff]
        %v5679 = vld [vmem:[%s3068 + $0x12] sm:$0xff]
        %v5680 = vld [vmem:[%s3068 + $0x22] sm:$0xff]
        %v5681 = vld [vmem:[%s3068 + $0x32] sm:$0xff]
        %v5682 = vld [vmem:[%s3068 + $0x42] sm:$0xff]
        %v5683 = vld [vmem:[%s3068 + $0x52] sm:$0xff]
        %v5684 = vld [vmem:[%s3068 + $0x62] sm:$0xff]
        %v5685 = vld [vmem:[%s3068 + $0x72] sm:$0xff]
        %v5686 = vlaneseq
        %v5687 = vshrl.u32 %v5686, 7
        %v5688 = vsub.s32 2, %v5687
        %v5689 = vrot.slane %v5453, %v5688
        %v5690 = vmul.f32 %v5678, %v5689
        %v5691 = vmul.f32 %v5679, %v5689
        %v5692 = vmul.f32 %v5680, %v5689
        %v5693 = vmul.f32 %v5681, %v5689
        %v5694 = vmul.f32 %v5682, %v5689
        %v5695 = vmul.f32 %v5683, %v5689
        %v5696 = vmul.f32 %v5684, %v5689
        %v5697 = vmul.f32 %v5685, %v5689
        %v5698 = vadd.f32 %v5670, %v5690
        %v5699 = vadd.f32 %v5671, %v5691
        %v5700 = vadd.f32 %v5672, %v5692
        %v5701 = vadd.f32 %v5673, %v5693
        %v5702 = vadd.f32 %v5674, %v5694
        %v5703 = vadd.f32 %v5675, %v5695
        %v5704 = vadd.f32 %v5676, %v5696
        %v5705 = vadd.f32 %v5677, %v5697
        %s5706 = scalar_lea.vmem %s16, 1
        %v5707 = vld [vmem:[%s5706] sm:$0x1]
        %v5709 = vlaneseq
        %v5710 = vshrl.u32 %v5709, 7
        %v5711 = vsub.s32 0, %v5710
        %v5712 = vrot.slane %v5707, %v5711
        %v5714 = vadd.f32 %v5698, %v5712
        %v5715 = vadd.f32 %v5699, %v5712
        %v5716 = vadd.f32 %v5700, %v5712
        %v5717 = vadd.f32 %v5701, %v5712
        %v5718 = vadd.f32 %v5702, %v5712
        %v5719 = vadd.f32 %v5703, %v5712
        %v5720 = vadd.f32 %v5704, %v5712
        %v5721 = vadd.f32 %v5705, %v5712
        %v5722 = vmul.f32 %v5714, 0.5
        %v5723 = vmul.f32 %v5715, 0.5
        %v5724 = vmul.f32 %v5716, 0.5
        %v5725 = vmul.f32 %v5717, 0.5
        %v5726 = vmul.f32 %v5718, 0.5
        %v5727 = vmul.f32 %v5719, 0.5
        %v5728 = vmul.f32 %v5720, 0.5
        %v5729 = vmul.f32 %v5721, 0.5
        %v5730 = vmul.f32 %v5714, 0.70710677
        %v5731 = vmul.f32 %v5715, 0.70710677
        %v5732 = vmul.f32 %v5716, 0.70710677
        %v5733 = vmul.f32 %v5717, 0.70710677
        %v5734 = vmul.f32 %v5718, 0.70710677
        %v5735 = vmul.f32 %v5719, 0.70710677
        %v5736 = vmul.f32 %v5720, 0.70710677
        %v5737 = vmul.f32 %v5721, 0.70710677
        %v5738 = vand.u32 2147483647, %v5730
        %v5739 = vand.u32 2147483647, %v5731
        %v5740 = vand.u32 2147483647, %v5732
        %v5741 = vand.u32 2147483647, %v5733
        %v5742 = vand.u32 2147483647, %v5734
        %v5743 = vand.u32 2147483647, %v5735
        %v5744 = vand.u32 2147483647, %v5736
        %v5745 = vand.u32 2147483647, %v5737
        %v5746 = vmul.f32 %v5738, 0.3275911
        %v5747 = vmul.f32 %v5739, 0.3275911
        %v5748 = vmul.f32 %v5740, 0.3275911
        %v5749 = vmul.f32 %v5741, 0.3275911
        %v5750 = vmul.f32 %v5742, 0.3275911
        %v5751 = vmul.f32 %v5743, 0.3275911
        %v5752 = vmul.f32 %v5744, 0.3275911
        %v5753 = vmul.f32 %v5745, 0.3275911
        %v5754 = vadd.f32 %v5746, 1.0
        %v5755 = vadd.f32 %v5747, 1.0
        %v5756 = vadd.f32 %v5748, 1.0
        %v5757 = vadd.f32 %v5749, 1.0
        %v5758 = vadd.f32 %v5750, 1.0
        %v5759 = vadd.f32 %v5751, 1.0
        %v5760 = vadd.f32 %v5752, 1.0
        %v5761 = vadd.f32 %v5753, 1.0
        %v5762 = vrcp.pop %v5754
        %v5763 = vmul.f32 1.0, %v5762
        %v5764 = vrcp.pop %v5755
        %v5765 = vmul.f32 1.0, %v5764
        %v5766 = vrcp.pop %v5756
        %v5767 = vmul.f32 1.0, %v5766
        %v5768 = vrcp.pop %v5757
        %v5769 = vmul.f32 1.0, %v5768
        %v5770 = vrcp.pop %v5758
        %v5771 = vmul.f32 1.0, %v5770
        %v5772 = vrcp.pop %v5759
        %v5773 = vmul.f32 1.0, %v5772
        %v5774 = vrcp.pop %v5760
        %v5775 = vmul.f32 1.0, %v5774
        %v5776 = vrcp.pop %v5761
        %v5777 = vmul.f32 1.0, %v5776
        %v5778 = vmul.f32 %v5763, 1.0614054
        %v5779 = vmul.f32 %v5765, 1.0614054
        %v5780 = vmul.f32 %v5767, 1.0614054
        %v5781 = vmul.f32 %v5769, 1.0614054
        %v5782 = vmul.f32 %v5771, 1.0614054
        %v5783 = vmul.f32 %v5773, 1.0614054
        %v5784 = vmul.f32 %v5775, 1.0614054
        %v5785 = vmul.f32 %v5777, 1.0614054
        %v5786 = vadd.f32 %v5778, -1.4531521
        %v5787 = vadd.f32 %v5779, -1.4531521
        %v5788 = vadd.f32 %v5780, -1.4531521
        %v5789 = vadd.f32 %v5781, -1.4531521
        %v5790 = vadd.f32 %v5782, -1.4531521
        %v5791 = vadd.f32 %v5783, -1.4531521
        %v5792 = vadd.f32 %v5784, -1.4531521
        %v5793 = vadd.f32 %v5785, -1.4531521
        %v5794 = vmul.f32 %v5763, %v5786
        %v5795 = vmul.f32 %v5765, %v5787
        %v5796 = vmul.f32 %v5767, %v5788
        %v5797 = vmul.f32 %v5769, %v5789
        %v5798 = vmul.f32 %v5771, %v5790
        %v5799 = vmul.f32 %v5773, %v5791
        %v5800 = vmul.f32 %v5775, %v5792
        %v5801 = vmul.f32 %v5777, %v5793
        %v5802 = vadd.f32 %v5794, 1.4214138
        %v5803 = vadd.f32 %v5795, 1.4214138
        %v5804 = vadd.f32 %v5796, 1.4214138
        %v5805 = vadd.f32 %v5797, 1.4214138
        %v5806 = vadd.f32 %v5798, 1.4214138
        %v5807 = vadd.f32 %v5799, 1.4214138
        %v5808 = vadd.f32 %v5800, 1.4214138
        %v5809 = vadd.f32 %v5801, 1.4214138
        %v5810 = vmul.f32 %v5763, %v5802
        %v5811 = vmul.f32 %v5765, %v5803
        %v5812 = vmul.f32 %v5767, %v5804
        %v5813 = vmul.f32 %v5769, %v5805
        %v5814 = vmul.f32 %v5771, %v5806
        %v5815 = vmul.f32 %v5773, %v5807
        %v5816 = vmul.f32 %v5775, %v5808
        %v5817 = vmul.f32 %v5777, %v5809
        %v5818 = vadd.f32 %v5810, -0.28449672
        %v5819 = vadd.f32 %v5811, -0.28449672
        %v5820 = vadd.f32 %v5812, -0.28449672
        %v5821 = vadd.f32 %v5813, -0.28449672
        %v5822 = vadd.f32 %v5814, -0.28449672
        %v5823 = vadd.f32 %v5815, -0.28449672
        %v5824 = vadd.f32 %v5816, -0.28449672
        %v5825 = vadd.f32 %v5817, -0.28449672
        %v5826 = vmul.f32 %v5763, %v5818
        %v5827 = vmul.f32 %v5765, %v5819
        %v5828 = vmul.f32 %v5767, %v5820
        %v5829 = vmul.f32 %v5769, %v5821
        %v5830 = vmul.f32 %v5771, %v5822
        %v5831 = vmul.f32 %v5773, %v5823
        %v5832 = vmul.f32 %v5775, %v5824
        %v5833 = vmul.f32 %v5777, %v5825
        %v5834 = vadd.f32 %v5826, 0.2548296
        %v5835 = vadd.f32 %v5827, 0.2548296
        %v5836 = vadd.f32 %v5828, 0.2548296
        %v5837 = vadd.f32 %v5829, 0.2548296
        %v5838 = vadd.f32 %v5830, 0.2548296
        %v5839 = vadd.f32 %v5831, 0.2548296
        %v5840 = vadd.f32 %v5832, 0.2548296
        %v5841 = vadd.f32 %v5833, 0.2548296
        %v5842 = vmul.f32 %v5763, %v5834
        %v5843 = vmul.f32 %v5765, %v5835
        %v5844 = vmul.f32 %v5767, %v5836
        %v5845 = vmul.f32 %v5769, %v5837
        %v5846 = vmul.f32 %v5771, %v5838
        %v5847 = vmul.f32 %v5773, %v5839
        %v5848 = vmul.f32 %v5775, %v5840
        %v5849 = vmul.f32 %v5777, %v5841
        %v5850 = vmul.f32 %v5730, %v5730
        %v5851 = vmul.f32 %v5731, %v5731
        %v5852 = vmul.f32 %v5732, %v5732
        %v5853 = vmul.f32 %v5733, %v5733
        %v5854 = vmul.f32 %v5734, %v5734
        %v5855 = vmul.f32 %v5735, %v5735
        %v5856 = vmul.f32 %v5736, %v5736
        %v5857 = vmul.f32 %v5737, %v5737
        %v5858 = vsub.f32 0.0, %v5850
        %v5859 = vsub.f32 0.0, %v5851
        %v5860 = vsub.f32 0.0, %v5852
        %v5861 = vsub.f32 0.0, %v5853
        %v5862 = vsub.f32 0.0, %v5854
        %v5863 = vsub.f32 0.0, %v5855
        %v5864 = vsub.f32 0.0, %v5856
        %v5865 = vsub.f32 0.0, %v5857
        %v5866 = vmul.f32 %v5858, 1.442695
        %v5867 = vpow.pop %v5866
        %v5868 = vmul.f32 %v5859, 1.442695
        %v5869 = vpow.pop %v5868
        %v5870 = vmul.f32 %v5860, 1.442695
        %v5871 = vpow.pop %v5870
        %v5872 = vmul.f32 %v5861, 1.442695
        %v5873 = vpow.pop %v5872
        %v5874 = vmul.f32 %v5862, 1.442695
        %v5875 = vpow.pop %v5874
        %v5876 = vmul.f32 %v5863, 1.442695
        %v5877 = vpow.pop %v5876
        %v5878 = vmul.f32 %v5864, 1.442695
        %v5879 = vpow.pop %v5878
        %v5880 = vmul.f32 %v5865, 1.442695
        %v5881 = vpow.pop %v5880
        %v5882 = vmul.f32 %v5842, %v5867
        %v5883 = vmul.f32 %v5843, %v5869
        %v5884 = vmul.f32 %v5844, %v5871
        %v5885 = vmul.f32 %v5845, %v5873
        %v5886 = vmul.f32 %v5846, %v5875
        %v5887 = vmul.f32 %v5847, %v5877
        %v5888 = vmul.f32 %v5848, %v5879
        %v5889 = vmul.f32 %v5849, %v5881
        %v5890 = vsub.f32 1.0, %v5882
        %v5891 = vsub.f32 1.0, %v5883
        %v5892 = vsub.f32 1.0, %v5884
        %v5893 = vsub.f32 1.0, %v5885
        %v5894 = vsub.f32 1.0, %v5886
        %v5895 = vsub.f32 1.0, %v5887
        %v5896 = vsub.f32 1.0, %v5888
        %v5897 = vsub.f32 1.0, %v5889
        %vm5898 = vcmp.ge.f32.partialorder %v5730, 0.0
        %vm5899 = vcmp.ge.f32.partialorder %v5731, 0.0
        %vm5900 = vcmp.ge.f32.partialorder %v5732, 0.0
        %vm5901 = vcmp.ge.f32.partialorder %v5733, 0.0
        %vm5902 = vcmp.ge.f32.partialorder %v5734, 0.0
        %vm5903 = vcmp.ge.f32.partialorder %v5735, 0.0
        %vm5904 = vcmp.ge.f32.partialorder %v5736, 0.0
        %vm5905 = vcmp.ge.f32.partialorder %v5737, 0.0
        %v5906 = vsub.f32 0.0, %v5890
        %v5907 = vsub.f32 0.0, %v5891
        %v5908 = vsub.f32 0.0, %v5892
        %v5909 = vsub.f32 0.0, %v5893
        %v5910 = vsub.f32 0.0, %v5894
        %v5911 = vsub.f32 0.0, %v5895
        %v5912 = vsub.f32 0.0, %v5896
        %v5913 = vsub.f32 0.0, %v5897
        %v5914 = vsel %vm5898, %v5890, %v5906
        %v5915 = vsel %vm5899, %v5891, %v5907
        %v5916 = vsel %vm5900, %v5892, %v5908
        %v5917 = vsel %vm5901, %v5893, %v5909
        %v5918 = vsel %vm5902, %v5894, %v5910
        %v5919 = vsel %vm5903, %v5895, %v5911
        %v5920 = vsel %vm5904, %v5896, %v5912
        %v5921 = vsel %vm5905, %v5897, %v5913
        %v5922 = vadd.f32 %v5914, 1.0
        %v5923 = vadd.f32 %v5915, 1.0
        %v5924 = vadd.f32 %v5916, 1.0
        %v5925 = vadd.f32 %v5917, 1.0
        %v5926 = vadd.f32 %v5918, 1.0
        %v5927 = vadd.f32 %v5919, 1.0
        %v5928 = vadd.f32 %v5920, 1.0
        %v5929 = vadd.f32 %v5921, 1.0
        %v5930 = vmul.f32 %v5722, %v5922
        %v5931 = vmul.f32 %v5723, %v5923
        %v5932 = vmul.f32 %v5724, %v5924
        %v5933 = vmul.f32 %v5725, %v5925
        %v5934 = vmul.f32 %v5726, %v5926
        %v5935 = vmul.f32 %v5727, %v5927
        %v5936 = vmul.f32 %v5728, %v5928
        %v5937 = vmul.f32 %v5729, %v5929
        %s5938 = scalar_lea.vmem %s17, 64
        %v5939 = vld [vmem:[%s5938] sm:$0xf]
        %v5940 = vld [vmem:[%s5938 + $0x4] sm:$0xf]
        %v5941 = vld [vmem:[%s5938 + $0x8] sm:$0xf]
        %v5942 = vld [vmem:[%s5938 + $0xc] sm:$0xf]
        %v5943 = vld [vmem:[%s5938 + $0x10] sm:$0xf]
        %v5944 = vld [vmem:[%s5938 + $0x14] sm:$0xf]
        %v5945 = vld [vmem:[%s5938 + $0x18] sm:$0xf]
        %v5946 = vld [vmem:[%s5938 + $0x1c] sm:$0xf]
        %v5947 = vld [vmem:[%s5938 + $0x20] sm:$0xf]
        %v5948 = vld [vmem:[%s5938 + $0x24] sm:$0xf]
        %v5949 = vld [vmem:[%s5938 + $0x28] sm:$0xf]
        %v5950 = vld [vmem:[%s5938 + $0x2c] sm:$0xf]
        %v5951 = vld [vmem:[%s5938 + $0x30] sm:$0xf]
        %v5952 = vld [vmem:[%s5938 + $0x34] sm:$0xf]
        %v5953 = vld [vmem:[%s5938 + $0x38] sm:$0xf]
        %v5954 = vld [vmem:[%s5938 + $0x3c] sm:$0xf]
        %v5955 = vpack.c.bf16 %v5931, %v5930
        %v5956 = vpack.c.bf16 %v5933, %v5932
        %v5957 = vpack.c.bf16 %v5935, %v5934
        %v5958 = vpack.c.bf16 %v5937, %v5936
        %v5975 = vunpack.c.l.b16 %v5939
        %v5976 = vunpack.c.l.b16 %v5940
        %v5977 = vunpack.c.l.b16 %v5941
        %v5978 = vunpack.c.l.b16 %v5942
        %v5979 = vunpack.c.l.b16 %v5943
        %v5980 = vunpack.c.l.b16 %v5944
        %v5981 = vunpack.c.l.b16 %v5945
        %v5982 = vunpack.c.l.b16 %v5946
        %v5983 = vunpack.c.l.b16 %v5947
        %v5984 = vunpack.c.l.b16 %v5948
        %v5985 = vunpack.c.l.b16 %v5949
        %v5986 = vunpack.c.l.b16 %v5950
        %v5987 = vunpack.c.l.b16 %v5951
        %v5988 = vunpack.c.l.b16 %v5952
        %v5989 = vunpack.c.l.b16 %v5953
        %v5990 = vunpack.c.l.b16 %v5954
        %v5991 = vpack.c.b16 %v5976, %v5975
        %v5992 = vpack.c.b16 %v5978, %v5977
        %v5993 = vpack.c.b16 %v5980, %v5979
        %v5994 = vpack.c.b16 %v5982, %v5981
        %v5995 = vpack.c.b16 %v5984, %v5983
        %v5996 = vpack.c.b16 %v5986, %v5985
        %v5997 = vpack.c.b16 %v5988, %v5987
        %v5998 = vpack.c.b16 %v5990, %v5989
        %6007 = vmatprep.subr.bf16.mxu0 0
        %6008 = vmatpush1.bf16.msra.mxu0 %v5991
        %6009 = vmatprep.subr.bf16.mxu0 0
        %6010 = vmatpush1.bf16.msra.mxu0 %v5992
        %6011 = vmatprep.subr.bf16.mxu0 0
        %6012 = vmatpush1.bf16.msra.mxu0 %v5993
        %6013 = vmatprep.subr.bf16.mxu0 0
        %6014 = vmatpush1.bf16.msra.mxu0 %v5994
        %6015 = vmatprep.subr.bf16.mxu0 0
        %6016 = vmatpush1.bf16.msra.mxu0 %v5995
        %6017 = vmatprep.subr.bf16.mxu0 0
        %6018 = vmatpush1.bf16.msra.mxu0 %v5996
        %6019 = vmatprep.subr.bf16.mxu0 0
        %6020 = vmatpush1.bf16.msra.mxu0 %v5997
        %6021 = vmatprep.subr.bf16.mxu0 0
        %6022 = vmatpush1.bf16.msra.mxu0 %v5998
        %6023 = vmatprep.subr.bf16.mxu0 0
        %6024 = vmatpush1.bf16.msra.mxu0 0
        %6025 = vmatprep.subr.bf16.mxu0 0
        %6026 = vmatpush1.bf16.msra.mxu0 0
        %6027 = vmatprep.subr.bf16.mxu0 0
        %6028 = vmatpush1.bf16.msra.mxu0 0
        %6029 = vmatprep.subr.bf16.mxu0 0
        %6030 = vmatpush1.bf16.msra.mxu0 0
        %6031 = vmatprep.subr.bf16.mxu0 0
        %6032 = vmatpush1.bf16.msra.mxu0 0
        %6033 = vmatprep.subr.bf16.mxu0 0
        %6034 = vmatpush1.bf16.msra.mxu0 0
        %6035 = vmatprep.subr.bf16.mxu0 0
        %6036 = vmatpush1.bf16.msra.mxu0 0
        %6037 = vmatprep.subr.bf16.mxu0 0
        %6038 = vmatpush1.bf16.msra.mxu0 0
        %6039 = vmatprep.mubr.bf16.mxu0 0
        %6040 = vmatmul.mubr.bf16.gmra.mrb[0].mxu0 %v5955
        %v6041 = vpop.f32.mrb[0].mxu0
        %v6042 = vadd.f32 0.0, %v6041
        %v6043 = vpop.f32.mrb[0].mxu0
        %v6044 = vpop.f32.mrb[0].mxu0
        %v6045 = vadd.f32 0.0, %v6044
        %v6046 = vpop.f32.mrb[0].mxu0
        %6047 = vmatprep.mubr.bf16.mxu0 0
        %6048 = vmatmul.mubr.bf16.gmra.mrb[0].mxu0 %v5956
        %v6049 = vpop.f32.mrb[0].mxu0
        %v6050 = vadd.f32 0.0, %v6049
        %v6051 = vpop.f32.mrb[0].mxu0
        %v6052 = vpop.f32.mrb[0].mxu0
        %v6053 = vadd.f32 0.0, %v6052
        %v6054 = vpop.f32.mrb[0].mxu0
        %6055 = vmatprep.mubr.bf16.mxu0 0
        %6056 = vmatmul.mubr.bf16.gmra.mrb[0].mxu0 %v5957
        %v6057 = vpop.f32.mrb[0].mxu0
        %v6058 = vadd.f32 0.0, %v6057
        %v6059 = vpop.f32.mrb[0].mxu0
        %v6060 = vpop.f32.mrb[0].mxu0
        %v6061 = vadd.f32 0.0, %v6060
        %v6062 = vpop.f32.mrb[0].mxu0
        %6063 = vmatprep.mubr.bf16.mxu0 0
        %6064 = vmatmul.mubr.bf16.gmra.mrb[0].mxu0 %v5958
        %v6065 = vpop.f32.mrb[0].mxu0
        %v6066 = vadd.f32 0.0, %v6065
        %v6067 = vpop.f32.mrb[0].mxu0
        %v6068 = vpop.f32.mrb[0].mxu0
        %v6069 = vadd.f32 0.0, %v6068
        %v6070 = vpop.f32.mrb[0].mxu0
        %6071 = vdwg.mxu0
        %v6072 = vadd.f32 %v5192, %v6042
        %v6073 = vadd.f32 %v5193, %v6045
        %v6074 = vadd.f32 %v5194, %v6050
        %v6075 = vadd.f32 %v5195, %v6053
        %v6076 = vadd.f32 %v5196, %v6058
        %v6077 = vadd.f32 %v5197, %v6061
        %v6078 = vadd.f32 %v5198, %v6066
        %v6079 = vadd.f32 %v5199, %v6069
        %s6080 = scalar_lea.vmem %s18, 1
        %v6081 = vld [vmem:[%s6080] sm:$0x1]
        %v6083 = vlaneseq
        %v6084 = vshrl.u32 %v6083, 7
        %v6085 = vsub.s32 0, %v6084
        %v6086 = vrot.slane %v6081, %v6085
        %v6088 = vadd.f32 %v6072, %v6086
        %v6089 = vadd.f32 %v6073, %v6086
        %v6090 = vadd.f32 %v6074, %v6086
        %v6091 = vadd.f32 %v6075, %v6086
        %v6092 = vadd.f32 %v6076, %v6086
        %v6093 = vadd.f32 %v6077, %v6086
        %v6094 = vadd.f32 %v6078, %v6086
        %v6095 = vadd.f32 %v6079, %v6086
        %s6096 = scalar_lea.vmem %s5, 2
        %v6097 = vld [vmem:[%s6096] sm:$0x1]
        %s6098 = scalar_lea.vmem %s6, 2
        %v6099 = vld [vmem:[%s6098] sm:$0x1]
        %v6100 = vsel %vm859, %v6088, 0.0
        %6101 = vadd.xlane.f32.xlu0 %v6100
        %v6102 = vpop.xlane.xlu0 %6101
        %v6103 = vsel %vm859, %v6089, 0.0
        %6104 = vadd.xlane.f32.xlu0 %v6103
        %v6105 = vpop.xlane.xlu0 %6104
        %v6106 = vsel %vm859, %v6090, 0.0
        %6107 = vadd.xlane.f32.xlu0 %v6106
        %v6108 = vpop.xlane.xlu0 %6107
        %v6109 = vsel %vm859, %v6091, 0.0
        %6110 = vadd.xlane.f32.xlu0 %v6109
        %v6111 = vpop.xlane.xlu0 %6110
        %v6112 = vsel %vm859, %v6092, 0.0
        %6113 = vadd.xlane.f32.xlu0 %v6112
        %v6114 = vpop.xlane.xlu0 %6113
        %v6115 = vsel %vm859, %v6093, 0.0
        %6116 = vadd.xlane.f32.xlu0 %v6115
        %v6117 = vpop.xlane.xlu0 %6116
        %v6118 = vsel %vm859, %v6094, 0.0
        %6119 = vadd.xlane.f32.xlu0 %v6118
        %v6120 = vpop.xlane.xlu0 %6119
        %v6121 = vsel %vm859, %v6095, 0.0
        %6122 = vadd.xlane.f32.xlu0 %v6121
        %v6123 = vpop.xlane.xlu0 %6122
        %v6124 = vmul.f32 %v6102, %v884
        %v6125 = vmul.f32 %v6105, %v884
        %v6126 = vmul.f32 %v6108, %v884
        %v6127 = vmul.f32 %v6111, %v884
        %v6128 = vmul.f32 %v6114, %v884
        %v6129 = vmul.f32 %v6117, %v884
        %v6130 = vmul.f32 %v6120, %v884
        %v6131 = vmul.f32 %v6123, %v884
        %v6132 = vsub.f32 %v6088, %v6124
        %v6133 = vsub.f32 %v6089, %v6125
        %v6134 = vsub.f32 %v6090, %v6126
        %v6135 = vsub.f32 %v6091, %v6127
        %v6136 = vsub.f32 %v6092, %v6128
        %v6137 = vsub.f32 %v6093, %v6129
        %v6138 = vsub.f32 %v6094, %v6130
        %v6139 = vsub.f32 %v6095, %v6131
        %v6140 = vmul.f32 %v6132, %v6132
        %v6141 = vmul.f32 %v6133, %v6133
        %v6142 = vmul.f32 %v6134, %v6134
        %v6143 = vmul.f32 %v6135, %v6135
        %v6144 = vmul.f32 %v6136, %v6136
        %v6145 = vmul.f32 %v6137, %v6137
        %v6146 = vmul.f32 %v6138, %v6138
        %v6147 = vmul.f32 %v6139, %v6139
        %v6148 = vsel %vm859, %v6140, 0.0
        %6149 = vadd.xlane.f32.xlu0 %v6148
        %v6150 = vpop.xlane.xlu0 %6149
        %v6151 = vsel %vm859, %v6141, 0.0
        %6152 = vadd.xlane.f32.xlu0 %v6151
        %v6153 = vpop.xlane.xlu0 %6152
        %v6154 = vsel %vm859, %v6142, 0.0
        %6155 = vadd.xlane.f32.xlu0 %v6154
        %v6156 = vpop.xlane.xlu0 %6155
        %v6157 = vsel %vm859, %v6143, 0.0
        %6158 = vadd.xlane.f32.xlu0 %v6157
        %v6159 = vpop.xlane.xlu0 %6158
        %v6160 = vsel %vm859, %v6144, 0.0
        %6161 = vadd.xlane.f32.xlu0 %v6160
        %v6162 = vpop.xlane.xlu0 %6161
        %v6163 = vsel %vm859, %v6145, 0.0
        %6164 = vadd.xlane.f32.xlu0 %v6163
        %v6165 = vpop.xlane.xlu0 %6164
        %v6166 = vsel %vm859, %v6146, 0.0
        %6167 = vadd.xlane.f32.xlu0 %v6166
        %v6168 = vpop.xlane.xlu0 %6167
        %v6169 = vsel %vm859, %v6147, 0.0
        %6170 = vadd.xlane.f32.xlu0 %v6169
        %v6171 = vpop.xlane.xlu0 %6170
        %v6172 = vmul.f32 %v6150, %v884
        %v6173 = vmul.f32 %v6153, %v884
        %v6174 = vmul.f32 %v6156, %v884
        %v6175 = vmul.f32 %v6159, %v884
        %v6176 = vmul.f32 %v6162, %v884
        %v6177 = vmul.f32 %v6165, %v884
        %v6178 = vmul.f32 %v6168, %v884
        %v6179 = vmul.f32 %v6171, %v884
        %v6180 = vadd.f32 %v6172, 1e-05
        %v6181 = vadd.f32 %v6173, 1e-05
        %v6182 = vadd.f32 %v6174, 1e-05
        %v6183 = vadd.f32 %v6175, 1e-05
        %v6184 = vadd.f32 %v6176, 1e-05
        %v6185 = vadd.f32 %v6177, 1e-05
        %v6186 = vadd.f32 %v6178, 1e-05
        %v6187 = vadd.f32 %v6179, 1e-05
        %v6188 = vrsqrt.pop %v6180
        %v6189 = vrsqrt.pop %v6181
        %v6190 = vrsqrt.pop %v6182
        %v6191 = vrsqrt.pop %v6183
        %v6192 = vrsqrt.pop %v6184
        %v6193 = vrsqrt.pop %v6185
        %v6194 = vrsqrt.pop %v6186
        %v6195 = vrsqrt.pop %v6187
        %v6196 = vmul.f32 %v6132, %v6188
        %v6197 = vmul.f32 %v6133, %v6189
        %v6198 = vmul.f32 %v6134, %v6190
        %v6199 = vmul.f32 %v6135, %v6191
        %v6200 = vmul.f32 %v6136, %v6192
        %v6201 = vmul.f32 %v6137, %v6193
        %v6202 = vmul.f32 %v6138, %v6194
        %v6203 = vmul.f32 %v6139, %v6195
        %v6205 = vlaneseq
        %v6206 = vshrl.u32 %v6205, 7
        %v6207 = vsub.s32 0, %v6206
        %v6208 = vrot.slane %v6097, %v6207
        %v6210 = vmul.f32 %v6196, %v6208
        %v6211 = vmul.f32 %v6197, %v6208
        %v6212 = vmul.f32 %v6198, %v6208
        %v6213 = vmul.f32 %v6199, %v6208
        %v6214 = vmul.f32 %v6200, %v6208
        %v6215 = vmul.f32 %v6201, %v6208
        %v6216 = vmul.f32 %v6202, %v6208
        %v6217 = vmul.f32 %v6203, %v6208
        %v6219 = vlaneseq
        %v6220 = vshrl.u32 %v6219, 7
        %v6221 = vsub.s32 0, %v6220
        %v6222 = vrot.slane %v6099, %v6221
        %v6224 = vadd.f32 %v6210, %v6222
        %v6225 = vadd.f32 %v6211, %v6222
        %v6226 = vadd.f32 %v6212, %v6222
        %v6227 = vadd.f32 %v6213, %v6222
        %v6228 = vadd.f32 %v6214, %v6222
        %v6229 = vadd.f32 %v6215, %v6222
        %v6230 = vadd.f32 %v6216, %v6222
        %v6231 = vadd.f32 %v6217, %v6222
        %s6232 = scalar_lea.vmem %s7, 32
        %v6233 = vld [vmem:[%s6232] sm:$0xf]
        %v6234 = vld [vmem:[%s6232 + $0x4] sm:$0xf]
        %v6235 = vld [vmem:[%s6232 + $0x8] sm:$0xf]
        %v6236 = vld [vmem:[%s6232 + $0xc] sm:$0xf]
        %v6237 = vpack.c.bf16 %v6225, %v6224
        %v6238 = vpack.c.bf16 %v6227, %v6226
        %v6239 = vpack.c.bf16 %v6229, %v6228
        %v6240 = vpack.c.bf16 %v6231, %v6230
        %s6241 = scalar_lea.vmem %s8, 2
        %v6242 = vld [vmem:[%s6241] sm:$0x1]
        %v6244 = vlaneseq
        %v6245 = vshrl.u32 %v6244, 7
        %v6246 = vsub.s32 0, %v6245
        %v6247 = vrot.slane %v6242, %v6246
        %v6253 = vunpack.c.l.b16 %v6233
        %v6254 = vunpack.c.l.b16 %v6234
        %v6255 = vunpack.c.l.b16 %v6235
        %v6256 = vunpack.c.l.b16 %v6236
        %v6257 = vpack.c.b16 %v6254, %v6253
        %v6258 = vpack.c.b16 %v6256, %v6255
        %v6262 = vsel %vm859, %v6237, 0
        %v6265 = vsel %vm859, %v6238, 0
        %v6268 = vsel %vm859, %v6239, 0
        %v6271 = vsel %vm859, %v6240, 0
        %6273 = vmatprep.subr.bf16.mxu0 0
        %6274 = vmatpush1.bf16.msra.mxu0 %v6257
        %6275 = vmatprep.subr.bf16.mxu0 0
        %6276 = vmatpush1.bf16.msra.mxu0 %v6258
        %6277 = vmatprep.subr.bf16.mxu0 0
        %6278 = vmatpush1.bf16.msra.mxu0 0
        %6279 = vmatprep.subr.bf16.mxu0 0
        %6280 = vmatpush1.bf16.msra.mxu0 0
        %6281 = vmatprep.subr.bf16.mxu0 0
        %6282 = vmatpush1.bf16.msra.mxu0 0
        %6283 = vmatprep.subr.bf16.mxu0 0
        %6284 = vmatpush1.bf16.msra.mxu0 0
        %6285 = vmatprep.subr.bf16.mxu0 0
        %6286 = vmatpush1.bf16.msra.mxu0 0
        %6287 = vmatprep.subr.bf16.mxu0 0
        %6288 = vmatpush1.bf16.msra.mxu0 0
        %6289 = vmatprep.subr.bf16.mxu0 0
        %6290 = vmatpush1.bf16.msra.mxu0 0
        %6291 = vmatprep.subr.bf16.mxu0 0
        %6292 = vmatpush1.bf16.msra.mxu0 0
        %6293 = vmatprep.subr.bf16.mxu0 0
        %6294 = vmatpush1.bf16.msra.mxu0 0
        %6295 = vmatprep.subr.bf16.mxu0 0
        %6296 = vmatpush1.bf16.msra.mxu0 0
        %6297 = vmatprep.subr.bf16.mxu0 0
        %6298 = vmatpush1.bf16.msra.mxu0 0
        %6299 = vmatprep.subr.bf16.mxu0 0
        %6300 = vmatpush1.bf16.msra.mxu0 0
        %6301 = vmatprep.subr.bf16.mxu0 0
        %6302 = vmatpush1.bf16.msra.mxu0 0
        %6303 = vmatprep.subr.bf16.mxu0 0
        %6304 = vmatpush1.bf16.msra.mxu0 0
        %6305 = vmatprep.mubr.bf16.mxu0 0
        %6306 = vmatmul.mubr.bf16.gmra.mrb[0].mxu0 %v6262
        %v6307 = vpop.f32.mrb[0].mxu0
        %v6308 = vadd.f32 %v6247, %v6307
        %v6309 = vpop.f32.mrb[0].mxu0
        %v6310 = vpop.f32.mrb[0].mxu0
        %v6311 = vadd.f32 %v6247, %v6310
        %v6312 = vpop.f32.mrb[0].mxu0
        %6313 = vmatprep.mubr.bf16.mxu0 0
        %6314 = vmatmul.mubr.bf16.gmra.mrb[0].mxu0 %v6265
        %v6315 = vpop.f32.mrb[0].mxu0
        %v6316 = vadd.f32 %v6247, %v6315
        %v6317 = vpop.f32.mrb[0].mxu0
        %v6318 = vpop.f32.mrb[0].mxu0
        %v6319 = vadd.f32 %v6247, %v6318
        %v6320 = vpop.f32.mrb[0].mxu0
        %6321 = vmatprep.mubr.bf16.mxu0 0
        %6322 = vmatmul.mubr.bf16.gmra.mrb[0].mxu0 %v6268
        %v6323 = vpop.f32.mrb[0].mxu0
        %v6324 = vadd.f32 %v6247, %v6323
        %v6325 = vpop.f32.mrb[0].mxu0
        %v6326 = vpop.f32.mrb[0].mxu0
        %v6327 = vadd.f32 %v6247, %v6326
        %v6328 = vpop.f32.mrb[0].mxu0
        %6329 = vmatprep.mubr.bf16.mxu0 0
        %6330 = vmatmul.mubr.bf16.gmra.mrb[0].mxu0 %v6271
        %v6331 = vpop.f32.mrb[0].mxu0
        %v6332 = vadd.f32 %v6247, %v6331
        %v6333 = vpop.f32.mrb[0].mxu0
        %v6334 = vpop.f32.mrb[0].mxu0
        %v6335 = vadd.f32 %v6247, %v6334
        %v6336 = vpop.f32.mrb[0].mxu0
        %6337 = vdwg.mxu0
        %v6338 = vpack.c.bf16 %v6311, %v6308
        %v6339 = vpack.c.bf16 %v6319, %v6316
        %v6340 = vpack.c.bf16 %v6327, %v6324
        %v6341 = vpack.c.bf16 %v6335, %v6332
        %6346 = vrot.lane.b32.xlu0 %v6338, 96
        %v6347 = vpop.permute.xlu0 %6346
        %6348 = vrot.lane.b32.xlu0 %v6339, 96
        %v6349 = vpop.permute.xlu0 %6348
        %6350 = vrot.lane.b32.xlu0 %v6340, 96
        %v6351 = vpop.permute.xlu0 %6350
        %6352 = vrot.lane.b32.xlu0 %v6341, 96
        %v6353 = vpop.permute.xlu0 %6352
        %v6355 = vsel %vm1247, %v6338, 0
        %v6358 = vsel %vm1247, %v6339, 0
        %v6361 = vsel %vm1247, %v6340, 0
        %v6364 = vsel %vm1247, %v6341, 0
        %v6367 = vsel %vm1247, %v6347, 0
        %v6370 = vsel %vm1247, %v6349, 0
        %v6373 = vsel %vm1247, %v6351, 0
        %v6376 = vsel %vm1247, %v6353, 0
        %6378 = vmatprep.subr.bf16.mxu0 0
        %6379 = vmatpush1.bf16.xpose.msra.mxu0 %v6367
        %6380 = vmatprep.subr.bf16.mxu0 0
        %6381 = vmatpush1.bf16.xpose.msra.mxu0 %v6370
        %6382 = vmatprep.subr.bf16.mxu0 0
        %6383 = vmatpush1.bf16.xpose.msra.mxu0 %v6373
        %6384 = vmatprep.subr.bf16.mxu0 0
        %6385 = vmatpush1.bf16.xpose.msra.mxu0 %v6376
        %6386 = vmatprep.subr.bf16.mxu0 0
        %6387 = vmatpush1.bf16.xpose.msra.mxu0 0
        %6388 = vmatprep.subr.bf16.mxu0 0
        %6389 = vmatpush1.bf16.xpose.msra.mxu0 0
        %6390 = vmatprep.subr.bf16.mxu0 0
        %6391 = vmatpush1.bf16.xpose.msra.mxu0 0
        %6392 = vmatprep.subr.bf16.mxu0 0
        %6393 = vmatpush1.bf16.xpose.msra.mxu0 0
        %6394 = vmatprep.subr.bf16.mxu0 0
        %6395 = vmatpush1.bf16.xpose.msra.mxu0 0
        %6396 = vmatprep.subr.bf16.mxu0 0
        %6397 = vmatpush1.bf16.xpose.msra.mxu0 0
        %6398 = vmatprep.subr.bf16.mxu0 0
        %6399 = vmatpush1.bf16.xpose.msra.mxu0 0
        %6400 = vmatprep.subr.bf16.mxu0 0
        %6401 = vmatpush1.bf16.xpose.msra.mxu0 0
        %6402 = vmatprep.subr.bf16.mxu0 0
        %6403 = vmatpush1.bf16.xpose.msra.mxu0 0
        %6404 = vmatprep.subr.bf16.mxu0 0
        %6405 = vmatpush1.bf16.xpose.msra.mxu0 0
        %6406 = vmatprep.subr.bf16.mxu0 0
        %6407 = vmatpush1.bf16.xpose.msra.mxu0 0
        %6408 = vmatprep.subr.bf16.mxu0 0
        %6409 = vmatpush1.bf16.xpose.msra.mxu0 0
        %6410 = vmatprep.mubr.bf16.mxu0 0
        %6411 = vmatmul.mubr.bf16.gmra.mrb[0].mxu0 %v6355
        %v6412 = vpop.f32.mrb[0].mxu0
        %v6413 = vadd.f32 0.0, %v6412
        %v6414 = vpop.f32.mrb[0].mxu0
        %v6415 = vpop.f32.mrb[0].mxu0
        %v6416 = vadd.f32 0.0, %v6415
        %v6417 = vpop.f32.mrb[0].mxu0
        %6418 = vmatprep.mubr.bf16.mxu0 0
        %6419 = vmatmul.mubr.bf16.gmra.mrb[0].mxu0 %v6358
        %v6420 = vpop.f32.mrb[0].mxu0
        %v6421 = vadd.f32 0.0, %v6420
        %v6422 = vpop.f32.mrb[0].mxu0
        %v6423 = vpop.f32.mrb[0].mxu0
        %v6424 = vadd.f32 0.0, %v6423
        %v6425 = vpop.f32.mrb[0].mxu0
        %6426 = vmatprep.mubr.bf16.mxu0 0
        %6427 = vmatmul.mubr.bf16.gmra.mrb[0].mxu0 %v6361
        %v6428 = vpop.f32.mrb[0].mxu0
        %v6429 = vadd.f32 0.0, %v6428
        %v6430 = vpop.f32.mrb[0].mxu0
        %v6431 = vpop.f32.mrb[0].mxu0
        %v6432 = vadd.f32 0.0, %v6431
        %v6433 = vpop.f32.mrb[0].mxu0
        %6434 = vmatprep.mubr.bf16.mxu0 0
        %6435 = vmatmul.mubr.bf16.gmra.mrb[0].mxu0 %v6364
        %v6436 = vpop.f32.mrb[0].mxu0
        %v6437 = vadd.f32 0.0, %v6436
        %v6438 = vpop.f32.mrb[0].mxu0
        %v6439 = vpop.f32.mrb[0].mxu0
        %v6440 = vadd.f32 0.0, %v6439
        %v6441 = vpop.f32.mrb[0].mxu0
        %6442 = vdwg.mxu0
        %v6443 = vmul.f32 %v6413, 0.35355338
        %v6444 = vmul.f32 %v6416, 0.35355338
        %v6445 = vmul.f32 %v6421, 0.35355338
        %v6446 = vmul.f32 %v6424, 0.35355338
        %v6447 = vmul.f32 %v6429, 0.35355338
        %v6448 = vmul.f32 %v6432, 0.35355338
        %v6449 = vmul.f32 %v6437, 0.35355338
        %v6450 = vmul.f32 %v6440, 0.35355338
        %v6451 = vsel %vm1345, %v6443, -inf
        %6452 = vmax.xlane.f32.xlu0 %v6451
        %v6453 = vpop.xlane.xlu0 %6452
        %v6454 = vsel %vm1345, %v6444, -inf
        %6455 = vmax.xlane.f32.xlu0 %v6454
        %v6456 = vpop.xlane.xlu0 %6455
        %v6457 = vsel %vm1345, %v6445, -inf
        %6458 = vmax.xlane.f32.xlu0 %v6457
        %v6459 = vpop.xlane.xlu0 %6458
        %v6460 = vsel %vm1345, %v6446, -inf
        %6461 = vmax.xlane.f32.xlu0 %v6460
        %v6462 = vpop.xlane.xlu0 %6461
        %v6463 = vsel %vm1345, %v6447, -inf
        %6464 = vmax.xlane.f32.xlu0 %v6463
        %v6465 = vpop.xlane.xlu0 %6464
        %v6466 = vsel %vm1345, %v6448, -inf
        %6467 = vmax.xlane.f32.xlu0 %v6466
        %v6468 = vpop.xlane.xlu0 %6467
        %v6469 = vsel %vm1345, %v6449, -inf
        %6470 = vmax.xlane.f32.xlu0 %v6469
        %v6471 = vpop.xlane.xlu0 %6470
        %v6472 = vsel %vm1345, %v6450, -inf
        %6473 = vmax.xlane.f32.xlu0 %v6472
        %v6474 = vpop.xlane.xlu0 %6473
        %v6475 = vsub.f32 %v6443, %v6453
        %v6476 = vsub.f32 %v6444, %v6456
        %v6477 = vsub.f32 %v6445, %v6459
        %v6478 = vsub.f32 %v6446, %v6462
        %v6479 = vsub.f32 %v6447, %v6465
        %v6480 = vsub.f32 %v6448, %v6468
        %v6481 = vsub.f32 %v6449, %v6471
        %v6482 = vsub.f32 %v6450, %v6474
        %v6483 = vmul.f32 %v6475, 1.442695
        %v6484 = vpow.pop %v6483
        %v6485 = vmul.f32 %v6476, 1.442695
        %v6486 = vpow.pop %v6485
        %v6487 = vmul.f32 %v6477, 1.442695
        %v6488 = vpow.pop %v6487
        %v6489 = vmul.f32 %v6478, 1.442695
        %v6490 = vpow.pop %v6489
        %v6491 = vmul.f32 %v6479, 1.442695
        %v6492 = vpow.pop %v6491
        %v6493 = vmul.f32 %v6480, 1.442695
        %v6494 = vpow.pop %v6493
        %v6495 = vmul.f32 %v6481, 1.442695
        %v6496 = vpow.pop %v6495
        %v6497 = vmul.f32 %v6482, 1.442695
        %v6498 = vpow.pop %v6497
        %v6499 = vsel %vm1345, %v6484, 0.0
        %6500 = vadd.xlane.f32.xlu0 %v6499
        %v6501 = vpop.xlane.xlu0 %6500
        %v6502 = vsel %vm1345, %v6486, 0.0
        %6503 = vadd.xlane.f32.xlu0 %v6502
        %v6504 = vpop.xlane.xlu0 %6503
        %v6505 = vsel %vm1345, %v6488, 0.0
        %6506 = vadd.xlane.f32.xlu0 %v6505
        %v6507 = vpop.xlane.xlu0 %6506
        %v6508 = vsel %vm1345, %v6490, 0.0
        %6509 = vadd.xlane.f32.xlu0 %v6508
        %v6510 = vpop.xlane.xlu0 %6509
        %v6511 = vsel %vm1345, %v6492, 0.0
        %6512 = vadd.xlane.f32.xlu0 %v6511
        %v6513 = vpop.xlane.xlu0 %6512
        %v6514 = vsel %vm1345, %v6494, 0.0
        %6515 = vadd.xlane.f32.xlu0 %v6514
        %v6516 = vpop.xlane.xlu0 %6515
        %v6517 = vsel %vm1345, %v6496, 0.0
        %6518 = vadd.xlane.f32.xlu0 %v6517
        %v6519 = vpop.xlane.xlu0 %6518
        %v6520 = vsel %vm1345, %v6498, 0.0
        %6521 = vadd.xlane.f32.xlu0 %v6520
        %v6522 = vpop.xlane.xlu0 %6521
        %v6523 = vrcp.pop %v6501
        %v6524 = vrcp.pop %v6504
        %v6525 = vrcp.pop %v6507
        %v6526 = vrcp.pop %v6510
        %v6527 = vrcp.pop %v6513
        %v6528 = vrcp.pop %v6516
        %v6529 = vrcp.pop %v6519
        %v6530 = vrcp.pop %v6522
        %v6531 = vmul.f32 %v6484, %v6523
        %v6532 = vmul.f32 %v6486, %v6524
        %v6533 = vmul.f32 %v6488, %v6525
        %v6534 = vmul.f32 %v6490, %v6526
        %v6535 = vmul.f32 %v6492, %v6527
        %v6536 = vmul.f32 %v6494, %v6528
        %v6537 = vmul.f32 %v6496, %v6529
        %v6538 = vmul.f32 %v6498, %v6530
        %v6539 = vpack.c.bf16 %v6532, %v6531
        %v6540 = vpack.c.bf16 %v6534, %v6533
        %v6541 = vpack.c.bf16 %v6536, %v6535
        %v6542 = vpack.c.bf16 %v6538, %v6537
        %6543 = vrot.lane.b32.xlu0 %v6338, 64
        %v6544 = vpop.permute.xlu0 %6543
        %6545 = vrot.lane.b32.xlu0 %v6339, 64
        %v6546 = vpop.permute.xlu0 %6545
        %6547 = vrot.lane.b32.xlu0 %v6340, 64
        %v6548 = vpop.permute.xlu0 %6547
        %6549 = vrot.lane.b32.xlu0 %v6341, 64
        %v6550 = vpop.permute.xlu0 %6549
        %v6556 = vsel %vm1345, %v6539, 0
        %v6559 = vsel %vm1345, %v6540, 0
        %v6562 = vsel %vm1345, %v6541, 0
        %v6565 = vsel %vm1345, %v6542, 0
        %6567 = vmatprep.subr.bf16.mxu0 0
        %6568 = vmatpush1.bf16.msra.mxu0 %v6544
        %6569 = vmatprep.subr.bf16.mxu0 0
        %6570 = vmatpush1.bf16.msra.mxu0 %v6546
        %6571 = vmatprep.subr.bf16.mxu0 0
        %6572 = vmatpush1.bf16.msra.mxu0 %v6548
        %6573 = vmatprep.subr.bf16.mxu0 0
        %6574 = vmatpush1.bf16.msra.mxu0 %v6550
        %6575 = vmatprep.subr.bf16.mxu0 0
        %6576 = vmatpush1.bf16.msra.mxu0 0
        %6577 = vmatprep.subr.bf16.mxu0 0
        %6578 = vmatpush1.bf16.msra.mxu0 0
        %6579 = vmatprep.subr.bf16.mxu0 0
        %6580 = vmatpush1.bf16.msra.mxu0 0
        %6581 = vmatprep.subr.bf16.mxu0 0
        %6582 = vmatpush1.bf16.msra.mxu0 0
        %6583 = vmatprep.subr.bf16.mxu0 0
        %6584 = vmatpush1.bf16.msra.mxu0 0
        %6585 = vmatprep.subr.bf16.mxu0 0
        %6586 = vmatpush1.bf16.msra.mxu0 0
        %6587 = vmatprep.subr.bf16.mxu0 0
        %6588 = vmatpush1.bf16.msra.mxu0 0
        %6589 = vmatprep.subr.bf16.mxu0 0
        %6590 = vmatpush1.bf16.msra.mxu0 0
        %6591 = vmatprep.subr.bf16.mxu0 0
        %6592 = vmatpush1.bf16.msra.mxu0 0
        %6593 = vmatprep.subr.bf16.mxu0 0
        %6594 = vmatpush1.bf16.msra.mxu0 0
        %6595 = vmatprep.subr.bf16.mxu0 0
        %6596 = vmatpush1.bf16.msra.mxu0 0
        %6597 = vmatprep.subr.bf16.mxu0 0
        %6598 = vmatpush1.bf16.msra.mxu0 0
        %6599 = vmatprep.mubr.bf16.mxu0 0
        %6600 = vmatmul.mubr.bf16.gmra.mrb[0].mxu0 %v6556
        %v6601 = vpop.f32.mrb[0].mxu0
        %v6602 = vadd.f32 0.0, %v6601
        %v6603 = vpop.f32.mrb[0].mxu0
        %v6604 = vpop.f32.mrb[0].mxu0
        %v6605 = vadd.f32 0.0, %v6604
        %v6606 = vpop.f32.mrb[0].mxu0
        %6607 = vmatprep.mubr.bf16.mxu0 0
        %6608 = vmatmul.mubr.bf16.gmra.mrb[0].mxu0 %v6559
        %v6609 = vpop.f32.mrb[0].mxu0
        %v6610 = vadd.f32 0.0, %v6609
        %v6611 = vpop.f32.mrb[0].mxu0
        %v6612 = vpop.f32.mrb[0].mxu0
        %v6613 = vadd.f32 0.0, %v6612
        %v6614 = vpop.f32.mrb[0].mxu0
        %6615 = vmatprep.mubr.bf16.mxu0 0
        %6616 = vmatmul.mubr.bf16.gmra.mrb[0].mxu0 %v6562
        %v6617 = vpop.f32.mrb[0].mxu0
        %v6618 = vadd.f32 0.0, %v6617
        %v6619 = vpop.f32.mrb[0].mxu0
        %v6620 = vpop.f32.mrb[0].mxu0
        %v6621 = vadd.f32 0.0, %v6620
        %v6622 = vpop.f32.mrb[0].mxu0
        %6623 = vmatprep.mubr.bf16.mxu0 0
        %6624 = vmatmul.mubr.bf16.gmra.mrb[0].mxu0 %v6565
        %v6625 = vpop.f32.mrb[0].mxu0
        %v6626 = vadd.f32 0.0, %v6625
        %v6627 = vpop.f32.mrb[0].mxu0
        %v6628 = vpop.f32.mrb[0].mxu0
        %v6629 = vadd.f32 0.0, %v6628
        %v6630 = vpop.f32.mrb[0].mxu0
        %6631 = vdwg.mxu0
        %6632 = vrot.lane.b32.xlu0 %v6338, 120
        %v6633 = vpop.permute.xlu0 %6632
        %6634 = vrot.lane.b32.xlu0 %v6339, 120
        %v6635 = vpop.permute.xlu0 %6634
        %6636 = vrot.lane.b32.xlu0 %v6340, 120
        %v6637 = vpop.permute.xlu0 %6636
        %6638 = vrot.lane.b32.xlu0 %v6341, 120
        %v6639 = vpop.permute.xlu0 %6638
        %6640 = vrot.lane.b32.xlu0 %v6338, 88
        %v6641 = vpop.permute.xlu0 %6640
        %6642 = vrot.lane.b32.xlu0 %v6339, 88
        %v6643 = vpop.permute.xlu0 %6642
        %6644 = vrot.lane.b32.xlu0 %v6340, 88
        %v6645 = vpop.permute.xlu0 %6644
        %6646 = vrot.lane.b32.xlu0 %v6341, 88
        %v6647 = vpop.permute.xlu0 %6646
        %v6649 = vsel %vm1247, %v6633, 0
        %v6652 = vsel %vm1247, %v6635, 0
        %v6655 = vsel %vm1247, %v6637, 0
        %v6658 = vsel %vm1247, %v6639, 0
        %v6661 = vsel %vm1247, %v6641, 0
        %v6664 = vsel %vm1247, %v6643, 0
        %v6667 = vsel %vm1247, %v6645, 0
        %v6670 = vsel %vm1247, %v6647, 0
        %6672 = vmatprep.subr.bf16.mxu0 0
        %6673 = vmatpush1.bf16.xpose.msra.mxu0 %v6661
        %6674 = vmatprep.subr.bf16.mxu0 0
        %6675 = vmatpush1.bf16.xpose.msra.mxu0 %v6664
        %6676 = vmatprep.subr.bf16.mxu0 0
        %6677 = vmatpush1.bf16.xpose.msra.mxu0 %v6667
        %6678 = vmatprep.subr.bf16.mxu0 0
        %6679 = vmatpush1.bf16.xpose.msra.mxu0 %v6670
        %6680 = vmatprep.subr.bf16.mxu0 0
        %6681 = vmatpush1.bf16.xpose.msra.mxu0 0
        %6682 = vmatprep.subr.bf16.mxu0 0
        %6683 = vmatpush1.bf16.xpose.msra.mxu0 0
        %6684 = vmatprep.subr.bf16.mxu0 0
        %6685 = vmatpush1.bf16.xpose.msra.mxu0 0
        %6686 = vmatprep.subr.bf16.mxu0 0
        %6687 = vmatpush1.bf16.xpose.msra.mxu0 0
        %6688 = vmatprep.subr.bf16.mxu0 0
        %6689 = vmatpush1.bf16.xpose.msra.mxu0 0
        %6690 = vmatprep.subr.bf16.mxu0 0
        %6691 = vmatpush1.bf16.xpose.msra.mxu0 0
        %6692 = vmatprep.subr.bf16.mxu0 0
        %6693 = vmatpush1.bf16.xpose.msra.mxu0 0
        %6694 = vmatprep.subr.bf16.mxu0 0
        %6695 = vmatpush1.bf16.xpose.msra.mxu0 0
        %6696 = vmatprep.subr.bf16.mxu0 0
        %6697 = vmatpush1.bf16.xpose.msra.mxu0 0
        %6698 = vmatprep.subr.bf16.mxu0 0
        %6699 = vmatpush1.bf16.xpose.msra.mxu0 0
        %6700 = vmatprep.subr.bf16.mxu0 0
        %6701 = vmatpush1.bf16.xpose.msra.mxu0 0
        %6702 = vmatprep.subr.bf16.mxu0 0
        %6703 = vmatpush1.bf16.xpose.msra.mxu0 0
        %6704 = vmatprep.mubr.bf16.mxu0 0
        %6705 = vmatmul.mubr.bf16.gmra.mrb[0].mxu0 %v6649
        %v6706 = vpop.f32.mrb[0].mxu0
        %v6707 = vadd.f32 0.0, %v6706
        %v6708 = vpop.f32.mrb[0].mxu0
        %v6709 = vpop.f32.mrb[0].mxu0
        %v6710 = vadd.f32 0.0, %v6709
        %v6711 = vpop.f32.mrb[0].mxu0
        %6712 = vmatprep.mubr.bf16.mxu0 0
        %6713 = vmatmul.mubr.bf16.gmra.mrb[0].mxu0 %v6652
        %v6714 = vpop.f32.mrb[0].mxu0
        %v6715 = vadd.f32 0.0, %v6714
        %v6716 = vpop.f32.mrb[0].mxu0
        %v6717 = vpop.f32.mrb[0].mxu0
        %v6718 = vadd.f32 0.0, %v6717
        %v6719 = vpop.f32.mrb[0].mxu0
        %6720 = vmatprep.mubr.bf16.mxu0 0
        %6721 = vmatmul.mubr.bf16.gmra.mrb[0].mxu0 %v6655
        %v6722 = vpop.f32.mrb[0].mxu0
        %v6723 = vadd.f32 0.0, %v6722
        %v6724 = vpop.f32.mrb[0].mxu0
        %v6725 = vpop.f32.mrb[0].mxu0
        %v6726 = vadd.f32 0.0, %v6725
        %v6727 = vpop.f32.mrb[0].mxu0
        %6728 = vmatprep.mubr.bf16.mxu0 0
        %6729 = vmatmul.mubr.bf16.gmra.mrb[0].mxu0 %v6658
        %v6730 = vpop.f32.mrb[0].mxu0
        %v6731 = vadd.f32 0.0, %v6730
        %v6732 = vpop.f32.mrb[0].mxu0
        %v6733 = vpop.f32.mrb[0].mxu0
        %v6734 = vadd.f32 0.0, %v6733
        %v6735 = vpop.f32.mrb[0].mxu0
        %6736 = vdwg.mxu0
        %v6737 = vmul.f32 %v6707, 0.35355338
        %v6738 = vmul.f32 %v6710, 0.35355338
        %v6739 = vmul.f32 %v6715, 0.35355338
        %v6740 = vmul.f32 %v6718, 0.35355338
        %v6741 = vmul.f32 %v6723, 0.35355338
        %v6742 = vmul.f32 %v6726, 0.35355338
        %v6743 = vmul.f32 %v6731, 0.35355338
        %v6744 = vmul.f32 %v6734, 0.35355338
        %v6745 = vsel %vm1345, %v6737, -inf
        %6746 = vmax.xlane.f32.xlu0 %v6745
        %v6747 = vpop.xlane.xlu0 %6746
        %v6748 = vsel %vm1345, %v6738, -inf
        %6749 = vmax.xlane.f32.xlu0 %v6748
        %v6750 = vpop.xlane.xlu0 %6749
        %v6751 = vsel %vm1345, %v6739, -inf
        %6752 = vmax.xlane.f32.xlu0 %v6751
        %v6753 = vpop.xlane.xlu0 %6752
        %v6754 = vsel %vm1345, %v6740, -inf
        %6755 = vmax.xlane.f32.xlu0 %v6754
        %v6756 = vpop.xlane.xlu0 %6755
        %v6757 = vsel %vm1345, %v6741, -inf
        %6758 = vmax.xlane.f32.xlu0 %v6757
        %v6759 = vpop.xlane.xlu0 %6758
        %v6760 = vsel %vm1345, %v6742, -inf
        %6761 = vmax.xlane.f32.xlu0 %v6760
        %v6762 = vpop.xlane.xlu0 %6761
        %v6763 = vsel %vm1345, %v6743, -inf
        %6764 = vmax.xlane.f32.xlu0 %v6763
        %v6765 = vpop.xlane.xlu0 %6764
        %v6766 = vsel %vm1345, %v6744, -inf
        %6767 = vmax.xlane.f32.xlu0 %v6766
        %v6768 = vpop.xlane.xlu0 %6767
        %v6769 = vsub.f32 %v6737, %v6747
        %v6770 = vsub.f32 %v6738, %v6750
        %v6771 = vsub.f32 %v6739, %v6753
        %v6772 = vsub.f32 %v6740, %v6756
        %v6773 = vsub.f32 %v6741, %v6759
        %v6774 = vsub.f32 %v6742, %v6762
        %v6775 = vsub.f32 %v6743, %v6765
        %v6776 = vsub.f32 %v6744, %v6768
        %v6777 = vmul.f32 %v6769, 1.442695
        %v6778 = vpow.pop %v6777
        %v6779 = vmul.f32 %v6770, 1.442695
        %v6780 = vpow.pop %v6779
        %v6781 = vmul.f32 %v6771, 1.442695
        %v6782 = vpow.pop %v6781
        %v6783 = vmul.f32 %v6772, 1.442695
        %v6784 = vpow.pop %v6783
        %v6785 = vmul.f32 %v6773, 1.442695
        %v6786 = vpow.pop %v6785
        %v6787 = vmul.f32 %v6774, 1.442695
        %v6788 = vpow.pop %v6787
        %v6789 = vmul.f32 %v6775, 1.442695
        %v6790 = vpow.pop %v6789
        %v6791 = vmul.f32 %v6776, 1.442695
        %v6792 = vpow.pop %v6791
        %v6793 = vsel %vm1345, %v6778, 0.0
        %6794 = vadd.xlane.f32.xlu0 %v6793
        %v6795 = vpop.xlane.xlu0 %6794
        %v6796 = vsel %vm1345, %v6780, 0.0
        %6797 = vadd.xlane.f32.xlu0 %v6796
        %v6798 = vpop.xlane.xlu0 %6797
        %v6799 = vsel %vm1345, %v6782, 0.0
        %6800 = vadd.xlane.f32.xlu0 %v6799
        %v6801 = vpop.xlane.xlu0 %6800
        %v6802 = vsel %vm1345, %v6784, 0.0
        %6803 = vadd.xlane.f32.xlu0 %v6802
        %v6804 = vpop.xlane.xlu0 %6803
        %v6805 = vsel %vm1345, %v6786, 0.0
        %6806 = vadd.xlane.f32.xlu0 %v6805
        %v6807 = vpop.xlane.xlu0 %6806
        %v6808 = vsel %vm1345, %v6788, 0.0
        %6809 = vadd.xlane.f32.xlu0 %v6808
        %v6810 = vpop.xlane.xlu0 %6809
        %v6811 = vsel %vm1345, %v6790, 0.0
        %6812 = vadd.xlane.f32.xlu0 %v6811
        %v6813 = vpop.xlane.xlu0 %6812
        %v6814 = vsel %vm1345, %v6792, 0.0
        %6815 = vadd.xlane.f32.xlu0 %v6814
        %v6816 = vpop.xlane.xlu0 %6815
        %v6817 = vrcp.pop %v6795
        %v6818 = vrcp.pop %v6798
        %v6819 = vrcp.pop %v6801
        %v6820 = vrcp.pop %v6804
        %v6821 = vrcp.pop %v6807
        %v6822 = vrcp.pop %v6810
        %v6823 = vrcp.pop %v6813
        %v6824 = vrcp.pop %v6816
        %v6825 = vmul.f32 %v6778, %v6817
        %v6826 = vmul.f32 %v6780, %v6818
        %v6827 = vmul.f32 %v6782, %v6819
        %v6828 = vmul.f32 %v6784, %v6820
        %v6829 = vmul.f32 %v6786, %v6821
        %v6830 = vmul.f32 %v6788, %v6822
        %v6831 = vmul.f32 %v6790, %v6823
        %v6832 = vmul.f32 %v6792, %v6824
        %v6833 = vpack.c.bf16 %v6826, %v6825
        %v6834 = vpack.c.bf16 %v6828, %v6827
        %v6835 = vpack.c.bf16 %v6830, %v6829
        %v6836 = vpack.c.bf16 %v6832, %v6831
        %6837 = vrot.lane.b32.xlu0 %v6338, 56
        %v6838 = vpop.permute.xlu0 %6837
        %6839 = vrot.lane.b32.xlu0 %v6339, 56
        %v6840 = vpop.permute.xlu0 %6839
        %6841 = vrot.lane.b32.xlu0 %v6340, 56
        %v6842 = vpop.permute.xlu0 %6841
        %6843 = vrot.lane.b32.xlu0 %v6341, 56
        %v6844 = vpop.permute.xlu0 %6843
        %v6850 = vsel %vm1345, %v6833, 0
        %v6853 = vsel %vm1345, %v6834, 0
        %v6856 = vsel %vm1345, %v6835, 0
        %v6859 = vsel %vm1345, %v6836, 0
        %6861 = vmatprep.subr.bf16.mxu0 0
        %6862 = vmatpush1.bf16.msra.mxu0 %v6838
        %6863 = vmatprep.subr.bf16.mxu0 0
        %6864 = vmatpush1.bf16.msra.mxu0 %v6840
        %6865 = vmatprep.subr.bf16.mxu0 0
        %6866 = vmatpush1.bf16.msra.mxu0 %v6842
        %6867 = vmatprep.subr.bf16.mxu0 0
        %6868 = vmatpush1.bf16.msra.mxu0 %v6844
        %6869 = vmatprep.subr.bf16.mxu0 0
        %6870 = vmatpush1.bf16.msra.mxu0 0
        %6871 = vmatprep.subr.bf16.mxu0 0
        %6872 = vmatpush1.bf16.msra.mxu0 0
        %6873 = vmatprep.subr.bf16.mxu0 0
        %6874 = vmatpush1.bf16.msra.mxu0 0
        %6875 = vmatprep.subr.bf16.mxu0 0
        %6876 = vmatpush1.bf16.msra.mxu0 0
        %6877 = vmatprep.subr.bf16.mxu0 0
        %6878 = vmatpush1.bf16.msra.mxu0 0
        %6879 = vmatprep.subr.bf16.mxu0 0
        %6880 = vmatpush1.bf16.msra.mxu0 0
        %6881 = vmatprep.subr.bf16.mxu0 0
        %6882 = vmatpush1.bf16.msra.mxu0 0
        %6883 = vmatprep.subr.bf16.mxu0 0
        %6884 = vmatpush1.bf16.msra.mxu0 0
        %6885 = vmatprep.subr.bf16.mxu0 0
        %6886 = vmatpush1.bf16.msra.mxu0 0
        %6887 = vmatprep.subr.bf16.mxu0 0
        %6888 = vmatpush1.bf16.msra.mxu0 0
        %6889 = vmatprep.subr.bf16.mxu0 0
        %6890 = vmatpush1.bf16.msra.mxu0 0
        %6891 = vmatprep.subr.bf16.mxu0 0
        %6892 = vmatpush1.bf16.msra.mxu0 0
        %6893 = vmatprep.mubr.bf16.mxu0 0
        %6894 = vmatmul.mubr.bf16.gmra.mrb[0].mxu0 %v6850
        %v6895 = vpop.f32.mrb[0].mxu0
        %v6896 = vadd.f32 0.0, %v6895
        %v6897 = vpop.f32.mrb[0].mxu0
        %v6898 = vpop.f32.mrb[0].mxu0
        %v6899 = vadd.f32 0.0, %v6898
        %v6900 = vpop.f32.mrb[0].mxu0
        %6901 = vmatprep.mubr.bf16.mxu0 0
        %6902 = vmatmul.mubr.bf16.gmra.mrb[0].mxu0 %v6853
        %v6903 = vpop.f32.mrb[0].mxu0
        %v6904 = vadd.f32 0.0, %v6903
        %v6905 = vpop.f32.mrb[0].mxu0
        %v6906 = vpop.f32.mrb[0].mxu0
        %v6907 = vadd.f32 0.0, %v6906
        %v6908 = vpop.f32.mrb[0].mxu0
        %6909 = vmatprep.mubr.bf16.mxu0 0
        %6910 = vmatmul.mubr.bf16.gmra.mrb[0].mxu0 %v6856
        %v6911 = vpop.f32.mrb[0].mxu0
        %v6912 = vadd.f32 0.0, %v6911
        %v6913 = vpop.f32.mrb[0].mxu0
        %v6914 = vpop.f32.mrb[0].mxu0
        %v6915 = vadd.f32 0.0, %v6914
        %v6916 = vpop.f32.mrb[0].mxu0
        %6917 = vmatprep.mubr.bf16.mxu0 0
        %6918 = vmatmul.mubr.bf16.gmra.mrb[0].mxu0 %v6859
        %v6919 = vpop.f32.mrb[0].mxu0
        %v6920 = vadd.f32 0.0, %v6919
        %v6921 = vpop.f32.mrb[0].mxu0
        %v6922 = vpop.f32.mrb[0].mxu0
        %v6923 = vadd.f32 0.0, %v6922
        %v6924 = vpop.f32.mrb[0].mxu0
        %6925 = vdwg.mxu0
        %6926 = vrot.lane.b32.xlu0 %v6338, 112
        %v6927 = vpop.permute.xlu0 %6926
        %6928 = vrot.lane.b32.xlu0 %v6339, 112
        %v6929 = vpop.permute.xlu0 %6928
        %6930 = vrot.lane.b32.xlu0 %v6340, 112
        %v6931 = vpop.permute.xlu0 %6930
        %6932 = vrot.lane.b32.xlu0 %v6341, 112
        %v6933 = vpop.permute.xlu0 %6932
        %6934 = vrot.lane.b32.xlu0 %v6338, 80
        %v6935 = vpop.permute.xlu0 %6934
        %6936 = vrot.lane.b32.xlu0 %v6339, 80
        %v6937 = vpop.permute.xlu0 %6936
        %6938 = vrot.lane.b32.xlu0 %v6340, 80
        %v6939 = vpop.permute.xlu0 %6938
        %6940 = vrot.lane.b32.xlu0 %v6341, 80
        %v6941 = vpop.permute.xlu0 %6940
        %v6943 = vsel %vm1247, %v6927, 0
        %v6946 = vsel %vm1247, %v6929, 0
        %v6949 = vsel %vm1247, %v6931, 0
        %v6952 = vsel %vm1247, %v6933, 0
        %v6955 = vsel %vm1247, %v6935, 0
        %v6958 = vsel %vm1247, %v6937, 0
        %v6961 = vsel %vm1247, %v6939, 0
        %v6964 = vsel %vm1247, %v6941, 0
        %6966 = vmatprep.subr.bf16.mxu0 0
        %6967 = vmatpush1.bf16.xpose.msra.mxu0 %v6955
        %6968 = vmatprep.subr.bf16.mxu0 0
        %6969 = vmatpush1.bf16.xpose.msra.mxu0 %v6958
        %6970 = vmatprep.subr.bf16.mxu0 0
        %6971 = vmatpush1.bf16.xpose.msra.mxu0 %v6961
        %6972 = vmatprep.subr.bf16.mxu0 0
        %6973 = vmatpush1.bf16.xpose.msra.mxu0 %v6964
        %6974 = vmatprep.subr.bf16.mxu0 0
        %6975 = vmatpush1.bf16.xpose.msra.mxu0 0
        %6976 = vmatprep.subr.bf16.mxu0 0
        %6977 = vmatpush1.bf16.xpose.msra.mxu0 0
        %6978 = vmatprep.subr.bf16.mxu0 0
        %6979 = vmatpush1.bf16.xpose.msra.mxu0 0
        %6980 = vmatprep.subr.bf16.mxu0 0
        %6981 = vmatpush1.bf16.xpose.msra.mxu0 0
        %6982 = vmatprep.subr.bf16.mxu0 0
        %6983 = vmatpush1.bf16.xpose.msra.mxu0 0
        %6984 = vmatprep.subr.bf16.mxu0 0
        %6985 = vmatpush1.bf16.xpose.msra.mxu0 0
        %6986 = vmatprep.subr.bf16.mxu0 0
        %6987 = vmatpush1.bf16.xpose.msra.mxu0 0
        %6988 = vmatprep.subr.bf16.mxu0 0
        %6989 = vmatpush1.bf16.xpose.msra.mxu0 0
        %6990 = vmatprep.subr.bf16.mxu0 0
        %6991 = vmatpush1.bf16.xpose.msra.mxu0 0
        %6992 = vmatprep.subr.bf16.mxu0 0
        %6993 = vmatpush1.bf16.xpose.msra.mxu0 0
        %6994 = vmatprep.subr.bf16.mxu0 0
        %6995 = vmatpush1.bf16.xpose.msra.mxu0 0
        %6996 = vmatprep.subr.bf16.mxu0 0
        %6997 = vmatpush1.bf16.xpose.msra.mxu0 0
        %6998 = vmatprep.mubr.bf16.mxu0 0
        %6999 = vmatmul.mubr.bf16.gmra.mrb[0].mxu0 %v6943
        %v7000 = vpop.f32.mrb[0].mxu0
        %v7001 = vadd.f32 0.0, %v7000
        %v7002 = vpop.f32.mrb[0].mxu0
        %v7003 = vpop.f32.mrb[0].mxu0
        %v7004 = vadd.f32 0.0, %v7003
        %v7005 = vpop.f32.mrb[0].mxu0
        %7006 = vmatprep.mubr.bf16.mxu0 0
        %7007 = vmatmul.mubr.bf16.gmra.mrb[0].mxu0 %v6946
        %v7008 = vpop.f32.mrb[0].mxu0
        %v7009 = vadd.f32 0.0, %v7008
        %v7010 = vpop.f32.mrb[0].mxu0
        %v7011 = vpop.f32.mrb[0].mxu0
        %v7012 = vadd.f32 0.0, %v7011
        %v7013 = vpop.f32.mrb[0].mxu0
        %7014 = vmatprep.mubr.bf16.mxu0 0
        %7015 = vmatmul.mubr.bf16.gmra.mrb[0].mxu0 %v6949
        %v7016 = vpop.f32.mrb[0].mxu0
        %v7017 = vadd.f32 0.0, %v7016
        %v7018 = vpop.f32.mrb[0].mxu0
        %v7019 = vpop.f32.mrb[0].mxu0
        %v7020 = vadd.f32 0.0, %v7019
        %v7021 = vpop.f32.mrb[0].mxu0
        %7022 = vmatprep.mubr.bf16.mxu0 0
        %7023 = vmatmul.mubr.bf16.gmra.mrb[0].mxu0 %v6952
        %v7024 = vpop.f32.mrb[0].mxu0
        %v7025 = vadd.f32 0.0, %v7024
        %v7026 = vpop.f32.mrb[0].mxu0
        %v7027 = vpop.f32.mrb[0].mxu0
        %v7028 = vadd.f32 0.0, %v7027
        %v7029 = vpop.f32.mrb[0].mxu0
        %7030 = vdwg.mxu0
        %v7031 = vmul.f32 %v7001, 0.35355338
        %v7032 = vmul.f32 %v7004, 0.35355338
        %v7033 = vmul.f32 %v7009, 0.35355338
        %v7034 = vmul.f32 %v7012, 0.35355338
        %v7035 = vmul.f32 %v7017, 0.35355338
        %v7036 = vmul.f32 %v7020, 0.35355338
        %v7037 = vmul.f32 %v7025, 0.35355338
        %v7038 = vmul.f32 %v7028, 0.35355338
        %v7039 = vsel %vm1345, %v7031, -inf
        %7040 = vmax.xlane.f32.xlu0 %v7039
        %v7041 = vpop.xlane.xlu0 %7040
        %v7042 = vsel %vm1345, %v7032, -inf
        %7043 = vmax.xlane.f32.xlu0 %v7042
        %v7044 = vpop.xlane.xlu0 %7043
        %v7045 = vsel %vm1345, %v7033, -inf
        %7046 = vmax.xlane.f32.xlu0 %v7045
        %v7047 = vpop.xlane.xlu0 %7046
        %v7048 = vsel %vm1345, %v7034, -inf
        %7049 = vmax.xlane.f32.xlu0 %v7048
        %v7050 = vpop.xlane.xlu0 %7049
        %v7051 = vsel %vm1345, %v7035, -inf
        %7052 = vmax.xlane.f32.xlu0 %v7051
        %v7053 = vpop.xlane.xlu0 %7052
        %v7054 = vsel %vm1345, %v7036, -inf
        %7055 = vmax.xlane.f32.xlu0 %v7054
        %v7056 = vpop.xlane.xlu0 %7055
        %v7057 = vsel %vm1345, %v7037, -inf
        %7058 = vmax.xlane.f32.xlu0 %v7057
        %v7059 = vpop.xlane.xlu0 %7058
        %v7060 = vsel %vm1345, %v7038, -inf
        %7061 = vmax.xlane.f32.xlu0 %v7060
        %v7062 = vpop.xlane.xlu0 %7061
        %v7063 = vsub.f32 %v7031, %v7041
        %v7064 = vsub.f32 %v7032, %v7044
        %v7065 = vsub.f32 %v7033, %v7047
        %v7066 = vsub.f32 %v7034, %v7050
        %v7067 = vsub.f32 %v7035, %v7053
        %v7068 = vsub.f32 %v7036, %v7056
        %v7069 = vsub.f32 %v7037, %v7059
        %v7070 = vsub.f32 %v7038, %v7062
        %v7071 = vmul.f32 %v7063, 1.442695
        %v7072 = vpow.pop %v7071
        %v7073 = vmul.f32 %v7064, 1.442695
        %v7074 = vpow.pop %v7073
        %v7075 = vmul.f32 %v7065, 1.442695
        %v7076 = vpow.pop %v7075
        %v7077 = vmul.f32 %v7066, 1.442695
        %v7078 = vpow.pop %v7077
        %v7079 = vmul.f32 %v7067, 1.442695
        %v7080 = vpow.pop %v7079
        %v7081 = vmul.f32 %v7068, 1.442695
        %v7082 = vpow.pop %v7081
        %v7083 = vmul.f32 %v7069, 1.442695
        %v7084 = vpow.pop %v7083
        %v7085 = vmul.f32 %v7070, 1.442695
        %v7086 = vpow.pop %v7085
        %v7087 = vsel %vm1345, %v7072, 0.0
        %7088 = vadd.xlane.f32.xlu0 %v7087
        %v7089 = vpop.xlane.xlu0 %7088
        %v7090 = vsel %vm1345, %v7074, 0.0
        %7091 = vadd.xlane.f32.xlu0 %v7090
        %v7092 = vpop.xlane.xlu0 %7091
        %v7093 = vsel %vm1345, %v7076, 0.0
        %7094 = vadd.xlane.f32.xlu0 %v7093
        %v7095 = vpop.xlane.xlu0 %7094
        %v7096 = vsel %vm1345, %v7078, 0.0
        %7097 = vadd.xlane.f32.xlu0 %v7096
        %v7098 = vpop.xlane.xlu0 %7097
        %v7099 = vsel %vm1345, %v7080, 0.0
        %7100 = vadd.xlane.f32.xlu0 %v7099
        %v7101 = vpop.xlane.xlu0 %7100
        %v7102 = vsel %vm1345, %v7082, 0.0
        %7103 = vadd.xlane.f32.xlu0 %v7102
        %v7104 = vpop.xlane.xlu0 %7103
        %v7105 = vsel %vm1345, %v7084, 0.0
        %7106 = vadd.xlane.f32.xlu0 %v7105
        %v7107 = vpop.xlane.xlu0 %7106
        %v7108 = vsel %vm1345, %v7086, 0.0
        %7109 = vadd.xlane.f32.xlu0 %v7108
        %v7110 = vpop.xlane.xlu0 %7109
        %v7111 = vrcp.pop %v7089
        %v7112 = vrcp.pop %v7092
        %v7113 = vrcp.pop %v7095
        %v7114 = vrcp.pop %v7098
        %v7115 = vrcp.pop %v7101
        %v7116 = vrcp.pop %v7104
        %v7117 = vrcp.pop %v7107
        %v7118 = vrcp.pop %v7110
        %v7119 = vmul.f32 %v7072, %v7111
        %v7120 = vmul.f32 %v7074, %v7112
        %v7121 = vmul.f32 %v7076, %v7113
        %v7122 = vmul.f32 %v7078, %v7114
        %v7123 = vmul.f32 %v7080, %v7115
        %v7124 = vmul.f32 %v7082, %v7116
        %v7125 = vmul.f32 %v7084, %v7117
        %v7126 = vmul.f32 %v7086, %v7118
        %v7127 = vpack.c.bf16 %v7120, %v7119
        %v7128 = vpack.c.bf16 %v7122, %v7121
        %v7129 = vpack.c.bf16 %v7124, %v7123
        %v7130 = vpack.c.bf16 %v7126, %v7125
        %7131 = vrot.lane.b32.xlu0 %v6338, 48
        %v7132 = vpop.permute.xlu0 %7131
        %7133 = vrot.lane.b32.xlu0 %v6339, 48
        %v7134 = vpop.permute.xlu0 %7133
        %7135 = vrot.lane.b32.xlu0 %v6340, 48
        %v7136 = vpop.permute.xlu0 %7135
        %7137 = vrot.lane.b32.xlu0 %v6341, 48
        %v7138 = vpop.permute.xlu0 %7137
        %v7144 = vsel %vm1345, %v7127, 0
        %v7147 = vsel %vm1345, %v7128, 0
        %v7150 = vsel %vm1345, %v7129, 0
        %v7153 = vsel %vm1345, %v7130, 0
        %7155 = vmatprep.subr.bf16.mxu0 0
        %7156 = vmatpush1.bf16.msra.mxu0 %v7132
        %7157 = vmatprep.subr.bf16.mxu0 0
        %7158 = vmatpush1.bf16.msra.mxu0 %v7134
        %7159 = vmatprep.subr.bf16.mxu0 0
        %7160 = vmatpush1.bf16.msra.mxu0 %v7136
        %7161 = vmatprep.subr.bf16.mxu0 0
        %7162 = vmatpush1.bf16.msra.mxu0 %v7138
        %7163 = vmatprep.subr.bf16.mxu0 0
        %7164 = vmatpush1.bf16.msra.mxu0 0
        %7165 = vmatprep.subr.bf16.mxu0 0
        %7166 = vmatpush1.bf16.msra.mxu0 0
        %7167 = vmatprep.subr.bf16.mxu0 0
        %7168 = vmatpush1.bf16.msra.mxu0 0
        %7169 = vmatprep.subr.bf16.mxu0 0
        %7170 = vmatpush1.bf16.msra.mxu0 0
        %7171 = vmatprep.subr.bf16.mxu0 0
        %7172 = vmatpush1.bf16.msra.mxu0 0
        %7173 = vmatprep.subr.bf16.mxu0 0
        %7174 = vmatpush1.bf16.msra.mxu0 0
        %7175 = vmatprep.subr.bf16.mxu0 0
        %7176 = vmatpush1.bf16.msra.mxu0 0
        %7177 = vmatprep.subr.bf16.mxu0 0
        %7178 = vmatpush1.bf16.msra.mxu0 0
        %7179 = vmatprep.subr.bf16.mxu0 0
        %7180 = vmatpush1.bf16.msra.mxu0 0
        %7181 = vmatprep.subr.bf16.mxu0 0
        %7182 = vmatpush1.bf16.msra.mxu0 0
        %7183 = vmatprep.subr.bf16.mxu0 0
        %7184 = vmatpush1.bf16.msra.mxu0 0
        %7185 = vmatprep.subr.bf16.mxu0 0
        %7186 = vmatpush1.bf16.msra.mxu0 0
        %7187 = vmatprep.mubr.bf16.mxu0 0
        %7188 = vmatmul.mubr.bf16.gmra.mrb[0].mxu0 %v7144
        %v7189 = vpop.f32.mrb[0].mxu0
        %v7190 = vadd.f32 0.0, %v7189
        %v7191 = vpop.f32.mrb[0].mxu0
        %v7192 = vpop.f32.mrb[0].mxu0
        %v7193 = vadd.f32 0.0, %v7192
        %v7194 = vpop.f32.mrb[0].mxu0
        %7195 = vmatprep.mubr.bf16.mxu0 0
        %7196 = vmatmul.mubr.bf16.gmra.mrb[0].mxu0 %v7147
        %v7197 = vpop.f32.mrb[0].mxu0
        %v7198 = vadd.f32 0.0, %v7197
        %v7199 = vpop.f32.mrb[0].mxu0
        %v7200 = vpop.f32.mrb[0].mxu0
        %v7201 = vadd.f32 0.0, %v7200
        %v7202 = vpop.f32.mrb[0].mxu0
        %7203 = vmatprep.mubr.bf16.mxu0 0
        %7204 = vmatmul.mubr.bf16.gmra.mrb[0].mxu0 %v7150
        %v7205 = vpop.f32.mrb[0].mxu0
        %v7206 = vadd.f32 0.0, %v7205
        %v7207 = vpop.f32.mrb[0].mxu0
        %v7208 = vpop.f32.mrb[0].mxu0
        %v7209 = vadd.f32 0.0, %v7208
        %v7210 = vpop.f32.mrb[0].mxu0
        %7211 = vmatprep.mubr.bf16.mxu0 0
        %7212 = vmatmul.mubr.bf16.gmra.mrb[0].mxu0 %v7153
        %v7213 = vpop.f32.mrb[0].mxu0
        %v7214 = vadd.f32 0.0, %v7213
        %v7215 = vpop.f32.mrb[0].mxu0
        %v7216 = vpop.f32.mrb[0].mxu0
        %v7217 = vadd.f32 0.0, %v7216
        %v7218 = vpop.f32.mrb[0].mxu0
        %7219 = vdwg.mxu0
        %7220 = vrot.lane.b32.xlu0 %v6338, 104
        %v7221 = vpop.permute.xlu0 %7220
        %7222 = vrot.lane.b32.xlu0 %v6339, 104
        %v7223 = vpop.permute.xlu0 %7222
        %7224 = vrot.lane.b32.xlu0 %v6340, 104
        %v7225 = vpop.permute.xlu0 %7224
        %7226 = vrot.lane.b32.xlu0 %v6341, 104
        %v7227 = vpop.permute.xlu0 %7226
        %7228 = vrot.lane.b32.xlu0 %v6338, 72
        %v7229 = vpop.permute.xlu0 %7228
        %7230 = vrot.lane.b32.xlu0 %v6339, 72
        %v7231 = vpop.permute.xlu0 %7230
        %7232 = vrot.lane.b32.xlu0 %v6340, 72
        %v7233 = vpop.permute.xlu0 %7232
        %7234 = vrot.lane.b32.xlu0 %v6341, 72
        %v7235 = vpop.permute.xlu0 %7234
        %v7237 = vsel %vm1247, %v7221, 0
        %v7240 = vsel %vm1247, %v7223, 0
        %v7243 = vsel %vm1247, %v7225, 0
        %v7246 = vsel %vm1247, %v7227, 0
        %v7249 = vsel %vm1247, %v7229, 0
        %v7252 = vsel %vm1247, %v7231, 0
        %v7255 = vsel %vm1247, %v7233, 0
        %v7258 = vsel %vm1247, %v7235, 0
        %7260 = vmatprep.subr.bf16.mxu0 0
        %7261 = vmatpush1.bf16.xpose.msra.mxu0 %v7249
        %7262 = vmatprep.subr.bf16.mxu0 0
        %7263 = vmatpush1.bf16.xpose.msra.mxu0 %v7252
        %7264 = vmatprep.subr.bf16.mxu0 0
        %7265 = vmatpush1.bf16.xpose.msra.mxu0 %v7255
        %7266 = vmatprep.subr.bf16.mxu0 0
        %7267 = vmatpush1.bf16.xpose.msra.mxu0 %v7258
        %7268 = vmatprep.subr.bf16.mxu0 0
        %7269 = vmatpush1.bf16.xpose.msra.mxu0 0
        %7270 = vmatprep.subr.bf16.mxu0 0
        %7271 = vmatpush1.bf16.xpose.msra.mxu0 0
        %7272 = vmatprep.subr.bf16.mxu0 0
        %7273 = vmatpush1.bf16.xpose.msra.mxu0 0
        %7274 = vmatprep.subr.bf16.mxu0 0
        %7275 = vmatpush1.bf16.xpose.msra.mxu0 0
        %7276 = vmatprep.subr.bf16.mxu0 0
        %7277 = vmatpush1.bf16.xpose.msra.mxu0 0
        %7278 = vmatprep.subr.bf16.mxu0 0
        %7279 = vmatpush1.bf16.xpose.msra.mxu0 0
        %7280 = vmatprep.subr.bf16.mxu0 0
        %7281 = vmatpush1.bf16.xpose.msra.mxu0 0
        %7282 = vmatprep.subr.bf16.mxu0 0
        %7283 = vmatpush1.bf16.xpose.msra.mxu0 0
        %7284 = vmatprep.subr.bf16.mxu0 0
        %7285 = vmatpush1.bf16.xpose.msra.mxu0 0
        %7286 = vmatprep.subr.bf16.mxu0 0
        %7287 = vmatpush1.bf16.xpose.msra.mxu0 0
        %7288 = vmatprep.subr.bf16.mxu0 0
        %7289 = vmatpush1.bf16.xpose.msra.mxu0 0
        %7290 = vmatprep.subr.bf16.mxu0 0
        %7291 = vmatpush1.bf16.xpose.msra.mxu0 0
        %7292 = vmatprep.mubr.bf16.mxu0 0
        %7293 = vmatmul.mubr.bf16.gmra.mrb[0].mxu0 %v7237
        %v7294 = vpop.f32.mrb[0].mxu0
        %v7295 = vadd.f32 0.0, %v7294
        %v7296 = vpop.f32.mrb[0].mxu0
        %v7297 = vpop.f32.mrb[0].mxu0
        %v7298 = vadd.f32 0.0, %v7297
        %v7299 = vpop.f32.mrb[0].mxu0
        %7300 = vmatprep.mubr.bf16.mxu0 0
        %7301 = vmatmul.mubr.bf16.gmra.mrb[0].mxu0 %v7240
        %v7302 = vpop.f32.mrb[0].mxu0
        %v7303 = vadd.f32 0.0, %v7302
        %v7304 = vpop.f32.mrb[0].mxu0
        %v7305 = vpop.f32.mrb[0].mxu0
        %v7306 = vadd.f32 0.0, %v7305
        %v7307 = vpop.f32.mrb[0].mxu0
        %7308 = vmatprep.mubr.bf16.mxu0 0
        %7309 = vmatmul.mubr.bf16.gmra.mrb[0].mxu0 %v7243
        %v7310 = vpop.f32.mrb[0].mxu0
        %v7311 = vadd.f32 0.0, %v7310
        %v7312 = vpop.f32.mrb[0].mxu0
        %v7313 = vpop.f32.mrb[0].mxu0
        %v7314 = vadd.f32 0.0, %v7313
        %v7315 = vpop.f32.mrb[0].mxu0
        %7316 = vmatprep.mubr.bf16.mxu0 0
        %7317 = vmatmul.mubr.bf16.gmra.mrb[0].mxu0 %v7246
        %v7318 = vpop.f32.mrb[0].mxu0
        %v7319 = vadd.f32 0.0, %v7318
        %v7320 = vpop.f32.mrb[0].mxu0
        %v7321 = vpop.f32.mrb[0].mxu0
        %v7322 = vadd.f32 0.0, %v7321
        %v7323 = vpop.f32.mrb[0].mxu0
        %7324 = vdwg.mxu0
        %v7325 = vmul.f32 %v7295, 0.35355338
        %v7326 = vmul.f32 %v7298, 0.35355338
        %v7327 = vmul.f32 %v7303, 0.35355338
        %v7328 = vmul.f32 %v7306, 0.35355338
        %v7329 = vmul.f32 %v7311, 0.35355338
        %v7330 = vmul.f32 %v7314, 0.35355338
        %v7331 = vmul.f32 %v7319, 0.35355338
        %v7332 = vmul.f32 %v7322, 0.35355338
        %v7333 = vsel %vm1345, %v7325, -inf
        %7334 = vmax.xlane.f32.xlu0 %v7333
        %v7335 = vpop.xlane.xlu0 %7334
        %v7336 = vsel %vm1345, %v7326, -inf
        %7337 = vmax.xlane.f32.xlu0 %v7336
        %v7338 = vpop.xlane.xlu0 %7337
        %v7339 = vsel %vm1345, %v7327, -inf
        %7340 = vmax.xlane.f32.xlu0 %v7339
        %v7341 = vpop.xlane.xlu0 %7340
        %v7342 = vsel %vm1345, %v7328, -inf
        %7343 = vmax.xlane.f32.xlu0 %v7342
        %v7344 = vpop.xlane.xlu0 %7343
        %v7345 = vsel %vm1345, %v7329, -inf
        %7346 = vmax.xlane.f32.xlu0 %v7345
        %v7347 = vpop.xlane.xlu0 %7346
        %v7348 = vsel %vm1345, %v7330, -inf
        %7349 = vmax.xlane.f32.xlu0 %v7348
        %v7350 = vpop.xlane.xlu0 %7349
        %v7351 = vsel %vm1345, %v7331, -inf
        %7352 = vmax.xlane.f32.xlu0 %v7351
        %v7353 = vpop.xlane.xlu0 %7352
        %v7354 = vsel %vm1345, %v7332, -inf
        %7355 = vmax.xlane.f32.xlu0 %v7354
        %v7356 = vpop.xlane.xlu0 %7355
        %v7357 = vsub.f32 %v7325, %v7335
        %v7358 = vsub.f32 %v7326, %v7338
        %v7359 = vsub.f32 %v7327, %v7341
        %v7360 = vsub.f32 %v7328, %v7344
        %v7361 = vsub.f32 %v7329, %v7347
        %v7362 = vsub.f32 %v7330, %v7350
        %v7363 = vsub.f32 %v7331, %v7353
        %v7364 = vsub.f32 %v7332, %v7356
        %v7365 = vmul.f32 %v7357, 1.442695
        %v7366 = vpow.pop %v7365
        %v7367 = vmul.f32 %v7358, 1.442695
        %v7368 = vpow.pop %v7367
        %v7369 = vmul.f32 %v7359, 1.442695
        %v7370 = vpow.pop %v7369
        %v7371 = vmul.f32 %v7360, 1.442695
        %v7372 = vpow.pop %v7371
        %v7373 = vmul.f32 %v7361, 1.442695
        %v7374 = vpow.pop %v7373
        %v7375 = vmul.f32 %v7362, 1.442695
        %v7376 = vpow.pop %v7375
        %v7377 = vmul.f32 %v7363, 1.442695
        %v7378 = vpow.pop %v7377
        %v7379 = vmul.f32 %v7364, 1.442695
        %v7380 = vpow.pop %v7379
        %v7381 = vsel %vm1345, %v7366, 0.0
        %7382 = vadd.xlane.f32.xlu0 %v7381
        %v7383 = vpop.xlane.xlu0 %7382
        %v7384 = vsel %vm1345, %v7368, 0.0
        %7385 = vadd.xlane.f32.xlu0 %v7384
        %v7386 = vpop.xlane.xlu0 %7385
        %v7387 = vsel %vm1345, %v7370, 0.0
        %7388 = vadd.xlane.f32.xlu0 %v7387
        %v7389 = vpop.xlane.xlu0 %7388
        %v7390 = vsel %vm1345, %v7372, 0.0
        %7391 = vadd.xlane.f32.xlu0 %v7390
        %v7392 = vpop.xlane.xlu0 %7391
        %v7393 = vsel %vm1345, %v7374, 0.0
        %7394 = vadd.xlane.f32.xlu0 %v7393
        %v7395 = vpop.xlane.xlu0 %7394
        %v7396 = vsel %vm1345, %v7376, 0.0
        %7397 = vadd.xlane.f32.xlu0 %v7396
        %v7398 = vpop.xlane.xlu0 %7397
        %v7399 = vsel %vm1345, %v7378, 0.0
        %7400 = vadd.xlane.f32.xlu0 %v7399
        %v7401 = vpop.xlane.xlu0 %7400
        %v7402 = vsel %vm1345, %v7380, 0.0
        %7403 = vadd.xlane.f32.xlu0 %v7402
        %v7404 = vpop.xlane.xlu0 %7403
        %v7405 = vrcp.pop %v7383
        %v7406 = vrcp.pop %v7386
        %v7407 = vrcp.pop %v7389
        %v7408 = vrcp.pop %v7392
        %v7409 = vrcp.pop %v7395
        %v7410 = vrcp.pop %v7398
        %v7411 = vrcp.pop %v7401
        %v7412 = vrcp.pop %v7404
        %v7413 = vmul.f32 %v7366, %v7405
        %v7414 = vmul.f32 %v7368, %v7406
        %v7415 = vmul.f32 %v7370, %v7407
        %v7416 = vmul.f32 %v7372, %v7408
        %v7417 = vmul.f32 %v7374, %v7409
        %v7418 = vmul.f32 %v7376, %v7410
        %v7419 = vmul.f32 %v7378, %v7411
        %v7420 = vmul.f32 %v7380, %v7412
        %v7421 = vpack.c.bf16 %v7414, %v7413
        %v7422 = vpack.c.bf16 %v7416, %v7415
        %v7423 = vpack.c.bf16 %v7418, %v7417
        %v7424 = vpack.c.bf16 %v7420, %v7419
        %7425 = vrot.lane.b32.xlu0 %v6338, 40
        %v7426 = vpop.permute.xlu0 %7425
        %7427 = vrot.lane.b32.xlu0 %v6339, 40
        %v7428 = vpop.permute.xlu0 %7427
        %7429 = vrot.lane.b32.xlu0 %v6340, 40
        %v7430 = vpop.permute.xlu0 %7429
        %7431 = vrot.lane.b32.xlu0 %v6341, 40
        %v7432 = vpop.permute.xlu0 %7431
        %v7438 = vsel %vm1345, %v7421, 0
        %v7441 = vsel %vm1345, %v7422, 0
        %v7444 = vsel %vm1345, %v7423, 0
        %v7447 = vsel %vm1345, %v7424, 0
        %7449 = vmatprep.subr.bf16.mxu0 0
        %7450 = vmatpush1.bf16.msra.mxu0 %v7426
        %7451 = vmatprep.subr.bf16.mxu0 0
        %7452 = vmatpush1.bf16.msra.mxu0 %v7428
        %7453 = vmatprep.subr.bf16.mxu0 0
        %7454 = vmatpush1.bf16.msra.mxu0 %v7430
        %7455 = vmatprep.subr.bf16.mxu0 0
        %7456 = vmatpush1.bf16.msra.mxu0 %v7432
        %7457 = vmatprep.subr.bf16.mxu0 0
        %7458 = vmatpush1.bf16.msra.mxu0 0
        %7459 = vmatprep.subr.bf16.mxu0 0
        %7460 = vmatpush1.bf16.msra.mxu0 0
        %7461 = vmatprep.subr.bf16.mxu0 0
        %7462 = vmatpush1.bf16.msra.mxu0 0
        %7463 = vmatprep.subr.bf16.mxu0 0
        %7464 = vmatpush1.bf16.msra.mxu0 0
        %7465 = vmatprep.subr.bf16.mxu0 0
        %7466 = vmatpush1.bf16.msra.mxu0 0
        %7467 = vmatprep.subr.bf16.mxu0 0
        %7468 = vmatpush1.bf16.msra.mxu0 0
        %7469 = vmatprep.subr.bf16.mxu0 0
        %7470 = vmatpush1.bf16.msra.mxu0 0
        %7471 = vmatprep.subr.bf16.mxu0 0
        %7472 = vmatpush1.bf16.msra.mxu0 0
        %7473 = vmatprep.subr.bf16.mxu0 0
        %7474 = vmatpush1.bf16.msra.mxu0 0
        %7475 = vmatprep.subr.bf16.mxu0 0
        %7476 = vmatpush1.bf16.msra.mxu0 0
        %7477 = vmatprep.subr.bf16.mxu0 0
        %7478 = vmatpush1.bf16.msra.mxu0 0
        %7479 = vmatprep.subr.bf16.mxu0 0
        %7480 = vmatpush1.bf16.msra.mxu0 0
        %7481 = vmatprep.mubr.bf16.mxu0 0
        %7482 = vmatmul.mubr.bf16.gmra.mrb[0].mxu0 %v7438
        %v7483 = vpop.f32.mrb[0].mxu0
        %v7484 = vadd.f32 0.0, %v7483
        %v7485 = vpop.f32.mrb[0].mxu0
        %v7486 = vpop.f32.mrb[0].mxu0
        %v7487 = vadd.f32 0.0, %v7486
        %v7488 = vpop.f32.mrb[0].mxu0
        %7489 = vmatprep.mubr.bf16.mxu0 0
        %7490 = vmatmul.mubr.bf16.gmra.mrb[0].mxu0 %v7441
        %v7491 = vpop.f32.mrb[0].mxu0
        %v7492 = vadd.f32 0.0, %v7491
        %v7493 = vpop.f32.mrb[0].mxu0
        %v7494 = vpop.f32.mrb[0].mxu0
        %v7495 = vadd.f32 0.0, %v7494
        %v7496 = vpop.f32.mrb[0].mxu0
        %7497 = vmatprep.mubr.bf16.mxu0 0
        %7498 = vmatmul.mubr.bf16.gmra.mrb[0].mxu0 %v7444
        %v7499 = vpop.f32.mrb[0].mxu0
        %v7500 = vadd.f32 0.0, %v7499
        %v7501 = vpop.f32.mrb[0].mxu0
        %v7502 = vpop.f32.mrb[0].mxu0
        %v7503 = vadd.f32 0.0, %v7502
        %v7504 = vpop.f32.mrb[0].mxu0
        %7505 = vmatprep.mubr.bf16.mxu0 0
        %7506 = vmatmul.mubr.bf16.gmra.mrb[0].mxu0 %v7447
        %v7507 = vpop.f32.mrb[0].mxu0
        %v7508 = vadd.f32 0.0, %v7507
        %v7509 = vpop.f32.mrb[0].mxu0
        %v7510 = vpop.f32.mrb[0].mxu0
        %v7511 = vadd.f32 0.0, %v7510
        %v7512 = vpop.f32.mrb[0].mxu0
        %7513 = vdwg.mxu0
        %7522 = vrot.lane.b32.xlu0 %v6896, 8
        %v7523 = vpop.permute.xlu0 %7522
        %7524 = vrot.lane.b32.xlu0 %v6899, 8
        %v7525 = vpop.permute.xlu0 %7524
        %7526 = vrot.lane.b32.xlu0 %v6904, 8
        %v7527 = vpop.permute.xlu0 %7526
        %7528 = vrot.lane.b32.xlu0 %v6907, 8
        %v7529 = vpop.permute.xlu0 %7528
        %7530 = vrot.lane.b32.xlu0 %v6912, 8
        %v7531 = vpop.permute.xlu0 %7530
        %7532 = vrot.lane.b32.xlu0 %v6915, 8
        %v7533 = vpop.permute.xlu0 %7532
        %7534 = vrot.lane.b32.xlu0 %v6920, 8
        %v7535 = vpop.permute.xlu0 %7534
        %7536 = vrot.lane.b32.xlu0 %v6923, 8
        %v7537 = vpop.permute.xlu0 %7536
        %7554 = vrot.lane.b32.xlu0 %v7190, 16
        %v7555 = vpop.permute.xlu0 %7554
        %7556 = vrot.lane.b32.xlu0 %v7193, 16
        %v7557 = vpop.permute.xlu0 %7556
        %7558 = vrot.lane.b32.xlu0 %v7198, 16
        %v7559 = vpop.permute.xlu0 %7558
        %7560 = vrot.lane.b32.xlu0 %v7201, 16
        %v7561 = vpop.permute.xlu0 %7560
        %7562 = vrot.lane.b32.xlu0 %v7206, 16
        %v7563 = vpop.permute.xlu0 %7562
        %7564 = vrot.lane.b32.xlu0 %v7209, 16
        %v7565 = vpop.permute.xlu0 %7564
        %7566 = vrot.lane.b32.xlu0 %v7214, 16
        %v7567 = vpop.permute.xlu0 %7566
        %7568 = vrot.lane.b32.xlu0 %v7217, 16
        %v7569 = vpop.permute.xlu0 %7568
        %7586 = vrot.lane.b32.xlu0 %v7484, 24
        %v7587 = vpop.permute.xlu0 %7586
        %7588 = vrot.lane.b32.xlu0 %v7487, 24
        %v7589 = vpop.permute.xlu0 %7588
        %7590 = vrot.lane.b32.xlu0 %v7492, 24
        %v7591 = vpop.permute.xlu0 %7590
        %7592 = vrot.lane.b32.xlu0 %v7495, 24
        %v7593 = vpop.permute.xlu0 %7592
        %7594 = vrot.lane.b32.xlu0 %v7500, 24
        %v7595 = vpop.permute.xlu0 %7594
        %7596 = vrot.lane.b32.xlu0 %v7503, 24
        %v7597 = vpop.permute.xlu0 %7596
        %7598 = vrot.lane.b32.xlu0 %v7508, 24
        %v7599 = vpop.permute.xlu0 %7598
        %7600 = vrot.lane.b32.xlu0 %v7511, 24
        %v7601 = vpop.permute.xlu0 %7600
        %v7610 = vsel %vm1247, %v6602, %v7523
        %v7611 = vsel %vm1247, %v6605, %v7525
        %v7612 = vsel %vm1247, %v6610, %v7527
        %v7613 = vsel %vm1247, %v6613, %v7529
        %v7614 = vsel %vm1247, %v6618, %v7531
        %v7615 = vsel %vm1247, %v6621, %v7533
        %v7616 = vsel %vm1247, %v6626, %v7535
        %v7617 = vsel %vm1247, %v6629, %v7537
        %v7618 = vsel %vm779, %v7610, %v7555
        %v7619 = vsel %vm779, %v7611, %v7557
        %v7620 = vsel %vm779, %v7612, %v7559
        %v7621 = vsel %vm779, %v7613, %v7561
        %v7622 = vsel %vm779, %v7614, %v7563
        %v7623 = vsel %vm779, %v7615, %v7565
        %v7624 = vsel %vm779, %v7616, %v7567
        %v7625 = vsel %vm779, %v7617, %v7569
        %v7626 = vsel %vm2521, %v7618, %v7587
        %v7627 = vsel %vm2521, %v7619, %v7589
        %v7628 = vsel %vm2521, %v7620, %v7591
        %v7629 = vsel %vm2521, %v7621, %v7593
        %v7630 = vsel %vm2521, %v7622, %v7595
        %v7631 = vsel %vm2521, %v7623, %v7597
        %v7632 = vsel %vm2521, %v7624, %v7599
        %v7633 = vsel %vm2521, %v7625, %v7601
        %s7634 = scalar_lea.vmem %s9, 32
        %v7635 = vld [vmem:[%s7634] sm:$0xf]
        %v7636 = vld [vmem:[%s7634 + $0x4] sm:$0xf]
        %v7637 = vld [vmem:[%s7634 + $0x8] sm:$0xf]
        %v7638 = vld [vmem:[%s7634 + $0xc] sm:$0xf]
        %v7639 = vpack.c.bf16 %v7627, %v7626
        %v7640 = vpack.c.bf16 %v7629, %v7628
        %v7641 = vpack.c.bf16 %v7631, %v7630
        %v7642 = vpack.c.bf16 %v7633, %v7632
        %v7647 = vunpack.c.l.b16 %v7635
        %v7648 = vunpack.c.l.b16 %v7636
        %v7649 = vunpack.c.l.b16 %v7637
        %v7650 = vunpack.c.l.b16 %v7638
        %v7651 = vpack.c.b16 %v7648, %v7647
        %v7652 = vpack.c.b16 %v7650, %v7649
        %v7656 = vsel %vm859, %v7639, 0
        %v7659 = vsel %vm859, %v7640, 0
        %v7662 = vsel %vm859, %v7641, 0
        %v7665 = vsel %vm859, %v7642, 0
        %7667 = vmatprep.subr.bf16.mxu0 0
        %7668 = vmatpush1.bf16.msra.mxu0 %v7651
        %7669 = vmatprep.subr.bf16.mxu0 0
        %7670 = vmatpush1.bf16.msra.mxu0 %v7652
        %7671 = vmatprep.subr.bf16.mxu0 0
        %7672 = vmatpush1.bf16.msra.mxu0 0
        %7673 = vmatprep.subr.bf16.mxu0 0
        %7674 = vmatpush1.bf16.msra.mxu0 0
        %7675 = vmatprep.subr.bf16.mxu0 0
        %7676 = vmatpush1.bf16.msra.mxu0 0
        %7677 = vmatprep.subr.bf16.mxu0 0
        %7678 = vmatpush1.bf16.msra.mxu0 0
        %7679 = vmatprep.subr.bf16.mxu0 0
        %7680 = vmatpush1.bf16.msra.mxu0 0
        %7681 = vmatprep.subr.bf16.mxu0 0
        %7682 = vmatpush1.bf16.msra.mxu0 0
        %7683 = vmatprep.subr.bf16.mxu0 0
        %7684 = vmatpush1.bf16.msra.mxu0 0
        %7685 = vmatprep.subr.bf16.mxu0 0
        %7686 = vmatpush1.bf16.msra.mxu0 0
        %7687 = vmatprep.subr.bf16.mxu0 0
        %7688 = vmatpush1.bf16.msra.mxu0 0
        %7689 = vmatprep.subr.bf16.mxu0 0
        %7690 = vmatpush1.bf16.msra.mxu0 0
        %7691 = vmatprep.subr.bf16.mxu0 0
        %7692 = vmatpush1.bf16.msra.mxu0 0
        %7693 = vmatprep.subr.bf16.mxu0 0
        %7694 = vmatpush1.bf16.msra.mxu0 0
        %7695 = vmatprep.subr.bf16.mxu0 0
        %7696 = vmatpush1.bf16.msra.mxu0 0
        %7697 = vmatprep.subr.bf16.mxu0 0
        %7698 = vmatpush1.bf16.msra.mxu0 0
        %7699 = vmatprep.mubr.bf16.mxu0 0
        %7700 = vmatmul.mubr.bf16.gmra.mrb[0].mxu0 %v7656
        %v7701 = vpop.f32.mrb[0].mxu0
        %v7702 = vadd.f32 0.0, %v7701
        %v7703 = vpop.f32.mrb[0].mxu0
        %v7704 = vpop.f32.mrb[0].mxu0
        %v7705 = vadd.f32 0.0, %v7704
        %v7706 = vpop.f32.mrb[0].mxu0
        %7707 = vmatprep.mubr.bf16.mxu0 0
        %7708 = vmatmul.mubr.bf16.gmra.mrb[0].mxu0 %v7659
        %v7709 = vpop.f32.mrb[0].mxu0
        %v7710 = vadd.f32 0.0, %v7709
        %v7711 = vpop.f32.mrb[0].mxu0
        %v7712 = vpop.f32.mrb[0].mxu0
        %v7713 = vadd.f32 0.0, %v7712
        %v7714 = vpop.f32.mrb[0].mxu0
        %7715 = vmatprep.mubr.bf16.mxu0 0
        %7716 = vmatmul.mubr.bf16.gmra.mrb[0].mxu0 %v7662
        %v7717 = vpop.f32.mrb[0].mxu0
        %v7718 = vadd.f32 0.0, %v7717
        %v7719 = vpop.f32.mrb[0].mxu0
        %v7720 = vpop.f32.mrb[0].mxu0
        %v7721 = vadd.f32 0.0, %v7720
        %v7722 = vpop.f32.mrb[0].mxu0
        %7723 = vmatprep.mubr.bf16.mxu0 0
        %7724 = vmatmul.mubr.bf16.gmra.mrb[0].mxu0 %v7665
        %v7725 = vpop.f32.mrb[0].mxu0
        %v7726 = vadd.f32 0.0, %v7725
        %v7727 = vpop.f32.mrb[0].mxu0
        %v7728 = vpop.f32.mrb[0].mxu0
        %v7729 = vadd.f32 0.0, %v7728
        %v7730 = vpop.f32.mrb[0].mxu0
        %7731 = vdwg.mxu0
        %v7732 = vadd.f32 %v6088, %v7702
        %v7733 = vadd.f32 %v6089, %v7705
        %v7734 = vadd.f32 %v6090, %v7710
        %v7735 = vadd.f32 %v6091, %v7713
        %v7736 = vadd.f32 %v6092, %v7718
        %v7737 = vadd.f32 %v6093, %v7721
        %v7738 = vadd.f32 %v6094, %v7726
        %v7739 = vadd.f32 %v6095, %v7729
        %s7740 = scalar_lea.vmem %s10, 2
        %v7741 = vld [vmem:[%s7740] sm:$0x1]
        %v7743 = vlaneseq
        %v7744 = vshrl.u32 %v7743, 7
        %v7745 = vsub.s32 0, %v7744
        %v7746 = vrot.slane %v7741, %v7745
        %v7748 = vadd.f32 %v7732, %v7746
        %v7749 = vadd.f32 %v7733, %v7746
        %v7750 = vadd.f32 %v7734, %v7746
        %v7751 = vadd.f32 %v7735, %v7746
        %v7752 = vadd.f32 %v7736, %v7746
        %v7753 = vadd.f32 %v7737, %v7746
        %v7754 = vadd.f32 %v7738, %v7746
        %v7755 = vadd.f32 %v7739, %v7746
        %s7756 = scalar_lea.vmem %s11, 2
        %v7757 = vld [vmem:[%s7756] sm:$0x1]
        %s7758 = scalar_lea.vmem %s12, 2
        %v7759 = vld [vmem:[%s7758] sm:$0x1]
        %v7760 = vsel %vm859, %v7748, 0.0
        %7761 = vadd.xlane.f32.xlu0 %v7760
        %v7762 = vpop.xlane.xlu0 %7761
        %v7763 = vsel %vm859, %v7749, 0.0
        %7764 = vadd.xlane.f32.xlu0 %v7763
        %v7765 = vpop.xlane.xlu0 %7764
        %v7766 = vsel %vm859, %v7750, 0.0
        %7767 = vadd.xlane.f32.xlu0 %v7766
        %v7768 = vpop.xlane.xlu0 %7767
        %v7769 = vsel %vm859, %v7751, 0.0
        %7770 = vadd.xlane.f32.xlu0 %v7769
        %v7771 = vpop.xlane.xlu0 %7770
        %v7772 = vsel %vm859, %v7752, 0.0
        %7773 = vadd.xlane.f32.xlu0 %v7772
        %v7774 = vpop.xlane.xlu0 %7773
        %v7775 = vsel %vm859, %v7753, 0.0
        %7776 = vadd.xlane.f32.xlu0 %v7775
        %v7777 = vpop.xlane.xlu0 %7776
        %v7778 = vsel %vm859, %v7754, 0.0
        %7779 = vadd.xlane.f32.xlu0 %v7778
        %v7780 = vpop.xlane.xlu0 %7779
        %v7781 = vsel %vm859, %v7755, 0.0
        %7782 = vadd.xlane.f32.xlu0 %v7781
        %v7783 = vpop.xlane.xlu0 %7782
        %v7784 = vmul.f32 %v7762, %v884
        %v7785 = vmul.f32 %v7765, %v884
        %v7786 = vmul.f32 %v7768, %v884
        %v7787 = vmul.f32 %v7771, %v884
        %v7788 = vmul.f32 %v7774, %v884
        %v7789 = vmul.f32 %v7777, %v884
        %v7790 = vmul.f32 %v7780, %v884
        %v7791 = vmul.f32 %v7783, %v884
        %v7792 = vsub.f32 %v7748, %v7784
        %v7793 = vsub.f32 %v7749, %v7785
        %v7794 = vsub.f32 %v7750, %v7786
        %v7795 = vsub.f32 %v7751, %v7787
        %v7796 = vsub.f32 %v7752, %v7788
        %v7797 = vsub.f32 %v7753, %v7789
        %v7798 = vsub.f32 %v7754, %v7790
        %v7799 = vsub.f32 %v7755, %v7791
        %v7800 = vmul.f32 %v7792, %v7792
        %v7801 = vmul.f32 %v7793, %v7793
        %v7802 = vmul.f32 %v7794, %v7794
        %v7803 = vmul.f32 %v7795, %v7795
        %v7804 = vmul.f32 %v7796, %v7796
        %v7805 = vmul.f32 %v7797, %v7797
        %v7806 = vmul.f32 %v7798, %v7798
        %v7807 = vmul.f32 %v7799, %v7799
        %v7808 = vsel %vm859, %v7800, 0.0
        %7809 = vadd.xlane.f32.xlu0 %v7808
        %v7810 = vpop.xlane.xlu0 %7809
        %v7811 = vsel %vm859, %v7801, 0.0
        %7812 = vadd.xlane.f32.xlu0 %v7811
        %v7813 = vpop.xlane.xlu0 %7812
        %v7814 = vsel %vm859, %v7802, 0.0
        %7815 = vadd.xlane.f32.xlu0 %v7814
        %v7816 = vpop.xlane.xlu0 %7815
        %v7817 = vsel %vm859, %v7803, 0.0
        %7818 = vadd.xlane.f32.xlu0 %v7817
        %v7819 = vpop.xlane.xlu0 %7818
        %v7820 = vsel %vm859, %v7804, 0.0
        %7821 = vadd.xlane.f32.xlu0 %v7820
        %v7822 = vpop.xlane.xlu0 %7821
        %v7823 = vsel %vm859, %v7805, 0.0
        %7824 = vadd.xlane.f32.xlu0 %v7823
        %v7825 = vpop.xlane.xlu0 %7824
        %v7826 = vsel %vm859, %v7806, 0.0
        %7827 = vadd.xlane.f32.xlu0 %v7826
        %v7828 = vpop.xlane.xlu0 %7827
        %v7829 = vsel %vm859, %v7807, 0.0
        %7830 = vadd.xlane.f32.xlu0 %v7829
        %v7831 = vpop.xlane.xlu0 %7830
        %v7832 = vmul.f32 %v7810, %v884
        %v7833 = vmul.f32 %v7813, %v884
        %v7834 = vmul.f32 %v7816, %v884
        %v7835 = vmul.f32 %v7819, %v884
        %v7836 = vmul.f32 %v7822, %v884
        %v7837 = vmul.f32 %v7825, %v884
        %v7838 = vmul.f32 %v7828, %v884
        %v7839 = vmul.f32 %v7831, %v884
        %v7840 = vadd.f32 %v7832, 1e-05
        %v7841 = vadd.f32 %v7833, 1e-05
        %v7842 = vadd.f32 %v7834, 1e-05
        %v7843 = vadd.f32 %v7835, 1e-05
        %v7844 = vadd.f32 %v7836, 1e-05
        %v7845 = vadd.f32 %v7837, 1e-05
        %v7846 = vadd.f32 %v7838, 1e-05
        %v7847 = vadd.f32 %v7839, 1e-05
        %v7848 = vrsqrt.pop %v7840
        %v7849 = vrsqrt.pop %v7841
        %v7850 = vrsqrt.pop %v7842
        %v7851 = vrsqrt.pop %v7843
        %v7852 = vrsqrt.pop %v7844
        %v7853 = vrsqrt.pop %v7845
        %v7854 = vrsqrt.pop %v7846
        %v7855 = vrsqrt.pop %v7847
        %v7856 = vmul.f32 %v7792, %v7848
        %v7857 = vmul.f32 %v7793, %v7849
        %v7858 = vmul.f32 %v7794, %v7850
        %v7859 = vmul.f32 %v7795, %v7851
        %v7860 = vmul.f32 %v7796, %v7852
        %v7861 = vmul.f32 %v7797, %v7853
        %v7862 = vmul.f32 %v7798, %v7854
        %v7863 = vmul.f32 %v7799, %v7855
        %v7865 = vlaneseq
        %v7866 = vshrl.u32 %v7865, 7
        %v7867 = vsub.s32 0, %v7866
        %v7868 = vrot.slane %v7757, %v7867
        %v7870 = vmul.f32 %v7856, %v7868
        %v7871 = vmul.f32 %v7857, %v7868
        %v7872 = vmul.f32 %v7858, %v7868
        %v7873 = vmul.f32 %v7859, %v7868
        %v7874 = vmul.f32 %v7860, %v7868
        %v7875 = vmul.f32 %v7861, %v7868
        %v7876 = vmul.f32 %v7862, %v7868
        %v7877 = vmul.f32 %v7863, %v7868
        %v7879 = vlaneseq
        %v7880 = vshrl.u32 %v7879, 7
        %v7881 = vsub.s32 0, %v7880
        %v7882 = vrot.slane %v7759, %v7881
        %v7884 = vadd.f32 %v7870, %v7882
        %v7885 = vadd.f32 %v7871, %v7882
        %v7886 = vadd.f32 %v7872, %v7882
        %v7887 = vadd.f32 %v7873, %v7882
        %v7888 = vadd.f32 %v7874, %v7882
        %v7889 = vadd.f32 %v7875, %v7882
        %v7890 = vadd.f32 %v7876, %v7882
        %v7891 = vadd.f32 %v7877, %v7882
        %s7892 = scalar_lea.vmem %s13, 32
        %v7893 = vld [vmem:[%s7892] sm:$0xf]
        %v7894 = vld [vmem:[%s7892 + $0x4] sm:$0xf]
        %v7895 = vld [vmem:[%s7892 + $0x8] sm:$0xf]
        %v7896 = vld [vmem:[%s7892 + $0xc] sm:$0xf]
        %v7897 = vpack.c.bf16 %v7885, %v7884
        %v7898 = vpack.c.bf16 %v7887, %v7886
        %v7899 = vpack.c.bf16 %v7889, %v7888
        %v7900 = vpack.c.bf16 %v7891, %v7890
        %s7901 = scalar_lea.vmem %s14, 2
        %v7902 = vld [vmem:[%s7901] sm:$0x1]
        %v7904 = vlaneseq
        %v7905 = vshrl.u32 %v7904, 7
        %v7906 = vsub.s32 0, %v7905
        %v7907 = vrot.slane %v7902, %v7906
        %v7913 = vunpack.c.l.b16 %v7893
        %v7914 = vunpack.c.l.b16 %v7894
        %v7915 = vunpack.c.l.b16 %v7895
        %v7916 = vunpack.c.l.b16 %v7896
        %v7917 = vpack.c.b16 %v7914, %v7913
        %v7918 = vpack.c.b16 %v7916, %v7915
        %v7922 = vsel %vm859, %v7897, 0
        %v7925 = vsel %vm859, %v7898, 0
        %v7928 = vsel %vm859, %v7899, 0
        %v7931 = vsel %vm859, %v7900, 0
        %7933 = vmatprep.subr.bf16.mxu0 0
        %7934 = vmatpush1.bf16.msra.mxu0 %v7917
        %7935 = vmatprep.subr.bf16.mxu0 0
        %7936 = vmatpush1.bf16.msra.mxu0 %v7918
        %7937 = vmatprep.subr.bf16.mxu0 0
        %7938 = vmatpush1.bf16.msra.mxu0 0
        %7939 = vmatprep.subr.bf16.mxu0 0
        %7940 = vmatpush1.bf16.msra.mxu0 0
        %7941 = vmatprep.subr.bf16.mxu0 0
        %7942 = vmatpush1.bf16.msra.mxu0 0
        %7943 = vmatprep.subr.bf16.mxu0 0
        %7944 = vmatpush1.bf16.msra.mxu0 0
        %7945 = vmatprep.subr.bf16.mxu0 0
        %7946 = vmatpush1.bf16.msra.mxu0 0
        %7947 = vmatprep.subr.bf16.mxu0 0
        %7948 = vmatpush1.bf16.msra.mxu0 0
        %7949 = vmatprep.subr.bf16.mxu0 0
        %7950 = vmatpush1.bf16.msra.mxu0 0
        %7951 = vmatprep.subr.bf16.mxu0 0
        %7952 = vmatpush1.bf16.msra.mxu0 0
        %7953 = vmatprep.subr.bf16.mxu0 0
        %7954 = vmatpush1.bf16.msra.mxu0 0
        %7955 = vmatprep.subr.bf16.mxu0 0
        %7956 = vmatpush1.bf16.msra.mxu0 0
        %7957 = vmatprep.subr.bf16.mxu0 0
        %7958 = vmatpush1.bf16.msra.mxu0 0
        %7959 = vmatprep.subr.bf16.mxu0 0
        %7960 = vmatpush1.bf16.msra.mxu0 0
        %7961 = vmatprep.subr.bf16.mxu0 0
        %7962 = vmatpush1.bf16.msra.mxu0 0
        %7963 = vmatprep.subr.bf16.mxu0 0
        %7964 = vmatpush1.bf16.msra.mxu0 0
        %7965 = vmatprep.mubr.bf16.mxu0 0
        %7966 = vmatmul.mubr.bf16.gmra.mrb[0].mxu0 %v7922
        %v7967 = vpop.f32.mrb[0].mxu0
        %v7968 = vadd.f32 %v7907, %v7967
        %v7969 = vpop.f32.mrb[0].mxu0
        %v7970 = vpop.f32.mrb[0].mxu0
        %v7971 = vadd.f32 %v7907, %v7970
        %v7972 = vpop.f32.mrb[0].mxu0
        %7973 = vmatprep.mubr.bf16.mxu0 0
        %7974 = vmatmul.mubr.bf16.gmra.mrb[0].mxu0 %v7925
        %v7975 = vpop.f32.mrb[0].mxu0
        %v7976 = vadd.f32 %v7907, %v7975
        %v7977 = vpop.f32.mrb[0].mxu0
        %v7978 = vpop.f32.mrb[0].mxu0
        %v7979 = vadd.f32 %v7907, %v7978
        %v7980 = vpop.f32.mrb[0].mxu0
        %7981 = vmatprep.mubr.bf16.mxu0 0
        %7982 = vmatmul.mubr.bf16.gmra.mrb[0].mxu0 %v7928
        %v7983 = vpop.f32.mrb[0].mxu0
        %v7984 = vadd.f32 %v7907, %v7983
        %v7985 = vpop.f32.mrb[0].mxu0
        %v7986 = vpop.f32.mrb[0].mxu0
        %v7987 = vadd.f32 %v7907, %v7986
        %v7988 = vpop.f32.mrb[0].mxu0
        %7989 = vmatprep.mubr.bf16.mxu0 0
        %7990 = vmatmul.mubr.bf16.gmra.mrb[0].mxu0 %v7931
        %v7991 = vpop.f32.mrb[0].mxu0
        %v7992 = vadd.f32 %v7907, %v7991
        %v7993 = vpop.f32.mrb[0].mxu0
        %v7994 = vpop.f32.mrb[0].mxu0
        %v7995 = vadd.f32 %v7907, %v7994
        %v7996 = vpop.f32.mrb[0].mxu0
        %7997 = vdwg.mxu0
        %7998 = vst [vmem:[%s2888 + $0x1] sm:$0xff] %v7968
        %7999 = vst [vmem:[%s2888 + $0x11] sm:$0xff] %v7971
        %8000 = vst [vmem:[%s2888 + $0x21] sm:$0xff] %v7976
        %8001 = vst [vmem:[%s2888 + $0x31] sm:$0xff] %v7979
        %8002 = vst [vmem:[%s2888 + $0x41] sm:$0xff] %v7984
        %8003 = vst [vmem:[%s2888 + $0x51] sm:$0xff] %v7987
        %8004 = vst [vmem:[%s2888 + $0x61] sm:$0xff] %v7992
        %8005 = vst [vmem:[%s2888 + $0x71] sm:$0xff] %v7995
        %s8006 = scalar_lea.vmem %s15, 24
        %v8007 = vld [vmem:[%s8006] sm:$0x7]
        %v8008 = vld [vmem:[%s8006 + $0x4] sm:$0x7]
        %v8009 = vld [vmem:[%s8006 + $0x8] sm:$0x7]
        %v8010 = vld [vmem:[#allocation2] sm:$0xff]
        %v8011 = vld [vmem:[#allocation2 + $0x10] sm:$0xff]
        %v8012 = vld [vmem:[#allocation2 + $0x20] sm:$0xff]
        %v8013 = vld [vmem:[#allocation2 + $0x30] sm:$0xff]
        %v8014 = vld [vmem:[#allocation2 + $0x40] sm:$0xff]
        %v8015 = vld [vmem:[#allocation2 + $0x50] sm:$0xff]
        %v8016 = vld [vmem:[#allocation2 + $0x60] sm:$0xff]
        %v8017 = vld [vmem:[#allocation2 + $0x70] sm:$0xff]
        %v8018 = vlaneseq
        %v8019 = vshrl.u32 %v8018, 7
        %v8020 = vsub.s32 0, %v8019
        %v8021 = vrot.slane %v8007, %v8020
        %v8022 = vmul.f32 %v8010, %v8021
        %v8023 = vmul.f32 %v8011, %v8021
        %v8024 = vmul.f32 %v8012, %v8021
        %v8025 = vmul.f32 %v8013, %v8021
        %v8026 = vmul.f32 %v8014, %v8021
        %v8027 = vmul.f32 %v8015, %v8021
        %v8028 = vmul.f32 %v8016, %v8021
        %v8029 = vmul.f32 %v8017, %v8021
        %v8030 = vadd.f32 %v8022, 0.0
        %v8031 = vadd.f32 %v8023, 0.0
        %v8032 = vadd.f32 %v8024, 0.0
        %v8033 = vadd.f32 %v8025, 0.0
        %v8034 = vadd.f32 %v8026, 0.0
        %v8035 = vadd.f32 %v8027, 0.0
        %v8036 = vadd.f32 %v8028, 0.0
        %v8037 = vadd.f32 %v8029, 0.0
        %v8038 = vld [vmem:[#allocation2 + $0x1] sm:$0xff]
        %v8039 = vld [vmem:[#allocation2 + $0x11] sm:$0xff]
        %v8040 = vld [vmem:[#allocation2 + $0x21] sm:$0xff]
        %v8041 = vld [vmem:[#allocation2 + $0x31] sm:$0xff]
        %v8042 = vld [vmem:[#allocation2 + $0x41] sm:$0xff]
        %v8043 = vld [vmem:[#allocation2 + $0x51] sm:$0xff]
        %v8044 = vld [vmem:[#allocation2 + $0x61] sm:$0xff]
        %v8045 = vld [vmem:[#allocation2 + $0x71] sm:$0xff]
        %v8046 = vlaneseq
        %v8047 = vshrl.u32 %v8046, 7
        %v8048 = vsub.s32 1, %v8047
        %v8049 = vrot.slane %v8007, %v8048
        %v8050 = vmul.f32 %v8038, %v8049
        %v8051 = vmul.f32 %v8039, %v8049
        %v8052 = vmul.f32 %v8040, %v8049
        %v8053 = vmul.f32 %v8041, %v8049
        %v8054 = vmul.f32 %v8042, %v8049
        %v8055 = vmul.f32 %v8043, %v8049
        %v8056 = vmul.f32 %v8044, %v8049
        %v8057 = vmul.f32 %v8045, %v8049
        %v8058 = vadd.f32 %v8030, %v8050
        %v8059 = vadd.f32 %v8031, %v8051
        %v8060 = vadd.f32 %v8032, %v8052
        %v8061 = vadd.f32 %v8033, %v8053
        %v8062 = vadd.f32 %v8034, %v8054
        %v8063 = vadd.f32 %v8035, %v8055
        %v8064 = vadd.f32 %v8036, %v8056
        %v8065 = vadd.f32 %v8037, %v8057
        %v8066 = vld [vmem:[#allocation2 + $0x2] sm:$0xff]
        %v8067 = vld [vmem:[#allocation2 + $0x12] sm:$0xff]
        %v8068 = vld [vmem:[#allocation2 + $0x22] sm:$0xff]
        %v8069 = vld [vmem:[#allocation2 + $0x32] sm:$0xff]
        %v8070 = vld [vmem:[#allocation2 + $0x42] sm:$0xff]
        %v8071 = vld [vmem:[#allocation2 + $0x52] sm:$0xff]
        %v8072 = vld [vmem:[#allocation2 + $0x62] sm:$0xff]
        %v8073 = vld [vmem:[#allocation2 + $0x72] sm:$0xff]
        %v8074 = vlaneseq
        %v8075 = vshrl.u32 %v8074, 7
        %v8076 = vsub.s32 2, %v8075
        %v8077 = vrot.slane %v8007, %v8076
        %v8078 = vmul.f32 %v8066, %v8077
        %v8079 = vmul.f32 %v8067, %v8077
        %v8080 = vmul.f32 %v8068, %v8077
        %v8081 = vmul.f32 %v8069, %v8077
        %v8082 = vmul.f32 %v8070, %v8077
        %v8083 = vmul.f32 %v8071, %v8077
        %v8084 = vmul.f32 %v8072, %v8077
        %v8085 = vmul.f32 %v8073, %v8077
        %v8086 = vadd.f32 %v8058, %v8078
        %v8087 = vadd.f32 %v8059, %v8079
        %v8088 = vadd.f32 %v8060, %v8080
        %v8089 = vadd.f32 %v8061, %v8081
        %v8090 = vadd.f32 %v8062, %v8082
        %v8091 = vadd.f32 %v8063, %v8083
        %v8092 = vadd.f32 %v8064, %v8084
        %v8093 = vadd.f32 %v8065, %v8085
        %v8094 = vld [vmem:[%s2888] sm:$0xff]
        %v8095 = vld [vmem:[%s2888 + $0x10] sm:$0xff]
        %v8096 = vld [vmem:[%s2888 + $0x20] sm:$0xff]
        %v8097 = vld [vmem:[%s2888 + $0x30] sm:$0xff]
        %v8098 = vld [vmem:[%s2888 + $0x40] sm:$0xff]
        %v8099 = vld [vmem:[%s2888 + $0x50] sm:$0xff]
        %v8100 = vld [vmem:[%s2888 + $0x60] sm:$0xff]
        %v8101 = vld [vmem:[%s2888 + $0x70] sm:$0xff]
        %v8102 = vlaneseq
        %v8103 = vshrl.u32 %v8102, 7
        %v8104 = vsub.s32 0, %v8103
        %v8105 = vrot.slane %v8008, %v8104
        %v8106 = vmul.f32 %v8094, %v8105
        %v8107 = vmul.f32 %v8095, %v8105
        %v8108 = vmul.f32 %v8096, %v8105
        %v8109 = vmul.f32 %v8097, %v8105
        %v8110 = vmul.f32 %v8098, %v8105
        %v8111 = vmul.f32 %v8099, %v8105
        %v8112 = vmul.f32 %v8100, %v8105
        %v8113 = vmul.f32 %v8101, %v8105
        %v8114 = vadd.f32 %v8086, %v8106
        %v8115 = vadd.f32 %v8087, %v8107
        %v8116 = vadd.f32 %v8088, %v8108
        %v8117 = vadd.f32 %v8089, %v8109
        %v8118 = vadd.f32 %v8090, %v8110
        %v8119 = vadd.f32 %v8091, %v8111
        %v8120 = vadd.f32 %v8092, %v8112
        %v8121 = vadd.f32 %v8093, %v8113
        %v8122 = vld [vmem:[%s2888 + $0x1] sm:$0xff]
        %v8123 = vld [vmem:[%s2888 + $0x11] sm:$0xff]
        %v8124 = vld [vmem:[%s2888 + $0x21] sm:$0xff]
        %v8125 = vld [vmem:[%s2888 + $0x31] sm:$0xff]
        %v8126 = vld [vmem:[%s2888 + $0x41] sm:$0xff]
        %v8127 = vld [vmem:[%s2888 + $0x51] sm:$0xff]
        %v8128 = vld [vmem:[%s2888 + $0x61] sm:$0xff]
        %v8129 = vld [vmem:[%s2888 + $0x71] sm:$0xff]
        %v8130 = vlaneseq
        %v8131 = vshrl.u32 %v8130, 7
        %v8132 = vsub.s32 1, %v8131
        %v8133 = vrot.slane %v8008, %v8132
        %v8134 = vmul.f32 %v8122, %v8133
        %v8135 = vmul.f32 %v8123, %v8133
        %v8136 = vmul.f32 %v8124, %v8133
        %v8137 = vmul.f32 %v8125, %v8133
        %v8138 = vmul.f32 %v8126, %v8133
        %v8139 = vmul.f32 %v8127, %v8133
        %v8140 = vmul.f32 %v8128, %v8133
        %v8141 = vmul.f32 %v8129, %v8133
        %v8142 = vadd.f32 %v8114, %v8134
        %v8143 = vadd.f32 %v8115, %v8135
        %v8144 = vadd.f32 %v8116, %v8136
        %v8145 = vadd.f32 %v8117, %v8137
        %v8146 = vadd.f32 %v8118, %v8138
        %v8147 = vadd.f32 %v8119, %v8139
        %v8148 = vadd.f32 %v8120, %v8140
        %v8149 = vadd.f32 %v8121, %v8141
        %v8150 = vld [vmem:[%s2888 + $0x2] sm:$0xff]
        %v8151 = vld [vmem:[%s2888 + $0x12] sm:$0xff]
        %v8152 = vld [vmem:[%s2888 + $0x22] sm:$0xff]
        %v8153 = vld [vmem:[%s2888 + $0x32] sm:$0xff]
        %v8154 = vld [vmem:[%s2888 + $0x42] sm:$0xff]
        %v8155 = vld [vmem:[%s2888 + $0x52] sm:$0xff]
        %v8156 = vld [vmem:[%s2888 + $0x62] sm:$0xff]
        %v8157 = vld [vmem:[%s2888 + $0x72] sm:$0xff]
        %v8158 = vlaneseq
        %v8159 = vshrl.u32 %v8158, 7
        %v8160 = vsub.s32 2, %v8159
        %v8161 = vrot.slane %v8008, %v8160
        %v8162 = vmul.f32 %v8150, %v8161
        %v8163 = vmul.f32 %v8151, %v8161
        %v8164 = vmul.f32 %v8152, %v8161
        %v8165 = vmul.f32 %v8153, %v8161
        %v8166 = vmul.f32 %v8154, %v8161
        %v8167 = vmul.f32 %v8155, %v8161
        %v8168 = vmul.f32 %v8156, %v8161
        %v8169 = vmul.f32 %v8157, %v8161
        %v8170 = vadd.f32 %v8142, %v8162
        %v8171 = vadd.f32 %v8143, %v8163
        %v8172 = vadd.f32 %v8144, %v8164
        %v8173 = vadd.f32 %v8145, %v8165
        %v8174 = vadd.f32 %v8146, %v8166
        %v8175 = vadd.f32 %v8147, %v8167
        %v8176 = vadd.f32 %v8148, %v8168
        %v8177 = vadd.f32 %v8149, %v8169
        %v8178 = vld [vmem:[%s3068] sm:$0xff]
        %v8179 = vld [vmem:[%s3068 + $0x10] sm:$0xff]
        %v8180 = vld [vmem:[%s3068 + $0x20] sm:$0xff]
        %v8181 = vld [vmem:[%s3068 + $0x30] sm:$0xff]
        %v8182 = vld [vmem:[%s3068 + $0x40] sm:$0xff]
        %v8183 = vld [vmem:[%s3068 + $0x50] sm:$0xff]
        %v8184 = vld [vmem:[%s3068 + $0x60] sm:$0xff]
        %v8185 = vld [vmem:[%s3068 + $0x70] sm:$0xff]
        %v8186 = vlaneseq
        %v8187 = vshrl.u32 %v8186, 7
        %v8188 = vsub.s32 0, %v8187
        %v8189 = vrot.slane %v8009, %v8188
        %v8190 = vmul.f32 %v8178, %v8189
        %v8191 = vmul.f32 %v8179, %v8189
        %v8192 = vmul.f32 %v8180, %v8189
        %v8193 = vmul.f32 %v8181, %v8189
        %v8194 = vmul.f32 %v8182, %v8189
        %v8195 = vmul.f32 %v8183, %v8189
        %v8196 = vmul.f32 %v8184, %v8189
        %v8197 = vmul.f32 %v8185, %v8189
        %v8198 = vadd.f32 %v8170, %v8190
        %v8199 = vadd.f32 %v8171, %v8191
        %v8200 = vadd.f32 %v8172, %v8192
        %v8201 = vadd.f32 %v8173, %v8193
        %v8202 = vadd.f32 %v8174, %v8194
        %v8203 = vadd.f32 %v8175, %v8195
        %v8204 = vadd.f32 %v8176, %v8196
        %v8205 = vadd.f32 %v8177, %v8197
        %v8206 = vld [vmem:[%s3068 + $0x1] sm:$0xff]
        %v8207 = vld [vmem:[%s3068 + $0x11] sm:$0xff]
        %v8208 = vld [vmem:[%s3068 + $0x21] sm:$0xff]
        %v8209 = vld [vmem:[%s3068 + $0x31] sm:$0xff]
        %v8210 = vld [vmem:[%s3068 + $0x41] sm:$0xff]
        %v8211 = vld [vmem:[%s3068 + $0x51] sm:$0xff]
        %v8212 = vld [vmem:[%s3068 + $0x61] sm:$0xff]
        %v8213 = vld [vmem:[%s3068 + $0x71] sm:$0xff]
        %v8214 = vlaneseq
        %v8215 = vshrl.u32 %v8214, 7
        %v8216 = vsub.s32 1, %v8215
        %v8217 = vrot.slane %v8009, %v8216
        %v8218 = vmul.f32 %v8206, %v8217
        %v8219 = vmul.f32 %v8207, %v8217
        %v8220 = vmul.f32 %v8208, %v8217
        %v8221 = vmul.f32 %v8209, %v8217
        %v8222 = vmul.f32 %v8210, %v8217
        %v8223 = vmul.f32 %v8211, %v8217
        %v8224 = vmul.f32 %v8212, %v8217
        %v8225 = vmul.f32 %v8213, %v8217
        %v8226 = vadd.f32 %v8198, %v8218
        %v8227 = vadd.f32 %v8199, %v8219
        %v8228 = vadd.f32 %v8200, %v8220
        %v8229 = vadd.f32 %v8201, %v8221
        %v8230 = vadd.f32 %v8202, %v8222
        %v8231 = vadd.f32 %v8203, %v8223
        %v8232 = vadd.f32 %v8204, %v8224
        %v8233 = vadd.f32 %v8205, %v8225
        %v8234 = vld [vmem:[%s3068 + $0x2] sm:$0xff]
        %v8235 = vld [vmem:[%s3068 + $0x12] sm:$0xff]
        %v8236 = vld [vmem:[%s3068 + $0x22] sm:$0xff]
        %v8237 = vld [vmem:[%s3068 + $0x32] sm:$0xff]
        %v8238 = vld [vmem:[%s3068 + $0x42] sm:$0xff]
        %v8239 = vld [vmem:[%s3068 + $0x52] sm:$0xff]
        %v8240 = vld [vmem:[%s3068 + $0x62] sm:$0xff]
        %v8241 = vld [vmem:[%s3068 + $0x72] sm:$0xff]
        %v8242 = vlaneseq
        %v8243 = vshrl.u32 %v8242, 7
        %v8244 = vsub.s32 2, %v8243
        %v8245 = vrot.slane %v8009, %v8244
        %v8246 = vmul.f32 %v8234, %v8245
        %v8247 = vmul.f32 %v8235, %v8245
        %v8248 = vmul.f32 %v8236, %v8245
        %v8249 = vmul.f32 %v8237, %v8245
        %v8250 = vmul.f32 %v8238, %v8245
        %v8251 = vmul.f32 %v8239, %v8245
        %v8252 = vmul.f32 %v8240, %v8245
        %v8253 = vmul.f32 %v8241, %v8245
        %v8254 = vadd.f32 %v8226, %v8246
        %v8255 = vadd.f32 %v8227, %v8247
        %v8256 = vadd.f32 %v8228, %v8248
        %v8257 = vadd.f32 %v8229, %v8249
        %v8258 = vadd.f32 %v8230, %v8250
        %v8259 = vadd.f32 %v8231, %v8251
        %v8260 = vadd.f32 %v8232, %v8252
        %v8261 = vadd.f32 %v8233, %v8253
        %s8262 = scalar_lea.vmem %s16, 2
        %v8263 = vld [vmem:[%s8262] sm:$0x1]
        %v8265 = vlaneseq
        %v8266 = vshrl.u32 %v8265, 7
        %v8267 = vsub.s32 0, %v8266
        %v8268 = vrot.slane %v8263, %v8267
        %v8270 = vadd.f32 %v8254, %v8268
        %v8271 = vadd.f32 %v8255, %v8268
        %v8272 = vadd.f32 %v8256, %v8268
        %v8273 = vadd.f32 %v8257, %v8268
        %v8274 = vadd.f32 %v8258, %v8268
        %v8275 = vadd.f32 %v8259, %v8268
        %v8276 = vadd.f32 %v8260, %v8268
        %v8277 = vadd.f32 %v8261, %v8268
        %v8278 = vmul.f32 %v8270, 0.5
        %v8279 = vmul.f32 %v8271, 0.5
        %v8280 = vmul.f32 %v8272, 0.5
        %v8281 = vmul.f32 %v8273, 0.5
        %v8282 = vmul.f32 %v8274, 0.5
        %v8283 = vmul.f32 %v8275, 0.5
        %v8284 = vmul.f32 %v8276, 0.5
        %v8285 = vmul.f32 %v8277, 0.5
        %v8286 = vmul.f32 %v8270, 0.70710677
        %v8287 = vmul.f32 %v8271, 0.70710677
        %v8288 = vmul.f32 %v8272, 0.70710677
        %v8289 = vmul.f32 %v8273, 0.70710677
        %v8290 = vmul.f32 %v8274, 0.70710677
        %v8291 = vmul.f32 %v8275, 0.70710677
        %v8292 = vmul.f32 %v8276, 0.70710677
        %v8293 = vmul.f32 %v8277, 0.70710677
        %v8294 = vand.u32 2147483647, %v8286
        %v8295 = vand.u32 2147483647, %v8287
        %v8296 = vand.u32 2147483647, %v8288
        %v8297 = vand.u32 2147483647, %v8289
        %v8298 = vand.u32 2147483647, %v8290
        %v8299 = vand.u32 2147483647, %v8291
        %v8300 = vand.u32 2147483647, %v8292
        %v8301 = vand.u32 2147483647, %v8293
        %v8302 = vmul.f32 %v8294, 0.3275911
        %v8303 = vmul.f32 %v8295, 0.3275911
        %v8304 = vmul.f32 %v8296, 0.3275911
        %v8305 = vmul.f32 %v8297, 0.3275911
        %v8306 = vmul.f32 %v8298, 0.3275911
        %v8307 = vmul.f32 %v8299, 0.3275911
        %v8308 = vmul.f32 %v8300, 0.3275911
        %v8309 = vmul.f32 %v8301, 0.3275911
        %v8310 = vadd.f32 %v8302, 1.0
        %v8311 = vadd.f32 %v8303, 1.0
        %v8312 = vadd.f32 %v8304, 1.0
        %v8313 = vadd.f32 %v8305, 1.0
        %v8314 = vadd.f32 %v8306, 1.0
        %v8315 = vadd.f32 %v8307, 1.0
        %v8316 = vadd.f32 %v8308, 1.0
        %v8317 = vadd.f32 %v8309, 1.0
        %v8318 = vrcp.pop %v8310
        %v8319 = vmul.f32 1.0, %v8318
        %v8320 = vrcp.pop %v8311
        %v8321 = vmul.f32 1.0, %v8320
        %v8322 = vrcp.pop %v8312
        %v8323 = vmul.f32 1.0, %v8322
        %v8324 = vrcp.pop %v8313
        %v8325 = vmul.f32 1.0, %v8324
        %v8326 = vrcp.pop %v8314
        %v8327 = vmul.f32 1.0, %v8326
        %v8328 = vrcp.pop %v8315
        %v8329 = vmul.f32 1.0, %v8328
        %v8330 = vrcp.pop %v8316
        %v8331 = vmul.f32 1.0, %v8330
        %v8332 = vrcp.pop %v8317
        %v8333 = vmul.f32 1.0, %v8332
        %v8334 = vmul.f32 %v8319, 1.0614054
        %v8335 = vmul.f32 %v8321, 1.0614054
        %v8336 = vmul.f32 %v8323, 1.0614054
        %v8337 = vmul.f32 %v8325, 1.0614054
        %v8338 = vmul.f32 %v8327, 1.0614054
        %v8339 = vmul.f32 %v8329, 1.0614054
        %v8340 = vmul.f32 %v8331, 1.0614054
        %v8341 = vmul.f32 %v8333, 1.0614054
        %v8342 = vadd.f32 %v8334, -1.4531521
        %v8343 = vadd.f32 %v8335, -1.4531521
        %v8344 = vadd.f32 %v8336, -1.4531521
        %v8345 = vadd.f32 %v8337, -1.4531521
        %v8346 = vadd.f32 %v8338, -1.4531521
        %v8347 = vadd.f32 %v8339, -1.4531521
        %v8348 = vadd.f32 %v8340, -1.4531521
        %v8349 = vadd.f32 %v8341, -1.4531521
        %v8350 = vmul.f32 %v8319, %v8342
        %v8351 = vmul.f32 %v8321, %v8343
        %v8352 = vmul.f32 %v8323, %v8344
        %v8353 = vmul.f32 %v8325, %v8345
        %v8354 = vmul.f32 %v8327, %v8346
        %v8355 = vmul.f32 %v8329, %v8347
        %v8356 = vmul.f32 %v8331, %v8348
        %v8357 = vmul.f32 %v8333, %v8349
        %v8358 = vadd.f32 %v8350, 1.4214138
        %v8359 = vadd.f32 %v8351, 1.4214138
        %v8360 = vadd.f32 %v8352, 1.4214138
        %v8361 = vadd.f32 %v8353, 1.4214138
        %v8362 = vadd.f32 %v8354, 1.4214138
        %v8363 = vadd.f32 %v8355, 1.4214138
        %v8364 = vadd.f32 %v8356, 1.4214138
        %v8365 = vadd.f32 %v8357, 1.4214138
        %v8366 = vmul.f32 %v8319, %v8358
        %v8367 = vmul.f32 %v8321, %v8359
        %v8368 = vmul.f32 %v8323, %v8360
        %v8369 = vmul.f32 %v8325, %v8361
        %v8370 = vmul.f32 %v8327, %v8362
        %v8371 = vmul.f32 %v8329, %v8363
        %v8372 = vmul.f32 %v8331, %v8364
        %v8373 = vmul.f32 %v8333, %v8365
        %v8374 = vadd.f32 %v8366, -0.28449672
        %v8375 = vadd.f32 %v8367, -0.28449672
        %v8376 = vadd.f32 %v8368, -0.28449672
        %v8377 = vadd.f32 %v8369, -0.28449672
        %v8378 = vadd.f32 %v8370, -0.28449672
        %v8379 = vadd.f32 %v8371, -0.28449672
        %v8380 = vadd.f32 %v8372, -0.28449672
        %v8381 = vadd.f32 %v8373, -0.28449672
        %v8382 = vmul.f32 %v8319, %v8374
        %v8383 = vmul.f32 %v8321, %v8375
        %v8384 = vmul.f32 %v8323, %v8376
        %v8385 = vmul.f32 %v8325, %v8377
        %v8386 = vmul.f32 %v8327, %v8378
        %v8387 = vmul.f32 %v8329, %v8379
        %v8388 = vmul.f32 %v8331, %v8380
        %v8389 = vmul.f32 %v8333, %v8381
        %v8390 = vadd.f32 %v8382, 0.2548296
        %v8391 = vadd.f32 %v8383, 0.2548296
        %v8392 = vadd.f32 %v8384, 0.2548296
        %v8393 = vadd.f32 %v8385, 0.2548296
        %v8394 = vadd.f32 %v8386, 0.2548296
        %v8395 = vadd.f32 %v8387, 0.2548296
        %v8396 = vadd.f32 %v8388, 0.2548296
        %v8397 = vadd.f32 %v8389, 0.2548296
        %v8398 = vmul.f32 %v8319, %v8390
        %v8399 = vmul.f32 %v8321, %v8391
        %v8400 = vmul.f32 %v8323, %v8392
        %v8401 = vmul.f32 %v8325, %v8393
        %v8402 = vmul.f32 %v8327, %v8394
        %v8403 = vmul.f32 %v8329, %v8395
        %v8404 = vmul.f32 %v8331, %v8396
        %v8405 = vmul.f32 %v8333, %v8397
        %v8406 = vmul.f32 %v8286, %v8286
        %v8407 = vmul.f32 %v8287, %v8287
        %v8408 = vmul.f32 %v8288, %v8288
        %v8409 = vmul.f32 %v8289, %v8289
        %v8410 = vmul.f32 %v8290, %v8290
        %v8411 = vmul.f32 %v8291, %v8291
        %v8412 = vmul.f32 %v8292, %v8292
        %v8413 = vmul.f32 %v8293, %v8293
        %v8414 = vsub.f32 0.0, %v8406
        %v8415 = vsub.f32 0.0, %v8407
        %v8416 = vsub.f32 0.0, %v8408
        %v8417 = vsub.f32 0.0, %v8409
        %v8418 = vsub.f32 0.0, %v8410
        %v8419 = vsub.f32 0.0, %v8411
        %v8420 = vsub.f32 0.0, %v8412
        %v8421 = vsub.f32 0.0, %v8413
        %v8422 = vmul.f32 %v8414, 1.442695
        %v8423 = vpow.pop %v8422
        %v8424 = vmul.f32 %v8415, 1.442695
        %v8425 = vpow.pop %v8424
        %v8426 = vmul.f32 %v8416, 1.442695
        %v8427 = vpow.pop %v8426
        %v8428 = vmul.f32 %v8417, 1.442695
        %v8429 = vpow.pop %v8428
        %v8430 = vmul.f32 %v8418, 1.442695
        %v8431 = vpow.pop %v8430
        %v8432 = vmul.f32 %v8419, 1.442695
        %v8433 = vpow.pop %v8432
        %v8434 = vmul.f32 %v8420, 1.442695
        %v8435 = vpow.pop %v8434
        %v8436 = vmul.f32 %v8421, 1.442695
        %v8437 = vpow.pop %v8436
        %v8438 = vmul.f32 %v8398, %v8423
        %v8439 = vmul.f32 %v8399, %v8425
        %v8440 = vmul.f32 %v8400, %v8427
        %v8441 = vmul.f32 %v8401, %v8429
        %v8442 = vmul.f32 %v8402, %v8431
        %v8443 = vmul.f32 %v8403, %v8433
        %v8444 = vmul.f32 %v8404, %v8435
        %v8445 = vmul.f32 %v8405, %v8437
        %v8446 = vsub.f32 1.0, %v8438
        %v8447 = vsub.f32 1.0, %v8439
        %v8448 = vsub.f32 1.0, %v8440
        %v8449 = vsub.f32 1.0, %v8441
        %v8450 = vsub.f32 1.0, %v8442
        %v8451 = vsub.f32 1.0, %v8443
        %v8452 = vsub.f32 1.0, %v8444
        %v8453 = vsub.f32 1.0, %v8445
        %vm8454 = vcmp.ge.f32.partialorder %v8286, 0.0
        %vm8455 = vcmp.ge.f32.partialorder %v8287, 0.0
        %vm8456 = vcmp.ge.f32.partialorder %v8288, 0.0
        %vm8457 = vcmp.ge.f32.partialorder %v8289, 0.0
        %vm8458 = vcmp.ge.f32.partialorder %v8290, 0.0
        %vm8459 = vcmp.ge.f32.partialorder %v8291, 0.0
        %vm8460 = vcmp.ge.f32.partialorder %v8292, 0.0
        %vm8461 = vcmp.ge.f32.partialorder %v8293, 0.0
        %v8462 = vsub.f32 0.0, %v8446
        %v8463 = vsub.f32 0.0, %v8447
        %v8464 = vsub.f32 0.0, %v8448
        %v8465 = vsub.f32 0.0, %v8449
        %v8466 = vsub.f32 0.0, %v8450
        %v8467 = vsub.f32 0.0, %v8451
        %v8468 = vsub.f32 0.0, %v8452
        %v8469 = vsub.f32 0.0, %v8453
        %v8470 = vsel %vm8454, %v8446, %v8462
        %v8471 = vsel %vm8455, %v8447, %v8463
        %v8472 = vsel %vm8456, %v8448, %v8464
        %v8473 = vsel %vm8457, %v8449, %v8465
        %v8474 = vsel %vm8458, %v8450, %v8466
        %v8475 = vsel %vm8459, %v8451, %v8467
        %v8476 = vsel %vm8460, %v8452, %v8468
        %v8477 = vsel %vm8461, %v8453, %v8469
        %v8478 = vadd.f32 %v8470, 1.0
        %v8479 = vadd.f32 %v8471, 1.0
        %v8480 = vadd.f32 %v8472, 1.0
        %v8481 = vadd.f32 %v8473, 1.0
        %v8482 = vadd.f32 %v8474, 1.0
        %v8483 = vadd.f32 %v8475, 1.0
        %v8484 = vadd.f32 %v8476, 1.0
        %v8485 = vadd.f32 %v8477, 1.0
        %v8486 = vmul.f32 %v8278, %v8478
        %v8487 = vmul.f32 %v8279, %v8479
        %v8488 = vmul.f32 %v8280, %v8480
        %v8489 = vmul.f32 %v8281, %v8481
        %v8490 = vmul.f32 %v8282, %v8482
        %v8491 = vmul.f32 %v8283, %v8483
        %v8492 = vmul.f32 %v8284, %v8484
        %v8493 = vmul.f32 %v8285, %v8485
        %s8494 = scalar_lea.vmem %s17, 128
        %v8495 = vld [vmem:[%s8494] sm:$0xf]
        %v8496 = vld [vmem:[%s8494 + $0x4] sm:$0xf]
        %v8497 = vld [vmem:[%s8494 + $0x8] sm:$0xf]
        %v8498 = vld [vmem:[%s8494 + $0xc] sm:$0xf]
        %v8499 = vld [vmem:[%s8494 + $0x10] sm:$0xf]
        %v8500 = vld [vmem:[%s8494 + $0x14] sm:$0xf]
        %v8501 = vld [vmem:[%s8494 + $0x18] sm:$0xf]
        %v8502 = vld [vmem:[%s8494 + $0x1c] sm:$0xf]
        %v8503 = vld [vmem:[%s8494 + $0x20] sm:$0xf]
        %v8504 = vld [vmem:[%s8494 + $0x24] sm:$0xf]
        %v8505 = vld [vmem:[%s8494 + $0x28] sm:$0xf]
        %v8506 = vld [vmem:[%s8494 + $0x2c] sm:$0xf]
        %v8507 = vld [vmem:[%s8494 + $0x30] sm:$0xf]
        %v8508 = vld [vmem:[%s8494 + $0x34] sm:$0xf]
        %v8509 = vld [vmem:[%s8494 + $0x38] sm:$0xf]
        %v8510 = vld [vmem:[%s8494 + $0x3c] sm:$0xf]
        %v8511 = vpack.c.bf16 %v8487, %v8486
        %v8512 = vpack.c.bf16 %v8489, %v8488
        %v8513 = vpack.c.bf16 %v8491, %v8490
        %v8514 = vpack.c.bf16 %v8493, %v8492
        %v8531 = vunpack.c.l.b16 %v8495
        %v8532 = vunpack.c.l.b16 %v8496
        %v8533 = vunpack.c.l.b16 %v8497
        %v8534 = vunpack.c.l.b16 %v8498
        %v8535 = vunpack.c.l.b16 %v8499
        %v8536 = vunpack.c.l.b16 %v8500
        %v8537 = vunpack.c.l.b16 %v8501
        %v8538 = vunpack.c.l.b16 %v8502
        %v8539 = vunpack.c.l.b16 %v8503
        %v8540 = vunpack.c.l.b16 %v8504
        %v8541 = vunpack.c.l.b16 %v8505
        %v8542 = vunpack.c.l.b16 %v8506
        %v8543 = vunpack.c.l.b16 %v8507
        %v8544 = vunpack.c.l.b16 %v8508
        %v8545 = vunpack.c.l.b16 %v8509
        %v8546 = vunpack.c.l.b16 %v8510
        %v8547 = vpack.c.b16 %v8532, %v8531
        %v8548 = vpack.c.b16 %v8534, %v8533
        %v8549 = vpack.c.b16 %v8536, %v8535
        %v8550 = vpack.c.b16 %v8538, %v8537
        %v8551 = vpack.c.b16 %v8540, %v8539
        %v8552 = vpack.c.b16 %v8542, %v8541
        %v8553 = vpack.c.b16 %v8544, %v8543
        %v8554 = vpack.c.b16 %v8546, %v8545
        %8563 = vmatprep.subr.bf16.mxu0 0
        %8564 = vmatpush1.bf16.msra.mxu0 %v8547
        %8565 = vmatprep.subr.bf16.mxu0 0
        %8566 = vmatpush1.bf16.msra.mxu0 %v8548
        %8567 = vmatprep.subr.bf16.mxu0 0
        %8568 = vmatpush1.bf16.msra.mxu0 %v8549
        %8569 = vmatprep.subr.bf16.mxu0 0
        %8570 = vmatpush1.bf16.msra.mxu0 %v8550
        %8571 = vmatprep.subr.bf16.mxu0 0
        %8572 = vmatpush1.bf16.msra.mxu0 %v8551
        %8573 = vmatprep.subr.bf16.mxu0 0
        %8574 = vmatpush1.bf16.msra.mxu0 %v8552
        %8575 = vmatprep.subr.bf16.mxu0 0
        %8576 = vmatpush1.bf16.msra.mxu0 %v8553
        %8577 = vmatprep.subr.bf16.mxu0 0
        %8578 = vmatpush1.bf16.msra.mxu0 %v8554
        %8579 = vmatprep.subr.bf16.mxu0 0
        %8580 = vmatpush1.bf16.msra.mxu0 0
        %8581 = vmatprep.subr.bf16.mxu0 0
        %8582 = vmatpush1.bf16.msra.mxu0 0
        %8583 = vmatprep.subr.bf16.mxu0 0
        %8584 = vmatpush1.bf16.msra.mxu0 0
        %8585 = vmatprep.subr.bf16.mxu0 0
        %8586 = vmatpush1.bf16.msra.mxu0 0
        %8587 = vmatprep.subr.bf16.mxu0 0
        %8588 = vmatpush1.bf16.msra.mxu0 0
        %8589 = vmatprep.subr.bf16.mxu0 0
        %8590 = vmatpush1.bf16.msra.mxu0 0
        %8591 = vmatprep.subr.bf16.mxu0 0
        %8592 = vmatpush1.bf16.msra.mxu0 0
        %8593 = vmatprep.subr.bf16.mxu0 0
        %8594 = vmatpush1.bf16.msra.mxu0 0
        %8595 = vmatprep.mubr.bf16.mxu0 0
        %8596 = vmatmul.mubr.bf16.gmra.mrb[0].mxu0 %v8511
        %v8597 = vpop.f32.mrb[0].mxu0
        %v8598 = vadd.f32 0.0, %v8597
        %v8599 = vpop.f32.mrb[0].mxu0
        %v8600 = vpop.f32.mrb[0].mxu0
        %v8601 = vadd.f32 0.0, %v8600
        %v8602 = vpop.f32.mrb[0].mxu0
        %8603 = vmatprep.mubr.bf16.mxu0 0
        %8604 = vmatmul.mubr.bf16.gmra.mrb[0].mxu0 %v8512
        %v8605 = vpop.f32.mrb[0].mxu0
        %v8606 = vadd.f32 0.0, %v8605
        %v8607 = vpop.f32.mrb[0].mxu0
        %v8608 = vpop.f32.mrb[0].mxu0
        %v8609 = vadd.f32 0.0, %v8608
        %v8610 = vpop.f32.mrb[0].mxu0
        %8611 = vmatprep.mubr.bf16.mxu0 0
        %8612 = vmatmul.mubr.bf16.gmra.mrb[0].mxu0 %v8513
        %v8613 = vpop.f32.mrb[0].mxu0
        %v8614 = vadd.f32 0.0, %v8613
        %v8615 = vpop.f32.mrb[0].mxu0
        %v8616 = vpop.f32.mrb[0].mxu0
        %v8617 = vadd.f32 0.0, %v8616
        %v8618 = vpop.f32.mrb[0].mxu0
        %8619 = vmatprep.mubr.bf16.mxu0 0
        %8620 = vmatmul.mubr.bf16.gmra.mrb[0].mxu0 %v8514
        %v8621 = vpop.f32.mrb[0].mxu0
        %v8622 = vadd.f32 0.0, %v8621
        %v8623 = vpop.f32.mrb[0].mxu0
        %v8624 = vpop.f32.mrb[0].mxu0
        %v8625 = vadd.f32 0.0, %v8624
        %v8626 = vpop.f32.mrb[0].mxu0
        %8627 = vdwg.mxu0
        %v8628 = vadd.f32 %v7748, %v8598
        %v8629 = vadd.f32 %v7749, %v8601
        %v8630 = vadd.f32 %v7750, %v8606
        %v8631 = vadd.f32 %v7751, %v8609
        %v8632 = vadd.f32 %v7752, %v8614
        %v8633 = vadd.f32 %v7753, %v8617
        %v8634 = vadd.f32 %v7754, %v8622
        %v8635 = vadd.f32 %v7755, %v8625
        %s8636 = scalar_lea.vmem %s18, 2
        %v8637 = vld [vmem:[%s8636] sm:$0x1]
        %v8639 = vlaneseq
        %v8640 = vshrl.u32 %v8639, 7
        %v8641 = vsub.s32 0, %v8640
        %v8642 = vrot.slane %v8637, %v8641
        %v8644 = vadd.f32 %v8628, %v8642
        %v8645 = vadd.f32 %v8629, %v8642
        %v8646 = vadd.f32 %v8630, %v8642
        %v8647 = vadd.f32 %v8631, %v8642
        %v8648 = vadd.f32 %v8632, %v8642
        %v8649 = vadd.f32 %v8633, %v8642
        %v8650 = vadd.f32 %v8634, %v8642
        %v8651 = vadd.f32 %v8635, %v8642
        %v8652 = vld [vmem:[%s19] sm:$0x1]
        %v8653 = vld [vmem:[%s20] sm:$0x1]
        %v8654 = vsel %vm859, %v8644, 0.0
        %8655 = vadd.xlane.f32.xlu0 %v8654
        %v8656 = vpop.xlane.xlu0 %8655
        %v8657 = vsel %vm859, %v8645, 0.0
        %8658 = vadd.xlane.f32.xlu0 %v8657
        %v8659 = vpop.xlane.xlu0 %8658
        %v8660 = vsel %vm859, %v8646, 0.0
        %8661 = vadd.xlane.f32.xlu0 %v8660
        %v8662 = vpop.xlane.xlu0 %8661
        %v8663 = vsel %vm859, %v8647, 0.0
        %8664 = vadd.xlane.f32.xlu0 %v8663
        %v8665 = vpop.xlane.xlu0 %8664
        %v8666 = vsel %vm859, %v8648, 0.0
        %8667 = vadd.xlane.f32.xlu0 %v8666
        %v8668 = vpop.xlane.xlu0 %8667
        %v8669 = vsel %vm859, %v8649, 0.0
        %8670 = vadd.xlane.f32.xlu0 %v8669
        %v8671 = vpop.xlane.xlu0 %8670
        %v8672 = vsel %vm859, %v8650, 0.0
        %8673 = vadd.xlane.f32.xlu0 %v8672
        %v8674 = vpop.xlane.xlu0 %8673
        %v8675 = vsel %vm859, %v8651, 0.0
        %8676 = vadd.xlane.f32.xlu0 %v8675
        %v8677 = vpop.xlane.xlu0 %8676
        %v8678 = vmul.f32 %v8656, %v884
        %v8679 = vmul.f32 %v8659, %v884
        %v8680 = vmul.f32 %v8662, %v884
        %v8681 = vmul.f32 %v8665, %v884
        %v8682 = vmul.f32 %v8668, %v884
        %v8683 = vmul.f32 %v8671, %v884
        %v8684 = vmul.f32 %v8674, %v884
        %v8685 = vmul.f32 %v8677, %v884
        %v8686 = vsub.f32 %v8644, %v8678
        %v8687 = vsub.f32 %v8645, %v8679
        %v8688 = vsub.f32 %v8646, %v8680
        %v8689 = vsub.f32 %v8647, %v8681
        %v8690 = vsub.f32 %v8648, %v8682
        %v8691 = vsub.f32 %v8649, %v8683
        %v8692 = vsub.f32 %v8650, %v8684
        %v8693 = vsub.f32 %v8651, %v8685
        %v8694 = vmul.f32 %v8686, %v8686
        %v8695 = vmul.f32 %v8687, %v8687
        %v8696 = vmul.f32 %v8688, %v8688
        %v8697 = vmul.f32 %v8689, %v8689
        %v8698 = vmul.f32 %v8690, %v8690
        %v8699 = vmul.f32 %v8691, %v8691
        %v8700 = vmul.f32 %v8692, %v8692
        %v8701 = vmul.f32 %v8693, %v8693
        %v8702 = vsel %vm859, %v8694, 0.0
        %8703 = vadd.xlane.f32.xlu0 %v8702
        %v8704 = vpop.xlane.xlu0 %8703
        %v8705 = vsel %vm859, %v8695, 0.0
        %8706 = vadd.xlane.f32.xlu0 %v8705
        %v8707 = vpop.xlane.xlu0 %8706
        %v8708 = vsel %vm859, %v8696, 0.0
        %8709 = vadd.xlane.f32.xlu0 %v8708
        %v8710 = vpop.xlane.xlu0 %8709
        %v8711 = vsel %vm859, %v8697, 0.0
        %8712 = vadd.xlane.f32.xlu0 %v8711
        %v8713 = vpop.xlane.xlu0 %8712
        %v8714 = vsel %vm859, %v8698, 0.0
        %8715 = vadd.xlane.f32.xlu0 %v8714
        %v8716 = vpop.xlane.xlu0 %8715
        %v8717 = vsel %vm859, %v8699, 0.0
        %8718 = vadd.xlane.f32.xlu0 %v8717
        %v8719 = vpop.xlane.xlu0 %8718
        %v8720 = vsel %vm859, %v8700, 0.0
        %8721 = vadd.xlane.f32.xlu0 %v8720
        %v8722 = vpop.xlane.xlu0 %8721
        %v8723 = vsel %vm859, %v8701, 0.0
        %8724 = vadd.xlane.f32.xlu0 %v8723
        %v8725 = vpop.xlane.xlu0 %8724
        %v8726 = vmul.f32 %v8704, %v884
        %v8727 = vmul.f32 %v8707, %v884
        %v8728 = vmul.f32 %v8710, %v884
        %v8729 = vmul.f32 %v8713, %v884
        %v8730 = vmul.f32 %v8716, %v884
        %v8731 = vmul.f32 %v8719, %v884
        %v8732 = vmul.f32 %v8722, %v884
        %v8733 = vmul.f32 %v8725, %v884
        %v8734 = vadd.f32 %v8726, 1e-05
        %v8735 = vadd.f32 %v8727, 1e-05
        %v8736 = vadd.f32 %v8728, 1e-05
        %v8737 = vadd.f32 %v8729, 1e-05
        %v8738 = vadd.f32 %v8730, 1e-05
        %v8739 = vadd.f32 %v8731, 1e-05
        %v8740 = vadd.f32 %v8732, 1e-05
        %v8741 = vadd.f32 %v8733, 1e-05
        %v8742 = vrsqrt.pop %v8734
        %v8743 = vrsqrt.pop %v8735
        %v8744 = vrsqrt.pop %v8736
        %v8745 = vrsqrt.pop %v8737
        %v8746 = vrsqrt.pop %v8738
        %v8747 = vrsqrt.pop %v8739
        %v8748 = vrsqrt.pop %v8740
        %v8749 = vrsqrt.pop %v8741
        %v8750 = vmul.f32 %v8686, %v8742
        %v8751 = vmul.f32 %v8687, %v8743
        %v8752 = vmul.f32 %v8688, %v8744
        %v8753 = vmul.f32 %v8689, %v8745
        %v8754 = vmul.f32 %v8690, %v8746
        %v8755 = vmul.f32 %v8691, %v8747
        %v8756 = vmul.f32 %v8692, %v8748
        %v8757 = vmul.f32 %v8693, %v8749
        %v8759 = vlaneseq
        %v8760 = vshrl.u32 %v8759, 7
        %v8761 = vsub.s32 0, %v8760
        %v8762 = vrot.slane %v8652, %v8761
        %v8764 = vmul.f32 %v8750, %v8762
        %v8765 = vmul.f32 %v8751, %v8762
        %v8766 = vmul.f32 %v8752, %v8762
        %v8767 = vmul.f32 %v8753, %v8762
        %v8768 = vmul.f32 %v8754, %v8762
        %v8769 = vmul.f32 %v8755, %v8762
        %v8770 = vmul.f32 %v8756, %v8762
        %v8771 = vmul.f32 %v8757, %v8762
        %v8773 = vlaneseq
        %v8774 = vshrl.u32 %v8773, 7
        %v8775 = vsub.s32 0, %v8774
        %v8776 = vrot.slane %v8653, %v8775
        %v8778 = vadd.f32 %v8764, %v8776
        %v8779 = vadd.f32 %v8765, %v8776
        %v8780 = vadd.f32 %v8766, %v8776
        %v8781 = vadd.f32 %v8767, %v8776
        %v8782 = vadd.f32 %v8768, %v8776
        %v8783 = vadd.f32 %v8769, %v8776
        %v8784 = vadd.f32 %v8770, %v8776
        %v8785 = vadd.f32 %v8771, %v8776
        %8786 = vst.msk [vmem:[%s649] sm:$0xff] %vm859, %v8778
        %8787 = vst.msk [vmem:[%s649 + $0x8] sm:$0xff] %vm859, %v8779
        %8788 = vst.msk [vmem:[%s649 + $0x10] sm:$0xff] %vm859, %v8780
        %8789 = vst.msk [vmem:[%s649 + $0x18] sm:$0xff] %vm859, %v8781
        %8790 = vst.msk [vmem:[%s649 + $0x20] sm:$0xff] %vm859, %v8782
        %8791 = vst.msk [vmem:[%s649 + $0x28] sm:$0xff] %vm859, %v8783
        %8792 = vst.msk [vmem:[%s649 + $0x30] sm:$0xff] %vm859, %v8784
        %8793 = vst.msk [vmem:[%s649 + $0x38] sm:$0xff] %vm859, %v8785
        %s8794 = sand.u32 %s489, 1
        %s8795 = scalar_lea.sflag [#allocation4], %s8794
        %s8796 = sand.u32 %s489, 1
        %s8797 = smul.addr %s8796, 64
        %s8798 = scalar_lea.vmem [#allocation3], %s8797
        // Predicated region
        $region105: #{_lambda_.1} parent=103 // pred_check
          %p8799 = pneg %p499
        $region106: #{_lambda_.1} parent=103 // pred_check_branch
          %8801 = sbr.rel (%p8799) target = $region108
        $region107: #{_lambda_.1} parent=103 // pred_region
          %s8803 = ssub.s32 1024, 1024
          %8804 = vsyncadd %s8795, %s8803
          %s8805 = smul.addr %s35, 8
          %s8806 = smul.addr %s8805, 128
          %s8807 = scalar_lea.hbm %s21, %s8806
          %s8808 = sshll.u32 %s8798, 4
          %s8809 = int_to_ptr.vmem [resolvable:$true] %s8808
          %8814 = dma.vmem_to_hbm [thread:$0]  %s8809, 1024, %s8807, %s8795, 128, 128, 8
        $region108: #{_lambda_.1} parent=103 // pred_fallthru
          _
      $region104: #{_lambda_.1} parent=5 // pred_fallthru
        _
      %p8815 = scmp.le.s32.totalorder 2, %s30
      // Predicated region
      $region109: #{_lambda_.1} parent=5 // pred_check
        %p8816 = pneg %p8815
      $region110: #{_lambda_.1} parent=5 // pred_check_branch
        %8818 = sbr.rel (%p8816) target = $region112
      $region111: #{_lambda_.1} parent=5 // pred_region
        %s8819 = ssub.s32 %s30, 2
        // Predicated region
        $region113: #{_lambda_.1} parent=111 // pred_check
          %p8820 = pneg %p505
        $region114: #{_lambda_.1} parent=111 // pred_check_branch
          %8822 = sbr.rel (%p8820) target = $region116
        $region115: #{_lambda_.1} parent=111 // pred_region
          %s8823 = sand.u32 %s490, 1
          %s8824 = scalar_lea.sflag [#allocation4], %s8823
          %s8825 = sand.u32 %s490, 1
          %s8826 = smul.addr %s8825, 64
          %s8827 = scalar_lea.vmem [#allocation3], %s8826
          %8828 = dma.done %s8824, 1024
        $region116: #{_lambda_.1} parent=111 // pred_fallthru
          _
      $region112: #{_lambda_.1} parent=5 // pred_fallthru
        _
    $region6: #{_lambda_.1} parent=1 // loop_footer
      %s34 = sadd.s32 1, %s30
    $region7: #{_lambda_.1} parent=1 // loop_footer_branch
      %29 = sbr.rel target = $region3
    $region8: #{_lambda_.1} parent=1 // loop_exit
      _
    %8829 = vsyncpa [#allocation4], 1
    %s8830 = scalar_lea.sflag [#allocation4], 1
    %8831 = vsyncpa %s8830, 1

</llo_original>
